<compile_context>
chip_gen: v5e
topology: v5e:2x2
jax: 0.10.0
libtpu: 0.0.40
codegen_flags: <defaults>
</compile_context>

<pallas_src>
import jax
import jax.numpy as jnp
from jax import lax
from jax.experimental import pallas as pl
from jax.experimental.pallas import tpu as pltpu


# ----------------------------------------------------------------------------- helpers

class _Cursor:
    """Trace-time counter used to consume packed-slab rows in a fixed order."""

    def __init__(self):
        self.i = 0

    def take(self, n=1):
        i = self.i
        self.i += n
        return i


def _rep_spec(shape):
    """BlockSpec for a packed weight slab that is fully resident for every grid step."""
    n = len(shape)
    return pl.BlockSpec(tuple(int(d) for d in shape), lambda *_, _n=n: (0,) * _n)


def _pick_block_b(B, max_bb=16):
    """Largest per-step sample block that divides B while keeping >= 2 grid steps."""
    best = 1
    for d in range(1, min(B, max_bb) + 1):
        if B % d == 0 and B // d >= 2:
            best = d
    return best


# ----------------------------------------------------------------------------- fused kernel

def _make_smfe_kernel(*, N, C, heads, Bb, depths, out_lanes):
    hd = C // heads
    scale = float(hd) ** -0.5
    C2, C3 = 2 * C, 3 * C
    M = Bb * N
    f32 = jnp.float32

    def kernel(x_ref, vecs_ref, sq_ref, wc_ref, w1_ref, w2_ref, pos_ref,
               embw_ref, embb_ref, o_ref):
        x = x_ref[...].reshape(M, C)                          # (Bb*N, C); N % 8 == 0

        # Head-expansion mask built in-kernel (no DMA): row h*N+i is live only on the
        # hd channels belonging to head h.
        cc = lax.broadcasted_iota(jnp.int32, (N, C), 1)
        hmask = jnp.concatenate(
            [jnp.logical_and(cc >= h * hd, cc < (h + 1) * hd).astype(f32)
             for h in range(heads)], axis=0)                  # (heads*N, C)

        vcur, scur, bcur = _Cursor(), _Cursor(), _Cursor()

        def vec(width):
            i = vcur.take()
            return vecs_ref[i:i + 1, 0:width]                 # (1, width), static slice

        def layer_norm(y, g, b, eps):
            mu = jnp.mean(y, axis=-1, keepdims=True)
            yc = y - mu
            var = jnp.mean(yc * yc, axis=-1, keepdims=True)
            return yc * lax.rsqrt(var + eps) * g + b

        def gelu_tanh(h):
            # TODO(synk): reference nn.GELU is exact-erf; tanh approximation used here.
            c0 = 0.7978845608028654                           # sqrt(2/pi)
            return 0.5 * h * (1.0 + jnp.tanh(c0 * (h + 0.044715 * h * h * h)))

        def attention(z, bi, s0):
            # Fused center projection: [q_center | k | v] in ONE (C, 3C) matmul.
            b_qkv = vec(C3)
            qkv = jnp.dot(z, wc_ref[bi], preferred_element_type=f32) + b_qkv  # (M, 3C)
            q = qkv[:, 0:C]
            k = qkv[:, C:C2]
            v = qkv[:, C2:C3]

            # Conv1d(C, C, k=3, padding=1) over tokens: the +-1 taps are two extra
            # accumulated matmuls on per-sample token-shifted inputs (zero padded at
            # sample boundaries) -- no lane-misaligned (N, 3C) window build.
            z3 = z.reshape(Bb, N, C)
            zpad = jnp.zeros((Bb, 1, C), f32)
            z_prev = jnp.concatenate([zpad, z3[:, :N - 1, :]], axis=1).reshape(M, C)
            z_next = jnp.concatenate([z3[:, 1:, :], zpad], axis=1).reshape(M, C)
            q = (q + jnp.dot(z_prev, sq_ref[s0], preferred_element_type=f32)
                   + jnp.dot(z_next, sq_ref[s0 + 1], preferred_element_type=f32))

            # Per-sample multi-head attention; scores kept lane-dense as
            # (N_k, heads*N_q) = (16, 144) so one softmax normalizes every head.
            q3 = q.reshape(Bb, N, C)
            k3 = k.reshape(Bb, N, C)
            v3 = v.reshape(Bb, N, C)
            ctx_parts = []
            for sb in range(Bb):
                q_exp = jnp.concatenate([q3[sb]] * heads, axis=0) * hmask  # (heads*N, C)
                s = lax.dot_general(k3[sb], q_exp, (((1,), (1,)), ((), ())),
                                    preferred_element_type=f32) * scale    # (N, heads*N)
                s = s - jnp.max(s, axis=0, keepdims=True)
                e = jnp.exp(s)
                a = e * pl.reciprocal(jnp.sum(e, axis=0, keepdims=True), approx=True)
                ce = jnp.dot(a.T, v3[sb], preferred_element_type=f32) * hmask  # (heads*N, C)
                ctx_b = ce[0:N, :]
                for h in range(1, heads):                     # aligned sublane slices
                    ctx_b = ctx_b + ce[h * N:(h + 1) * N, :]
                ctx_parts.append(ctx_b)
            ctx = jnp.concatenate(ctx_parts, axis=0)                        # (M, C)

            bp = vec(C)
            # reference: out = proj(q - attn_out)
            return jnp.dot(q - ctx, sq_ref[s0 + 2], preferred_element_type=f32) + bp

        def mlp(z, bi):
            b1 = vec(C2)
            h = jnp.dot(z, w1_ref[bi], preferred_element_type=f32) + b1
            h = gelu_tanh(h)
            b2 = vec(C)
            return jnp.dot(h, w2_ref[bi], preferred_element_type=f32) + b2

        # ---- three strided transformer stages, fully VMEM-resident ------------------
        y = x
        stage_out = []
        for st, depth in enumerate(depths):
            g_out = vec(C)
            b_out = vec(C)
            z = layer_norm(y, g_out, b_out, 1e-5)             # SMFE norm_i (default eps)
            z = (z.reshape(Bb, N, C) + pos_ref[st][None]).reshape(M, C)  # pos_drop = id
            for _ in range(depth):
                l1g = vec(C)
                l1b = vec(C)
                s0 = scur.take(3)
                bi = bcur.take()
                z = z + attention(layer_norm(z, l1g, l1b, 1e-6), bi, s0)
                l2g = vec(C)
                l2b = vec(C)
                z = z + mlp(layer_norm(z, l2g, l2b, 1e-6), bi)
            lg = vec(C)
            lb = vec(C)
            y = y + layer_norm(z, lg, lb, 1e-6)               # residual around encoder
            stage_out.append(y.reshape(Bb, N, C))

        # ---- embeddings: BN-folded 1x1 convs as one block-diagonal matmul per sample,
        #      emitted as a lane-dense (F, out_lanes) slab [e1 | e2 | e3 | pad] ---------
        ycat = jnp.concatenate(stage_out, axis=1)             # (Bb, 3N, C), 16-aligned
        embw = embw_ref[...]                                  # (3N, out_lanes)
        embb = embb_ref[...]                                  # (1, out_lanes)
        for sb in range(Bb):
            emb = jnp.dot(ycat[sb].T, embw, preferred_element_type=f32) + embb  # (C, 128)
            o_ref[sb] = jnp.maximum(emb, 0.0)
            # TODO(synk): Dropout(0.25) after ReLU is train-only; identity in eval mode.

    return kernel


# ----------------------------------------------------------------------------- param packing

def _pack_params(p, N, C, CH, out_lanes):
    """Pack the ~70 tiny parameter arrays into a handful of resident slabs."""
    C2, C3 = 2 * C, 3 * C
    f32 = jnp.float32

    vec_rows, sq, wc, w1s, w2s, pos = [], [], [], [], [], []

    def add_vec(v):
        v = jnp.asarray(v, f32).reshape(1, -1)
        if v.shape[1] < C3:
            v = jnp.pad(v, ((0, 0), (0, C3 - v.shape[1])))
        vec_rows.append(v)

    for n_key, t_key in (("n1", "t1"), ("n2", "t2"), ("n3", "t3")):
        add_vec(p[n_key + "_g"])
        add_vec(p[n_key + "_b"])
        t = p[t_key]
        pos.append(jnp.asarray(t["pos_embed"], f32).reshape(N, C))
        for blk in t["blocks"]:
            add_vec(blk["ln1_g"])
            add_vec(blk["ln1_b"])
            add_vec(jnp.concatenate([jnp.reshape(blk["bq"], (1, C)),
                                     jnp.reshape(blk["bk"], (1, C)),
                                     jnp.reshape(blk["bv"], (1, C))], axis=1))
            add_vec(blk["bp"])
            add_vec(blk["ln2_g"])
            add_vec(blk["ln2_b"])
            add_vec(blk["b1"])
            add_vec(blk["b2"])
            sq += [blk["wq0"], blk["wq2"], blk["wp"]]                  # prev / next / proj
            wc.append(jnp.concatenate([blk["wq1"], blk["wk"], blk["wv"]], axis=1))
            w1s.append(blk["w1"])
            w2s.append(blk["w2"])
        add_vec(t["ln_g"])
        add_vec(t["ln_b"])

    vecs = jnp.concatenate(vec_rows, axis=0)                           # (n_vec, 3C)
    sq_stack = jnp.stack([jnp.asarray(a, f32) for a in sq], axis=0)    # (3*nblk, C, C)
    wc_stack = jnp.stack(wc, axis=0)                                   # (nblk, C, 3C)
    w1_stack = jnp.stack([jnp.asarray(a, f32) for a in w1s], axis=0)   # (nblk, C, 2C)
    w2_stack = jnp.stack([jnp.asarray(a, f32) for a in w2s], axis=0)   # (nblk, 2C, C)
    pos_stack = jnp.stack(pos, axis=0)                                 # (3, N, C)

    # Embeddings: eval-mode BN folded into the 1x1 conv; all three packed into one
    # block-diagonal (3N, out_lanes) weight so a single matmul per sample produces the
    # lane-dense [e1 | e2 | e3 | pad] output slab.
    embw = jnp.zeros((3 * N, out_lanes), f32)
    embb = jnp.zeros((1, out_lanes), f32)
    for i, e_key in enumerate(("e1", "e2", "e3")):
        e = p[e_key]
        bn_scale = e["bn_g"] * lax.rsqrt(e["bn_rv"] + 1e-5)            # (1, CH)
        w_eff = e["w"] * bn_scale.reshape(CH, 1)                       # (CH, N)
        b_eff = (e["cb"] - e["bn_rm"]) * bn_scale + e["bn_b"]          # (1, CH)
        embw = embw.at[i * N:(i + 1) * N, i * CH:(i + 1) * CH].set(w_eff.T)
        embb = embb.at[:, i * CH:(i + 1) * CH].set(b_eff)

    return (vecs, sq_stack, wc_stack, w1_stack, w2_stack, pos_stack, embw, embb)


# ----------------------------------------------------------------------------- wrapper

def smfe_forward(x, p, num_heads, block_b=None):
    B, N, C = x.shape
    CH = p["e1"]["w"].shape[0]
    depths = tuple(len(p[t]["blocks"]) for t in ("t1", "t2", "t3"))
    out_lanes = ((3 * CH + 127) // 128) * 128

    if block_b is None:
        block_b = _pick_block_b(B)
    assert B % block_b == 0, "batch must be divisible by the per-step sample block"

    slabs = _pack_params(p, N, C, CH, out_lanes)
    kernel = _make_smfe_kernel(N=N, C=C, heads=num_heads, Bb=block_b,
                               depths=depths, out_lanes=out_lanes)

    in_specs = ([pl.BlockSpec((block_b, N, C), lambda i: (i, 0, 0))]
                + [_rep_spec(a.shape) for a in slabs])

    out = pl.pallas_call(
        kernel,
        out_shape=jax.ShapeDtypeStruct((B, C, out_lanes), jnp.float32),
        grid=(B // block_b,),
        in_specs=in_specs,
        out_specs=pl.BlockSpec((block_b, C, out_lanes), lambda i: (i, 0, 0)),
        compiler_params=pltpu.CompilerParams(dimension_semantics=("parallel",)),
    )(x, *slabs)

    return out[:, :, 0:CH], out[:, :, CH:2 * CH], out[:, :, 2 * CH:3 * CH]


# ----------------------------------------------------------------------------- params

def _uniform(key, shape, bound):
    return jax.random.uniform(key, shape, jnp.float32, -bound, bound)


def init_block(key, c, hidden):
    ks = jax.random.split(key, 14)
    conv_b = (1.0 / (c * 3)) ** 0.5      # Conv1d(C, C, 3) default init bound
    lin_c = (1.0 / c) ** 0.5
    lin_h = (1.0 / hidden) ** 0.5
    return dict(
        ln1_g=jnp.ones((1, c), jnp.float32), ln1_b=jnp.zeros((1, c), jnp.float32),
        # Conv1d(C, C, 3, padding=1) expressed as three (C_in, C_out) right-multipliers
        # applied to the previous / centre / next token.
        wq0=_uniform(ks[0], (c, c), conv_b),
        wq1=_uniform(ks[1], (c, c), conv_b),
        wq2=_uniform(ks[2], (c, c), conv_b),
        bq=_uniform(ks[3], (1, c), conv_b),
        wk=_uniform(ks[4], (c, c), lin_c), bk=_uniform(ks[5], (1, c), lin_c),
        wv=_uniform(ks[6], (c, c), lin_c), bv=_uniform(ks[7], (1, c), lin_c),
        wp=_uniform(ks[8], (c, c), lin_c), bp=_uniform(ks[9], (1, c), lin_c),
        ln2_g=jnp.ones((1, c), jnp.float32), ln2_b=jnp.zeros((1, c), jnp.float32),
        w1=_uniform(ks[10], (c, hidden), lin_c), b1=_uniform(ks[11], (1, hidden), lin_c),
        w2=_uniform(ks[12], (hidden, c), lin_h), b2=_uniform(ks[13], (1, c), lin_h),
    )


def init_transformer(key, depth, n_tokens, c, hidden):
    return dict(
        pos_embed=jnp.zeros((1, n_tokens, c), jnp.float32),   # torch init: zeros
        blocks=[init_block(jax.random.fold_in(key, i), c, hidden) for i in range(depth)],
        ln_g=jnp.ones((1, c), jnp.float32), ln_b=jnp.zeros((1, c), jnp.float32),
    )


def init_embedding(key, in_ch, out_ch):
    k1, k2 = jax.random.split(key)
    b = (1.0 / in_ch) ** 0.5
    return dict(
        w=_uniform(k1, (out_ch, in_ch), b),                   # Conv1d(in_ch, out_ch, 1) weight
        cb=_uniform(k2, (1, out_ch), b),
        bn_g=jnp.ones((1, out_ch), jnp.float32), bn_b=jnp.zeros((1, out_ch), jnp.float32),
        bn_rm=jnp.zeros((1, out_ch), jnp.float32), bn_rv=jnp.ones((1, out_ch), jnp.float32),
    )


def init_smfe(key, n_tokens, frames, channel, depths):
    ks = jax.random.split(key, 6)
    c = frames
    hidden = 2 * frames
    ones, zeros = jnp.ones((1, c), jnp.float32), jnp.zeros((1, c), jnp.float32)
    return dict(
        n1_g=ones, n1_b=zeros, n2_g=ones, n2_b=zeros, n3_g=ones, n3_b=zeros,
        t1=init_transformer(ks[0], depths[0], n_tokens, c, hidden),
        t2=init_transformer(ks[1], depths[1], n_tokens, c, hidden),
        t3=init_transformer(ks[2], depths[2], n_tokens, c, hidden),
        e1=init_embedding(ks[3], n_tokens, channel),
        e2=init_embedding(ks[4], n_tokens, channel),
        # embedding_3 uses 2*out_joints input channels; here out_joints == n_joints
        e3=init_embedding(ks[5], n_tokens, channel),
    )


# ----------------------------------------------------------------------------- main

if __name__ == "__main__":
    # args: frames=27 (<=27 branch), n_joints=out_joints=8, channel=32, smfe=[1,1,1], h=9
    B = 8                   # batched 4-per-step -> grid=(2,), keeps both v7x TCs busy
    n_joints = 8
    frames = 27             # embed dim; divisible by 9 heads -> head_dim = 3
    channel = 32
    num_heads = 9
    N = 2 * n_joints        # 16 tokens

    key = jax.random.PRNGKey(0)
    kx, kp = jax.random.split(key)
    x = jax.random.normal(kx, (B, N, frames), jnp.float32)
    params = init_smfe(kp, N, frames, channel, depths=(1, 1, 1))

    fwd = jax.jit(lambda xx, pp: smfe_forward(xx, pp, num_heads=num_heads))
    y1, y2, y3 = fwd(x, params)
    jax.block_until_ready((y1, y2, y3))

    assert y1.shape == (B, frames, channel)
    assert y2.shape == (B, frames, channel)
    assert y3.shape == (B, frames, channel)
    assert all(bool(jnp.all(jnp.isfinite(y))) for y in (y1, y2, y3))
    print("KERNEL_OK")
</pallas_src>

<mosaic_0001>
module attributes {stable_mosaic.version = 11 : i64} {
  func.func @kernel(%arg0: i32, %arg1: memref<4x16x27xf32, #tpu.memory_space<vmem>>, %arg2: memref<36x81xf32, #tpu.memory_space<vmem>>, %arg3: memref<9x27x27xf32, #tpu.memory_space<vmem>>, %arg4: memref<3x27x81xf32, #tpu.memory_space<vmem>>, %arg5: memref<3x27x54xf32, #tpu.memory_space<vmem>>, %arg6: memref<3x54x27xf32, #tpu.memory_space<vmem>>, %arg7: memref<3x16x27xf32, #tpu.memory_space<vmem>>, %arg8: memref<48x128xf32, #tpu.memory_space<vmem>>, %arg9: memref<1x128xf32, #tpu.memory_space<vmem>>, %arg10: memref<4x27x128xf32, #tpu.memory_space<vmem>>) attributes {dimension_semantics = [#tpu.dimension_semantics<parallel>], iteration_bounds = array<i64: 2>, scalar_prefetch = 0 : i64, scratch_operands = 0 : i64, tpu.core_type = #tpu.core_type<tc>, window_params = [{transform_indices = @transform_0, window_bounds = array<i64: 4, 16, 27>}, {pipeline_mode = #tpu.pipeline_mode<synchronous>, transform_indices = @transform_1, window_bounds = array<i64: 36, 81>}, {pipeline_mode = #tpu.pipeline_mode<synchronous>, transform_indices = @transform_2, window_bounds = array<i64: 9, 27, 27>}, {pipeline_mode = #tpu.pipeline_mode<synchronous>, transform_indices = @transform_3, window_bounds = array<i64: 3, 27, 81>}, {pipeline_mode = #tpu.pipeline_mode<synchronous>, transform_indices = @transform_4, window_bounds = array<i64: 3, 27, 54>}, {pipeline_mode = #tpu.pipeline_mode<synchronous>, transform_indices = @transform_5, window_bounds = array<i64: 3, 54, 27>}, {pipeline_mode = #tpu.pipeline_mode<synchronous>, transform_indices = @transform_6, window_bounds = array<i64: 3, 16, 27>}, {pipeline_mode = #tpu.pipeline_mode<synchronous>, transform_indices = @transform_7, window_bounds = array<i64: 48, 128>}, {pipeline_mode = #tpu.pipeline_mode<synchronous>, transform_indices = @transform_8, window_bounds = array<i64: 1, 128>}, {transform_indices = @transform_9, window_bounds = array<i64: 4, 27, 128>}]} {
    %c0 = arith.constant 0 : index
    %c0_0 = arith.constant 0 : index
    %c0_1 = arith.constant 0 : index
    %0 = vector.load %arg1[%c0, %c0_0, %c0_1] : memref<4x16x27xf32, #tpu.memory_space<vmem>>, vector<4x16x27xf32>
    %1 = vector.shape_cast %0 : vector<4x16x27xf32> to vector<64x27xf32>
    %2 = tpu.iota {dimensions = array<i32: 1>} : vector<16x27xi32>
    %c0_i32 = arith.constant 0 : i32
    %3 = vector.broadcast %c0_i32 : i32 to vector<16x27xi32>
    %4 = arith.cmpi sge, %2, %3 : vector<16x27xi32>
    %c3_i32 = arith.constant 3 : i32
    %5 = vector.broadcast %c3_i32 : i32 to vector<16x27xi32>
    %6 = arith.cmpi slt, %2, %5 : vector<16x27xi32>
    %7 = arith.andi %4, %6 : vector<16x27xi1>
    %8 = arith.extui %7 : vector<16x27xi1> to vector<16x27xi32>
    %9 = arith.sitofp %8 : vector<16x27xi32> to vector<16x27xf32>
    %c3_i32_2 = arith.constant 3 : i32
    %10 = vector.broadcast %c3_i32_2 : i32 to vector<16x27xi32>
    %11 = arith.cmpi sge, %2, %10 : vector<16x27xi32>
    %c6_i32 = arith.constant 6 : i32
    %12 = vector.broadcast %c6_i32 : i32 to vector<16x27xi32>
    %13 = arith.cmpi slt, %2, %12 : vector<16x27xi32>
    %14 = arith.andi %11, %13 : vector<16x27xi1>
    %15 = arith.extui %14 : vector<16x27xi1> to vector<16x27xi32>
    %16 = arith.sitofp %15 : vector<16x27xi32> to vector<16x27xf32>
    %c6_i32_3 = arith.constant 6 : i32
    %17 = vector.broadcast %c6_i32_3 : i32 to vector<16x27xi32>
    %18 = arith.cmpi sge, %2, %17 : vector<16x27xi32>
    %c9_i32 = arith.constant 9 : i32
    %19 = vector.broadcast %c9_i32 : i32 to vector<16x27xi32>
    %20 = arith.cmpi slt, %2, %19 : vector<16x27xi32>
    %21 = arith.andi %18, %20 : vector<16x27xi1>
    %22 = arith.extui %21 : vector<16x27xi1> to vector<16x27xi32>
    %23 = arith.sitofp %22 : vector<16x27xi32> to vector<16x27xf32>
    %c9_i32_4 = arith.constant 9 : i32
    %24 = vector.broadcast %c9_i32_4 : i32 to vector<16x27xi32>
    %25 = arith.cmpi sge, %2, %24 : vector<16x27xi32>
    %c12_i32 = arith.constant 12 : i32
    %26 = vector.broadcast %c12_i32 : i32 to vector<16x27xi32>
    %27 = arith.cmpi slt, %2, %26 : vector<16x27xi32>
    %28 = arith.andi %25, %27 : vector<16x27xi1>
    %29 = arith.extui %28 : vector<16x27xi1> to vector<16x27xi32>
    %30 = arith.sitofp %29 : vector<16x27xi32> to vector<16x27xf32>
    %c12_i32_5 = arith.constant 12 : i32
    %31 = vector.broadcast %c12_i32_5 : i32 to vector<16x27xi32>
    %32 = arith.cmpi sge, %2, %31 : vector<16x27xi32>
    %c15_i32 = arith.constant 15 : i32
    %33 = vector.broadcast %c15_i32 : i32 to vector<16x27xi32>
    %34 = arith.cmpi slt, %2, %33 : vector<16x27xi32>
    %35 = arith.andi %32, %34 : vector<16x27xi1>
    %36 = arith.extui %35 : vector<16x27xi1> to vector<16x27xi32>
    %37 = arith.sitofp %36 : vector<16x27xi32> to vector<16x27xf32>
    %c15_i32_6 = arith.constant 15 : i32
    %38 = vector.broadcast %c15_i32_6 : i32 to vector<16x27xi32>
    %39 = arith.cmpi sge, %2, %38 : vector<16x27xi32>
    %c18_i32 = arith.constant 18 : i32
    %40 = vector.broadcast %c18_i32 : i32 to vector<16x27xi32>
    %41 = arith.cmpi slt, %2, %40 : vector<16x27xi32>
    %42 = arith.andi %39, %41 : vector<16x27xi1>
    %43 = arith.extui %42 : vector<16x27xi1> to vector<16x27xi32>
    %44 = arith.sitofp %43 : vector<16x27xi32> to vector<16x27xf32>
    %c18_i32_7 = arith.constant 18 : i32
    %45 = vector.broadcast %c18_i32_7 : i32 to vector<16x27xi32>
    %46 = arith.cmpi sge, %2, %45 : vector<16x27xi32>
    %c21_i32 = arith.constant 21 : i32
    %47 = vector.broadcast %c21_i32 : i32 to vector<16x27xi32>
    %48 = arith.cmpi slt, %2, %47 : vector<16x27xi32>
    %49 = arith.andi %46, %48 : vector<16x27xi1>
    %50 = arith.extui %49 : vector<16x27xi1> to vector<16x27xi32>
    %51 = arith.sitofp %50 : vector<16x27xi32> to vector<16x27xf32>
    %c21_i32_8 = arith.constant 21 : i32
    %52 = vector.broadcast %c21_i32_8 : i32 to vector<16x27xi32>
    %53 = arith.cmpi sge, %2, %52 : vector<16x27xi32>
    %c24_i32 = arith.constant 24 : i32
    %54 = vector.broadcast %c24_i32 : i32 to vector<16x27xi32>
    %55 = arith.cmpi slt, %2, %54 : vector<16x27xi32>
    %56 = arith.andi %53, %55 : vector<16x27xi1>
    %57 = arith.extui %56 : vector<16x27xi1> to vector<16x27xi32>
    %58 = arith.sitofp %57 : vector<16x27xi32> to vector<16x27xf32>
    %c24_i32_9 = arith.constant 24 : i32
    %59 = vector.broadcast %c24_i32_9 : i32 to vector<16x27xi32>
    %60 = arith.cmpi sge, %2, %59 : vector<16x27xi32>
    %c27_i32 = arith.constant 27 : i32
    %61 = vector.broadcast %c27_i32 : i32 to vector<16x27xi32>
    %62 = arith.cmpi slt, %2, %61 : vector<16x27xi32>
    %63 = arith.andi %60, %62 : vector<16x27xi1>
    %64 = arith.extui %63 : vector<16x27xi1> to vector<16x27xi32>
    %65 = arith.sitofp %64 : vector<16x27xi32> to vector<16x27xf32>
    %66 = tpu.concatenate %9, %16, %23, %30, %37, %44, %51, %58, %65 in 0 : vector<16x27xf32>, vector<16x27xf32>, vector<16x27xf32>, vector<16x27xf32>, vector<16x27xf32>, vector<16x27xf32>, vector<16x27xf32>, vector<16x27xf32>, vector<16x27xf32> -> vector<144x27xf32>
    %c0_10 = arith.constant 0 : index
    %c0_11 = arith.constant 0 : index
    %67 = vector.load %arg2[%c0_10, %c0_11] : memref<36x81xf32, #tpu.memory_space<vmem>>, vector<1x27xf32>
    %c1 = arith.constant 1 : index
    %c0_12 = arith.constant 0 : index
    %68 = vector.load %arg2[%c1, %c0_12] : memref<36x81xf32, #tpu.memory_space<vmem>>, vector<1x27xf32>
    %cst = arith.constant dense<0.000000e+00> : vector<64xf32>
    %69 = vector.multi_reduction <add>, %1, %cst [1] : vector<64x27xf32> to vector<64xf32>
    %70 = vector.shape_cast %69 : vector<64xf32> to vector<64x1xf32>
    %cst_13 = arith.constant 2.700000e+01 : f32
    %71 = vector.broadcast %cst_13 : f32 to vector<64x1xf32>
    %72 = arith.divf %70, %71 : vector<64x1xf32>
    %73 = vector.broadcast %72 : vector<64x1xf32> to vector<64x27xf32>
    %74 = arith.subf %1, %73 : vector<64x27xf32>
    %75 = arith.mulf %74, %74 : vector<64x27xf32>
    %cst_14 = arith.constant dense<0.000000e+00> : vector<64xf32>
    %76 = vector.multi_reduction <add>, %75, %cst_14 [1] : vector<64x27xf32> to vector<64xf32>
    %77 = vector.shape_cast %76 : vector<64xf32> to vector<64x1xf32>
    %cst_15 = arith.constant 2.700000e+01 : f32
    %78 = vector.broadcast %cst_15 : f32 to vector<64x1xf32>
    %79 = arith.divf %77, %78 : vector<64x1xf32>
    %cst_16 = arith.constant 9.99999974E-6 : f32
    %80 = vector.broadcast %cst_16 : f32 to vector<64x1xf32>
    %81 = arith.addf %79, %80 : vector<64x1xf32>
    %82 = math.rsqrt %81 : vector<64x1xf32>
    %83 = vector.broadcast %82 : vector<64x1xf32> to vector<64x27xf32>
    %84 = arith.mulf %74, %83 : vector<64x27xf32>
    %85 = vector.broadcast %67 : vector<1x27xf32> to vector<64x27xf32>
    %86 = arith.mulf %84, %85 : vector<64x27xf32>
    %87 = vector.broadcast %68 : vector<1x27xf32> to vector<64x27xf32>
    %88 = arith.addf %86, %87 : vector<64x27xf32>
    %89 = vector.shape_cast %88 : vector<64x27xf32> to vector<4x16x27xf32>
    %c0_17 = arith.constant 0 : index
    %c0_18 = arith.constant 0 : index
    %c0_19 = arith.constant 0 : index
    %90 = vector.load %arg7[%c0_17, %c0_18, %c0_19] : memref<3x16x27xf32, #tpu.memory_space<vmem>>, vector<1x16x27xf32>
    %91 = vector.shape_cast %90 : vector<1x16x27xf32> to vector<16x27xf32>
    %92 = vector.shape_cast %91 : vector<16x27xf32> to vector<1x16x27xf32>
    %93 = vector.broadcast %92 : vector<1x16x27xf32> to vector<4x16x27xf32>
    %94 = arith.addf %89, %93 : vector<4x16x27xf32>
    %95 = vector.shape_cast %94 : vector<4x16x27xf32> to vector<64x27xf32>
    %c2 = arith.constant 2 : index
    %c0_20 = arith.constant 0 : index
    %96 = vector.load %arg2[%c2, %c0_20] : memref<36x81xf32, #tpu.memory_space<vmem>>, vector<1x27xf32>
    %c3 = arith.constant 3 : index
    %c0_21 = arith.constant 0 : index
    %97 = vector.load %arg2[%c3, %c0_21] : memref<36x81xf32, #tpu.memory_space<vmem>>, vector<1x27xf32>
    %cst_22 = arith.constant dense<0.000000e+00> : vector<64xf32>
    %98 = vector.multi_reduction <add>, %95, %cst_22 [1] : vector<64x27xf32> to vector<64xf32>
    %99 = vector.shape_cast %98 : vector<64xf32> to vector<64x1xf32>
    %cst_23 = arith.constant 2.700000e+01 : f32
    %100 = vector.broadcast %cst_23 : f32 to vector<64x1xf32>
    %101 = arith.divf %99, %100 : vector<64x1xf32>
    %102 = vector.broadcast %101 : vector<64x1xf32> to vector<64x27xf32>
    %103 = arith.subf %95, %102 : vector<64x27xf32>
    %104 = arith.mulf %103, %103 : vector<64x27xf32>
    %cst_24 = arith.constant dense<0.000000e+00> : vector<64xf32>
    %105 = vector.multi_reduction <add>, %104, %cst_24 [1] : vector<64x27xf32> to vector<64xf32>
    %106 = vector.shape_cast %105 : vector<64xf32> to vector<64x1xf32>
    %cst_25 = arith.constant 2.700000e+01 : f32
    %107 = vector.broadcast %cst_25 : f32 to vector<64x1xf32>
    %108 = arith.divf %106, %107 : vector<64x1xf32>
    %cst_26 = arith.constant 9.99999997E-7 : f32
    %109 = vector.broadcast %cst_26 : f32 to vector<64x1xf32>
    %110 = arith.addf %108, %109 : vector<64x1xf32>
    %111 = math.rsqrt %110 : vector<64x1xf32>
    %112 = vector.broadcast %111 : vector<64x1xf32> to vector<64x27xf32>
    %113 = arith.mulf %103, %112 : vector<64x27xf32>
    %114 = vector.broadcast %96 : vector<1x27xf32> to vector<64x27xf32>
    %115 = arith.mulf %113, %114 : vector<64x27xf32>
    %116 = vector.broadcast %97 : vector<1x27xf32> to vector<64x27xf32>
    %117 = arith.addf %115, %116 : vector<64x27xf32>
    %c4 = arith.constant 4 : index
    %c0_27 = arith.constant 0 : index
    %118 = vector.load %arg2[%c4, %c0_27] : memref<36x81xf32, #tpu.memory_space<vmem>>, vector<1x81xf32>
    %c0_28 = arith.constant 0 : index
    %c0_29 = arith.constant 0 : index
    %c0_30 = arith.constant 0 : index
    %119 = vector.load %arg4[%c0_28, %c0_29, %c0_30] : memref<3x27x81xf32, #tpu.memory_space<vmem>>, vector<1x27x81xf32>
    %120 = vector.shape_cast %119 : vector<1x27x81xf32> to vector<27x81xf32>
    %cst_31 = arith.constant dense<0.000000e+00> : vector<64x81xf32>
    %121 = tpu.matmul %117, %120, %cst_31 {dimension_numbers = #tpu.dot_dimension_numbers<[1], [0], [0], [1], [0, 0, 1, 1], [], []>} : vector<64x27xf32>, vector<27x81xf32>, vector<64x81xf32> -> vector<64x81xf32>
    %122 = vector.broadcast %118 : vector<1x81xf32> to vector<64x81xf32>
    %123 = arith.addf %121, %122 : vector<64x81xf32>
    %124 = vector.extract_strided_slice %123 {offsets = [0, 0], sizes = [64, 27], strides = [1, 1]} : vector<64x81xf32> to vector<64x27xf32>
    %125 = vector.extract_strided_slice %123 {offsets = [0, 27], sizes = [64, 27], strides = [1, 1]} : vector<64x81xf32> to vector<64x27xf32>
    %126 = vector.extract_strided_slice %123 {offsets = [0, 54], sizes = [64, 27], strides = [1, 1]} : vector<64x81xf32> to vector<64x27xf32>
    %127 = vector.shape_cast %117 : vector<64x27xf32> to vector<4x16x27xf32>
    %cst_32 = arith.constant 0.000000e+00 : f32
    %128 = vector.broadcast %cst_32 : f32 to vector<4x1x27xf32>
    %129 = vector.extract_strided_slice %127 {offsets = [0, 0, 0], sizes = [4, 15, 27], strides = [1, 1, 1]} : vector<4x16x27xf32> to vector<4x15x27xf32>
    %130 = tpu.concatenate %128, %129 in 1 : vector<4x1x27xf32>, vector<4x15x27xf32> -> vector<4x16x27xf32>
    %131 = vector.shape_cast %130 : vector<4x16x27xf32> to vector<64x27xf32>
    %132 = vector.extract_strided_slice %127 {offsets = [0, 1, 0], sizes = [4, 15, 27], strides = [1, 1, 1]} : vector<4x16x27xf32> to vector<4x15x27xf32>
    %133 = tpu.concatenate %132, %128 in 1 : vector<4x15x27xf32>, vector<4x1x27xf32> -> vector<4x16x27xf32>
    %134 = vector.shape_cast %133 : vector<4x16x27xf32> to vector<64x27xf32>
    %c0_33 = arith.constant 0 : index
    %c0_34 = arith.constant 0 : index
    %c0_35 = arith.constant 0 : index
    %135 = vector.load %arg3[%c0_33, %c0_34, %c0_35] : memref<9x27x27xf32, #tpu.memory_space<vmem>>, vector<1x27x27xf32>
    %136 = vector.shape_cast %135 : vector<1x27x27xf32> to vector<27x27xf32>
    %cst_36 = arith.constant dense<0.000000e+00> : vector<64x27xf32>
    %137 = tpu.matmul %131, %136, %cst_36 {dimension_numbers = #tpu.dot_dimension_numbers<[1], [0], [0], [1], [0, 0, 1, 1], [], []>} : vector<64x27xf32>, vector<27x27xf32>, vector<64x27xf32> -> vector<64x27xf32>
    %138 = arith.addf %124, %137 : vector<64x27xf32>
    %c1_37 = arith.constant 1 : index
    %c0_38 = arith.constant 0 : index
    %c0_39 = arith.constant 0 : index
    %139 = vector.load %arg3[%c1_37, %c0_38, %c0_39] : memref<9x27x27xf32, #tpu.memory_space<vmem>>, vector<1x27x27xf32>
    %140 = vector.shape_cast %139 : vector<1x27x27xf32> to vector<27x27xf32>
    %cst_40 = arith.constant dense<0.000000e+00> : vector<64x27xf32>
    %141 = tpu.matmul %134, %140, %cst_40 {dimension_numbers = #tpu.dot_dimension_numbers<[1], [0], [0], [1], [0, 0, 1, 1], [], []>} : vector<64x27xf32>, vector<27x27xf32>, vector<64x27xf32> -> vector<64x27xf32>
    %142 = arith.addf %138, %141 : vector<64x27xf32>
    %143 = vector.shape_cast %142 : vector<64x27xf32> to vector<4x16x27xf32>
    %144 = vector.shape_cast %125 : vector<64x27xf32> to vector<4x16x27xf32>
    %145 = vector.shape_cast %126 : vector<64x27xf32> to vector<4x16x27xf32>
    %146 = vector.extract_strided_slice %143 {offsets = [0, 0, 0], sizes = [1, 16, 27], strides = [1, 1, 1]} : vector<4x16x27xf32> to vector<1x16x27xf32>
    %147 = vector.shape_cast %146 : vector<1x16x27xf32> to vector<16x27xf32>
    %148 = tpu.concatenate %147, %147, %147, %147, %147, %147, %147, %147, %147 in 0 : vector<16x27xf32>, vector<16x27xf32>, vector<16x27xf32>, vector<16x27xf32>, vector<16x27xf32>, vector<16x27xf32>, vector<16x27xf32>, vector<16x27xf32>, vector<16x27xf32> -> vector<144x27xf32>
    %149 = arith.mulf %148, %66 : vector<144x27xf32>
    %150 = vector.extract_strided_slice %144 {offsets = [0, 0, 0], sizes = [1, 16, 27], strides = [1, 1, 1]} : vector<4x16x27xf32> to vector<1x16x27xf32>
    %151 = vector.shape_cast %150 : vector<1x16x27xf32> to vector<16x27xf32>
    %cst_41 = arith.constant dense<0.000000e+00> : vector<16x144xf32>
    %152 = tpu.matmul %151, %149, %cst_41 {dimension_numbers = #tpu.dot_dimension_numbers<[1], [1], [0], [0], [0, 0, 1, 0], [], []>} : vector<16x27xf32>, vector<144x27xf32>, vector<16x144xf32> -> vector<16x144xf32>
    %cst_42 = arith.constant 0.577350259 : f32
    %153 = vector.broadcast %cst_42 : f32 to vector<16x144xf32>
    %154 = arith.mulf %152, %153 : vector<16x144xf32>
    %cst_43 = arith.constant dense<0xFF800000> : vector<144xf32>
    %155 = vector.multi_reduction <maximumf>, %154, %cst_43 [0] : vector<16x144xf32> to vector<144xf32>
    %156 = vector.shape_cast %155 : vector<144xf32> to vector<1x144xf32>
    %157 = vector.broadcast %156 : vector<1x144xf32> to vector<16x144xf32>
    %158 = arith.subf %154, %157 : vector<16x144xf32>
    %159 = math.exp %158 : vector<16x144xf32>
    %cst_44 = arith.constant dense<0.000000e+00> : vector<144xf32>
    %160 = vector.multi_reduction <add>, %159, %cst_44 [0] : vector<16x144xf32> to vector<144xf32>
    %161 = vector.shape_cast %160 : vector<144xf32> to vector<1x144xf32>
    %162 = tpu.reciprocal %161 {approx = true} : vector<1x144xf32> -> vector<1x144xf32>
    %163 = vector.broadcast %162 : vector<1x144xf32> to vector<16x144xf32>
    %164 = arith.mulf %159, %163 : vector<16x144xf32>
    %165 = tpu.transpose %164, [1, 0] : vector<16x144xf32> -> vector<144x16xf32>
    %166 = vector.extract_strided_slice %145 {offsets = [0, 0, 0], sizes = [1, 16, 27], strides = [1, 1, 1]} : vector<4x16x27xf32> to vector<1x16x27xf32>
    %167 = vector.shape_cast %166 : vector<1x16x27xf32> to vector<16x27xf32>
    %cst_45 = arith.constant dense<0.000000e+00> : vector<144x27xf32>
    %168 = tpu.matmul %165, %167, %cst_45 {dimension_numbers = #tpu.dot_dimension_numbers<[1], [0], [0], [1], [0, 0, 1, 1], [], []>} : vector<144x16xf32>, vector<16x27xf32>, vector<144x27xf32> -> vector<144x27xf32>
    %169 = arith.mulf %168, %66 : vector<144x27xf32>
    %170 = vector.extract_strided_slice %169 {offsets = [0, 0], sizes = [16, 27], strides = [1, 1]} : vector<144x27xf32> to vector<16x27xf32>
    %171 = vector.extract_strided_slice %169 {offsets = [16, 0], sizes = [16, 27], strides = [1, 1]} : vector<144x27xf32> to vector<16x27xf32>
    %172 = arith.addf %170, %171 : vector<16x27xf32>
    %173 = vector.extract_strided_slice %169 {offsets = [32, 0], sizes = [16, 27], strides = [1, 1]} : vector<144x27xf32> to vector<16x27xf32>
    %174 = arith.addf %172, %173 : vector<16x27xf32>
    %175 = vector.extract_strided_slice %169 {offsets = [48, 0], sizes = [16, 27], strides = [1, 1]} : vector<144x27xf32> to vector<16x27xf32>
    %176 = arith.addf %174, %175 : vector<16x27xf32>
    %177 = vector.extract_strided_slice %169 {offsets = [64, 0], sizes = [16, 27], strides = [1, 1]} : vector<144x27xf32> to vector<16x27xf32>
    %178 = arith.addf %176, %177 : vector<16x27xf32>
    %179 = vector.extract_strided_slice %169 {offsets = [80, 0], sizes = [16, 27], strides = [1, 1]} : vector<144x27xf32> to vector<16x27xf32>
    %180 = arith.addf %178, %179 : vector<16x27xf32>
    %181 = vector.extract_strided_slice %169 {offsets = [96, 0], sizes = [16, 27], strides = [1, 1]} : vector<144x27xf32> to vector<16x27xf32>
    %182 = arith.addf %180, %181 : vector<16x27xf32>
    %183 = vector.extract_strided_slice %169 {offsets = [112, 0], sizes = [16, 27], strides = [1, 1]} : vector<144x27xf32> to vector<16x27xf32>
    %184 = arith.addf %182, %183 : vector<16x27xf32>
    %185 = vector.extract_strided_slice %169 {offsets = [128, 0], sizes = [16, 27], strides = [1, 1]} : vector<144x27xf32> to vector<16x27xf32>
    %186 = arith.addf %184, %185 : vector<16x27xf32>
    %187 = vector.extract_strided_slice %143 {offsets = [1, 0, 0], sizes = [1, 16, 27], strides = [1, 1, 1]} : vector<4x16x27xf32> to vector<1x16x27xf32>
    %188 = vector.shape_cast %187 : vector<1x16x27xf32> to vector<16x27xf32>
    %189 = tpu.concatenate %188, %188, %188, %188, %188, %188, %188, %188, %188 in 0 : vector<16x27xf32>, vector<16x27xf32>, vector<16x27xf32>, vector<16x27xf32>, vector<16x27xf32>, vector<16x27xf32>, vector<16x27xf32>, vector<16x27xf32>, vector<16x27xf32> -> vector<144x27xf32>
    %190 = arith.mulf %189, %66 : vector<144x27xf32>
    %191 = vector.extract_strided_slice %144 {offsets = [1, 0, 0], sizes = [1, 16, 27], strides = [1, 1, 1]} : vector<4x16x27xf32> to vector<1x16x27xf32>
    %192 = vector.shape_cast %191 : vector<1x16x27xf32> to vector<16x27xf32>
    %cst_46 = arith.constant dense<0.000000e+00> : vector<16x144xf32>
    %193 = tpu.matmul %192, %190, %cst_46 {dimension_numbers = #tpu.dot_dimension_numbers<[1], [1], [0], [0], [0, 0, 1, 0], [], []>} : vector<16x27xf32>, vector<144x27xf32>, vector<16x144xf32> -> vector<16x144xf32>
    %cst_47 = arith.constant 0.577350259 : f32
    %194 = vector.broadcast %cst_47 : f32 to vector<16x144xf32>
    %195 = arith.mulf %193, %194 : vector<16x144xf32>
    %cst_48 = arith.constant dense<0xFF800000> : vector<144xf32>
    %196 = vector.multi_reduction <maximumf>, %195, %cst_48 [0] : vector<16x144xf32> to vector<144xf32>
    %197 = vector.shape_cast %196 : vector<144xf32> to vector<1x144xf32>
    %198 = vector.broadcast %197 : vector<1x144xf32> to vector<16x144xf32>
    %199 = arith.subf %195, %198 : vector<16x144xf32>
    %200 = math.exp %199 : vector<16x144xf32>
    %cst_49 = arith.constant dense<0.000000e+00> : vector<144xf32>
    %201 = vector.multi_reduction <add>, %200, %cst_49 [0] : vector<16x144xf32> to vector<144xf32>
    %202 = vector.shape_cast %201 : vector<144xf32> to vector<1x144xf32>
    %203 = tpu.reciprocal %202 {approx = true} : vector<1x144xf32> -> vector<1x144xf32>
    %204 = vector.broadcast %203 : vector<1x144xf32> to vector<16x144xf32>
    %205 = arith.mulf %200, %204 : vector<16x144xf32>
    %206 = tpu.transpose %205, [1, 0] : vector<16x144xf32> -> vector<144x16xf32>
    %207 = vector.extract_strided_slice %145 {offsets = [1, 0, 0], sizes = [1, 16, 27], strides = [1, 1, 1]} : vector<4x16x27xf32> to vector<1x16x27xf32>
    %208 = vector.shape_cast %207 : vector<1x16x27xf32> to vector<16x27xf32>
    %cst_50 = arith.constant dense<0.000000e+00> : vector<144x27xf32>
    %209 = tpu.matmul %206, %208, %cst_50 {dimension_numbers = #tpu.dot_dimension_numbers<[1], [0], [0], [1], [0, 0, 1, 1], [], []>} : vector<144x16xf32>, vector<16x27xf32>, vector<144x27xf32> -> vector<144x27xf32>
    %210 = arith.mulf %209, %66 : vector<144x27xf32>
    %211 = vector.extract_strided_slice %210 {offsets = [0, 0], sizes = [16, 27], strides = [1, 1]} : vector<144x27xf32> to vector<16x27xf32>
    %212 = vector.extract_strided_slice %210 {offsets = [16, 0], sizes = [16, 27], strides = [1, 1]} : vector<144x27xf32> to vector<16x27xf32>
    %213 = arith.addf %211, %212 : vector<16x27xf32>
    %214 = vector.extract_strided_slice %210 {offsets = [32, 0], sizes = [16, 27], strides = [1, 1]} : vector<144x27xf32> to vector<16x27xf32>
    %215 = arith.addf %213, %214 : vector<16x27xf32>
    %216 = vector.extract_strided_slice %210 {offsets = [48, 0], sizes = [16, 27], strides = [1, 1]} : vector<144x27xf32> to vector<16x27xf32>
    %217 = arith.addf %215, %216 : vector<16x27xf32>
    %218 = vector.extract_strided_slice %210 {offsets = [64, 0], sizes = [16, 27], strides = [1, 1]} : vector<144x27xf32> to vector<16x27xf32>
    %219 = arith.addf %217, %218 : vector<16x27xf32>
    %220 = vector.extract_strided_slice %210 {offsets = [80, 0], sizes = [16, 27], strides = [1, 1]} : vector<144x27xf32> to vector<16x27xf32>
    %221 = arith.addf %219, %220 : vector<16x27xf32>
    %222 = vector.extract_strided_slice %210 {offsets = [96, 0], sizes = [16, 27], strides = [1, 1]} : vector<144x27xf32> to vector<16x27xf32>
    %223 = arith.addf %221, %222 : vector<16x27xf32>
    %224 = vector.extract_strided_slice %210 {offsets = [112, 0], sizes = [16, 27], strides = [1, 1]} : vector<144x27xf32> to vector<16x27xf32>
    %225 = arith.addf %223, %224 : vector<16x27xf32>
    %226 = vector.extract_strided_slice %210 {offsets = [128, 0], sizes = [16, 27], strides = [1, 1]} : vector<144x27xf32> to vector<16x27xf32>
    %227 = arith.addf %225, %226 : vector<16x27xf32>
    %228 = vector.extract_strided_slice %143 {offsets = [2, 0, 0], sizes = [1, 16, 27], strides = [1, 1, 1]} : vector<4x16x27xf32> to vector<1x16x27xf32>
    %229 = vector.shape_cast %228 : vector<1x16x27xf32> to vector<16x27xf32>
    %230 = tpu.concatenate %229, %229, %229, %229, %229, %229, %229, %229, %229 in 0 : vector<16x27xf32>, vector<16x27xf32>, vector<16x27xf32>, vector<16x27xf32>, vector<16x27xf32>, vector<16x27xf32>, vector<16x27xf32>, vector<16x27xf32>, vector<16x27xf32> -> vector<144x27xf32>
    %231 = arith.mulf %230, %66 : vector<144x27xf32>
    %232 = vector.extract_strided_slice %144 {offsets = [2, 0, 0], sizes = [1, 16, 27], strides = [1, 1, 1]} : vector<4x16x27xf32> to vector<1x16x27xf32>
    %233 = vector.shape_cast %232 : vector<1x16x27xf32> to vector<16x27xf32>
    %cst_51 = arith.constant dense<0.000000e+00> : vector<16x144xf32>
    %234 = tpu.matmul %233, %231, %cst_51 {dimension_numbers = #tpu.dot_dimension_numbers<[1], [1], [0], [0], [0, 0, 1, 0], [], []>} : vector<16x27xf32>, vector<144x27xf32>, vector<16x144xf32> -> vector<16x144xf32>
    %cst_52 = arith.constant 0.577350259 : f32
    %235 = vector.broadcast %cst_52 : f32 to vector<16x144xf32>
    %236 = arith.mulf %234, %235 : vector<16x144xf32>
    %cst_53 = arith.constant dense<0xFF800000> : vector<144xf32>
    %237 = vector.multi_reduction <maximumf>, %236, %cst_53 [0] : vector<16x144xf32> to vector<144xf32>
    %238 = vector.shape_cast %237 : vector<144xf32> to vector<1x144xf32>
    %239 = vector.broadcast %238 : vector<1x144xf32> to vector<16x144xf32>
    %240 = arith.subf %236, %239 : vector<16x144xf32>
    %241 = math.exp %240 : vector<16x144xf32>
    %cst_54 = arith.constant dense<0.000000e+00> : vector<144xf32>
    %242 = vector.multi_reduction <add>, %241, %cst_54 [0] : vector<16x144xf32> to vector<144xf32>
    %243 = vector.shape_cast %242 : vector<144xf32> to vector<1x144xf32>
    %244 = tpu.reciprocal %243 {approx = true} : vector<1x144xf32> -> vector<1x144xf32>
    %245 = vector.broadcast %244 : vector<1x144xf32> to vector<16x144xf32>
    %246 = arith.mulf %241, %245 : vector<16x144xf32>
    %247 = tpu.transpose %246, [1, 0] : vector<16x144xf32> -> vector<144x16xf32>
    %248 = vector.extract_strided_slice %145 {offsets = [2, 0, 0], sizes = [1, 16, 27], strides = [1, 1, 1]} : vector<4x16x27xf32> to vector<1x16x27xf32>
    %249 = vector.shape_cast %248 : vector<1x16x27xf32> to vector<16x27xf32>
    %cst_55 = arith.constant dense<0.000000e+00> : vector<144x27xf32>
    %250 = tpu.matmul %247, %249, %cst_55 {dimension_numbers = #tpu.dot_dimension_numbers<[1], [0], [0], [1], [0, 0, 1, 1], [], []>} : vector<144x16xf32>, vector<16x27xf32>, vector<144x27xf32> -> vector<144x27xf32>
    %251 = arith.mulf %250, %66 : vector<144x27xf32>
    %252 = vector.extract_strided_slice %251 {offsets = [0, 0], sizes = [16, 27], strides = [1, 1]} : vector<144x27xf32> to vector<16x27xf32>
    %253 = vector.extract_strided_slice %251 {offsets = [16, 0], sizes = [16, 27], strides = [1, 1]} : vector<144x27xf32> to vector<16x27xf32>
    %254 = arith.addf %252, %253 : vector<16x27xf32>
    %255 = vector.extract_strided_slice %251 {offsets = [32, 0], sizes = [16, 27], strides = [1, 1]} : vector<144x27xf32> to vector<16x27xf32>
    %256 = arith.addf %254, %255 : vector<16x27xf32>
    %257 = vector.extract_strided_slice %251 {offsets = [48, 0], sizes = [16, 27], strides = [1, 1]} : vector<144x27xf32> to vector<16x27xf32>
    %258 = arith.addf %256, %257 : vector<16x27xf32>
    %259 = vector.extract_strided_slice %251 {offsets = [64, 0], sizes = [16, 27], strides = [1, 1]} : vector<144x27xf32> to vector<16x27xf32>
    %260 = arith.addf %258, %259 : vector<16x27xf32>
    %261 = vector.extract_strided_slice %251 {offsets = [80, 0], sizes = [16, 27], strides = [1, 1]} : vector<144x27xf32> to vector<16x27xf32>
    %262 = arith.addf %260, %261 : vector<16x27xf32>
    %263 = vector.extract_strided_slice %251 {offsets = [96, 0], sizes = [16, 27], strides = [1, 1]} : vector<144x27xf32> to vector<16x27xf32>
    %264 = arith.addf %262, %263 : vector<16x27xf32>
    %265 = vector.extract_strided_slice %251 {offsets = [112, 0], sizes = [16, 27], strides = [1, 1]} : vector<144x27xf32> to vector<16x27xf32>
    %266 = arith.addf %264, %265 : vector<16x27xf32>
    %267 = vector.extract_strided_slice %251 {offsets = [128, 0], sizes = [16, 27], strides = [1, 1]} : vector<144x27xf32> to vector<16x27xf32>
    %268 = arith.addf %266, %267 : vector<16x27xf32>
    %269 = vector.extract_strided_slice %143 {offsets = [3, 0, 0], sizes = [1, 16, 27], strides = [1, 1, 1]} : vector<4x16x27xf32> to vector<1x16x27xf32>
    %270 = vector.shape_cast %269 : vector<1x16x27xf32> to vector<16x27xf32>
    %271 = tpu.concatenate %270, %270, %270, %270, %270, %270, %270, %270, %270 in 0 : vector<16x27xf32>, vector<16x27xf32>, vector<16x27xf32>, vector<16x27xf32>, vector<16x27xf32>, vector<16x27xf32>, vector<16x27xf32>, vector<16x27xf32>, vector<16x27xf32> -> vector<144x27xf32>
    %272 = arith.mulf %271, %66 : vector<144x27xf32>
    %273 = vector.extract_strided_slice %144 {offsets = [3, 0, 0], sizes = [1, 16, 27], strides = [1, 1, 1]} : vector<4x16x27xf32> to vector<1x16x27xf32>
    %274 = vector.shape_cast %273 : vector<1x16x27xf32> to vector<16x27xf32>
    %cst_56 = arith.constant dense<0.000000e+00> : vector<16x144xf32>
    %275 = tpu.matmul %274, %272, %cst_56 {dimension_numbers = #tpu.dot_dimension_numbers<[1], [1], [0], [0], [0, 0, 1, 0], [], []>} : vector<16x27xf32>, vector<144x27xf32>, vector<16x144xf32> -> vector<16x144xf32>
    %cst_57 = arith.constant 0.577350259 : f32
    %276 = vector.broadcast %cst_57 : f32 to vector<16x144xf32>
    %277 = arith.mulf %275, %276 : vector<16x144xf32>
    %cst_58 = arith.constant dense<0xFF800000> : vector<144xf32>
    %278 = vector.multi_reduction <maximumf>, %277, %cst_58 [0] : vector<16x144xf32> to vector<144xf32>
    %279 = vector.shape_cast %278 : vector<144xf32> to vector<1x144xf32>
    %280 = vector.broadcast %279 : vector<1x144xf32> to vector<16x144xf32>
    %281 = arith.subf %277, %280 : vector<16x144xf32>
    %282 = math.exp %281 : vector<16x144xf32>
    %cst_59 = arith.constant dense<0.000000e+00> : vector<144xf32>
    %283 = vector.multi_reduction <add>, %282, %cst_59 [0] : vector<16x144xf32> to vector<144xf32>
    %284 = vector.shape_cast %283 : vector<144xf32> to vector<1x144xf32>
    %285 = tpu.reciprocal %284 {approx = true} : vector<1x144xf32> -> vector<1x144xf32>
    %286 = vector.broadcast %285 : vector<1x144xf32> to vector<16x144xf32>
    %287 = arith.mulf %282, %286 : vector<16x144xf32>
    %288 = tpu.transpose %287, [1, 0] : vector<16x144xf32> -> vector<144x16xf32>
    %289 = vector.extract_strided_slice %145 {offsets = [3, 0, 0], sizes = [1, 16, 27], strides = [1, 1, 1]} : vector<4x16x27xf32> to vector<1x16x27xf32>
    %290 = vector.shape_cast %289 : vector<1x16x27xf32> to vector<16x27xf32>
    %cst_60 = arith.constant dense<0.000000e+00> : vector<144x27xf32>
    %291 = tpu.matmul %288, %290, %cst_60 {dimension_numbers = #tpu.dot_dimension_numbers<[1], [0], [0], [1], [0, 0, 1, 1], [], []>} : vector<144x16xf32>, vector<16x27xf32>, vector<144x27xf32> -> vector<144x27xf32>
    %292 = arith.mulf %291, %66 : vector<144x27xf32>
    %293 = vector.extract_strided_slice %292 {offsets = [0, 0], sizes = [16, 27], strides = [1, 1]} : vector<144x27xf32> to vector<16x27xf32>
    %294 = vector.extract_strided_slice %292 {offsets = [16, 0], sizes = [16, 27], strides = [1, 1]} : vector<144x27xf32> to vector<16x27xf32>
    %295 = arith.addf %293, %294 : vector<16x27xf32>
    %296 = vector.extract_strided_slice %292 {offsets = [32, 0], sizes = [16, 27], strides = [1, 1]} : vector<144x27xf32> to vector<16x27xf32>
    %297 = arith.addf %295, %296 : vector<16x27xf32>
    %298 = vector.extract_strided_slice %292 {offsets = [48, 0], sizes = [16, 27], strides = [1, 1]} : vector<144x27xf32> to vector<16x27xf32>
    %299 = arith.addf %297, %298 : vector<16x27xf32>
    %300 = vector.extract_strided_slice %292 {offsets = [64, 0], sizes = [16, 27], strides = [1, 1]} : vector<144x27xf32> to vector<16x27xf32>
    %301 = arith.addf %299, %300 : vector<16x27xf32>
    %302 = vector.extract_strided_slice %292 {offsets = [80, 0], sizes = [16, 27], strides = [1, 1]} : vector<144x27xf32> to vector<16x27xf32>
    %303 = arith.addf %301, %302 : vector<16x27xf32>
    %304 = vector.extract_strided_slice %292 {offsets = [96, 0], sizes = [16, 27], strides = [1, 1]} : vector<144x27xf32> to vector<16x27xf32>
    %305 = arith.addf %303, %304 : vector<16x27xf32>
    %306 = vector.extract_strided_slice %292 {offsets = [112, 0], sizes = [16, 27], strides = [1, 1]} : vector<144x27xf32> to vector<16x27xf32>
    %307 = arith.addf %305, %306 : vector<16x27xf32>
    %308 = vector.extract_strided_slice %292 {offsets = [128, 0], sizes = [16, 27], strides = [1, 1]} : vector<144x27xf32> to vector<16x27xf32>
    %309 = arith.addf %307, %308 : vector<16x27xf32>
    %310 = tpu.concatenate %186, %227, %268, %309 in 0 : vector<16x27xf32>, vector<16x27xf32>, vector<16x27xf32>, vector<16x27xf32> -> vector<64x27xf32>
    %c5 = arith.constant 5 : index
    %c0_61 = arith.constant 0 : index
    %311 = vector.load %arg2[%c5, %c0_61] : memref<36x81xf32, #tpu.memory_space<vmem>>, vector<1x27xf32>
    %312 = arith.subf %142, %310 : vector<64x27xf32>
    %c2_62 = arith.constant 2 : index
    %c0_63 = arith.constant 0 : index
    %c0_64 = arith.constant 0 : index
    %313 = vector.load %arg3[%c2_62, %c0_63, %c0_64] : memref<9x27x27xf32, #tpu.memory_space<vmem>>, vector<1x27x27xf32>
    %314 = vector.shape_cast %313 : vector<1x27x27xf32> to vector<27x27xf32>
    %cst_65 = arith.constant dense<0.000000e+00> : vector<64x27xf32>
    %315 = tpu.matmul %312, %314, %cst_65 {dimension_numbers = #tpu.dot_dimension_numbers<[1], [0], [0], [1], [0, 0, 1, 1], [], []>} : vector<64x27xf32>, vector<27x27xf32>, vector<64x27xf32> -> vector<64x27xf32>
    %316 = vector.broadcast %311 : vector<1x27xf32> to vector<64x27xf32>
    %317 = arith.addf %315, %316 : vector<64x27xf32>
    %318 = arith.addf %95, %317 : vector<64x27xf32>
    %c6 = arith.constant 6 : index
    %c0_66 = arith.constant 0 : index
    %319 = vector.load %arg2[%c6, %c0_66] : memref<36x81xf32, #tpu.memory_space<vmem>>, vector<1x27xf32>
    %c7 = arith.constant 7 : index
    %c0_67 = arith.constant 0 : index
    %320 = vector.load %arg2[%c7, %c0_67] : memref<36x81xf32, #tpu.memory_space<vmem>>, vector<1x27xf32>
    %cst_68 = arith.constant dense<0.000000e+00> : vector<64xf32>
    %321 = vector.multi_reduction <add>, %318, %cst_68 [1] : vector<64x27xf32> to vector<64xf32>
    %322 = vector.shape_cast %321 : vector<64xf32> to vector<64x1xf32>
    %cst_69 = arith.constant 2.700000e+01 : f32
    %323 = vector.broadcast %cst_69 : f32 to vector<64x1xf32>
    %324 = arith.divf %322, %323 : vector<64x1xf32>
    %325 = vector.broadcast %324 : vector<64x1xf32> to vector<64x27xf32>
    %326 = arith.subf %318, %325 : vector<64x27xf32>
    %327 = arith.mulf %326, %326 : vector<64x27xf32>
    %cst_70 = arith.constant dense<0.000000e+00> : vector<64xf32>
    %328 = vector.multi_reduction <add>, %327, %cst_70 [1] : vector<64x27xf32> to vector<64xf32>
    %329 = vector.shape_cast %328 : vector<64xf32> to vector<64x1xf32>
    %cst_71 = arith.constant 2.700000e+01 : f32
    %330 = vector.broadcast %cst_71 : f32 to vector<64x1xf32>
    %331 = arith.divf %329, %330 : vector<64x1xf32>
    %cst_72 = arith.constant 9.99999997E-7 : f32
    %332 = vector.broadcast %cst_72 : f32 to vector<64x1xf32>
    %333 = arith.addf %331, %332 : vector<64x1xf32>
    %334 = math.rsqrt %333 : vector<64x1xf32>
    %335 = vector.broadcast %334 : vector<64x1xf32> to vector<64x27xf32>
    %336 = arith.mulf %326, %335 : vector<64x27xf32>
    %337 = vector.broadcast %319 : vector<1x27xf32> to vector<64x27xf32>
    %338 = arith.mulf %336, %337 : vector<64x27xf32>
    %339 = vector.broadcast %320 : vector<1x27xf32> to vector<64x27xf32>
    %340 = arith.addf %338, %339 : vector<64x27xf32>
    %c8 = arith.constant 8 : index
    %c0_73 = arith.constant 0 : index
    %341 = vector.load %arg2[%c8, %c0_73] : memref<36x81xf32, #tpu.memory_space<vmem>>, vector<1x54xf32>
    %c0_74 = arith.constant 0 : index
    %c0_75 = arith.constant 0 : index
    %c0_76 = arith.constant 0 : index
    %342 = vector.load %arg5[%c0_74, %c0_75, %c0_76] : memref<3x27x54xf32, #tpu.memory_space<vmem>>, vector<1x27x54xf32>
    %343 = vector.shape_cast %342 : vector<1x27x54xf32> to vector<27x54xf32>
    %cst_77 = arith.constant dense<0.000000e+00> : vector<64x54xf32>
    %344 = tpu.matmul %340, %343, %cst_77 {dimension_numbers = #tpu.dot_dimension_numbers<[1], [0], [0], [1], [0, 0, 1, 1], [], []>} : vector<64x27xf32>, vector<27x54xf32>, vector<64x54xf32> -> vector<64x54xf32>
    %345 = vector.broadcast %341 : vector<1x54xf32> to vector<64x54xf32>
    %346 = arith.addf %344, %345 : vector<64x54xf32>
    %cst_78 = arith.constant 5.000000e-01 : f32
    %347 = vector.broadcast %cst_78 : f32 to vector<64x54xf32>
    %348 = arith.mulf %347, %346 : vector<64x54xf32>
    %cst_79 = arith.constant 4.471500e-02 : f32
    %349 = vector.broadcast %cst_79 : f32 to vector<64x54xf32>
    %350 = arith.mulf %349, %346 : vector<64x54xf32>
    %351 = arith.mulf %350, %346 : vector<64x54xf32>
    %352 = arith.mulf %351, %346 : vector<64x54xf32>
    %353 = arith.addf %346, %352 : vector<64x54xf32>
    %cst_80 = arith.constant 0.797884583 : f32
    %354 = vector.broadcast %cst_80 : f32 to vector<64x54xf32>
    %355 = arith.mulf %354, %353 : vector<64x54xf32>
    %356 = math.tanh %355 : vector<64x54xf32>
    %cst_81 = arith.constant 1.000000e+00 : f32
    %357 = vector.broadcast %cst_81 : f32 to vector<64x54xf32>
    %358 = arith.addf %357, %356 : vector<64x54xf32>
    %359 = arith.mulf %348, %358 : vector<64x54xf32>
    %c9 = arith.constant 9 : index
    %c0_82 = arith.constant 0 : index
    %360 = vector.load %arg2[%c9, %c0_82] : memref<36x81xf32, #tpu.memory_space<vmem>>, vector<1x27xf32>
    %c0_83 = arith.constant 0 : index
    %c0_84 = arith.constant 0 : index
    %c0_85 = arith.constant 0 : index
    %361 = vector.load %arg6[%c0_83, %c0_84, %c0_85] : memref<3x54x27xf32, #tpu.memory_space<vmem>>, vector<1x54x27xf32>
    %362 = vector.shape_cast %361 : vector<1x54x27xf32> to vector<54x27xf32>
    %cst_86 = arith.constant dense<0.000000e+00> : vector<64x27xf32>
    %363 = tpu.matmul %359, %362, %cst_86 {dimension_numbers = #tpu.dot_dimension_numbers<[1], [0], [0], [1], [0, 0, 1, 1], [], []>} : vector<64x54xf32>, vector<54x27xf32>, vector<64x27xf32> -> vector<64x27xf32>
    %364 = vector.broadcast %360 : vector<1x27xf32> to vector<64x27xf32>
    %365 = arith.addf %363, %364 : vector<64x27xf32>
    %366 = arith.addf %318, %365 : vector<64x27xf32>
    %c10 = arith.constant 10 : index
    %c0_87 = arith.constant 0 : index
    %367 = vector.load %arg2[%c10, %c0_87] : memref<36x81xf32, #tpu.memory_space<vmem>>, vector<1x27xf32>
    %c11 = arith.constant 11 : index
    %c0_88 = arith.constant 0 : index
    %368 = vector.load %arg2[%c11, %c0_88] : memref<36x81xf32, #tpu.memory_space<vmem>>, vector<1x27xf32>
    %cst_89 = arith.constant dense<0.000000e+00> : vector<64xf32>
    %369 = vector.multi_reduction <add>, %366, %cst_89 [1] : vector<64x27xf32> to vector<64xf32>
    %370 = vector.shape_cast %369 : vector<64xf32> to vector<64x1xf32>
    %cst_90 = arith.constant 2.700000e+01 : f32
    %371 = vector.broadcast %cst_90 : f32 to vector<64x1xf32>
    %372 = arith.divf %370, %371 : vector<64x1xf32>
    %373 = vector.broadcast %372 : vector<64x1xf32> to vector<64x27xf32>
    %374 = arith.subf %366, %373 : vector<64x27xf32>
    %375 = arith.mulf %374, %374 : vector<64x27xf32>
    %cst_91 = arith.constant dense<0.000000e+00> : vector<64xf32>
    %376 = vector.multi_reduction <add>, %375, %cst_91 [1] : vector<64x27xf32> to vector<64xf32>
    %377 = vector.shape_cast %376 : vector<64xf32> to vector<64x1xf32>
    %cst_92 = arith.constant 2.700000e+01 : f32
    %378 = vector.broadcast %cst_92 : f32 to vector<64x1xf32>
    %379 = arith.divf %377, %378 : vector<64x1xf32>
    %cst_93 = arith.constant 9.99999997E-7 : f32
    %380 = vector.broadcast %cst_93 : f32 to vector<64x1xf32>
    %381 = arith.addf %379, %380 : vector<64x1xf32>
    %382 = math.rsqrt %381 : vector<64x1xf32>
    %383 = vector.broadcast %382 : vector<64x1xf32> to vector<64x27xf32>
    %384 = arith.mulf %374, %383 : vector<64x27xf32>
    %385 = vector.broadcast %367 : vector<1x27xf32> to vector<64x27xf32>
    %386 = arith.mulf %384, %385 : vector<64x27xf32>
    %387 = vector.broadcast %368 : vector<1x27xf32> to vector<64x27xf32>
    %388 = arith.addf %386, %387 : vector<64x27xf32>
    %389 = arith.addf %1, %388 : vector<64x27xf32>
    %390 = vector.shape_cast %389 : vector<64x27xf32> to vector<4x16x27xf32>
    %c12 = arith.constant 12 : index
    %c0_94 = arith.constant 0 : index
    %391 = vector.load %arg2[%c12, %c0_94] : memref<36x81xf32, #tpu.memory_space<vmem>>, vector<1x27xf32>
    %c13 = arith.constant 13 : index
    %c0_95 = arith.constant 0 : index
    %392 = vector.load %arg2[%c13, %c0_95] : memref<36x81xf32, #tpu.memory_space<vmem>>, vector<1x27xf32>
    %cst_96 = arith.constant dense<0.000000e+00> : vector<64xf32>
    %393 = vector.multi_reduction <add>, %389, %cst_96 [1] : vector<64x27xf32> to vector<64xf32>
    %394 = vector.shape_cast %393 : vector<64xf32> to vector<64x1xf32>
    %cst_97 = arith.constant 2.700000e+01 : f32
    %395 = vector.broadcast %cst_97 : f32 to vector<64x1xf32>
    %396 = arith.divf %394, %395 : vector<64x1xf32>
    %397 = vector.broadcast %396 : vector<64x1xf32> to vector<64x27xf32>
    %398 = arith.subf %389, %397 : vector<64x27xf32>
    %399 = arith.mulf %398, %398 : vector<64x27xf32>
    %cst_98 = arith.constant dense<0.000000e+00> : vector<64xf32>
    %400 = vector.multi_reduction <add>, %399, %cst_98 [1] : vector<64x27xf32> to vector<64xf32>
    %401 = vector.shape_cast %400 : vector<64xf32> to vector<64x1xf32>
    %cst_99 = arith.constant 2.700000e+01 : f32
    %402 = vector.broadcast %cst_99 : f32 to vector<64x1xf32>
    %403 = arith.divf %401, %402 : vector<64x1xf32>
    %cst_100 = arith.constant 9.99999974E-6 : f32
    %404 = vector.broadcast %cst_100 : f32 to vector<64x1xf32>
    %405 = arith.addf %403, %404 : vector<64x1xf32>
    %406 = math.rsqrt %405 : vector<64x1xf32>
    %407 = vector.broadcast %406 : vector<64x1xf32> to vector<64x27xf32>
    %408 = arith.mulf %398, %407 : vector<64x27xf32>
    %409 = vector.broadcast %391 : vector<1x27xf32> to vector<64x27xf32>
    %410 = arith.mulf %408, %409 : vector<64x27xf32>
    %411 = vector.broadcast %392 : vector<1x27xf32> to vector<64x27xf32>
    %412 = arith.addf %410, %411 : vector<64x27xf32>
    %413 = vector.shape_cast %412 : vector<64x27xf32> to vector<4x16x27xf32>
    %c1_101 = arith.constant 1 : index
    %c0_102 = arith.constant 0 : index
    %c0_103 = arith.constant 0 : index
    %414 = vector.load %arg7[%c1_101, %c0_102, %c0_103] : memref<3x16x27xf32, #tpu.memory_space<vmem>>, vector<1x16x27xf32>
    %415 = vector.shape_cast %414 : vector<1x16x27xf32> to vector<16x27xf32>
    %416 = vector.shape_cast %415 : vector<16x27xf32> to vector<1x16x27xf32>
    %417 = vector.broadcast %416 : vector<1x16x27xf32> to vector<4x16x27xf32>
    %418 = arith.addf %413, %417 : vector<4x16x27xf32>
    %419 = vector.shape_cast %418 : vector<4x16x27xf32> to vector<64x27xf32>
    %c14 = arith.constant 14 : index
    %c0_104 = arith.constant 0 : index
    %420 = vector.load %arg2[%c14, %c0_104] : memref<36x81xf32, #tpu.memory_space<vmem>>, vector<1x27xf32>
    %c15 = arith.constant 15 : index
    %c0_105 = arith.constant 0 : index
    %421 = vector.load %arg2[%c15, %c0_105] : memref<36x81xf32, #tpu.memory_space<vmem>>, vector<1x27xf32>
    %cst_106 = arith.constant dense<0.000000e+00> : vector<64xf32>
    %422 = vector.multi_reduction <add>, %419, %cst_106 [1] : vector<64x27xf32> to vector<64xf32>
    %423 = vector.shape_cast %422 : vector<64xf32> to vector<64x1xf32>
    %cst_107 = arith.constant 2.700000e+01 : f32
    %424 = vector.broadcast %cst_107 : f32 to vector<64x1xf32>
    %425 = arith.divf %423, %424 : vector<64x1xf32>
    %426 = vector.broadcast %425 : vector<64x1xf32> to vector<64x27xf32>
    %427 = arith.subf %419, %426 : vector<64x27xf32>
    %428 = arith.mulf %427, %427 : vector<64x27xf32>
    %cst_108 = arith.constant dense<0.000000e+00> : vector<64xf32>
    %429 = vector.multi_reduction <add>, %428, %cst_108 [1] : vector<64x27xf32> to vector<64xf32>
    %430 = vector.shape_cast %429 : vector<64xf32> to vector<64x1xf32>
    %cst_109 = arith.constant 2.700000e+01 : f32
    %431 = vector.broadcast %cst_109 : f32 to vector<64x1xf32>
    %432 = arith.divf %430, %431 : vector<64x1xf32>
    %cst_110 = arith.constant 9.99999997E-7 : f32
    %433 = vector.broadcast %cst_110 : f32 to vector<64x1xf32>
    %434 = arith.addf %432, %433 : vector<64x1xf32>
    %435 = math.rsqrt %434 : vector<64x1xf32>
    %436 = vector.broadcast %435 : vector<64x1xf32> to vector<64x27xf32>
    %437 = arith.mulf %427, %436 : vector<64x27xf32>
    %438 = vector.broadcast %420 : vector<1x27xf32> to vector<64x27xf32>
    %439 = arith.mulf %437, %438 : vector<64x27xf32>
    %440 = vector.broadcast %421 : vector<1x27xf32> to vector<64x27xf32>
    %441 = arith.addf %439, %440 : vector<64x27xf32>
    %c16 = arith.constant 16 : index
    %c0_111 = arith.constant 0 : index
    %442 = vector.load %arg2[%c16, %c0_111] : memref<36x81xf32, #tpu.memory_space<vmem>>, vector<1x81xf32>
    %c1_112 = arith.constant 1 : index
    %c0_113 = arith.constant 0 : index
    %c0_114 = arith.constant 0 : index
    %443 = vector.load %arg4[%c1_112, %c0_113, %c0_114] : memref<3x27x81xf32, #tpu.memory_space<vmem>>, vector<1x27x81xf32>
    %444 = vector.shape_cast %443 : vector<1x27x81xf32> to vector<27x81xf32>
    %cst_115 = arith.constant dense<0.000000e+00> : vector<64x81xf32>
    %445 = tpu.matmul %441, %444, %cst_115 {dimension_numbers = #tpu.dot_dimension_numbers<[1], [0], [0], [1], [0, 0, 1, 1], [], []>} : vector<64x27xf32>, vector<27x81xf32>, vector<64x81xf32> -> vector<64x81xf32>
    %446 = vector.broadcast %442 : vector<1x81xf32> to vector<64x81xf32>
    %447 = arith.addf %445, %446 : vector<64x81xf32>
    %448 = vector.extract_strided_slice %447 {offsets = [0, 0], sizes = [64, 27], strides = [1, 1]} : vector<64x81xf32> to vector<64x27xf32>
    %449 = vector.extract_strided_slice %447 {offsets = [0, 27], sizes = [64, 27], strides = [1, 1]} : vector<64x81xf32> to vector<64x27xf32>
    %450 = vector.extract_strided_slice %447 {offsets = [0, 54], sizes = [64, 27], strides = [1, 1]} : vector<64x81xf32> to vector<64x27xf32>
    %451 = vector.shape_cast %441 : vector<64x27xf32> to vector<4x16x27xf32>
    %cst_116 = arith.constant 0.000000e+00 : f32
    %452 = vector.broadcast %cst_116 : f32 to vector<4x1x27xf32>
    %453 = vector.extract_strided_slice %451 {offsets = [0, 0, 0], sizes = [4, 15, 27], strides = [1, 1, 1]} : vector<4x16x27xf32> to vector<4x15x27xf32>
    %454 = tpu.concatenate %452, %453 in 1 : vector<4x1x27xf32>, vector<4x15x27xf32> -> vector<4x16x27xf32>
    %455 = vector.shape_cast %454 : vector<4x16x27xf32> to vector<64x27xf32>
    %456 = vector.extract_strided_slice %451 {offsets = [0, 1, 0], sizes = [4, 15, 27], strides = [1, 1, 1]} : vector<4x16x27xf32> to vector<4x15x27xf32>
    %457 = tpu.concatenate %456, %452 in 1 : vector<4x15x27xf32>, vector<4x1x27xf32> -> vector<4x16x27xf32>
    %458 = vector.shape_cast %457 : vector<4x16x27xf32> to vector<64x27xf32>
    %c3_117 = arith.constant 3 : index
    %c0_118 = arith.constant 0 : index
    %c0_119 = arith.constant 0 : index
    %459 = vector.load %arg3[%c3_117, %c0_118, %c0_119] : memref<9x27x27xf32, #tpu.memory_space<vmem>>, vector<1x27x27xf32>
    %460 = vector.shape_cast %459 : vector<1x27x27xf32> to vector<27x27xf32>
    %cst_120 = arith.constant dense<0.000000e+00> : vector<64x27xf32>
    %461 = tpu.matmul %455, %460, %cst_120 {dimension_numbers = #tpu.dot_dimension_numbers<[1], [0], [0], [1], [0, 0, 1, 1], [], []>} : vector<64x27xf32>, vector<27x27xf32>, vector<64x27xf32> -> vector<64x27xf32>
    %462 = arith.addf %448, %461 : vector<64x27xf32>
    %c4_121 = arith.constant 4 : index
    %c0_122 = arith.constant 0 : index
    %c0_123 = arith.constant 0 : index
    %463 = vector.load %arg3[%c4_121, %c0_122, %c0_123] : memref<9x27x27xf32, #tpu.memory_space<vmem>>, vector<1x27x27xf32>
    %464 = vector.shape_cast %463 : vector<1x27x27xf32> to vector<27x27xf32>
    %cst_124 = arith.constant dense<0.000000e+00> : vector<64x27xf32>
    %465 = tpu.matmul %458, %464, %cst_124 {dimension_numbers = #tpu.dot_dimension_numbers<[1], [0], [0], [1], [0, 0, 1, 1], [], []>} : vector<64x27xf32>, vector<27x27xf32>, vector<64x27xf32> -> vector<64x27xf32>
    %466 = arith.addf %462, %465 : vector<64x27xf32>
    %467 = vector.shape_cast %466 : vector<64x27xf32> to vector<4x16x27xf32>
    %468 = vector.shape_cast %449 : vector<64x27xf32> to vector<4x16x27xf32>
    %469 = vector.shape_cast %450 : vector<64x27xf32> to vector<4x16x27xf32>
    %470 = vector.extract_strided_slice %467 {offsets = [0, 0, 0], sizes = [1, 16, 27], strides = [1, 1, 1]} : vector<4x16x27xf32> to vector<1x16x27xf32>
    %471 = vector.shape_cast %470 : vector<1x16x27xf32> to vector<16x27xf32>
    %472 = tpu.concatenate %471, %471, %471, %471, %471, %471, %471, %471, %471 in 0 : vector<16x27xf32>, vector<16x27xf32>, vector<16x27xf32>, vector<16x27xf32>, vector<16x27xf32>, vector<16x27xf32>, vector<16x27xf32>, vector<16x27xf32>, vector<16x27xf32> -> vector<144x27xf32>
    %473 = arith.mulf %472, %66 : vector<144x27xf32>
    %474 = vector.extract_strided_slice %468 {offsets = [0, 0, 0], sizes = [1, 16, 27], strides = [1, 1, 1]} : vector<4x16x27xf32> to vector<1x16x27xf32>
    %475 = vector.shape_cast %474 : vector<1x16x27xf32> to vector<16x27xf32>
    %cst_125 = arith.constant dense<0.000000e+00> : vector<16x144xf32>
    %476 = tpu.matmul %475, %473, %cst_125 {dimension_numbers = #tpu.dot_dimension_numbers<[1], [1], [0], [0], [0, 0, 1, 0], [], []>} : vector<16x27xf32>, vector<144x27xf32>, vector<16x144xf32> -> vector<16x144xf32>
    %cst_126 = arith.constant 0.577350259 : f32
    %477 = vector.broadcast %cst_126 : f32 to vector<16x144xf32>
    %478 = arith.mulf %476, %477 : vector<16x144xf32>
    %cst_127 = arith.constant dense<0xFF800000> : vector<144xf32>
    %479 = vector.multi_reduction <maximumf>, %478, %cst_127 [0] : vector<16x144xf32> to vector<144xf32>
    %480 = vector.shape_cast %479 : vector<144xf32> to vector<1x144xf32>
    %481 = vector.broadcast %480 : vector<1x144xf32> to vector<16x144xf32>
    %482 = arith.subf %478, %481 : vector<16x144xf32>
    %483 = math.exp %482 : vector<16x144xf32>
    %cst_128 = arith.constant dense<0.000000e+00> : vector<144xf32>
    %484 = vector.multi_reduction <add>, %483, %cst_128 [0] : vector<16x144xf32> to vector<144xf32>
    %485 = vector.shape_cast %484 : vector<144xf32> to vector<1x144xf32>
    %486 = tpu.reciprocal %485 {approx = true} : vector<1x144xf32> -> vector<1x144xf32>
    %487 = vector.broadcast %486 : vector<1x144xf32> to vector<16x144xf32>
    %488 = arith.mulf %483, %487 : vector<16x144xf32>
    %489 = tpu.transpose %488, [1, 0] : vector<16x144xf32> -> vector<144x16xf32>
    %490 = vector.extract_strided_slice %469 {offsets = [0, 0, 0], sizes = [1, 16, 27], strides = [1, 1, 1]} : vector<4x16x27xf32> to vector<1x16x27xf32>
    %491 = vector.shape_cast %490 : vector<1x16x27xf32> to vector<16x27xf32>
    %cst_129 = arith.constant dense<0.000000e+00> : vector<144x27xf32>
    %492 = tpu.matmul %489, %491, %cst_129 {dimension_numbers = #tpu.dot_dimension_numbers<[1], [0], [0], [1], [0, 0, 1, 1], [], []>} : vector<144x16xf32>, vector<16x27xf32>, vector<144x27xf32> -> vector<144x27xf32>
    %493 = arith.mulf %492, %66 : vector<144x27xf32>
    %494 = vector.extract_strided_slice %493 {offsets = [0, 0], sizes = [16, 27], strides = [1, 1]} : vector<144x27xf32> to vector<16x27xf32>
    %495 = vector.extract_strided_slice %493 {offsets = [16, 0], sizes = [16, 27], strides = [1, 1]} : vector<144x27xf32> to vector<16x27xf32>
    %496 = arith.addf %494, %495 : vector<16x27xf32>
    %497 = vector.extract_strided_slice %493 {offsets = [32, 0], sizes = [16, 27], strides = [1, 1]} : vector<144x27xf32> to vector<16x27xf32>
    %498 = arith.addf %496, %497 : vector<16x27xf32>
    %499 = vector.extract_strided_slice %493 {offsets = [48, 0], sizes = [16, 27], strides = [1, 1]} : vector<144x27xf32> to vector<16x27xf32>
    %500 = arith.addf %498, %499 : vector<16x27xf32>
    %501 = vector.extract_strided_slice %493 {offsets = [64, 0], sizes = [16, 27], strides = [1, 1]} : vector<144x27xf32> to vector<16x27xf32>
    %502 = arith.addf %500, %501 : vector<16x27xf32>
    %503 = vector.extract_strided_slice %493 {offsets = [80, 0], sizes = [16, 27], strides = [1, 1]} : vector<144x27xf32> to vector<16x27xf32>
    %504 = arith.addf %502, %503 : vector<16x27xf32>
    %505 = vector.extract_strided_slice %493 {offsets = [96, 0], sizes = [16, 27], strides = [1, 1]} : vector<144x27xf32> to vector<16x27xf32>
    %506 = arith.addf %504, %505 : vector<16x27xf32>
    %507 = vector.extract_strided_slice %493 {offsets = [112, 0], sizes = [16, 27], strides = [1, 1]} : vector<144x27xf32> to vector<16x27xf32>
    %508 = arith.addf %506, %507 : vector<16x27xf32>
    %509 = vector.extract_strided_slice %493 {offsets = [128, 0], sizes = [16, 27], strides = [1, 1]} : vector<144x27xf32> to vector<16x27xf32>
    %510 = arith.addf %508, %509 : vector<16x27xf32>
    %511 = vector.extract_strided_slice %467 {offsets = [1, 0, 0], sizes = [1, 16, 27], strides = [1, 1, 1]} : vector<4x16x27xf32> to vector<1x16x27xf32>
    %512 = vector.shape_cast %511 : vector<1x16x27xf32> to vector<16x27xf32>
    %513 = tpu.concatenate %512, %512, %512, %512, %512, %512, %512, %512, %512 in 0 : vector<16x27xf32>, vector<16x27xf32>, vector<16x27xf32>, vector<16x27xf32>, vector<16x27xf32>, vector<16x27xf32>, vector<16x27xf32>, vector<16x27xf32>, vector<16x27xf32> -> vector<144x27xf32>
    %514 = arith.mulf %513, %66 : vector<144x27xf32>
    %515 = vector.extract_strided_slice %468 {offsets = [1, 0, 0], sizes = [1, 16, 27], strides = [1, 1, 1]} : vector<4x16x27xf32> to vector<1x16x27xf32>
    %516 = vector.shape_cast %515 : vector<1x16x27xf32> to vector<16x27xf32>
    %cst_130 = arith.constant dense<0.000000e+00> : vector<16x144xf32>
    %517 = tpu.matmul %516, %514, %cst_130 {dimension_numbers = #tpu.dot_dimension_numbers<[1], [1], [0], [0], [0, 0, 1, 0], [], []>} : vector<16x27xf32>, vector<144x27xf32>, vector<16x144xf32> -> vector<16x144xf32>
    %cst_131 = arith.constant 0.577350259 : f32
    %518 = vector.broadcast %cst_131 : f32 to vector<16x144xf32>
    %519 = arith.mulf %517, %518 : vector<16x144xf32>
    %cst_132 = arith.constant dense<0xFF800000> : vector<144xf32>
    %520 = vector.multi_reduction <maximumf>, %519, %cst_132 [0] : vector<16x144xf32> to vector<144xf32>
    %521 = vector.shape_cast %520 : vector<144xf32> to vector<1x144xf32>
    %522 = vector.broadcast %521 : vector<1x144xf32> to vector<16x144xf32>
    %523 = arith.subf %519, %522 : vector<16x144xf32>
    %524 = math.exp %523 : vector<16x144xf32>
    %cst_133 = arith.constant dense<0.000000e+00> : vector<144xf32>
    %525 = vector.multi_reduction <add>, %524, %cst_133 [0] : vector<16x144xf32> to vector<144xf32>
    %526 = vector.shape_cast %525 : vector<144xf32> to vector<1x144xf32>
    %527 = tpu.reciprocal %526 {approx = true} : vector<1x144xf32> -> vector<1x144xf32>
    %528 = vector.broadcast %527 : vector<1x144xf32> to vector<16x144xf32>
    %529 = arith.mulf %524, %528 : vector<16x144xf32>
    %530 = tpu.transpose %529, [1, 0] : vector<16x144xf32> -> vector<144x16xf32>
    %531 = vector.extract_strided_slice %469 {offsets = [1, 0, 0], sizes = [1, 16, 27], strides = [1, 1, 1]} : vector<4x16x27xf32> to vector<1x16x27xf32>
    %532 = vector.shape_cast %531 : vector<1x16x27xf32> to vector<16x27xf32>
    %cst_134 = arith.constant dense<0.000000e+00> : vector<144x27xf32>
    %533 = tpu.matmul %530, %532, %cst_134 {dimension_numbers = #tpu.dot_dimension_numbers<[1], [0], [0], [1], [0, 0, 1, 1], [], []>} : vector<144x16xf32>, vector<16x27xf32>, vector<144x27xf32> -> vector<144x27xf32>
    %534 = arith.mulf %533, %66 : vector<144x27xf32>
    %535 = vector.extract_strided_slice %534 {offsets = [0, 0], sizes = [16, 27], strides = [1, 1]} : vector<144x27xf32> to vector<16x27xf32>
    %536 = vector.extract_strided_slice %534 {offsets = [16, 0], sizes = [16, 27], strides = [1, 1]} : vector<144x27xf32> to vector<16x27xf32>
    %537 = arith.addf %535, %536 : vector<16x27xf32>
    %538 = vector.extract_strided_slice %534 {offsets = [32, 0], sizes = [16, 27], strides = [1, 1]} : vector<144x27xf32> to vector<16x27xf32>
    %539 = arith.addf %537, %538 : vector<16x27xf32>
    %540 = vector.extract_strided_slice %534 {offsets = [48, 0], sizes = [16, 27], strides = [1, 1]} : vector<144x27xf32> to vector<16x27xf32>
    %541 = arith.addf %539, %540 : vector<16x27xf32>
    %542 = vector.extract_strided_slice %534 {offsets = [64, 0], sizes = [16, 27], strides = [1, 1]} : vector<144x27xf32> to vector<16x27xf32>
    %543 = arith.addf %541, %542 : vector<16x27xf32>
    %544 = vector.extract_strided_slice %534 {offsets = [80, 0], sizes = [16, 27], strides = [1, 1]} : vector<144x27xf32> to vector<16x27xf32>
    %545 = arith.addf %543, %544 : vector<16x27xf32>
    %546 = vector.extract_strided_slice %534 {offsets = [96, 0], sizes = [16, 27], strides = [1, 1]} : vector<144x27xf32> to vector<16x27xf32>
    %547 = arith.addf %545, %546 : vector<16x27xf32>
    %548 = vector.extract_strided_slice %534 {offsets = [112, 0], sizes = [16, 27], strides = [1, 1]} : vector<144x27xf32> to vector<16x27xf32>
    %549 = arith.addf %547, %548 : vector<16x27xf32>
    %550 = vector.extract_strided_slice %534 {offsets = [128, 0], sizes = [16, 27], strides = [1, 1]} : vector<144x27xf32> to vector<16x27xf32>
    %551 = arith.addf %549, %550 : vector<16x27xf32>
    %552 = vector.extract_strided_slice %467 {offsets = [2, 0, 0], sizes = [1, 16, 27], strides = [1, 1, 1]} : vector<4x16x27xf32> to vector<1x16x27xf32>
    %553 = vector.shape_cast %552 : vector<1x16x27xf32> to vector<16x27xf32>
    %554 = tpu.concatenate %553, %553, %553, %553, %553, %553, %553, %553, %553 in 0 : vector<16x27xf32>, vector<16x27xf32>, vector<16x27xf32>, vector<16x27xf32>, vector<16x27xf32>, vector<16x27xf32>, vector<16x27xf32>, vector<16x27xf32>, vector<16x27xf32> -> vector<144x27xf32>
    %555 = arith.mulf %554, %66 : vector<144x27xf32>
    %556 = vector.extract_strided_slice %468 {offsets = [2, 0, 0], sizes = [1, 16, 27], strides = [1, 1, 1]} : vector<4x16x27xf32> to vector<1x16x27xf32>
    %557 = vector.shape_cast %556 : vector<1x16x27xf32> to vector<16x27xf32>
    %cst_135 = arith.constant dense<0.000000e+00> : vector<16x144xf32>
    %558 = tpu.matmul %557, %555, %cst_135 {dimension_numbers = #tpu.dot_dimension_numbers<[1], [1], [0], [0], [0, 0, 1, 0], [], []>} : vector<16x27xf32>, vector<144x27xf32>, vector<16x144xf32> -> vector<16x144xf32>
    %cst_136 = arith.constant 0.577350259 : f32
    %559 = vector.broadcast %cst_136 : f32 to vector<16x144xf32>
    %560 = arith.mulf %558, %559 : vector<16x144xf32>
    %cst_137 = arith.constant dense<0xFF800000> : vector<144xf32>
    %561 = vector.multi_reduction <maximumf>, %560, %cst_137 [0] : vector<16x144xf32> to vector<144xf32>
    %562 = vector.shape_cast %561 : vector<144xf32> to vector<1x144xf32>
    %563 = vector.broadcast %562 : vector<1x144xf32> to vector<16x144xf32>
    %564 = arith.subf %560, %563 : vector<16x144xf32>
    %565 = math.exp %564 : vector<16x144xf32>
    %cst_138 = arith.constant dense<0.000000e+00> : vector<144xf32>
    %566 = vector.multi_reduction <add>, %565, %cst_138 [0] : vector<16x144xf32> to vector<144xf32>
    %567 = vector.shape_cast %566 : vector<144xf32> to vector<1x144xf32>
    %568 = tpu.reciprocal %567 {approx = true} : vector<1x144xf32> -> vector<1x144xf32>
    %569 = vector.broadcast %568 : vector<1x144xf32> to vector<16x144xf32>
    %570 = arith.mulf %565, %569 : vector<16x144xf32>
    %571 = tpu.transpose %570, [1, 0] : vector<16x144xf32> -> vector<144x16xf32>
    %572 = vector.extract_strided_slice %469 {offsets = [2, 0, 0], sizes = [1, 16, 27], strides = [1, 1, 1]} : vector<4x16x27xf32> to vector<1x16x27xf32>
    %573 = vector.shape_cast %572 : vector<1x16x27xf32> to vector<16x27xf32>
    %cst_139 = arith.constant dense<0.000000e+00> : vector<144x27xf32>
    %574 = tpu.matmul %571, %573, %cst_139 {dimension_numbers = #tpu.dot_dimension_numbers<[1], [0], [0], [1], [0, 0, 1, 1], [], []>} : vector<144x16xf32>, vector<16x27xf32>, vector<144x27xf32> -> vector<144x27xf32>
    %575 = arith.mulf %574, %66 : vector<144x27xf32>
    %576 = vector.extract_strided_slice %575 {offsets = [0, 0], sizes = [16, 27], strides = [1, 1]} : vector<144x27xf32> to vector<16x27xf32>
    %577 = vector.extract_strided_slice %575 {offsets = [16, 0], sizes = [16, 27], strides = [1, 1]} : vector<144x27xf32> to vector<16x27xf32>
    %578 = arith.addf %576, %577 : vector<16x27xf32>
    %579 = vector.extract_strided_slice %575 {offsets = [32, 0], sizes = [16, 27], strides = [1, 1]} : vector<144x27xf32> to vector<16x27xf32>
    %580 = arith.addf %578, %579 : vector<16x27xf32>
    %581 = vector.extract_strided_slice %575 {offsets = [48, 0], sizes = [16, 27], strides = [1, 1]} : vector<144x27xf32> to vector<16x27xf32>
    %582 = arith.addf %580, %581 : vector<16x27xf32>
    %583 = vector.extract_strided_slice %575 {offsets = [64, 0], sizes = [16, 27], strides = [1, 1]} : vector<144x27xf32> to vector<16x27xf32>
    %584 = arith.addf %582, %583 : vector<16x27xf32>
    %585 = vector.extract_strided_slice %575 {offsets = [80, 0], sizes = [16, 27], strides = [1, 1]} : vector<144x27xf32> to vector<16x27xf32>
    %586 = arith.addf %584, %585 : vector<16x27xf32>
    %587 = vector.extract_strided_slice %575 {offsets = [96, 0], sizes = [16, 27], strides = [1, 1]} : vector<144x27xf32> to vector<16x27xf32>
    %588 = arith.addf %586, %587 : vector<16x27xf32>
    %589 = vector.extract_strided_slice %575 {offsets = [112, 0], sizes = [16, 27], strides = [1, 1]} : vector<144x27xf32> to vector<16x27xf32>
    %590 = arith.addf %588, %589 : vector<16x27xf32>
    %591 = vector.extract_strided_slice %575 {offsets = [128, 0], sizes = [16, 27], strides = [1, 1]} : vector<144x27xf32> to vector<16x27xf32>
    %592 = arith.addf %590, %591 : vector<16x27xf32>
    %593 = vector.extract_strided_slice %467 {offsets = [3, 0, 0], sizes = [1, 16, 27], strides = [1, 1, 1]} : vector<4x16x27xf32> to vector<1x16x27xf32>
    %594 = vector.shape_cast %593 : vector<1x16x27xf32> to vector<16x27xf32>
    %595 = tpu.concatenate %594, %594, %594, %594, %594, %594, %594, %594, %594 in 0 : vector<16x27xf32>, vector<16x27xf32>, vector<16x27xf32>, vector<16x27xf32>, vector<16x27xf32>, vector<16x27xf32>, vector<16x27xf32>, vector<16x27xf32>, vector<16x27xf32> -> vector<144x27xf32>
    %596 = arith.mulf %595, %66 : vector<144x27xf32>
    %597 = vector.extract_strided_slice %468 {offsets = [3, 0, 0], sizes = [1, 16, 27], strides = [1, 1, 1]} : vector<4x16x27xf32> to vector<1x16x27xf32>
    %598 = vector.shape_cast %597 : vector<1x16x27xf32> to vector<16x27xf32>
    %cst_140 = arith.constant dense<0.000000e+00> : vector<16x144xf32>
    %599 = tpu.matmul %598, %596, %cst_140 {dimension_numbers = #tpu.dot_dimension_numbers<[1], [1], [0], [0], [0, 0, 1, 0], [], []>} : vector<16x27xf32>, vector<144x27xf32>, vector<16x144xf32> -> vector<16x144xf32>
    %cst_141 = arith.constant 0.577350259 : f32
    %600 = vector.broadcast %cst_141 : f32 to vector<16x144xf32>
    %601 = arith.mulf %599, %600 : vector<16x144xf32>
    %cst_142 = arith.constant dense<0xFF800000> : vector<144xf32>
    %602 = vector.multi_reduction <maximumf>, %601, %cst_142 [0] : vector<16x144xf32> to vector<144xf32>
    %603 = vector.shape_cast %602 : vector<144xf32> to vector<1x144xf32>
    %604 = vector.broadcast %603 : vector<1x144xf32> to vector<16x144xf32>
    %605 = arith.subf %601, %604 : vector<16x144xf32>
    %606 = math.exp %605 : vector<16x144xf32>
    %cst_143 = arith.constant dense<0.000000e+00> : vector<144xf32>
    %607 = vector.multi_reduction <add>, %606, %cst_143 [0] : vector<16x144xf32> to vector<144xf32>
    %608 = vector.shape_cast %607 : vector<144xf32> to vector<1x144xf32>
    %609 = tpu.reciprocal %608 {approx = true} : vector<1x144xf32> -> vector<1x144xf32>
    %610 = vector.broadcast %609 : vector<1x144xf32> to vector<16x144xf32>
    %611 = arith.mulf %606, %610 : vector<16x144xf32>
    %612 = tpu.transpose %611, [1, 0] : vector<16x144xf32> -> vector<144x16xf32>
    %613 = vector.extract_strided_slice %469 {offsets = [3, 0, 0], sizes = [1, 16, 27], strides = [1, 1, 1]} : vector<4x16x27xf32> to vector<1x16x27xf32>
    %614 = vector.shape_cast %613 : vector<1x16x27xf32> to vector<16x27xf32>
    %cst_144 = arith.constant dense<0.000000e+00> : vector<144x27xf32>
    %615 = tpu.matmul %612, %614, %cst_144 {dimension_numbers = #tpu.dot_dimension_numbers<[1], [0], [0], [1], [0, 0, 1, 1], [], []>} : vector<144x16xf32>, vector<16x27xf32>, vector<144x27xf32> -> vector<144x27xf32>
    %616 = arith.mulf %615, %66 : vector<144x27xf32>
    %617 = vector.extract_strided_slice %616 {offsets = [0, 0], sizes = [16, 27], strides = [1, 1]} : vector<144x27xf32> to vector<16x27xf32>
    %618 = vector.extract_strided_slice %616 {offsets = [16, 0], sizes = [16, 27], strides = [1, 1]} : vector<144x27xf32> to vector<16x27xf32>
    %619 = arith.addf %617, %618 : vector<16x27xf32>
    %620 = vector.extract_strided_slice %616 {offsets = [32, 0], sizes = [16, 27], strides = [1, 1]} : vector<144x27xf32> to vector<16x27xf32>
    %621 = arith.addf %619, %620 : vector<16x27xf32>
    %622 = vector.extract_strided_slice %616 {offsets = [48, 0], sizes = [16, 27], strides = [1, 1]} : vector<144x27xf32> to vector<16x27xf32>
    %623 = arith.addf %621, %622 : vector<16x27xf32>
    %624 = vector.extract_strided_slice %616 {offsets = [64, 0], sizes = [16, 27], strides = [1, 1]} : vector<144x27xf32> to vector<16x27xf32>
    %625 = arith.addf %623, %624 : vector<16x27xf32>
    %626 = vector.extract_strided_slice %616 {offsets = [80, 0], sizes = [16, 27], strides = [1, 1]} : vector<144x27xf32> to vector<16x27xf32>
    %627 = arith.addf %625, %626 : vector<16x27xf32>
    %628 = vector.extract_strided_slice %616 {offsets = [96, 0], sizes = [16, 27], strides = [1, 1]} : vector<144x27xf32> to vector<16x27xf32>
    %629 = arith.addf %627, %628 : vector<16x27xf32>
    %630 = vector.extract_strided_slice %616 {offsets = [112, 0], sizes = [16, 27], strides = [1, 1]} : vector<144x27xf32> to vector<16x27xf32>
    %631 = arith.addf %629, %630 : vector<16x27xf32>
    %632 = vector.extract_strided_slice %616 {offsets = [128, 0], sizes = [16, 27], strides = [1, 1]} : vector<144x27xf32> to vector<16x27xf32>
    %633 = arith.addf %631, %632 : vector<16x27xf32>
    %634 = tpu.concatenate %510, %551, %592, %633 in 0 : vector<16x27xf32>, vector<16x27xf32>, vector<16x27xf32>, vector<16x27xf32> -> vector<64x27xf32>
    %c17 = arith.constant 17 : index
    %c0_145 = arith.constant 0 : index
    %635 = vector.load %arg2[%c17, %c0_145] : memref<36x81xf32, #tpu.memory_space<vmem>>, vector<1x27xf32>
    %636 = arith.subf %466, %634 : vector<64x27xf32>
    %c5_146 = arith.constant 5 : index
    %c0_147 = arith.constant 0 : index
    %c0_148 = arith.constant 0 : index
    %637 = vector.load %arg3[%c5_146, %c0_147, %c0_148] : memref<9x27x27xf32, #tpu.memory_space<vmem>>, vector<1x27x27xf32>
    %638 = vector.shape_cast %637 : vector<1x27x27xf32> to vector<27x27xf32>
    %cst_149 = arith.constant dense<0.000000e+00> : vector<64x27xf32>
    %639 = tpu.matmul %636, %638, %cst_149 {dimension_numbers = #tpu.dot_dimension_numbers<[1], [0], [0], [1], [0, 0, 1, 1], [], []>} : vector<64x27xf32>, vector<27x27xf32>, vector<64x27xf32> -> vector<64x27xf32>
    %640 = vector.broadcast %635 : vector<1x27xf32> to vector<64x27xf32>
    %641 = arith.addf %639, %640 : vector<64x27xf32>
    %642 = arith.addf %419, %641 : vector<64x27xf32>
    %c18 = arith.constant 18 : index
    %c0_150 = arith.constant 0 : index
    %643 = vector.load %arg2[%c18, %c0_150] : memref<36x81xf32, #tpu.memory_space<vmem>>, vector<1x27xf32>
    %c19 = arith.constant 19 : index
    %c0_151 = arith.constant 0 : index
    %644 = vector.load %arg2[%c19, %c0_151] : memref<36x81xf32, #tpu.memory_space<vmem>>, vector<1x27xf32>
    %cst_152 = arith.constant dense<0.000000e+00> : vector<64xf32>
    %645 = vector.multi_reduction <add>, %642, %cst_152 [1] : vector<64x27xf32> to vector<64xf32>
    %646 = vector.shape_cast %645 : vector<64xf32> to vector<64x1xf32>
    %cst_153 = arith.constant 2.700000e+01 : f32
    %647 = vector.broadcast %cst_153 : f32 to vector<64x1xf32>
    %648 = arith.divf %646, %647 : vector<64x1xf32>
    %649 = vector.broadcast %648 : vector<64x1xf32> to vector<64x27xf32>
    %650 = arith.subf %642, %649 : vector<64x27xf32>
    %651 = arith.mulf %650, %650 : vector<64x27xf32>
    %cst_154 = arith.constant dense<0.000000e+00> : vector<64xf32>
    %652 = vector.multi_reduction <add>, %651, %cst_154 [1] : vector<64x27xf32> to vector<64xf32>
    %653 = vector.shape_cast %652 : vector<64xf32> to vector<64x1xf32>
    %cst_155 = arith.constant 2.700000e+01 : f32
    %654 = vector.broadcast %cst_155 : f32 to vector<64x1xf32>
    %655 = arith.divf %653, %654 : vector<64x1xf32>
    %cst_156 = arith.constant 9.99999997E-7 : f32
    %656 = vector.broadcast %cst_156 : f32 to vector<64x1xf32>
    %657 = arith.addf %655, %656 : vector<64x1xf32>
    %658 = math.rsqrt %657 : vector<64x1xf32>
    %659 = vector.broadcast %658 : vector<64x1xf32> to vector<64x27xf32>
    %660 = arith.mulf %650, %659 : vector<64x27xf32>
    %661 = vector.broadcast %643 : vector<1x27xf32> to vector<64x27xf32>
    %662 = arith.mulf %660, %661 : vector<64x27xf32>
    %663 = vector.broadcast %644 : vector<1x27xf32> to vector<64x27xf32>
    %664 = arith.addf %662, %663 : vector<64x27xf32>
    %c20 = arith.constant 20 : index
    %c0_157 = arith.constant 0 : index
    %665 = vector.load %arg2[%c20, %c0_157] : memref<36x81xf32, #tpu.memory_space<vmem>>, vector<1x54xf32>
    %c1_158 = arith.constant 1 : index
    %c0_159 = arith.constant 0 : index
    %c0_160 = arith.constant 0 : index
    %666 = vector.load %arg5[%c1_158, %c0_159, %c0_160] : memref<3x27x54xf32, #tpu.memory_space<vmem>>, vector<1x27x54xf32>
    %667 = vector.shape_cast %666 : vector<1x27x54xf32> to vector<27x54xf32>
    %cst_161 = arith.constant dense<0.000000e+00> : vector<64x54xf32>
    %668 = tpu.matmul %664, %667, %cst_161 {dimension_numbers = #tpu.dot_dimension_numbers<[1], [0], [0], [1], [0, 0, 1, 1], [], []>} : vector<64x27xf32>, vector<27x54xf32>, vector<64x54xf32> -> vector<64x54xf32>
    %669 = vector.broadcast %665 : vector<1x54xf32> to vector<64x54xf32>
    %670 = arith.addf %668, %669 : vector<64x54xf32>
    %cst_162 = arith.constant 5.000000e-01 : f32
    %671 = vector.broadcast %cst_162 : f32 to vector<64x54xf32>
    %672 = arith.mulf %671, %670 : vector<64x54xf32>
    %cst_163 = arith.constant 4.471500e-02 : f32
    %673 = vector.broadcast %cst_163 : f32 to vector<64x54xf32>
    %674 = arith.mulf %673, %670 : vector<64x54xf32>
    %675 = arith.mulf %674, %670 : vector<64x54xf32>
    %676 = arith.mulf %675, %670 : vector<64x54xf32>
    %677 = arith.addf %670, %676 : vector<64x54xf32>
    %cst_164 = arith.constant 0.797884583 : f32
    %678 = vector.broadcast %cst_164 : f32 to vector<64x54xf32>
    %679 = arith.mulf %678, %677 : vector<64x54xf32>
    %680 = math.tanh %679 : vector<64x54xf32>
    %cst_165 = arith.constant 1.000000e+00 : f32
    %681 = vector.broadcast %cst_165 : f32 to vector<64x54xf32>
    %682 = arith.addf %681, %680 : vector<64x54xf32>
    %683 = arith.mulf %672, %682 : vector<64x54xf32>
    %c21 = arith.constant 21 : index
    %c0_166 = arith.constant 0 : index
    %684 = vector.load %arg2[%c21, %c0_166] : memref<36x81xf32, #tpu.memory_space<vmem>>, vector<1x27xf32>
    %c1_167 = arith.constant 1 : index
    %c0_168 = arith.constant 0 : index
    %c0_169 = arith.constant 0 : index
    %685 = vector.load %arg6[%c1_167, %c0_168, %c0_169] : memref<3x54x27xf32, #tpu.memory_space<vmem>>, vector<1x54x27xf32>
    %686 = vector.shape_cast %685 : vector<1x54x27xf32> to vector<54x27xf32>
    %cst_170 = arith.constant dense<0.000000e+00> : vector<64x27xf32>
    %687 = tpu.matmul %683, %686, %cst_170 {dimension_numbers = #tpu.dot_dimension_numbers<[1], [0], [0], [1], [0, 0, 1, 1], [], []>} : vector<64x54xf32>, vector<54x27xf32>, vector<64x27xf32> -> vector<64x27xf32>
    %688 = vector.broadcast %684 : vector<1x27xf32> to vector<64x27xf32>
    %689 = arith.addf %687, %688 : vector<64x27xf32>
    %690 = arith.addf %642, %689 : vector<64x27xf32>
    %c22 = arith.constant 22 : index
    %c0_171 = arith.constant 0 : index
    %691 = vector.load %arg2[%c22, %c0_171] : memref<36x81xf32, #tpu.memory_space<vmem>>, vector<1x27xf32>
    %c23 = arith.constant 23 : index
    %c0_172 = arith.constant 0 : index
    %692 = vector.load %arg2[%c23, %c0_172] : memref<36x81xf32, #tpu.memory_space<vmem>>, vector<1x27xf32>
    %cst_173 = arith.constant dense<0.000000e+00> : vector<64xf32>
    %693 = vector.multi_reduction <add>, %690, %cst_173 [1] : vector<64x27xf32> to vector<64xf32>
    %694 = vector.shape_cast %693 : vector<64xf32> to vector<64x1xf32>
    %cst_174 = arith.constant 2.700000e+01 : f32
    %695 = vector.broadcast %cst_174 : f32 to vector<64x1xf32>
    %696 = arith.divf %694, %695 : vector<64x1xf32>
    %697 = vector.broadcast %696 : vector<64x1xf32> to vector<64x27xf32>
    %698 = arith.subf %690, %697 : vector<64x27xf32>
    %699 = arith.mulf %698, %698 : vector<64x27xf32>
    %cst_175 = arith.constant dense<0.000000e+00> : vector<64xf32>
    %700 = vector.multi_reduction <add>, %699, %cst_175 [1] : vector<64x27xf32> to vector<64xf32>
    %701 = vector.shape_cast %700 : vector<64xf32> to vector<64x1xf32>
    %cst_176 = arith.constant 2.700000e+01 : f32
    %702 = vector.broadcast %cst_176 : f32 to vector<64x1xf32>
    %703 = arith.divf %701, %702 : vector<64x1xf32>
    %cst_177 = arith.constant 9.99999997E-7 : f32
    %704 = vector.broadcast %cst_177 : f32 to vector<64x1xf32>
    %705 = arith.addf %703, %704 : vector<64x1xf32>
    %706 = math.rsqrt %705 : vector<64x1xf32>
    %707 = vector.broadcast %706 : vector<64x1xf32> to vector<64x27xf32>
    %708 = arith.mulf %698, %707 : vector<64x27xf32>
    %709 = vector.broadcast %691 : vector<1x27xf32> to vector<64x27xf32>
    %710 = arith.mulf %708, %709 : vector<64x27xf32>
    %711 = vector.broadcast %692 : vector<1x27xf32> to vector<64x27xf32>
    %712 = arith.addf %710, %711 : vector<64x27xf32>
    %713 = arith.addf %389, %712 : vector<64x27xf32>
    %714 = vector.shape_cast %713 : vector<64x27xf32> to vector<4x16x27xf32>
    %c24 = arith.constant 24 : index
    %c0_178 = arith.constant 0 : index
    %715 = vector.load %arg2[%c24, %c0_178] : memref<36x81xf32, #tpu.memory_space<vmem>>, vector<1x27xf32>
    %c25 = arith.constant 25 : index
    %c0_179 = arith.constant 0 : index
    %716 = vector.load %arg2[%c25, %c0_179] : memref<36x81xf32, #tpu.memory_space<vmem>>, vector<1x27xf32>
    %cst_180 = arith.constant dense<0.000000e+00> : vector<64xf32>
    %717 = vector.multi_reduction <add>, %713, %cst_180 [1] : vector<64x27xf32> to vector<64xf32>
    %718 = vector.shape_cast %717 : vector<64xf32> to vector<64x1xf32>
    %cst_181 = arith.constant 2.700000e+01 : f32
    %719 = vector.broadcast %cst_181 : f32 to vector<64x1xf32>
    %720 = arith.divf %718, %719 : vector<64x1xf32>
    %721 = vector.broadcast %720 : vector<64x1xf32> to vector<64x27xf32>
    %722 = arith.subf %713, %721 : vector<64x27xf32>
    %723 = arith.mulf %722, %722 : vector<64x27xf32>
    %cst_182 = arith.constant dense<0.000000e+00> : vector<64xf32>
    %724 = vector.multi_reduction <add>, %723, %cst_182 [1] : vector<64x27xf32> to vector<64xf32>
    %725 = vector.shape_cast %724 : vector<64xf32> to vector<64x1xf32>
    %cst_183 = arith.constant 2.700000e+01 : f32
    %726 = vector.broadcast %cst_183 : f32 to vector<64x1xf32>
    %727 = arith.divf %725, %726 : vector<64x1xf32>
    %cst_184 = arith.constant 9.99999974E-6 : f32
    %728 = vector.broadcast %cst_184 : f32 to vector<64x1xf32>
    %729 = arith.addf %727, %728 : vector<64x1xf32>
    %730 = math.rsqrt %729 : vector<64x1xf32>
    %731 = vector.broadcast %730 : vector<64x1xf32> to vector<64x27xf32>
    %732 = arith.mulf %722, %731 : vector<64x27xf32>
    %733 = vector.broadcast %715 : vector<1x27xf32> to vector<64x27xf32>
    %734 = arith.mulf %732, %733 : vector<64x27xf32>
    %735 = vector.broadcast %716 : vector<1x27xf32> to vector<64x27xf32>
    %736 = arith.addf %734, %735 : vector<64x27xf32>
    %737 = vector.shape_cast %736 : vector<64x27xf32> to vector<4x16x27xf32>
    %c2_185 = arith.constant 2 : index
    %c0_186 = arith.constant 0 : index
    %c0_187 = arith.constant 0 : index
    %738 = vector.load %arg7[%c2_185, %c0_186, %c0_187] : memref<3x16x27xf32, #tpu.memory_space<vmem>>, vector<1x16x27xf32>
    %739 = vector.shape_cast %738 : vector<1x16x27xf32> to vector<16x27xf32>
    %740 = vector.shape_cast %739 : vector<16x27xf32> to vector<1x16x27xf32>
    %741 = vector.broadcast %740 : vector<1x16x27xf32> to vector<4x16x27xf32>
    %742 = arith.addf %737, %741 : vector<4x16x27xf32>
    %743 = vector.shape_cast %742 : vector<4x16x27xf32> to vector<64x27xf32>
    %c26 = arith.constant 26 : index
    %c0_188 = arith.constant 0 : index
    %744 = vector.load %arg2[%c26, %c0_188] : memref<36x81xf32, #tpu.memory_space<vmem>>, vector<1x27xf32>
    %c27 = arith.constant 27 : index
    %c0_189 = arith.constant 0 : index
    %745 = vector.load %arg2[%c27, %c0_189] : memref<36x81xf32, #tpu.memory_space<vmem>>, vector<1x27xf32>
    %cst_190 = arith.constant dense<0.000000e+00> : vector<64xf32>
    %746 = vector.multi_reduction <add>, %743, %cst_190 [1] : vector<64x27xf32> to vector<64xf32>
    %747 = vector.shape_cast %746 : vector<64xf32> to vector<64x1xf32>
    %cst_191 = arith.constant 2.700000e+01 : f32
    %748 = vector.broadcast %cst_191 : f32 to vector<64x1xf32>
    %749 = arith.divf %747, %748 : vector<64x1xf32>
    %750 = vector.broadcast %749 : vector<64x1xf32> to vector<64x27xf32>
    %751 = arith.subf %743, %750 : vector<64x27xf32>
    %752 = arith.mulf %751, %751 : vector<64x27xf32>
    %cst_192 = arith.constant dense<0.000000e+00> : vector<64xf32>
    %753 = vector.multi_reduction <add>, %752, %cst_192 [1] : vector<64x27xf32> to vector<64xf32>
    %754 = vector.shape_cast %753 : vector<64xf32> to vector<64x1xf32>
    %cst_193 = arith.constant 2.700000e+01 : f32
    %755 = vector.broadcast %cst_193 : f32 to vector<64x1xf32>
    %756 = arith.divf %754, %755 : vector<64x1xf32>
    %cst_194 = arith.constant 9.99999997E-7 : f32
    %757 = vector.broadcast %cst_194 : f32 to vector<64x1xf32>
    %758 = arith.addf %756, %757 : vector<64x1xf32>
    %759 = math.rsqrt %758 : vector<64x1xf32>
    %760 = vector.broadcast %759 : vector<64x1xf32> to vector<64x27xf32>
    %761 = arith.mulf %751, %760 : vector<64x27xf32>
    %762 = vector.broadcast %744 : vector<1x27xf32> to vector<64x27xf32>
    %763 = arith.mulf %761, %762 : vector<64x27xf32>
    %764 = vector.broadcast %745 : vector<1x27xf32> to vector<64x27xf32>
    %765 = arith.addf %763, %764 : vector<64x27xf32>
    %c28 = arith.constant 28 : index
    %c0_195 = arith.constant 0 : index
    %766 = vector.load %arg2[%c28, %c0_195] : memref<36x81xf32, #tpu.memory_space<vmem>>, vector<1x81xf32>
    %c2_196 = arith.constant 2 : index
    %c0_197 = arith.constant 0 : index
    %c0_198 = arith.constant 0 : index
    %767 = vector.load %arg4[%c2_196, %c0_197, %c0_198] : memref<3x27x81xf32, #tpu.memory_space<vmem>>, vector<1x27x81xf32>
    %768 = vector.shape_cast %767 : vector<1x27x81xf32> to vector<27x81xf32>
    %cst_199 = arith.constant dense<0.000000e+00> : vector<64x81xf32>
    %769 = tpu.matmul %765, %768, %cst_199 {dimension_numbers = #tpu.dot_dimension_numbers<[1], [0], [0], [1], [0, 0, 1, 1], [], []>} : vector<64x27xf32>, vector<27x81xf32>, vector<64x81xf32> -> vector<64x81xf32>
    %770 = vector.broadcast %766 : vector<1x81xf32> to vector<64x81xf32>
    %771 = arith.addf %769, %770 : vector<64x81xf32>
    %772 = vector.extract_strided_slice %771 {offsets = [0, 0], sizes = [64, 27], strides = [1, 1]} : vector<64x81xf32> to vector<64x27xf32>
    %773 = vector.extract_strided_slice %771 {offsets = [0, 27], sizes = [64, 27], strides = [1, 1]} : vector<64x81xf32> to vector<64x27xf32>
    %774 = vector.extract_strided_slice %771 {offsets = [0, 54], sizes = [64, 27], strides = [1, 1]} : vector<64x81xf32> to vector<64x27xf32>
    %775 = vector.shape_cast %765 : vector<64x27xf32> to vector<4x16x27xf32>
    %cst_200 = arith.constant 0.000000e+00 : f32
    %776 = vector.broadcast %cst_200 : f32 to vector<4x1x27xf32>
    %777 = vector.extract_strided_slice %775 {offsets = [0, 0, 0], sizes = [4, 15, 27], strides = [1, 1, 1]} : vector<4x16x27xf32> to vector<4x15x27xf32>
    %778 = tpu.concatenate %776, %777 in 1 : vector<4x1x27xf32>, vector<4x15x27xf32> -> vector<4x16x27xf32>
    %779 = vector.shape_cast %778 : vector<4x16x27xf32> to vector<64x27xf32>
    %780 = vector.extract_strided_slice %775 {offsets = [0, 1, 0], sizes = [4, 15, 27], strides = [1, 1, 1]} : vector<4x16x27xf32> to vector<4x15x27xf32>
    %781 = tpu.concatenate %780, %776 in 1 : vector<4x15x27xf32>, vector<4x1x27xf32> -> vector<4x16x27xf32>
    %782 = vector.shape_cast %781 : vector<4x16x27xf32> to vector<64x27xf32>
    %c6_201 = arith.constant 6 : index
    %c0_202 = arith.constant 0 : index
    %c0_203 = arith.constant 0 : index
    %783 = vector.load %arg3[%c6_201, %c0_202, %c0_203] : memref<9x27x27xf32, #tpu.memory_space<vmem>>, vector<1x27x27xf32>
    %784 = vector.shape_cast %783 : vector<1x27x27xf32> to vector<27x27xf32>
    %cst_204 = arith.constant dense<0.000000e+00> : vector<64x27xf32>
    %785 = tpu.matmul %779, %784, %cst_204 {dimension_numbers = #tpu.dot_dimension_numbers<[1], [0], [0], [1], [0, 0, 1, 1], [], []>} : vector<64x27xf32>, vector<27x27xf32>, vector<64x27xf32> -> vector<64x27xf32>
    %786 = arith.addf %772, %785 : vector<64x27xf32>
    %c7_205 = arith.constant 7 : index
    %c0_206 = arith.constant 0 : index
    %c0_207 = arith.constant 0 : index
    %787 = vector.load %arg3[%c7_205, %c0_206, %c0_207] : memref<9x27x27xf32, #tpu.memory_space<vmem>>, vector<1x27x27xf32>
    %788 = vector.shape_cast %787 : vector<1x27x27xf32> to vector<27x27xf32>
    %cst_208 = arith.constant dense<0.000000e+00> : vector<64x27xf32>
    %789 = tpu.matmul %782, %788, %cst_208 {dimension_numbers = #tpu.dot_dimension_numbers<[1], [0], [0], [1], [0, 0, 1, 1], [], []>} : vector<64x27xf32>, vector<27x27xf32>, vector<64x27xf32> -> vector<64x27xf32>
    %790 = arith.addf %786, %789 : vector<64x27xf32>
    %791 = vector.shape_cast %790 : vector<64x27xf32> to vector<4x16x27xf32>
    %792 = vector.shape_cast %773 : vector<64x27xf32> to vector<4x16x27xf32>
    %793 = vector.shape_cast %774 : vector<64x27xf32> to vector<4x16x27xf32>
    %794 = vector.extract_strided_slice %791 {offsets = [0, 0, 0], sizes = [1, 16, 27], strides = [1, 1, 1]} : vector<4x16x27xf32> to vector<1x16x27xf32>
    %795 = vector.shape_cast %794 : vector<1x16x27xf32> to vector<16x27xf32>
    %796 = tpu.concatenate %795, %795, %795, %795, %795, %795, %795, %795, %795 in 0 : vector<16x27xf32>, vector<16x27xf32>, vector<16x27xf32>, vector<16x27xf32>, vector<16x27xf32>, vector<16x27xf32>, vector<16x27xf32>, vector<16x27xf32>, vector<16x27xf32> -> vector<144x27xf32>
    %797 = arith.mulf %796, %66 : vector<144x27xf32>
    %798 = vector.extract_strided_slice %792 {offsets = [0, 0, 0], sizes = [1, 16, 27], strides = [1, 1, 1]} : vector<4x16x27xf32> to vector<1x16x27xf32>
    %799 = vector.shape_cast %798 : vector<1x16x27xf32> to vector<16x27xf32>
    %cst_209 = arith.constant dense<0.000000e+00> : vector<16x144xf32>
    %800 = tpu.matmul %799, %797, %cst_209 {dimension_numbers = #tpu.dot_dimension_numbers<[1], [1], [0], [0], [0, 0, 1, 0], [], []>} : vector<16x27xf32>, vector<144x27xf32>, vector<16x144xf32> -> vector<16x144xf32>
    %cst_210 = arith.constant 0.577350259 : f32
    %801 = vector.broadcast %cst_210 : f32 to vector<16x144xf32>
    %802 = arith.mulf %800, %801 : vector<16x144xf32>
    %cst_211 = arith.constant dense<0xFF800000> : vector<144xf32>
    %803 = vector.multi_reduction <maximumf>, %802, %cst_211 [0] : vector<16x144xf32> to vector<144xf32>
    %804 = vector.shape_cast %803 : vector<144xf32> to vector<1x144xf32>
    %805 = vector.broadcast %804 : vector<1x144xf32> to vector<16x144xf32>
    %806 = arith.subf %802, %805 : vector<16x144xf32>
    %807 = math.exp %806 : vector<16x144xf32>
    %cst_212 = arith.constant dense<0.000000e+00> : vector<144xf32>
    %808 = vector.multi_reduction <add>, %807, %cst_212 [0] : vector<16x144xf32> to vector<144xf32>
    %809 = vector.shape_cast %808 : vector<144xf32> to vector<1x144xf32>
    %810 = tpu.reciprocal %809 {approx = true} : vector<1x144xf32> -> vector<1x144xf32>
    %811 = vector.broadcast %810 : vector<1x144xf32> to vector<16x144xf32>
    %812 = arith.mulf %807, %811 : vector<16x144xf32>
    %813 = tpu.transpose %812, [1, 0] : vector<16x144xf32> -> vector<144x16xf32>
    %814 = vector.extract_strided_slice %793 {offsets = [0, 0, 0], sizes = [1, 16, 27], strides = [1, 1, 1]} : vector<4x16x27xf32> to vector<1x16x27xf32>
    %815 = vector.shape_cast %814 : vector<1x16x27xf32> to vector<16x27xf32>
    %cst_213 = arith.constant dense<0.000000e+00> : vector<144x27xf32>
    %816 = tpu.matmul %813, %815, %cst_213 {dimension_numbers = #tpu.dot_dimension_numbers<[1], [0], [0], [1], [0, 0, 1, 1], [], []>} : vector<144x16xf32>, vector<16x27xf32>, vector<144x27xf32> -> vector<144x27xf32>
    %817 = arith.mulf %816, %66 : vector<144x27xf32>
    %818 = vector.extract_strided_slice %817 {offsets = [0, 0], sizes = [16, 27], strides = [1, 1]} : vector<144x27xf32> to vector<16x27xf32>
    %819 = vector.extract_strided_slice %817 {offsets = [16, 0], sizes = [16, 27], strides = [1, 1]} : vector<144x27xf32> to vector<16x27xf32>
    %820 = arith.addf %818, %819 : vector<16x27xf32>
    %821 = vector.extract_strided_slice %817 {offsets = [32, 0], sizes = [16, 27], strides = [1, 1]} : vector<144x27xf32> to vector<16x27xf32>
    %822 = arith.addf %820, %821 : vector<16x27xf32>
    %823 = vector.extract_strided_slice %817 {offsets = [48, 0], sizes = [16, 27], strides = [1, 1]} : vector<144x27xf32> to vector<16x27xf32>
    %824 = arith.addf %822, %823 : vector<16x27xf32>
    %825 = vector.extract_strided_slice %817 {offsets = [64, 0], sizes = [16, 27], strides = [1, 1]} : vector<144x27xf32> to vector<16x27xf32>
    %826 = arith.addf %824, %825 : vector<16x27xf32>
    %827 = vector.extract_strided_slice %817 {offsets = [80, 0], sizes = [16, 27], strides = [1, 1]} : vector<144x27xf32> to vector<16x27xf32>
    %828 = arith.addf %826, %827 : vector<16x27xf32>
    %829 = vector.extract_strided_slice %817 {offsets = [96, 0], sizes = [16, 27], strides = [1, 1]} : vector<144x27xf32> to vector<16x27xf32>
    %830 = arith.addf %828, %829 : vector<16x27xf32>
    %831 = vector.extract_strided_slice %817 {offsets = [112, 0], sizes = [16, 27], strides = [1, 1]} : vector<144x27xf32> to vector<16x27xf32>
    %832 = arith.addf %830, %831 : vector<16x27xf32>
    %833 = vector.extract_strided_slice %817 {offsets = [128, 0], sizes = [16, 27], strides = [1, 1]} : vector<144x27xf32> to vector<16x27xf32>
    %834 = arith.addf %832, %833 : vector<16x27xf32>
    %835 = vector.extract_strided_slice %791 {offsets = [1, 0, 0], sizes = [1, 16, 27], strides = [1, 1, 1]} : vector<4x16x27xf32> to vector<1x16x27xf32>
    %836 = vector.shape_cast %835 : vector<1x16x27xf32> to vector<16x27xf32>
    %837 = tpu.concatenate %836, %836, %836, %836, %836, %836, %836, %836, %836 in 0 : vector<16x27xf32>, vector<16x27xf32>, vector<16x27xf32>, vector<16x27xf32>, vector<16x27xf32>, vector<16x27xf32>, vector<16x27xf32>, vector<16x27xf32>, vector<16x27xf32> -> vector<144x27xf32>
    %838 = arith.mulf %837, %66 : vector<144x27xf32>
    %839 = vector.extract_strided_slice %792 {offsets = [1, 0, 0], sizes = [1, 16, 27], strides = [1, 1, 1]} : vector<4x16x27xf32> to vector<1x16x27xf32>
    %840 = vector.shape_cast %839 : vector<1x16x27xf32> to vector<16x27xf32>
    %cst_214 = arith.constant dense<0.000000e+00> : vector<16x144xf32>
    %841 = tpu.matmul %840, %838, %cst_214 {dimension_numbers = #tpu.dot_dimension_numbers<[1], [1], [0], [0], [0, 0, 1, 0], [], []>} : vector<16x27xf32>, vector<144x27xf32>, vector<16x144xf32> -> vector<16x144xf32>
    %cst_215 = arith.constant 0.577350259 : f32
    %842 = vector.broadcast %cst_215 : f32 to vector<16x144xf32>
    %843 = arith.mulf %841, %842 : vector<16x144xf32>
    %cst_216 = arith.constant dense<0xFF800000> : vector<144xf32>
    %844 = vector.multi_reduction <maximumf>, %843, %cst_216 [0] : vector<16x144xf32> to vector<144xf32>
    %845 = vector.shape_cast %844 : vector<144xf32> to vector<1x144xf32>
    %846 = vector.broadcast %845 : vector<1x144xf32> to vector<16x144xf32>
    %847 = arith.subf %843, %846 : vector<16x144xf32>
    %848 = math.exp %847 : vector<16x144xf32>
    %cst_217 = arith.constant dense<0.000000e+00> : vector<144xf32>
    %849 = vector.multi_reduction <add>, %848, %cst_217 [0] : vector<16x144xf32> to vector<144xf32>
    %850 = vector.shape_cast %849 : vector<144xf32> to vector<1x144xf32>
    %851 = tpu.reciprocal %850 {approx = true} : vector<1x144xf32> -> vector<1x144xf32>
    %852 = vector.broadcast %851 : vector<1x144xf32> to vector<16x144xf32>
    %853 = arith.mulf %848, %852 : vector<16x144xf32>
    %854 = tpu.transpose %853, [1, 0] : vector<16x144xf32> -> vector<144x16xf32>
    %855 = vector.extract_strided_slice %793 {offsets = [1, 0, 0], sizes = [1, 16, 27], strides = [1, 1, 1]} : vector<4x16x27xf32> to vector<1x16x27xf32>
    %856 = vector.shape_cast %855 : vector<1x16x27xf32> to vector<16x27xf32>
    %cst_218 = arith.constant dense<0.000000e+00> : vector<144x27xf32>
    %857 = tpu.matmul %854, %856, %cst_218 {dimension_numbers = #tpu.dot_dimension_numbers<[1], [0], [0], [1], [0, 0, 1, 1], [], []>} : vector<144x16xf32>, vector<16x27xf32>, vector<144x27xf32> -> vector<144x27xf32>
    %858 = arith.mulf %857, %66 : vector<144x27xf32>
    %859 = vector.extract_strided_slice %858 {offsets = [0, 0], sizes = [16, 27], strides = [1, 1]} : vector<144x27xf32> to vector<16x27xf32>
    %860 = vector.extract_strided_slice %858 {offsets = [16, 0], sizes = [16, 27], strides = [1, 1]} : vector<144x27xf32> to vector<16x27xf32>
    %861 = arith.addf %859, %860 : vector<16x27xf32>
    %862 = vector.extract_strided_slice %858 {offsets = [32, 0], sizes = [16, 27], strides = [1, 1]} : vector<144x27xf32> to vector<16x27xf32>
    %863 = arith.addf %861, %862 : vector<16x27xf32>
    %864 = vector.extract_strided_slice %858 {offsets = [48, 0], sizes = [16, 27], strides = [1, 1]} : vector<144x27xf32> to vector<16x27xf32>
    %865 = arith.addf %863, %864 : vector<16x27xf32>
    %866 = vector.extract_strided_slice %858 {offsets = [64, 0], sizes = [16, 27], strides = [1, 1]} : vector<144x27xf32> to vector<16x27xf32>
    %867 = arith.addf %865, %866 : vector<16x27xf32>
    %868 = vector.extract_strided_slice %858 {offsets = [80, 0], sizes = [16, 27], strides = [1, 1]} : vector<144x27xf32> to vector<16x27xf32>
    %869 = arith.addf %867, %868 : vector<16x27xf32>
    %870 = vector.extract_strided_slice %858 {offsets = [96, 0], sizes = [16, 27], strides = [1, 1]} : vector<144x27xf32> to vector<16x27xf32>
    %871 = arith.addf %869, %870 : vector<16x27xf32>
    %872 = vector.extract_strided_slice %858 {offsets = [112, 0], sizes = [16, 27], strides = [1, 1]} : vector<144x27xf32> to vector<16x27xf32>
    %873 = arith.addf %871, %872 : vector<16x27xf32>
    %874 = vector.extract_strided_slice %858 {offsets = [128, 0], sizes = [16, 27], strides = [1, 1]} : vector<144x27xf32> to vector<16x27xf32>
    %875 = arith.addf %873, %874 : vector<16x27xf32>
    %876 = vector.extract_strided_slice %791 {offsets = [2, 0, 0], sizes = [1, 16, 27], strides = [1, 1, 1]} : vector<4x16x27xf32> to vector<1x16x27xf32>
    %877 = vector.shape_cast %876 : vector<1x16x27xf32> to vector<16x27xf32>
    %878 = tpu.concatenate %877, %877, %877, %877, %877, %877, %877, %877, %877 in 0 : vector<16x27xf32>, vector<16x27xf32>, vector<16x27xf32>, vector<16x27xf32>, vector<16x27xf32>, vector<16x27xf32>, vector<16x27xf32>, vector<16x27xf32>, vector<16x27xf32> -> vector<144x27xf32>
    %879 = arith.mulf %878, %66 : vector<144x27xf32>
    %880 = vector.extract_strided_slice %792 {offsets = [2, 0, 0], sizes = [1, 16, 27], strides = [1, 1, 1]} : vector<4x16x27xf32> to vector<1x16x27xf32>
    %881 = vector.shape_cast %880 : vector<1x16x27xf32> to vector<16x27xf32>
    %cst_219 = arith.constant dense<0.000000e+00> : vector<16x144xf32>
    %882 = tpu.matmul %881, %879, %cst_219 {dimension_numbers = #tpu.dot_dimension_numbers<[1], [1], [0], [0], [0, 0, 1, 0], [], []>} : vector<16x27xf32>, vector<144x27xf32>, vector<16x144xf32> -> vector<16x144xf32>
    %cst_220 = arith.constant 0.577350259 : f32
    %883 = vector.broadcast %cst_220 : f32 to vector<16x144xf32>
    %884 = arith.mulf %882, %883 : vector<16x144xf32>
    %cst_221 = arith.constant dense<0xFF800000> : vector<144xf32>
    %885 = vector.multi_reduction <maximumf>, %884, %cst_221 [0] : vector<16x144xf32> to vector<144xf32>
    %886 = vector.shape_cast %885 : vector<144xf32> to vector<1x144xf32>
    %887 = vector.broadcast %886 : vector<1x144xf32> to vector<16x144xf32>
    %888 = arith.subf %884, %887 : vector<16x144xf32>
    %889 = math.exp %888 : vector<16x144xf32>
    %cst_222 = arith.constant dense<0.000000e+00> : vector<144xf32>
    %890 = vector.multi_reduction <add>, %889, %cst_222 [0] : vector<16x144xf32> to vector<144xf32>
    %891 = vector.shape_cast %890 : vector<144xf32> to vector<1x144xf32>
    %892 = tpu.reciprocal %891 {approx = true} : vector<1x144xf32> -> vector<1x144xf32>
    %893 = vector.broadcast %892 : vector<1x144xf32> to vector<16x144xf32>
    %894 = arith.mulf %889, %893 : vector<16x144xf32>
    %895 = tpu.transpose %894, [1, 0] : vector<16x144xf32> -> vector<144x16xf32>
    %896 = vector.extract_strided_slice %793 {offsets = [2, 0, 0], sizes = [1, 16, 27], strides = [1, 1, 1]} : vector<4x16x27xf32> to vector<1x16x27xf32>
    %897 = vector.shape_cast %896 : vector<1x16x27xf32> to vector<16x27xf32>
    %cst_223 = arith.constant dense<0.000000e+00> : vector<144x27xf32>
    %898 = tpu.matmul %895, %897, %cst_223 {dimension_numbers = #tpu.dot_dimension_numbers<[1], [0], [0], [1], [0, 0, 1, 1], [], []>} : vector<144x16xf32>, vector<16x27xf32>, vector<144x27xf32> -> vector<144x27xf32>
    %899 = arith.mulf %898, %66 : vector<144x27xf32>
    %900 = vector.extract_strided_slice %899 {offsets = [0, 0], sizes = [16, 27], strides = [1, 1]} : vector<144x27xf32> to vector<16x27xf32>
    %901 = vector.extract_strided_slice %899 {offsets = [16, 0], sizes = [16, 27], strides = [1, 1]} : vector<144x27xf32> to vector<16x27xf32>
    %902 = arith.addf %900, %901 : vector<16x27xf32>
    %903 = vector.extract_strided_slice %899 {offsets = [32, 0], sizes = [16, 27], strides = [1, 1]} : vector<144x27xf32> to vector<16x27xf32>
    %904 = arith.addf %902, %903 : vector<16x27xf32>
    %905 = vector.extract_strided_slice %899 {offsets = [48, 0], sizes = [16, 27], strides = [1, 1]} : vector<144x27xf32> to vector<16x27xf32>
    %906 = arith.addf %904, %905 : vector<16x27xf32>
    %907 = vector.extract_strided_slice %899 {offsets = [64, 0], sizes = [16, 27], strides = [1, 1]} : vector<144x27xf32> to vector<16x27xf32>
    %908 = arith.addf %906, %907 : vector<16x27xf32>
    %909 = vector.extract_strided_slice %899 {offsets = [80, 0], sizes = [16, 27], strides = [1, 1]} : vector<144x27xf32> to vector<16x27xf32>
    %910 = arith.addf %908, %909 : vector<16x27xf32>
    %911 = vector.extract_strided_slice %899 {offsets = [96, 0], sizes = [16, 27], strides = [1, 1]} : vector<144x27xf32> to vector<16x27xf32>
    %912 = arith.addf %910, %911 : vector<16x27xf32>
    %913 = vector.extract_strided_slice %899 {offsets = [112, 0], sizes = [16, 27], strides = [1, 1]} : vector<144x27xf32> to vector<16x27xf32>
    %914 = arith.addf %912, %913 : vector<16x27xf32>
    %915 = vector.extract_strided_slice %899 {offsets = [128, 0], sizes = [16, 27], strides = [1, 1]} : vector<144x27xf32> to vector<16x27xf32>
    %916 = arith.addf %914, %915 : vector<16x27xf32>
    %917 = vector.extract_strided_slice %791 {offsets = [3, 0, 0], sizes = [1, 16, 27], strides = [1, 1, 1]} : vector<4x16x27xf32> to vector<1x16x27xf32>
    %918 = vector.shape_cast %917 : vector<1x16x27xf32> to vector<16x27xf32>
    %919 = tpu.concatenate %918, %918, %918, %918, %918, %918, %918, %918, %918 in 0 : vector<16x27xf32>, vector<16x27xf32>, vector<16x27xf32>, vector<16x27xf32>, vector<16x27xf32>, vector<16x27xf32>, vector<16x27xf32>, vector<16x27xf32>, vector<16x27xf32> -> vector<144x27xf32>
    %920 = arith.mulf %919, %66 : vector<144x27xf32>
    %921 = vector.extract_strided_slice %792 {offsets = [3, 0, 0], sizes = [1, 16, 27], strides = [1, 1, 1]} : vector<4x16x27xf32> to vector<1x16x27xf32>
    %922 = vector.shape_cast %921 : vector<1x16x27xf32> to vector<16x27xf32>
    %cst_224 = arith.constant dense<0.000000e+00> : vector<16x144xf32>
    %923 = tpu.matmul %922, %920, %cst_224 {dimension_numbers = #tpu.dot_dimension_numbers<[1], [1], [0], [0], [0, 0, 1, 0], [], []>} : vector<16x27xf32>, vector<144x27xf32>, vector<16x144xf32> -> vector<16x144xf32>
    %cst_225 = arith.constant 0.577350259 : f32
    %924 = vector.broadcast %cst_225 : f32 to vector<16x144xf32>
    %925 = arith.mulf %923, %924 : vector<16x144xf32>
    %cst_226 = arith.constant dense<0xFF800000> : vector<144xf32>
    %926 = vector.multi_reduction <maximumf>, %925, %cst_226 [0] : vector<16x144xf32> to vector<144xf32>
    %927 = vector.shape_cast %926 : vector<144xf32> to vector<1x144xf32>
    %928 = vector.broadcast %927 : vector<1x144xf32> to vector<16x144xf32>
    %929 = arith.subf %925, %928 : vector<16x144xf32>
    %930 = math.exp %929 : vector<16x144xf32>
    %cst_227 = arith.constant dense<0.000000e+00> : vector<144xf32>
    %931 = vector.multi_reduction <add>, %930, %cst_227 [0] : vector<16x144xf32> to vector<144xf32>
    %932 = vector.shape_cast %931 : vector<144xf32> to vector<1x144xf32>
    %933 = tpu.reciprocal %932 {approx = true} : vector<1x144xf32> -> vector<1x144xf32>
    %934 = vector.broadcast %933 : vector<1x144xf32> to vector<16x144xf32>
    %935 = arith.mulf %930, %934 : vector<16x144xf32>
    %936 = tpu.transpose %935, [1, 0] : vector<16x144xf32> -> vector<144x16xf32>
    %937 = vector.extract_strided_slice %793 {offsets = [3, 0, 0], sizes = [1, 16, 27], strides = [1, 1, 1]} : vector<4x16x27xf32> to vector<1x16x27xf32>
    %938 = vector.shape_cast %937 : vector<1x16x27xf32> to vector<16x27xf32>
    %cst_228 = arith.constant dense<0.000000e+00> : vector<144x27xf32>
    %939 = tpu.matmul %936, %938, %cst_228 {dimension_numbers = #tpu.dot_dimension_numbers<[1], [0], [0], [1], [0, 0, 1, 1], [], []>} : vector<144x16xf32>, vector<16x27xf32>, vector<144x27xf32> -> vector<144x27xf32>
    %940 = arith.mulf %939, %66 : vector<144x27xf32>
    %941 = vector.extract_strided_slice %940 {offsets = [0, 0], sizes = [16, 27], strides = [1, 1]} : vector<144x27xf32> to vector<16x27xf32>
    %942 = vector.extract_strided_slice %940 {offsets = [16, 0], sizes = [16, 27], strides = [1, 1]} : vector<144x27xf32> to vector<16x27xf32>
    %943 = arith.addf %941, %942 : vector<16x27xf32>
    %944 = vector.extract_strided_slice %940 {offsets = [32, 0], sizes = [16, 27], strides = [1, 1]} : vector<144x27xf32> to vector<16x27xf32>
    %945 = arith.addf %943, %944 : vector<16x27xf32>
    %946 = vector.extract_strided_slice %940 {offsets = [48, 0], sizes = [16, 27], strides = [1, 1]} : vector<144x27xf32> to vector<16x27xf32>
    %947 = arith.addf %945, %946 : vector<16x27xf32>
    %948 = vector.extract_strided_slice %940 {offsets = [64, 0], sizes = [16, 27], strides = [1, 1]} : vector<144x27xf32> to vector<16x27xf32>
    %949 = arith.addf %947, %948 : vector<16x27xf32>
    %950 = vector.extract_strided_slice %940 {offsets = [80, 0], sizes = [16, 27], strides = [1, 1]} : vector<144x27xf32> to vector<16x27xf32>
    %951 = arith.addf %949, %950 : vector<16x27xf32>
    %952 = vector.extract_strided_slice %940 {offsets = [96, 0], sizes = [16, 27], strides = [1, 1]} : vector<144x27xf32> to vector<16x27xf32>
    %953 = arith.addf %951, %952 : vector<16x27xf32>
    %954 = vector.extract_strided_slice %940 {offsets = [112, 0], sizes = [16, 27], strides = [1, 1]} : vector<144x27xf32> to vector<16x27xf32>
    %955 = arith.addf %953, %954 : vector<16x27xf32>
    %956 = vector.extract_strided_slice %940 {offsets = [128, 0], sizes = [16, 27], strides = [1, 1]} : vector<144x27xf32> to vector<16x27xf32>
    %957 = arith.addf %955, %956 : vector<16x27xf32>
    %958 = tpu.concatenate %834, %875, %916, %957 in 0 : vector<16x27xf32>, vector<16x27xf32>, vector<16x27xf32>, vector<16x27xf32> -> vector<64x27xf32>
    %c29 = arith.constant 29 : index
    %c0_229 = arith.constant 0 : index
    %959 = vector.load %arg2[%c29, %c0_229] : memref<36x81xf32, #tpu.memory_space<vmem>>, vector<1x27xf32>
    %960 = arith.subf %790, %958 : vector<64x27xf32>
    %c8_230 = arith.constant 8 : index
    %c0_231 = arith.constant 0 : index
    %c0_232 = arith.constant 0 : index
    %961 = vector.load %arg3[%c8_230, %c0_231, %c0_232] : memref<9x27x27xf32, #tpu.memory_space<vmem>>, vector<1x27x27xf32>
    %962 = vector.shape_cast %961 : vector<1x27x27xf32> to vector<27x27xf32>
    %cst_233 = arith.constant dense<0.000000e+00> : vector<64x27xf32>
    %963 = tpu.matmul %960, %962, %cst_233 {dimension_numbers = #tpu.dot_dimension_numbers<[1], [0], [0], [1], [0, 0, 1, 1], [], []>} : vector<64x27xf32>, vector<27x27xf32>, vector<64x27xf32> -> vector<64x27xf32>
    %964 = vector.broadcast %959 : vector<1x27xf32> to vector<64x27xf32>
    %965 = arith.addf %963, %964 : vector<64x27xf32>
    %966 = arith.addf %743, %965 : vector<64x27xf32>
    %c30 = arith.constant 30 : index
    %c0_234 = arith.constant 0 : index
    %967 = vector.load %arg2[%c30, %c0_234] : memref<36x81xf32, #tpu.memory_space<vmem>>, vector<1x27xf32>
    %c31 = arith.constant 31 : index
    %c0_235 = arith.constant 0 : index
    %968 = vector.load %arg2[%c31, %c0_235] : memref<36x81xf32, #tpu.memory_space<vmem>>, vector<1x27xf32>
    %cst_236 = arith.constant dense<0.000000e+00> : vector<64xf32>
    %969 = vector.multi_reduction <add>, %966, %cst_236 [1] : vector<64x27xf32> to vector<64xf32>
    %970 = vector.shape_cast %969 : vector<64xf32> to vector<64x1xf32>
    %cst_237 = arith.constant 2.700000e+01 : f32
    %971 = vector.broadcast %cst_237 : f32 to vector<64x1xf32>
    %972 = arith.divf %970, %971 : vector<64x1xf32>
    %973 = vector.broadcast %972 : vector<64x1xf32> to vector<64x27xf32>
    %974 = arith.subf %966, %973 : vector<64x27xf32>
    %975 = arith.mulf %974, %974 : vector<64x27xf32>
    %cst_238 = arith.constant dense<0.000000e+00> : vector<64xf32>
    %976 = vector.multi_reduction <add>, %975, %cst_238 [1] : vector<64x27xf32> to vector<64xf32>
    %977 = vector.shape_cast %976 : vector<64xf32> to vector<64x1xf32>
    %cst_239 = arith.constant 2.700000e+01 : f32
    %978 = vector.broadcast %cst_239 : f32 to vector<64x1xf32>
    %979 = arith.divf %977, %978 : vector<64x1xf32>
    %cst_240 = arith.constant 9.99999997E-7 : f32
    %980 = vector.broadcast %cst_240 : f32 to vector<64x1xf32>
    %981 = arith.addf %979, %980 : vector<64x1xf32>
    %982 = math.rsqrt %981 : vector<64x1xf32>
    %983 = vector.broadcast %982 : vector<64x1xf32> to vector<64x27xf32>
    %984 = arith.mulf %974, %983 : vector<64x27xf32>
    %985 = vector.broadcast %967 : vector<1x27xf32> to vector<64x27xf32>
    %986 = arith.mulf %984, %985 : vector<64x27xf32>
    %987 = vector.broadcast %968 : vector<1x27xf32> to vector<64x27xf32>
    %988 = arith.addf %986, %987 : vector<64x27xf32>
    %c32 = arith.constant 32 : index
    %c0_241 = arith.constant 0 : index
    %989 = vector.load %arg2[%c32, %c0_241] : memref<36x81xf32, #tpu.memory_space<vmem>>, vector<1x54xf32>
    %c2_242 = arith.constant 2 : index
    %c0_243 = arith.constant 0 : index
    %c0_244 = arith.constant 0 : index
    %990 = vector.load %arg5[%c2_242, %c0_243, %c0_244] : memref<3x27x54xf32, #tpu.memory_space<vmem>>, vector<1x27x54xf32>
    %991 = vector.shape_cast %990 : vector<1x27x54xf32> to vector<27x54xf32>
    %cst_245 = arith.constant dense<0.000000e+00> : vector<64x54xf32>
    %992 = tpu.matmul %988, %991, %cst_245 {dimension_numbers = #tpu.dot_dimension_numbers<[1], [0], [0], [1], [0, 0, 1, 1], [], []>} : vector<64x27xf32>, vector<27x54xf32>, vector<64x54xf32> -> vector<64x54xf32>
    %993 = vector.broadcast %989 : vector<1x54xf32> to vector<64x54xf32>
    %994 = arith.addf %992, %993 : vector<64x54xf32>
    %cst_246 = arith.constant 5.000000e-01 : f32
    %995 = vector.broadcast %cst_246 : f32 to vector<64x54xf32>
    %996 = arith.mulf %995, %994 : vector<64x54xf32>
    %cst_247 = arith.constant 4.471500e-02 : f32
    %997 = vector.broadcast %cst_247 : f32 to vector<64x54xf32>
    %998 = arith.mulf %997, %994 : vector<64x54xf32>
    %999 = arith.mulf %998, %994 : vector<64x54xf32>
    %1000 = arith.mulf %999, %994 : vector<64x54xf32>
    %1001 = arith.addf %994, %1000 : vector<64x54xf32>
    %cst_248 = arith.constant 0.797884583 : f32
    %1002 = vector.broadcast %cst_248 : f32 to vector<64x54xf32>
    %1003 = arith.mulf %1002, %1001 : vector<64x54xf32>
    %1004 = math.tanh %1003 : vector<64x54xf32>
    %cst_249 = arith.constant 1.000000e+00 : f32
    %1005 = vector.broadcast %cst_249 : f32 to vector<64x54xf32>
    %1006 = arith.addf %1005, %1004 : vector<64x54xf32>
    %1007 = arith.mulf %996, %1006 : vector<64x54xf32>
    %c33 = arith.constant 33 : index
    %c0_250 = arith.constant 0 : index
    %1008 = vector.load %arg2[%c33, %c0_250] : memref<36x81xf32, #tpu.memory_space<vmem>>, vector<1x27xf32>
    %c2_251 = arith.constant 2 : index
    %c0_252 = arith.constant 0 : index
    %c0_253 = arith.constant 0 : index
    %1009 = vector.load %arg6[%c2_251, %c0_252, %c0_253] : memref<3x54x27xf32, #tpu.memory_space<vmem>>, vector<1x54x27xf32>
    %1010 = vector.shape_cast %1009 : vector<1x54x27xf32> to vector<54x27xf32>
    %cst_254 = arith.constant dense<0.000000e+00> : vector<64x27xf32>
    %1011 = tpu.matmul %1007, %1010, %cst_254 {dimension_numbers = #tpu.dot_dimension_numbers<[1], [0], [0], [1], [0, 0, 1, 1], [], []>} : vector<64x54xf32>, vector<54x27xf32>, vector<64x27xf32> -> vector<64x27xf32>
    %1012 = vector.broadcast %1008 : vector<1x27xf32> to vector<64x27xf32>
    %1013 = arith.addf %1011, %1012 : vector<64x27xf32>
    %1014 = arith.addf %966, %1013 : vector<64x27xf32>
    %c34 = arith.constant 34 : index
    %c0_255 = arith.constant 0 : index
    %1015 = vector.load %arg2[%c34, %c0_255] : memref<36x81xf32, #tpu.memory_space<vmem>>, vector<1x27xf32>
    %c35 = arith.constant 35 : index
    %c0_256 = arith.constant 0 : index
    %1016 = vector.load %arg2[%c35, %c0_256] : memref<36x81xf32, #tpu.memory_space<vmem>>, vector<1x27xf32>
    %cst_257 = arith.constant dense<0.000000e+00> : vector<64xf32>
    %1017 = vector.multi_reduction <add>, %1014, %cst_257 [1] : vector<64x27xf32> to vector<64xf32>
    %1018 = vector.shape_cast %1017 : vector<64xf32> to vector<64x1xf32>
    %cst_258 = arith.constant 2.700000e+01 : f32
    %1019 = vector.broadcast %cst_258 : f32 to vector<64x1xf32>
    %1020 = arith.divf %1018, %1019 : vector<64x1xf32>
    %1021 = vector.broadcast %1020 : vector<64x1xf32> to vector<64x27xf32>
    %1022 = arith.subf %1014, %1021 : vector<64x27xf32>
    %1023 = arith.mulf %1022, %1022 : vector<64x27xf32>
    %cst_259 = arith.constant dense<0.000000e+00> : vector<64xf32>
    %1024 = vector.multi_reduction <add>, %1023, %cst_259 [1] : vector<64x27xf32> to vector<64xf32>
    %1025 = vector.shape_cast %1024 : vector<64xf32> to vector<64x1xf32>
    %cst_260 = arith.constant 2.700000e+01 : f32
    %1026 = vector.broadcast %cst_260 : f32 to vector<64x1xf32>
    %1027 = arith.divf %1025, %1026 : vector<64x1xf32>
    %cst_261 = arith.constant 9.99999997E-7 : f32
    %1028 = vector.broadcast %cst_261 : f32 to vector<64x1xf32>
    %1029 = arith.addf %1027, %1028 : vector<64x1xf32>
    %1030 = math.rsqrt %1029 : vector<64x1xf32>
    %1031 = vector.broadcast %1030 : vector<64x1xf32> to vector<64x27xf32>
    %1032 = arith.mulf %1022, %1031 : vector<64x27xf32>
    %1033 = vector.broadcast %1015 : vector<1x27xf32> to vector<64x27xf32>
    %1034 = arith.mulf %1032, %1033 : vector<64x27xf32>
    %1035 = vector.broadcast %1016 : vector<1x27xf32> to vector<64x27xf32>
    %1036 = arith.addf %1034, %1035 : vector<64x27xf32>
    %1037 = arith.addf %713, %1036 : vector<64x27xf32>
    %1038 = vector.shape_cast %1037 : vector<64x27xf32> to vector<4x16x27xf32>
    %1039 = tpu.concatenate %390, %714, %1038 in 1 : vector<4x16x27xf32>, vector<4x16x27xf32>, vector<4x16x27xf32> -> vector<4x48x27xf32>
    %c0_262 = arith.constant 0 : index
    %c0_263 = arith.constant 0 : index
    %1040 = vector.load %arg8[%c0_262, %c0_263] : memref<48x128xf32, #tpu.memory_space<vmem>>, vector<48x128xf32>
    %c0_264 = arith.constant 0 : index
    %c0_265 = arith.constant 0 : index
    %1041 = vector.load %arg9[%c0_264, %c0_265] : memref<1x128xf32, #tpu.memory_space<vmem>>, vector<1x128xf32>
    %1042 = vector.extract_strided_slice %1039 {offsets = [0, 0, 0], sizes = [1, 48, 27], strides = [1, 1, 1]} : vector<4x48x27xf32> to vector<1x48x27xf32>
    %1043 = vector.shape_cast %1042 : vector<1x48x27xf32> to vector<48x27xf32>
    %1044 = tpu.transpose %1043, [1, 0] : vector<48x27xf32> -> vector<27x48xf32>
    %cst_266 = arith.constant dense<0.000000e+00> : vector<27x128xf32>
    %1045 = tpu.matmul %1044, %1040, %cst_266 {dimension_numbers = #tpu.dot_dimension_numbers<[1], [0], [0], [1], [0, 0, 1, 1], [], []>} : vector<27x48xf32>, vector<48x128xf32>, vector<27x128xf32> -> vector<27x128xf32>
    %1046 = vector.broadcast %1041 : vector<1x128xf32> to vector<27x128xf32>
    %1047 = arith.addf %1045, %1046 : vector<27x128xf32>
    %cst_267 = arith.constant 0.000000e+00 : f32
    %1048 = vector.broadcast %cst_267 : f32 to vector<27x128xf32>
    %1049 = arith.maximumf %1047, %1048 : vector<27x128xf32>
    %c0_268 = arith.constant 0 : index
    %c0_269 = arith.constant 0 : index
    %c0_270 = arith.constant 0 : index
    %1050 = vector.load %arg10[%c0_268, %c0_269, %c0_270] : memref<4x27x128xf32, #tpu.memory_space<vmem>>, vector<1x27x128xf32>
    %1051 = vector.shape_cast %1050 : vector<1x27x128xf32> to vector<27x128xf32>
    %1052 = vector.shape_cast %1049 : vector<27x128xf32> to vector<1x27x128xf32>
    tpu.vector_store %arg10[%c0_268, %c0_269, %c0_270], %1052 {strides = array<i32>} : memref<4x27x128xf32, #tpu.memory_space<vmem>>, vector<1x27x128xf32>,
    %1053 = vector.extract_strided_slice %1039 {offsets = [1, 0, 0], sizes = [1, 48, 27], strides = [1, 1, 1]} : vector<4x48x27xf32> to vector<1x48x27xf32>
    %1054 = vector.shape_cast %1053 : vector<1x48x27xf32> to vector<48x27xf32>
    %1055 = tpu.transpose %1054, [1, 0] : vector<48x27xf32> -> vector<27x48xf32>
    %cst_271 = arith.constant dense<0.000000e+00> : vector<27x128xf32>
    %1056 = tpu.matmul %1055, %1040, %cst_271 {dimension_numbers = #tpu.dot_dimension_numbers<[1], [0], [0], [1], [0, 0, 1, 1], [], []>} : vector<27x48xf32>, vector<48x128xf32>, vector<27x128xf32> -> vector<27x128xf32>
    %1057 = vector.broadcast %1041 : vector<1x128xf32> to vector<27x128xf32>
    %1058 = arith.addf %1056, %1057 : vector<27x128xf32>
    %cst_272 = arith.constant 0.000000e+00 : f32
    %1059 = vector.broadcast %cst_272 : f32 to vector<27x128xf32>
    %1060 = arith.maximumf %1058, %1059 : vector<27x128xf32>
    %c1_273 = arith.constant 1 : index
    %c0_274 = arith.constant 0 : index
    %c0_275 = arith.constant 0 : index
    %1061 = vector.load %arg10[%c1_273, %c0_274, %c0_275] : memref<4x27x128xf32, #tpu.memory_space<vmem>>, vector<1x27x128xf32>
    %1062 = vector.shape_cast %1061 : vector<1x27x128xf32> to vector<27x128xf32>
    %1063 = vector.shape_cast %1060 : vector<27x128xf32> to vector<1x27x128xf32>
    tpu.vector_store %arg10[%c1_273, %c0_274, %c0_275], %1063 {strides = array<i32>} : memref<4x27x128xf32, #tpu.memory_space<vmem>>, vector<1x27x128xf32>,
    %1064 = vector.extract_strided_slice %1039 {offsets = [2, 0, 0], sizes = [1, 48, 27], strides = [1, 1, 1]} : vector<4x48x27xf32> to vector<1x48x27xf32>
    %1065 = vector.shape_cast %1064 : vector<1x48x27xf32> to vector<48x27xf32>
    %1066 = tpu.transpose %1065, [1, 0] : vector<48x27xf32> -> vector<27x48xf32>
    %cst_276 = arith.constant dense<0.000000e+00> : vector<27x128xf32>
    %1067 = tpu.matmul %1066, %1040, %cst_276 {dimension_numbers = #tpu.dot_dimension_numbers<[1], [0], [0], [1], [0, 0, 1, 1], [], []>} : vector<27x48xf32>, vector<48x128xf32>, vector<27x128xf32> -> vector<27x128xf32>
    %1068 = vector.broadcast %1041 : vector<1x128xf32> to vector<27x128xf32>
    %1069 = arith.addf %1067, %1068 : vector<27x128xf32>
    %cst_277 = arith.constant 0.000000e+00 : f32
    %1070 = vector.broadcast %cst_277 : f32 to vector<27x128xf32>
    %1071 = arith.maximumf %1069, %1070 : vector<27x128xf32>
    %c2_278 = arith.constant 2 : index
    %c0_279 = arith.constant 0 : index
    %c0_280 = arith.constant 0 : index
    %1072 = vector.load %arg10[%c2_278, %c0_279, %c0_280] : memref<4x27x128xf32, #tpu.memory_space<vmem>>, vector<1x27x128xf32>
    %1073 = vector.shape_cast %1072 : vector<1x27x128xf32> to vector<27x128xf32>
    %1074 = vector.shape_cast %1071 : vector<27x128xf32> to vector<1x27x128xf32>
    tpu.vector_store %arg10[%c2_278, %c0_279, %c0_280], %1074 {strides = array<i32>} : memref<4x27x128xf32, #tpu.memory_space<vmem>>, vector<1x27x128xf32>,
    %1075 = vector.extract_strided_slice %1039 {offsets = [3, 0, 0], sizes = [1, 48, 27], strides = [1, 1, 1]} : vector<4x48x27xf32> to vector<1x48x27xf32>
    %1076 = vector.shape_cast %1075 : vector<1x48x27xf32> to vector<48x27xf32>
    %1077 = tpu.transpose %1076, [1, 0] : vector<48x27xf32> -> vector<27x48xf32>
    %cst_281 = arith.constant dense<0.000000e+00> : vector<27x128xf32>
    %1078 = tpu.matmul %1077, %1040, %cst_281 {dimension_numbers = #tpu.dot_dimension_numbers<[1], [0], [0], [1], [0, 0, 1, 1], [], []>} : vector<27x48xf32>, vector<48x128xf32>, vector<27x128xf32> -> vector<27x128xf32>
    %1079 = vector.broadcast %1041 : vector<1x128xf32> to vector<27x128xf32>
    %1080 = arith.addf %1078, %1079 : vector<27x128xf32>
    %cst_282 = arith.constant 0.000000e+00 : f32
    %1081 = vector.broadcast %cst_282 : f32 to vector<27x128xf32>
    %1082 = arith.maximumf %1080, %1081 : vector<27x128xf32>
    %c3_283 = arith.constant 3 : index
    %c0_284 = arith.constant 0 : index
    %c0_285 = arith.constant 0 : index
    %1083 = vector.load %arg10[%c3_283, %c0_284, %c0_285] : memref<4x27x128xf32, #tpu.memory_space<vmem>>, vector<1x27x128xf32>
    %1084 = vector.shape_cast %1083 : vector<1x27x128xf32> to vector<27x128xf32>
    %1085 = vector.shape_cast %1082 : vector<27x128xf32> to vector<1x27x128xf32>
    tpu.vector_store %arg10[%c3_283, %c0_284, %c0_285], %1085 {strides = array<i32>} : memref<4x27x128xf32, #tpu.memory_space<vmem>>, vector<1x27x128xf32>,
    return
  }
  func.func @transform_0(%arg0: i32) -> (i32, i32, i32) {
    %c0_i32 = arith.constant 0 : i32
    %c0_i32_0 = arith.constant 0 : i32
    %c0_i32_1 = arith.constant 0 : i32
    return %arg0, %c0_i32, %c0_i32_0 : i32, i32, i32
  }
  func.func @transform_1(%arg0: i32) -> (i32, i32) {
    %c0_i32 = arith.constant 0 : i32
    %c0_i32_0 = arith.constant 0 : i32
    %c0_i32_1 = arith.constant 0 : i32
    return %c0_i32, %c0_i32_0 : i32, i32
  }
  func.func @transform_2(%arg0: i32) -> (i32, i32, i32) {
    %c0_i32 = arith.constant 0 : i32
    %c0_i32_0 = arith.constant 0 : i32
    %c0_i32_1 = arith.constant 0 : i32
    %c0_i32_2 = arith.constant 0 : i32
    return %c0_i32, %c0_i32_0, %c0_i32_1 : i32, i32, i32
  }
  func.func @transform_3(%arg0: i32) -> (i32, i32, i32) {
    %c0_i32 = arith.constant 0 : i32
    %c0_i32_0 = arith.constant 0 : i32
    %c0_i32_1 = arith.constant 0 : i32
    %c0_i32_2 = arith.constant 0 : i32
    return %c0_i32, %c0_i32_0, %c0_i32_1 : i32, i32, i32
  }
  func.func @transform_4(%arg0: i32) -> (i32, i32, i32) {
    %c0_i32 = arith.constant 0 : i32
    %c0_i32_0 = arith.constant 0 : i32
    %c0_i32_1 = arith.constant 0 : i32
    %c0_i32_2 = arith.constant 0 : i32
    return %c0_i32, %c0_i32_0, %c0_i32_1 : i32, i32, i32
  }
  func.func @transform_5(%arg0: i32) -> (i32, i32, i32) {
    %c0_i32 = arith.constant 0 : i32
    %c0_i32_0 = arith.constant 0 : i32
    %c0_i32_1 = arith.constant 0 : i32
    %c0_i32_2 = arith.constant 0 : i32
    return %c0_i32, %c0_i32_0, %c0_i32_1 : i32, i32, i32
  }
  func.func @transform_6(%arg0: i32) -> (i32, i32, i32) {
    %c0_i32 = arith.constant 0 : i32
    %c0_i32_0 = arith.constant 0 : i32
    %c0_i32_1 = arith.constant 0 : i32
    %c0_i32_2 = arith.constant 0 : i32
    return %c0_i32, %c0_i32_0, %c0_i32_1 : i32, i32, i32
  }
  func.func @transform_7(%arg0: i32) -> (i32, i32) {
    %c0_i32 = arith.constant 0 : i32
    %c0_i32_0 = arith.constant 0 : i32
    %c0_i32_1 = arith.constant 0 : i32
    return %c0_i32, %c0_i32_0 : i32, i32
  }
  func.func @transform_8(%arg0: i32) -> (i32, i32) {
    %c0_i32 = arith.constant 0 : i32
    %c0_i32_0 = arith.constant 0 : i32
    %c0_i32_1 = arith.constant 0 : i32
    return %c0_i32, %c0_i32_0 : i32, i32
  }
  func.func @transform_9(%arg0: i32) -> (i32, i32, i32) {
    %c0_i32 = arith.constant 0 : i32
    %c0_i32_0 = arith.constant 0 : i32
    %c0_i32_1 = arith.constant 0 : i32
    return %arg0, %c0_i32, %c0_i32_0 : i32, i32, i32
  }
}

</mosaic_0001>

<llo_original>
// kernel: _lambda_.1
$region0: #{_lambda_.1}
  #allocation0 [shape = 'u32[]', space=smem, size = 0x4, offset = 0x4, fixed_abs, tag = 'smem constant byte address 0x4 - core index']
  #allocation1 [shape = 'u32[72,128]{1,0:T(1,128)}', space=vmem, size = 0x9000, scoped, tag = 'internal scratch']
  %s0 = inlined_call_operand.hbm [shape: f32[8,16,27], index: 0, kind: input, shape index: {}]
  %s1 = inlined_call_operand.vmem [shape: f32[36,81], index: 1, kind: input, shape index: {}]
  %s2 = inlined_call_operand.vmem [shape: f32[9,27,27], index: 2, kind: input, shape index: {}]
  %s3 = inlined_call_operand.vmem [shape: f32[3,27,81], index: 3, kind: input, shape index: {}]
  %s4 = inlined_call_operand.vmem [shape: f32[3,27,54], index: 4, kind: input, shape index: {}]
  %s5 = inlined_call_operand.vmem [shape: f32[3,54,27], index: 5, kind: input, shape index: {}]
  %s6 = inlined_call_operand.vmem [shape: f32[3,16,27], index: 6, kind: input, shape index: {}]
  %s7 = inlined_call_operand.vmem [shape: f32[48,128], index: 7, kind: input, shape index: {}]
  %s8 = inlined_call_operand.vmem [shape: f32[1,128], index: 8, kind: input, shape index: {}]
  %s9 = inlined_call_operand.vmem [shape: f32[8,27,128], index: 9, kind: output, shape index: {}]
  %s10 = sld [smem:[#allocation0]]
  $region73: #{_lambda_.1} parent=0
    _
  %s12 = ssub.s32 1, %s10
  %s13 = scalar_select 0, %s12, %s10
  $region1: #{_lambda_.1} parent=0
    #allocation2 [shape = 'u8[65536]{0}', space=vmem, size = 0x10000, scoped, tag = 'input window, operand 0']
    #allocation3 [shape = 's32[2]{0}', space=sflag, size = 0x8, scoped, tag = 'scoped memory for _lambda_.1']
    %14 = vsyncpa [#allocation3], 0
    %s15 = scalar_lea.sflag [#allocation3], 1
    %16 = vsyncpa %s15, 0
    loop: start=0, step=1, limit=4
    $region2: #{_lambda_.1} parent=1 // loop_pre_header
      _
    $region3: #{_lambda_.1} parent=1 // loop_header
      %s18 = sphi 0, %s22
      %p19 = scmp.ge.s32.totalorder %s18, 4
      %s28 = sphi 0, %s30
      %s31 = sphi 0, %s28
      %s32 = sphi 0, %s31
      %s48 = sphi 0, %s32
      %s52 = sphi 0, %s52
      %s54 = sphi 0, %s52
      %s55 = sphi 0, %s54
      %s69 = sphi 0, %s55
      %s73 = sphi 0, %s73
      %s75 = sphi 0, %s73
      %s76 = sphi 0, %s75
      %s90 = sphi 0, %s76
      %s94 = sphi 0, %s94
      %s96 = sphi 0, %s94
      %s97 = sphi 0, %s96
      %s111 = sphi 0, %s97
      %s115 = sphi 0, %s115
      %s117 = sphi 0, %s115
      %s118 = sphi 0, %s117
      %s132 = sphi 0, %s118
      %s136 = sphi 0, %s136
      %s138 = sphi 0, %s136
      %s139 = sphi 0, %s138
      %s153 = sphi 0, %s139
      %s157 = sphi 0, %s157
      %s159 = sphi 0, %s157
      %s160 = sphi 0, %s159
      %s174 = sphi 0, %s160
      %s178 = sphi 0, %s178
      %s180 = sphi 0, %s178
      %s181 = sphi 0, %s180
      %s195 = sphi 0, %s181
      %s199 = sphi 0, %s199
      %s201 = sphi 0, %s199
      %s202 = sphi 0, %s201
      %s216 = sphi 0, %s202
      %s222 = sphi 0, %s224
      %s225 = sphi 0, %s222
      %s226 = sphi 0, %s225
      %s242 = sphi 0, %s226
    $region4: #{_lambda_.1} parent=1 // loop_header_branch
      %21 = sbr.rel (%p19) target = $region8
    $region5: #{_lambda_.1} parent=1 // loop_body
      %s23 = ssub.s32 %s18, 1
      %s24 = ssub.s32 %s18, 2
      %s25 = sadd.s32 %s18, 1
      %s26 = ssub.s32 %s18, %s25
      %p27 = scmp.eq.s32.totalorder %s26, 0
      %s29 = sadd.s32 %s28, 1
      %s30 = scalar_select %p27, %s28, %s29
      %p33 = pneg %p27
      %p34 = scmp.eq.s32.totalorder %s18, 1
      %p35 = por %p33, %p34
      %p36 = scmp.ne.s32.totalorder %s28, %s31
      %p37 = scmp.eq.s32.totalorder %s18, 0
      %p38 = por %p36, %p37
      %p39 = scmp.ne.s32.totalorder %s28, %s31
      %p40 = scmp.eq.s32.totalorder %s23, 1
      %p41 = por %p39, %p40
      %p42 = scmp.ne.s32.totalorder %s31, %s32
      %p43 = scmp.eq.s32.totalorder %s23, 0
      %p44 = por %p42, %p43
      %p45 = scmp.ne.s32.totalorder %s31, %s32
      %p46 = scmp.eq.s32.totalorder %s24, 1
      %p47 = por %p45, %p46
      %p49 = scmp.ne.s32.totalorder %s32, %s48
      %p50 = scmp.eq.s32.totalorder %s24, 0
      %p51 = por %p49, %p50
      %s53 = sadd.s32 %s52, 1
      %p56 = scmp.eq.s32.totalorder %s18, 1
      %p57 = scmp.ne.s32.totalorder %s52, %s54
      %p58 = scmp.eq.s32.totalorder %s18, 0
      %p59 = por %p57, %p58
      %p60 = scmp.ne.s32.totalorder %s52, %s54
      %p61 = scmp.eq.s32.totalorder %s23, 1
      %p62 = por %p60, %p61
      %p63 = scmp.ne.s32.totalorder %s54, %s55
      %p64 = scmp.eq.s32.totalorder %s23, 0
      %p65 = por %p63, %p64
      %p66 = scmp.ne.s32.totalorder %s54, %s55
      %p67 = scmp.eq.s32.totalorder %s24, 1
      %p68 = por %p66, %p67
      %p70 = scmp.ne.s32.totalorder %s55, %s69
      %p71 = scmp.eq.s32.totalorder %s24, 0
      %p72 = por %p70, %p71
      %s74 = sadd.s32 %s73, 1
      %p77 = scmp.eq.s32.totalorder %s18, 1
      %p78 = scmp.ne.s32.totalorder %s73, %s75
      %p79 = scmp.eq.s32.totalorder %s18, 0
      %p80 = por %p78, %p79
      %p81 = scmp.ne.s32.totalorder %s73, %s75
      %p82 = scmp.eq.s32.totalorder %s23, 1
      %p83 = por %p81, %p82
      %p84 = scmp.ne.s32.totalorder %s75, %s76
      %p85 = scmp.eq.s32.totalorder %s23, 0
      %p86 = por %p84, %p85
      %p87 = scmp.ne.s32.totalorder %s75, %s76
      %p88 = scmp.eq.s32.totalorder %s24, 1
      %p89 = por %p87, %p88
      %p91 = scmp.ne.s32.totalorder %s76, %s90
      %p92 = scmp.eq.s32.totalorder %s24, 0
      %p93 = por %p91, %p92
      %s95 = sadd.s32 %s94, 1
      %p98 = scmp.eq.s32.totalorder %s18, 1
      %p99 = scmp.ne.s32.totalorder %s94, %s96
      %p100 = scmp.eq.s32.totalorder %s18, 0
      %p101 = por %p99, %p100
      %p102 = scmp.ne.s32.totalorder %s94, %s96
      %p103 = scmp.eq.s32.totalorder %s23, 1
      %p104 = por %p102, %p103
      %p105 = scmp.ne.s32.totalorder %s96, %s97
      %p106 = scmp.eq.s32.totalorder %s23, 0
      %p107 = por %p105, %p106
      %p108 = scmp.ne.s32.totalorder %s96, %s97
      %p109 = scmp.eq.s32.totalorder %s24, 1
      %p110 = por %p108, %p109
      %p112 = scmp.ne.s32.totalorder %s97, %s111
      %p113 = scmp.eq.s32.totalorder %s24, 0
      %p114 = por %p112, %p113
      %s116 = sadd.s32 %s115, 1
      %p119 = scmp.eq.s32.totalorder %s18, 1
      %p120 = scmp.ne.s32.totalorder %s115, %s117
      %p121 = scmp.eq.s32.totalorder %s18, 0
      %p122 = por %p120, %p121
      %p123 = scmp.ne.s32.totalorder %s115, %s117
      %p124 = scmp.eq.s32.totalorder %s23, 1
      %p125 = por %p123, %p124
      %p126 = scmp.ne.s32.totalorder %s117, %s118
      %p127 = scmp.eq.s32.totalorder %s23, 0
      %p128 = por %p126, %p127
      %p129 = scmp.ne.s32.totalorder %s117, %s118
      %p130 = scmp.eq.s32.totalorder %s24, 1
      %p131 = por %p129, %p130
      %p133 = scmp.ne.s32.totalorder %s118, %s132
      %p134 = scmp.eq.s32.totalorder %s24, 0
      %p135 = por %p133, %p134
      %s137 = sadd.s32 %s136, 1
      %p140 = scmp.eq.s32.totalorder %s18, 1
      %p141 = scmp.ne.s32.totalorder %s136, %s138
      %p142 = scmp.eq.s32.totalorder %s18, 0
      %p143 = por %p141, %p142
      %p144 = scmp.ne.s32.totalorder %s136, %s138
      %p145 = scmp.eq.s32.totalorder %s23, 1
      %p146 = por %p144, %p145
      %p147 = scmp.ne.s32.totalorder %s138, %s139
      %p148 = scmp.eq.s32.totalorder %s23, 0
      %p149 = por %p147, %p148
      %p150 = scmp.ne.s32.totalorder %s138, %s139
      %p151 = scmp.eq.s32.totalorder %s24, 1
      %p152 = por %p150, %p151
      %p154 = scmp.ne.s32.totalorder %s139, %s153
      %p155 = scmp.eq.s32.totalorder %s24, 0
      %p156 = por %p154, %p155
      %s158 = sadd.s32 %s157, 1
      %p161 = scmp.eq.s32.totalorder %s18, 1
      %p162 = scmp.ne.s32.totalorder %s157, %s159
      %p163 = scmp.eq.s32.totalorder %s18, 0
      %p164 = por %p162, %p163
      %p165 = scmp.ne.s32.totalorder %s157, %s159
      %p166 = scmp.eq.s32.totalorder %s23, 1
      %p167 = por %p165, %p166
      %p168 = scmp.ne.s32.totalorder %s159, %s160
      %p169 = scmp.eq.s32.totalorder %s23, 0
      %p170 = por %p168, %p169
      %p171 = scmp.ne.s32.totalorder %s159, %s160
      %p172 = scmp.eq.s32.totalorder %s24, 1
      %p173 = por %p171, %p172
      %p175 = scmp.ne.s32.totalorder %s160, %s174
      %p176 = scmp.eq.s32.totalorder %s24, 0
      %p177 = por %p175, %p176
      %s179 = sadd.s32 %s178, 1
      %p182 = scmp.eq.s32.totalorder %s18, 1
      %p183 = scmp.ne.s32.totalorder %s178, %s180
      %p184 = scmp.eq.s32.totalorder %s18, 0
      %p185 = por %p183, %p184
      %p186 = scmp.ne.s32.totalorder %s178, %s180
      %p187 = scmp.eq.s32.totalorder %s23, 1
      %p188 = por %p186, %p187
      %p189 = scmp.ne.s32.totalorder %s180, %s181
      %p190 = scmp.eq.s32.totalorder %s23, 0
      %p191 = por %p189, %p190
      %p192 = scmp.ne.s32.totalorder %s180, %s181
      %p193 = scmp.eq.s32.totalorder %s24, 1
      %p194 = por %p192, %p193
      %p196 = scmp.ne.s32.totalorder %s181, %s195
      %p197 = scmp.eq.s32.totalorder %s24, 0
      %p198 = por %p196, %p197
      %s200 = sadd.s32 %s199, 1
      %p203 = scmp.eq.s32.totalorder %s18, 1
      %p204 = scmp.ne.s32.totalorder %s199, %s201
      %p205 = scmp.eq.s32.totalorder %s18, 0
      %p206 = por %p204, %p205
      %p207 = scmp.ne.s32.totalorder %s199, %s201
      %p208 = scmp.eq.s32.totalorder %s23, 1
      %p209 = por %p207, %p208
      %p210 = scmp.ne.s32.totalorder %s201, %s202
      %p211 = scmp.eq.s32.totalorder %s23, 0
      %p212 = por %p210, %p211
      %p213 = scmp.ne.s32.totalorder %s201, %s202
      %p214 = scmp.eq.s32.totalorder %s24, 1
      %p215 = por %p213, %p214
      %p217 = scmp.ne.s32.totalorder %s202, %s216
      %p218 = scmp.eq.s32.totalorder %s24, 0
      %p219 = por %p217, %p218
      %s220 = ssub.s32 %s18, %s25
      %p221 = scmp.eq.s32.totalorder %s220, 0
      %s223 = sadd.s32 %s222, 1
      %s224 = scalar_select %p221, %s222, %s223
      %p227 = pneg %p221
      %p228 = scmp.eq.s32.totalorder %s18, 1
      %p229 = por %p227, %p228
      %p230 = scmp.ne.s32.totalorder %s222, %s225
      %p231 = scmp.eq.s32.totalorder %s18, 0
      %p232 = por %p230, %p231
      %p233 = scmp.ne.s32.totalorder %s222, %s225
      %p234 = scmp.eq.s32.totalorder %s23, 1
      %p235 = por %p233, %p234
      %p236 = scmp.ne.s32.totalorder %s225, %s226
      %p237 = scmp.eq.s32.totalorder %s23, 0
      %p238 = por %p236, %p237
      %p239 = scmp.ne.s32.totalorder %s225, %s226
      %p240 = scmp.eq.s32.totalorder %s24, 1
      %p241 = por %p239, %p240
      %p243 = scmp.ne.s32.totalorder %s226, %s242
      %p244 = scmp.eq.s32.totalorder %s24, 0
      %p245 = por %p243, %p244
      %p246 = scmp.le.s32.totalorder 1, %s18
      %p247 = scmp.lt.s32.totalorder %s18, 3
      %p248 = pnand %p246, %p247
      %p249 = pneg %p248
      // Predicated region
      $region9: #{_lambda_.1} parent=5 // pred_check
        _
      $region10: #{_lambda_.1} parent=5 // pred_check_branch
        %251 = sbr.rel (%p248) target = $region12
      $region11: #{_lambda_.1} parent=5 // pred_region
        %s252 = ssub.s32 %s18, 1
        // Predicated region
        $region13: #{_lambda_.1} parent=11 // pred_check
          %p253 = pneg %p65
        $region14: #{_lambda_.1} parent=11 // pred_check_branch
          %255 = sbr.rel (%p253) target = $region16
        $region15: #{_lambda_.1} parent=11 // pred_region
          _
        $region16: #{_lambda_.1} parent=11 // pred_fallthru
          _
        // Predicated region
        $region17: #{_lambda_.1} parent=11 // pred_check
          %p256 = pneg %p86
        $region18: #{_lambda_.1} parent=11 // pred_check_branch
          %258 = sbr.rel (%p256) target = $region20
        $region19: #{_lambda_.1} parent=11 // pred_region
          _
        $region20: #{_lambda_.1} parent=11 // pred_fallthru
          _
        // Predicated region
        $region21: #{_lambda_.1} parent=11 // pred_check
          %p259 = pneg %p107
        $region22: #{_lambda_.1} parent=11 // pred_check_branch
          %261 = sbr.rel (%p259) target = $region24
        $region23: #{_lambda_.1} parent=11 // pred_region
          _
        $region24: #{_lambda_.1} parent=11 // pred_fallthru
          _
        // Predicated region
        $region25: #{_lambda_.1} parent=11 // pred_check
          %p262 = pneg %p128
        $region26: #{_lambda_.1} parent=11 // pred_check_branch
          %264 = sbr.rel (%p262) target = $region28
        $region27: #{_lambda_.1} parent=11 // pred_region
          _
        $region28: #{_lambda_.1} parent=11 // pred_fallthru
          _
        // Predicated region
        $region29: #{_lambda_.1} parent=11 // pred_check
          %p265 = pneg %p149
        $region30: #{_lambda_.1} parent=11 // pred_check_branch
          %267 = sbr.rel (%p265) target = $region32
        $region31: #{_lambda_.1} parent=11 // pred_region
          _
        $region32: #{_lambda_.1} parent=11 // pred_fallthru
          _
        // Predicated region
        $region33: #{_lambda_.1} parent=11 // pred_check
          %p268 = pneg %p170
        $region34: #{_lambda_.1} parent=11 // pred_check_branch
          %270 = sbr.rel (%p268) target = $region36
        $region35: #{_lambda_.1} parent=11 // pred_region
          _
        $region36: #{_lambda_.1} parent=11 // pred_fallthru
          _
        // Predicated region
        $region37: #{_lambda_.1} parent=11 // pred_check
          %p271 = pneg %p191
        $region38: #{_lambda_.1} parent=11 // pred_check_branch
          %273 = sbr.rel (%p271) target = $region40
        $region39: #{_lambda_.1} parent=11 // pred_region
          _
        $region40: #{_lambda_.1} parent=11 // pred_fallthru
          _
        // Predicated region
        $region41: #{_lambda_.1} parent=11 // pred_check
          %p274 = pneg %p212
        $region42: #{_lambda_.1} parent=11 // pred_check_branch
          %276 = sbr.rel (%p274) target = $region44
        $region43: #{_lambda_.1} parent=11 // pred_region
          _
        $region44: #{_lambda_.1} parent=11 // pred_fallthru
          _
      $region12: #{_lambda_.1} parent=5 // pred_fallthru
        _
      %p277 = scmp.lt.s32.totalorder %s18, 2
      // Predicated region
      $region45: #{_lambda_.1} parent=5 // pred_check
        %p278 = pneg %p277
      $region46: #{_lambda_.1} parent=5 // pred_check_branch
        %280 = sbr.rel (%p278) target = $region48
      $region47: #{_lambda_.1} parent=5 // pred_region
        // Predicated region
        $region49: #{_lambda_.1} parent=47 // pred_check
          %p281 = pneg %p38
        $region50: #{_lambda_.1} parent=47 // pred_check_branch
          %283 = sbr.rel (%p281) target = $region52
        $region51: #{_lambda_.1} parent=47 // pred_region
          %s284 = sand.u32 %s28, 1
          %s285 = scalar_lea.sflag [#allocation3], %s284
          %s286 = sand.u32 %s28, 1
          %s287 = smul.addr %s286, 64
          %s288 = scalar_lea.vmem [#allocation2], %s287
          %s289 = smul.u32 4, %s18
          %291 = vsyncadd %s285, 0
          %s292 = smul.addr %s289, 2
          %s293 = smul.addr %s292, 8
          %s294 = scalar_lea.hbm %s0, %s293
          %s295 = sshll.u32 %s294, 4
          %s296 = int_to_ptr.hbm [resolvable:$true] %s295
          %s297 = sshll.u32 %s288, 4
          %s298 = int_to_ptr.vmem [resolvable:$true] %s297
          %303 = dma.hbm_to_vmem [thread:$0]  %s296, 1024, %s298, %s285, 128, 128, 8
        $region52: #{_lambda_.1} parent=47 // pred_fallthru
          _
      $region48: #{_lambda_.1} parent=5 // pred_fallthru
        _
      %p304 = scmp.le.s32.totalorder 1, %s18
      %p305 = scmp.lt.s32.totalorder %s18, 3
      %p306 = pnand %p304, %p305
      %p307 = pneg %p306
      // Predicated region
      $region53: #{_lambda_.1} parent=5 // pred_check
        _
      $region54: #{_lambda_.1} parent=5 // pred_check_branch
        %309 = sbr.rel (%p306) target = $region56
      $region55: #{_lambda_.1} parent=5 // pred_region
        %s310 = ssub.s32 %s18, 1
        %s311 = sand.u32 %s31, 1
        %s312 = scalar_lea.sflag [#allocation3], %s311
        %s313 = sand.u32 %s31, 1
        %s314 = smul.addr %s313, 64
        %s315 = scalar_lea.vmem [#allocation2], %s314
        // Predicated region
        $region57: #{_lambda_.1} parent=55 // pred_check
          %p316 = pneg %p44
        $region58: #{_lambda_.1} parent=55 // pred_check_branch
          %318 = sbr.rel (%p316) target = $region60
        $region59: #{_lambda_.1} parent=55 // pred_region
          %320 = dma.done %s312, 1024
        $region60: #{_lambda_.1} parent=55 // pred_fallthru
          _
        %s321 = sand.u32 %s31, 1
        %s322 = scalar_lea.sflag [#allocation3], %s321
        %s323 = sand.u32 %s31, 1
        %s324 = smul.addr %s323, 64
        %s325 = scalar_lea.vmem [#allocation2], %s324
        %p326 = pneg %p44
        %p327 = pneg %p41
        %p328 = pneg %p65
        %p329 = pneg %p62
        %p330 = pneg %p86
        %p331 = pneg %p83
        %p332 = pneg %p107
        %p333 = pneg %p104
        %p334 = pneg %p128
        %p335 = pneg %p125
        %p336 = pneg %p149
        %p337 = pneg %p146
        %p338 = pneg %p170
        %p339 = pneg %p167
        %p340 = pneg %p191
        %p341 = pneg %p188
        %p342 = pneg %p212
        %p343 = pneg %p209
        %p344 = pneg %p238
        %p345 = pneg %p235
        %s346 = smul.u32 4, %s23
        %p347 = scmp.lt.s32.totalorder %s346, 7
        %s348 = scalar_select %p347, %s346, 7
        %s349 = smul.addr %s348, 4
        %s350 = smul.addr %s349, 8
        %s351 = scalar_lea.vmem %s9, %s350
        %s352 = smul.u32 4, %s23
        %s353 = smul.u32 4, %s23
        %p354 = scmp.lt.s32.totalorder %s353, 7
        %s355 = scalar_select %p354, %s353, 7
        %s356 = smul.addr %s355, 4
        %s357 = smul.addr %s356, 8
        %s358 = scalar_lea.vmem %s9, %s357
        %s359 = smul.u32 4, %s23
        %v360 = vld [vmem:[%s315] sm:$0xff]
        %v361 = vld [vmem:[%s315 + $0x8] sm:$0xff]
        %v362 = vld [vmem:[%s315 + $0x10] sm:$0xff]
        %v363 = vld [vmem:[%s315 + $0x18] sm:$0xff]
        %v364 = vld [vmem:[%s315 + $0x20] sm:$0xff]
        %v365 = vld [vmem:[%s315 + $0x28] sm:$0xff]
        %v366 = vld [vmem:[%s315 + $0x30] sm:$0xff]
        %v367 = vld [vmem:[%s315 + $0x38] sm:$0xff]
        %v368 = vlaneseq
        %v369 = vand.u32 %v368, 127
        %vm370 = vcmp.ge.s32.totalorder %v369, 0
        %vm371 = vcmp.lt.s32.totalorder %v369, 3
        %vm372 = vmand %vm370, %vm371
        %v373 = vsel %vm372, 1, 0
        %v374 = vcvt.s32.f32 %v373
        %vm375 = vcmp.ge.s32.totalorder %v369, 3
        %vm376 = vcmp.lt.s32.totalorder %v369, 6
        %vm377 = vmand %vm375, %vm376
        %v378 = vsel %vm377, 1, 0
        %v379 = vcvt.s32.f32 %v378
        %vm380 = vcmp.ge.s32.totalorder %v369, 6
        %vm381 = vcmp.lt.s32.totalorder %v369, 9
        %vm382 = vmand %vm380, %vm381
        %v383 = vsel %vm382, 1, 0
        %v384 = vcvt.s32.f32 %v383
        %vm385 = vcmp.ge.s32.totalorder %v369, 9
        %vm386 = vcmp.lt.s32.totalorder %v369, 12
        %vm387 = vmand %vm385, %vm386
        %v388 = vsel %vm387, 1, 0
        %v389 = vcvt.s32.f32 %v388
        %vm390 = vcmp.ge.s32.totalorder %v369, 12
        %vm391 = vcmp.lt.s32.totalorder %v369, 15
        %vm392 = vmand %vm390, %vm391
        %v393 = vsel %vm392, 1, 0
        %v394 = vcvt.s32.f32 %v393
        %vm395 = vcmp.ge.s32.totalorder %v369, 15
        %vm396 = vcmp.lt.s32.totalorder %v369, 18
        %vm397 = vmand %vm395, %vm396
        %v398 = vsel %vm397, 1, 0
        %v399 = vcvt.s32.f32 %v398
        %vm400 = vcmp.ge.s32.totalorder %v369, 18
        %vm401 = vcmp.lt.s32.totalorder %v369, 21
        %vm402 = vmand %vm400, %vm401
        %v403 = vsel %vm402, 1, 0
        %v404 = vcvt.s32.f32 %v403
        %vm405 = vcmp.ge.s32.totalorder %v369, 21
        %vm406 = vcmp.lt.s32.totalorder %v369, 24
        %vm407 = vmand %vm405, %vm406
        %v408 = vsel %vm407, 1, 0
        %v409 = vcvt.s32.f32 %v408
        %vm410 = vcmp.ge.s32.totalorder %v369, 24
        %vm411 = vcmp.lt.s32.totalorder %v369, 27
        %vm412 = vmand %vm410, %vm411
        %v413 = vsel %vm412, 1, 0
        %v414 = vcvt.s32.f32 %v413
        %v415 = vld [vmem:[%s1] sm:$0x1]
        %v416 = vld [vmem:[%s1 + $0x1] sm:$0x1]
        %vm417 = vcmask 220160
        %v418 = vsel %vm417, %v360, 0.0
        %419 = vadd.xlane.f32.xlu0 %v418
        %v420 = vpop.xlane.xlu0 %419
        %v421 = vsel %vm417, %v361, 0.0
        %422 = vadd.xlane.f32.xlu0 %v421
        %v423 = vpop.xlane.xlu0 %422
        %v424 = vsel %vm417, %v362, 0.0
        %425 = vadd.xlane.f32.xlu0 %v424
        %v426 = vpop.xlane.xlu0 %425
        %v427 = vsel %vm417, %v363, 0.0
        %428 = vadd.xlane.f32.xlu0 %v427
        %v429 = vpop.xlane.xlu0 %428
        %v430 = vsel %vm417, %v364, 0.0
        %431 = vadd.xlane.f32.xlu0 %v430
        %v432 = vpop.xlane.xlu0 %431
        %v433 = vsel %vm417, %v365, 0.0
        %434 = vadd.xlane.f32.xlu0 %v433
        %v435 = vpop.xlane.xlu0 %434
        %v436 = vsel %vm417, %v366, 0.0
        %437 = vadd.xlane.f32.xlu0 %v436
        %v438 = vpop.xlane.xlu0 %437
        %v439 = vsel %vm417, %v367, 0.0
        %440 = vadd.xlane.f32.xlu0 %v439
        %v441 = vpop.xlane.xlu0 %440
        %v442 = vrcp.pop 27.0
        %v443 = vmul.f32 27.0, %v442
        %v444 = vsub.f32 1.0, %v443
        %v445 = vmul.f32 %v442, %v444
        %v446 = vadd.f32 %v442, %v445
        %vm447 = vweird.f32 %v442
        %v448 = vsel %vm447, %v442, %v446
        %v449 = vmul.f32 %v420, %v448
        %v450 = vmul.f32 %v423, %v448
        %v451 = vmul.f32 %v426, %v448
        %v452 = vmul.f32 %v429, %v448
        %v453 = vmul.f32 %v432, %v448
        %v454 = vmul.f32 %v435, %v448
        %v455 = vmul.f32 %v438, %v448
        %v456 = vmul.f32 %v441, %v448
        %v457 = vsub.f32 %v360, %v449
        %v458 = vsub.f32 %v361, %v450
        %v459 = vsub.f32 %v362, %v451
        %v460 = vsub.f32 %v363, %v452
        %v461 = vsub.f32 %v364, %v453
        %v462 = vsub.f32 %v365, %v454
        %v463 = vsub.f32 %v366, %v455
        %v464 = vsub.f32 %v367, %v456
        %v465 = vmul.f32 %v457, %v457
        %v466 = vmul.f32 %v458, %v458
        %v467 = vmul.f32 %v459, %v459
        %v468 = vmul.f32 %v460, %v460
        %v469 = vmul.f32 %v461, %v461
        %v470 = vmul.f32 %v462, %v462
        %v471 = vmul.f32 %v463, %v463
        %v472 = vmul.f32 %v464, %v464
        %v473 = vsel %vm417, %v465, 0.0
        %474 = vadd.xlane.f32.xlu0 %v473
        %v475 = vpop.xlane.xlu0 %474
        %v476 = vsel %vm417, %v466, 0.0
        %477 = vadd.xlane.f32.xlu0 %v476
        %v478 = vpop.xlane.xlu0 %477
        %v479 = vsel %vm417, %v467, 0.0
        %480 = vadd.xlane.f32.xlu0 %v479
        %v481 = vpop.xlane.xlu0 %480
        %v482 = vsel %vm417, %v468, 0.0
        %483 = vadd.xlane.f32.xlu0 %v482
        %v484 = vpop.xlane.xlu0 %483
        %v485 = vsel %vm417, %v469, 0.0
        %486 = vadd.xlane.f32.xlu0 %v485
        %v487 = vpop.xlane.xlu0 %486
        %v488 = vsel %vm417, %v470, 0.0
        %489 = vadd.xlane.f32.xlu0 %v488
        %v490 = vpop.xlane.xlu0 %489
        %v491 = vsel %vm417, %v471, 0.0
        %492 = vadd.xlane.f32.xlu0 %v491
        %v493 = vpop.xlane.xlu0 %492
        %v494 = vsel %vm417, %v472, 0.0
        %495 = vadd.xlane.f32.xlu0 %v494
        %v496 = vpop.xlane.xlu0 %495
        %v497 = vmul.f32 %v475, %v448
        %v498 = vmul.f32 %v478, %v448
        %v499 = vmul.f32 %v481, %v448
        %v500 = vmul.f32 %v484, %v448
        %v501 = vmul.f32 %v487, %v448
        %v502 = vmul.f32 %v490, %v448
        %v503 = vmul.f32 %v493, %v448
        %v504 = vmul.f32 %v496, %v448
        %v505 = vadd.f32 %v497, 1e-05
        %v506 = vadd.f32 %v498, 1e-05
        %v507 = vadd.f32 %v499, 1e-05
        %v508 = vadd.f32 %v500, 1e-05
        %v509 = vadd.f32 %v501, 1e-05
        %v510 = vadd.f32 %v502, 1e-05
        %v511 = vadd.f32 %v503, 1e-05
        %v512 = vadd.f32 %v504, 1e-05
        %v513 = vrsqrt.pop %v505
        %v514 = vmul.f32 %v513, %v505
        %v515 = vmul.f32 %v514, %v513
        %v516 = vmul.f32 0.5, %v515
        %v517 = vsub.f32 1.5, %v516
        %v518 = vmul.f32 %v513, %v517
        %vm519 = vweird.f32 %v505
        %vm520 = vweird.f32 %v513
        %vm521 = vmor %vm519, %vm520
        %v522 = vsel %vm521, %v513, %v518
        %v523 = vrsqrt.pop %v506
        %v524 = vmul.f32 %v523, %v506
        %v525 = vmul.f32 %v524, %v523
        %v526 = vmul.f32 0.5, %v525
        %v527 = vsub.f32 1.5, %v526
        %v528 = vmul.f32 %v523, %v527
        %vm529 = vweird.f32 %v506
        %vm530 = vweird.f32 %v523
        %vm531 = vmor %vm529, %vm530
        %v532 = vsel %vm531, %v523, %v528
        %v533 = vrsqrt.pop %v507
        %v534 = vmul.f32 %v533, %v507
        %v535 = vmul.f32 %v534, %v533
        %v536 = vmul.f32 0.5, %v535
        %v537 = vsub.f32 1.5, %v536
        %v538 = vmul.f32 %v533, %v537
        %vm539 = vweird.f32 %v507
        %vm540 = vweird.f32 %v533
        %vm541 = vmor %vm539, %vm540
        %v542 = vsel %vm541, %v533, %v538
        %v543 = vrsqrt.pop %v508
        %v544 = vmul.f32 %v543, %v508
        %v545 = vmul.f32 %v544, %v543
        %v546 = vmul.f32 0.5, %v545
        %v547 = vsub.f32 1.5, %v546
        %v548 = vmul.f32 %v543, %v547
        %vm549 = vweird.f32 %v508
        %vm550 = vweird.f32 %v543
        %vm551 = vmor %vm549, %vm550
        %v552 = vsel %vm551, %v543, %v548
        %v553 = vrsqrt.pop %v509
        %v554 = vmul.f32 %v553, %v509
        %v555 = vmul.f32 %v554, %v553
        %v556 = vmul.f32 0.5, %v555
        %v557 = vsub.f32 1.5, %v556
        %v558 = vmul.f32 %v553, %v557
        %vm559 = vweird.f32 %v509
        %vm560 = vweird.f32 %v553
        %vm561 = vmor %vm559, %vm560
        %v562 = vsel %vm561, %v553, %v558
        %v563 = vrsqrt.pop %v510
        %v564 = vmul.f32 %v563, %v510
        %v565 = vmul.f32 %v564, %v563
        %v566 = vmul.f32 0.5, %v565
        %v567 = vsub.f32 1.5, %v566
        %v568 = vmul.f32 %v563, %v567
        %vm569 = vweird.f32 %v510
        %vm570 = vweird.f32 %v563
        %vm571 = vmor %vm569, %vm570
        %v572 = vsel %vm571, %v563, %v568
        %v573 = vrsqrt.pop %v511
        %v574 = vmul.f32 %v573, %v511
        %v575 = vmul.f32 %v574, %v573
        %v576 = vmul.f32 0.5, %v575
        %v577 = vsub.f32 1.5, %v576
        %v578 = vmul.f32 %v573, %v577
        %vm579 = vweird.f32 %v511
        %vm580 = vweird.f32 %v573
        %vm581 = vmor %vm579, %vm580
        %v582 = vsel %vm581, %v573, %v578
        %v583 = vrsqrt.pop %v512
        %v584 = vmul.f32 %v583, %v512
        %v585 = vmul.f32 %v584, %v583
        %v586 = vmul.f32 0.5, %v585
        %v587 = vsub.f32 1.5, %v586
        %v588 = vmul.f32 %v583, %v587
        %vm589 = vweird.f32 %v512
        %vm590 = vweird.f32 %v583
        %vm591 = vmor %vm589, %vm590
        %v592 = vsel %vm591, %v583, %v588
        %v593 = vmul.f32 %v457, %v522
        %v594 = vmul.f32 %v458, %v532
        %v595 = vmul.f32 %v459, %v542
        %v596 = vmul.f32 %v460, %v552
        %v597 = vmul.f32 %v461, %v562
        %v598 = vmul.f32 %v462, %v572
        %v599 = vmul.f32 %v463, %v582
        %v600 = vmul.f32 %v464, %v592
        %v601 = vperm.slane %v415, 0
        %v602 = vmul.f32 %v593, %v601
        %v603 = vmul.f32 %v594, %v601
        %v604 = vmul.f32 %v595, %v601
        %v605 = vmul.f32 %v596, %v601
        %v606 = vmul.f32 %v597, %v601
        %v607 = vmul.f32 %v598, %v601
        %v608 = vmul.f32 %v599, %v601
        %v609 = vmul.f32 %v600, %v601
        %v610 = vperm.slane %v416, 0
        %v611 = vadd.f32 %v602, %v610
        %v612 = vadd.f32 %v603, %v610
        %v613 = vadd.f32 %v604, %v610
        %v614 = vadd.f32 %v605, %v610
        %v615 = vadd.f32 %v606, %v610
        %v616 = vadd.f32 %v607, %v610
        %v617 = vadd.f32 %v608, %v610
        %v618 = vadd.f32 %v609, %v610
        %v619 = vld [vmem:[%s6] sm:$0xff]
        %v620 = vld [vmem:[%s6 + $0x8] sm:$0xff]
        %v621 = vadd.f32 %v611, %v619
        %v622 = vadd.f32 %v612, %v620
        %v623 = vadd.f32 %v613, %v619
        %v624 = vadd.f32 %v614, %v620
        %v625 = vadd.f32 %v615, %v619
        %v626 = vadd.f32 %v616, %v620
        %v627 = vadd.f32 %v617, %v619
        %v628 = vadd.f32 %v618, %v620
        %v629 = vld [vmem:[%s1 + $0x2] sm:$0x1]
        %v630 = vld [vmem:[%s1 + $0x3] sm:$0x1]
        %v631 = vsel %vm417, %v621, 0.0
        %632 = vadd.xlane.f32.xlu0 %v631
        %v633 = vpop.xlane.xlu0 %632
        %v634 = vsel %vm417, %v622, 0.0
        %635 = vadd.xlane.f32.xlu0 %v634
        %v636 = vpop.xlane.xlu0 %635
        %v637 = vsel %vm417, %v623, 0.0
        %638 = vadd.xlane.f32.xlu0 %v637
        %v639 = vpop.xlane.xlu0 %638
        %v640 = vsel %vm417, %v624, 0.0
        %641 = vadd.xlane.f32.xlu0 %v640
        %v642 = vpop.xlane.xlu0 %641
        %v643 = vsel %vm417, %v625, 0.0
        %644 = vadd.xlane.f32.xlu0 %v643
        %v645 = vpop.xlane.xlu0 %644
        %v646 = vsel %vm417, %v626, 0.0
        %647 = vadd.xlane.f32.xlu0 %v646
        %v648 = vpop.xlane.xlu0 %647
        %v649 = vsel %vm417, %v627, 0.0
        %650 = vadd.xlane.f32.xlu0 %v649
        %v651 = vpop.xlane.xlu0 %650
        %v652 = vsel %vm417, %v628, 0.0
        %653 = vadd.xlane.f32.xlu0 %v652
        %v654 = vpop.xlane.xlu0 %653
        %v655 = vmul.f32 %v633, %v448
        %v656 = vmul.f32 %v636, %v448
        %v657 = vmul.f32 %v639, %v448
        %v658 = vmul.f32 %v642, %v448
        %v659 = vmul.f32 %v645, %v448
        %v660 = vmul.f32 %v648, %v448
        %v661 = vmul.f32 %v651, %v448
        %v662 = vmul.f32 %v654, %v448
        %v663 = vsub.f32 %v621, %v655
        %v664 = vsub.f32 %v622, %v656
        %v665 = vsub.f32 %v623, %v657
        %v666 = vsub.f32 %v624, %v658
        %v667 = vsub.f32 %v625, %v659
        %v668 = vsub.f32 %v626, %v660
        %v669 = vsub.f32 %v627, %v661
        %v670 = vsub.f32 %v628, %v662
        %v671 = vmul.f32 %v663, %v663
        %v672 = vmul.f32 %v664, %v664
        %v673 = vmul.f32 %v665, %v665
        %v674 = vmul.f32 %v666, %v666
        %v675 = vmul.f32 %v667, %v667
        %v676 = vmul.f32 %v668, %v668
        %v677 = vmul.f32 %v669, %v669
        %v678 = vmul.f32 %v670, %v670
        %v679 = vsel %vm417, %v671, 0.0
        %680 = vadd.xlane.f32.xlu0 %v679
        %v681 = vpop.xlane.xlu0 %680
        %v682 = vsel %vm417, %v672, 0.0
        %683 = vadd.xlane.f32.xlu0 %v682
        %v684 = vpop.xlane.xlu0 %683
        %v685 = vsel %vm417, %v673, 0.0
        %686 = vadd.xlane.f32.xlu0 %v685
        %v687 = vpop.xlane.xlu0 %686
        %v688 = vsel %vm417, %v674, 0.0
        %689 = vadd.xlane.f32.xlu0 %v688
        %v690 = vpop.xlane.xlu0 %689
        %v691 = vsel %vm417, %v675, 0.0
        %692 = vadd.xlane.f32.xlu0 %v691
        %v693 = vpop.xlane.xlu0 %692
        %v694 = vsel %vm417, %v676, 0.0
        %695 = vadd.xlane.f32.xlu0 %v694
        %v696 = vpop.xlane.xlu0 %695
        %v697 = vsel %vm417, %v677, 0.0
        %698 = vadd.xlane.f32.xlu0 %v697
        %v699 = vpop.xlane.xlu0 %698
        %v700 = vsel %vm417, %v678, 0.0
        %701 = vadd.xlane.f32.xlu0 %v700
        %v702 = vpop.xlane.xlu0 %701
        %v703 = vmul.f32 %v681, %v448
        %v704 = vmul.f32 %v684, %v448
        %v705 = vmul.f32 %v687, %v448
        %v706 = vmul.f32 %v690, %v448
        %v707 = vmul.f32 %v693, %v448
        %v708 = vmul.f32 %v696, %v448
        %v709 = vmul.f32 %v699, %v448
        %v710 = vmul.f32 %v702, %v448
        %v711 = vadd.f32 %v703, 1e-06
        %v712 = vadd.f32 %v704, 1e-06
        %v713 = vadd.f32 %v705, 1e-06
        %v714 = vadd.f32 %v706, 1e-06
        %v715 = vadd.f32 %v707, 1e-06
        %v716 = vadd.f32 %v708, 1e-06
        %v717 = vadd.f32 %v709, 1e-06
        %v718 = vadd.f32 %v710, 1e-06
        %v719 = vrsqrt.pop %v711
        %v720 = vmul.f32 %v719, %v711
        %v721 = vmul.f32 %v720, %v719
        %v722 = vmul.f32 0.5, %v721
        %v723 = vsub.f32 1.5, %v722
        %v724 = vmul.f32 %v719, %v723
        %vm725 = vweird.f32 %v711
        %vm726 = vweird.f32 %v719
        %vm727 = vmor %vm725, %vm726
        %v728 = vsel %vm727, %v719, %v724
        %v729 = vrsqrt.pop %v712
        %v730 = vmul.f32 %v729, %v712
        %v731 = vmul.f32 %v730, %v729
        %v732 = vmul.f32 0.5, %v731
        %v733 = vsub.f32 1.5, %v732
        %v734 = vmul.f32 %v729, %v733
        %vm735 = vweird.f32 %v712
        %vm736 = vweird.f32 %v729
        %vm737 = vmor %vm735, %vm736
        %v738 = vsel %vm737, %v729, %v734
        %v739 = vrsqrt.pop %v713
        %v740 = vmul.f32 %v739, %v713
        %v741 = vmul.f32 %v740, %v739
        %v742 = vmul.f32 0.5, %v741
        %v743 = vsub.f32 1.5, %v742
        %v744 = vmul.f32 %v739, %v743
        %vm745 = vweird.f32 %v713
        %vm746 = vweird.f32 %v739
        %vm747 = vmor %vm745, %vm746
        %v748 = vsel %vm747, %v739, %v744
        %v749 = vrsqrt.pop %v714
        %v750 = vmul.f32 %v749, %v714
        %v751 = vmul.f32 %v750, %v749
        %v752 = vmul.f32 0.5, %v751
        %v753 = vsub.f32 1.5, %v752
        %v754 = vmul.f32 %v749, %v753
        %vm755 = vweird.f32 %v714
        %vm756 = vweird.f32 %v749
        %vm757 = vmor %vm755, %vm756
        %v758 = vsel %vm757, %v749, %v754
        %v759 = vrsqrt.pop %v715
        %v760 = vmul.f32 %v759, %v715
        %v761 = vmul.f32 %v760, %v759
        %v762 = vmul.f32 0.5, %v761
        %v763 = vsub.f32 1.5, %v762
        %v764 = vmul.f32 %v759, %v763
        %vm765 = vweird.f32 %v715
        %vm766 = vweird.f32 %v759
        %vm767 = vmor %vm765, %vm766
        %v768 = vsel %vm767, %v759, %v764
        %v769 = vrsqrt.pop %v716
        %v770 = vmul.f32 %v769, %v716
        %v771 = vmul.f32 %v770, %v769
        %v772 = vmul.f32 0.5, %v771
        %v773 = vsub.f32 1.5, %v772
        %v774 = vmul.f32 %v769, %v773
        %vm775 = vweird.f32 %v716
        %vm776 = vweird.f32 %v769
        %vm777 = vmor %vm775, %vm776
        %v778 = vsel %vm777, %v769, %v774
        %v779 = vrsqrt.pop %v717
        %v780 = vmul.f32 %v779, %v717
        %v781 = vmul.f32 %v780, %v779
        %v782 = vmul.f32 0.5, %v781
        %v783 = vsub.f32 1.5, %v782
        %v784 = vmul.f32 %v779, %v783
        %vm785 = vweird.f32 %v717
        %vm786 = vweird.f32 %v779
        %vm787 = vmor %vm785, %vm786
        %v788 = vsel %vm787, %v779, %v784
        %v789 = vrsqrt.pop %v718
        %v790 = vmul.f32 %v789, %v718
        %v791 = vmul.f32 %v790, %v789
        %v792 = vmul.f32 0.5, %v791
        %v793 = vsub.f32 1.5, %v792
        %v794 = vmul.f32 %v789, %v793
        %vm795 = vweird.f32 %v718
        %vm796 = vweird.f32 %v789
        %vm797 = vmor %vm795, %vm796
        %v798 = vsel %vm797, %v789, %v794
        %v799 = vmul.f32 %v663, %v728
        %v800 = vmul.f32 %v664, %v738
        %v801 = vmul.f32 %v665, %v748
        %v802 = vmul.f32 %v666, %v758
        %v803 = vmul.f32 %v667, %v768
        %v804 = vmul.f32 %v668, %v778
        %v805 = vmul.f32 %v669, %v788
        %v806 = vmul.f32 %v670, %v798
        %v807 = vperm.slane %v629, 0
        %v808 = vmul.f32 %v799, %v807
        %v809 = vmul.f32 %v800, %v807
        %v810 = vmul.f32 %v801, %v807
        %v811 = vmul.f32 %v802, %v807
        %v812 = vmul.f32 %v803, %v807
        %v813 = vmul.f32 %v804, %v807
        %v814 = vmul.f32 %v805, %v807
        %v815 = vmul.f32 %v806, %v807
        %v816 = vperm.slane %v630, 0
        %v817 = vadd.f32 %v808, %v816
        %v818 = vadd.f32 %v809, %v816
        %v819 = vadd.f32 %v810, %v816
        %v820 = vadd.f32 %v811, %v816
        %v821 = vadd.f32 %v812, %v816
        %v822 = vadd.f32 %v813, %v816
        %v823 = vadd.f32 %v814, %v816
        %v824 = vadd.f32 %v815, %v816
        %v825 = vld [vmem:[%s1 + $0x4] sm:$0x1]
        %v826 = vld [vmem:[%s3] sm:$0xff]
        %v827 = vld [vmem:[%s3 + $0x8] sm:$0xff]
        %v828 = vld [vmem:[%s3 + $0x10] sm:$0xff]
        %v829 = vld [vmem:[%s3 + $0x18] sm:$0x7]
        %v830 = vperm.slane %v825, 0
        %v832 = vsel %vm417, %v817, 0
        %v835 = vsel %vm417, %v818, 0
        %v838 = vsel %vm417, %v819, 0
        %v841 = vsel %vm417, %v820, 0
        %v844 = vsel %vm417, %v821, 0
        %v847 = vsel %vm417, %v822, 0
        %v850 = vsel %vm417, %v823, 0
        %v853 = vsel %vm417, %v824, 0
        %vm855 = vcmask 1042432
        %v857 = vsel %vm855, %v829, 0
        %859 = vmatpush.msra.mxu0 0.0
        %860 = vmatpush.msra.mxu0 0.0
        %861 = vmatpush.msra.mxu0 0.0
        %862 = vmatpush.msra.mxu0 0.0
        %863 = vmatpush.msra.mxu0 0.0
        %864 = vmatpush.msra.mxu0 0.0
        %865 = vmatpush.msra.mxu0 0.0
        %866 = vmatpush.msra.mxu0 0.0
        %867 = vmatpush.msra.mxu0 0.0
        %868 = vmatpush.msra.mxu0 0.0
        %869 = vmatpush.msra.mxu0 0.0
        %870 = vmatpush.msra.mxu0 0.0
        %871 = vmatpush.msra.mxu0 %v857
        %872 = vmatpush.msra.mxu0 %v828
        %873 = vmatpush.msra.mxu0 %v827
        %874 = vmatpush.msra.mxu0 %v826
        %875 = vmatmul.f32.gmra.mxu0 %v832
        %v876 = vpop.f32.mrf.mxu0
        %v877 = vadd.f32 %v830, %v876
        %878 = vmatmul.f32.gmra.mxu0 %v835
        %v879 = vpop.f32.mrf.mxu0
        %v880 = vadd.f32 %v830, %v879
        %881 = vmatmul.f32.gmra.mxu0 %v838
        %v882 = vpop.f32.mrf.mxu0
        %v883 = vadd.f32 %v830, %v882
        %884 = vmatmul.f32.gmra.mxu0 %v841
        %v885 = vpop.f32.mrf.mxu0
        %v886 = vadd.f32 %v830, %v885
        %887 = vmatmul.f32.gmra.mxu0 %v844
        %v888 = vpop.f32.mrf.mxu0
        %v889 = vadd.f32 %v830, %v888
        %890 = vmatmul.f32.gmra.mxu0 %v847
        %v891 = vpop.f32.mrf.mxu0
        %v892 = vadd.f32 %v830, %v891
        %893 = vmatmul.f32.gmra.mxu0 %v850
        %v894 = vpop.f32.mrf.mxu0
        %v895 = vadd.f32 %v830, %v894
        %896 = vmatmul.f32.gmra.mxu0 %v853
        %v897 = vpop.f32.mrf.mxu0
        %v898 = vadd.f32 %v830, %v897
        %899 = vdwg.mxu0
        %vm900 = vcmask 1040384
        %v901 = vrot.slane %v817, 7
        %v902 = vrot.slane %v818, 7
        %v903 = vsel %vm900, %v901, %v902
        %v904 = vrot.slane %v819, 7
        %v905 = vrot.slane %v820, 7
        %v906 = vsel %vm900, %v904, %v905
        %v907 = vrot.slane %v821, 7
        %v908 = vrot.slane %v822, 7
        %v909 = vsel %vm900, %v907, %v908
        %v910 = vrot.slane %v823, 7
        %v911 = vrot.slane %v824, 7
        %v912 = vsel %vm900, %v910, %v911
        %v917 = vsel %vm900, 0.0, %v901
        %v918 = vsel %vm900, 0.0, %v904
        %v919 = vsel %vm900, 0.0, %v907
        %v920 = vsel %vm900, 0.0, %v910
        %vm921 = vcmask 1046528
        %v922 = vrot.slane %v817, 1
        %v923 = vrot.slane %v818, 1
        %v924 = vsel %vm921, %v922, %v923
        %v925 = vrot.slane %v819, 1
        %v926 = vrot.slane %v820, 1
        %v927 = vsel %vm921, %v925, %v926
        %v928 = vrot.slane %v821, 1
        %v929 = vrot.slane %v822, 1
        %v930 = vsel %vm921, %v928, %v929
        %v931 = vrot.slane %v823, 1
        %v932 = vrot.slane %v824, 1
        %v933 = vsel %vm921, %v931, %v932
        %v938 = vsel %vm921, %v923, 0.0
        %v939 = vsel %vm921, %v926, 0.0
        %v940 = vsel %vm921, %v929, 0.0
        %v941 = vsel %vm921, %v932, 0.0
        %v942 = vld [vmem:[%s2] sm:$0xff]
        %v943 = vld [vmem:[%s2 + $0x8] sm:$0xff]
        %v944 = vld [vmem:[%s2 + $0x10] sm:$0xff]
        %v945 = vld [vmem:[%s2 + $0x18] sm:$0x7]
        %v947 = vsel %vm417, %v917, 0
        %v949 = vsel %vm417, %v903, 0
        %v952 = vsel %vm417, %v918, 0
        %v954 = vsel %vm417, %v906, 0
        %v957 = vsel %vm417, %v919, 0
        %v959 = vsel %vm417, %v909, 0
        %v962 = vsel %vm417, %v920, 0
        %v964 = vsel %vm417, %v912, 0
        %v967 = vsel %vm855, %v945, 0
        %969 = vmatpush.msra.mxu0 0.0
        %970 = vmatpush.msra.mxu0 0.0
        %971 = vmatpush.msra.mxu0 0.0
        %972 = vmatpush.msra.mxu0 0.0
        %973 = vmatpush.msra.mxu0 0.0
        %974 = vmatpush.msra.mxu0 0.0
        %975 = vmatpush.msra.mxu0 0.0
        %976 = vmatpush.msra.mxu0 0.0
        %977 = vmatpush.msra.mxu0 0.0
        %978 = vmatpush.msra.mxu0 0.0
        %979 = vmatpush.msra.mxu0 0.0
        %980 = vmatpush.msra.mxu0 0.0
        %981 = vmatpush.msra.mxu0 %v967
        %982 = vmatpush.msra.mxu0 %v944
        %983 = vmatpush.msra.mxu0 %v943
        %984 = vmatpush.msra.mxu0 %v942
        %985 = vmatmul.f32.gmra.mxu0 %v947
        %v986 = vpop.f32.mrf.mxu0
        %v987 = vadd.f32 0.0, %v986
        %988 = vmatmul.f32.gmra.mxu0 %v949
        %v989 = vpop.f32.mrf.mxu0
        %v990 = vadd.f32 0.0, %v989
        %991 = vmatmul.f32.gmra.mxu0 %v952
        %v992 = vpop.f32.mrf.mxu0
        %v993 = vadd.f32 0.0, %v992
        %994 = vmatmul.f32.gmra.mxu0 %v954
        %v995 = vpop.f32.mrf.mxu0
        %v996 = vadd.f32 0.0, %v995
        %997 = vmatmul.f32.gmra.mxu0 %v957
        %v998 = vpop.f32.mrf.mxu0
        %v999 = vadd.f32 0.0, %v998
        %1000 = vmatmul.f32.gmra.mxu0 %v959
        %v1001 = vpop.f32.mrf.mxu0
        %v1002 = vadd.f32 0.0, %v1001
        %1003 = vmatmul.f32.gmra.mxu0 %v962
        %v1004 = vpop.f32.mrf.mxu0
        %v1005 = vadd.f32 0.0, %v1004
        %1006 = vmatmul.f32.gmra.mxu0 %v964
        %v1007 = vpop.f32.mrf.mxu0
        %v1008 = vadd.f32 0.0, %v1007
        %1009 = vdwg.mxu0
        %v1010 = vadd.f32 %v877, %v987
        %v1011 = vadd.f32 %v880, %v990
        %v1012 = vadd.f32 %v883, %v993
        %v1013 = vadd.f32 %v886, %v996
        %v1014 = vadd.f32 %v889, %v999
        %v1015 = vadd.f32 %v892, %v1002
        %v1016 = vadd.f32 %v895, %v1005
        %v1017 = vadd.f32 %v898, %v1008
        %s1018 = scalar_lea.vmem %s2, 32
        %v1019 = vld [vmem:[%s1018] sm:$0xff]
        %v1020 = vld [vmem:[%s1018 + $0x8] sm:$0xff]
        %v1021 = vld [vmem:[%s1018 + $0x10] sm:$0xff]
        %v1022 = vld [vmem:[%s1018 + $0x18] sm:$0x7]
        %v1023 = vsel %vm417, %v924, 0
        %v1026 = vsel %vm417, %v938, 0
        %v1028 = vsel %vm417, %v927, 0
        %v1031 = vsel %vm417, %v939, 0
        %v1033 = vsel %vm417, %v930, 0
        %v1036 = vsel %vm417, %v940, 0
        %v1038 = vsel %vm417, %v933, 0
        %v1041 = vsel %vm417, %v941, 0
        %v1044 = vsel %vm855, %v1022, 0
        %1046 = vmatpush.msra.mxu0 0.0
        %1047 = vmatpush.msra.mxu0 0.0
        %1048 = vmatpush.msra.mxu0 0.0
        %1049 = vmatpush.msra.mxu0 0.0
        %1050 = vmatpush.msra.mxu0 0.0
        %1051 = vmatpush.msra.mxu0 0.0
        %1052 = vmatpush.msra.mxu0 0.0
        %1053 = vmatpush.msra.mxu0 0.0
        %1054 = vmatpush.msra.mxu0 0.0
        %1055 = vmatpush.msra.mxu0 0.0
        %1056 = vmatpush.msra.mxu0 0.0
        %1057 = vmatpush.msra.mxu0 0.0
        %1058 = vmatpush.msra.mxu0 %v1044
        %1059 = vmatpush.msra.mxu0 %v1021
        %1060 = vmatpush.msra.mxu0 %v1020
        %1061 = vmatpush.msra.mxu0 %v1019
        %1062 = vmatmul.f32.gmra.mxu0 %v1023
        %v1063 = vpop.f32.mrf.mxu0
        %v1064 = vadd.f32 0.0, %v1063
        %1065 = vmatmul.f32.gmra.mxu0 %v1026
        %v1066 = vpop.f32.mrf.mxu0
        %v1067 = vadd.f32 0.0, %v1066
        %1068 = vmatmul.f32.gmra.mxu0 %v1028
        %v1069 = vpop.f32.mrf.mxu0
        %v1070 = vadd.f32 0.0, %v1069
        %1071 = vmatmul.f32.gmra.mxu0 %v1031
        %v1072 = vpop.f32.mrf.mxu0
        %v1073 = vadd.f32 0.0, %v1072
        %1074 = vmatmul.f32.gmra.mxu0 %v1033
        %v1075 = vpop.f32.mrf.mxu0
        %v1076 = vadd.f32 0.0, %v1075
        %1077 = vmatmul.f32.gmra.mxu0 %v1036
        %v1078 = vpop.f32.mrf.mxu0
        %v1079 = vadd.f32 0.0, %v1078
        %1080 = vmatmul.f32.gmra.mxu0 %v1038
        %v1081 = vpop.f32.mrf.mxu0
        %v1082 = vadd.f32 0.0, %v1081
        %1083 = vmatmul.f32.gmra.mxu0 %v1041
        %v1084 = vpop.f32.mrf.mxu0
        %v1085 = vadd.f32 0.0, %v1084
        %1086 = vdwg.mxu0
        %v1087 = vadd.f32 %v1010, %v1064
        %v1088 = vadd.f32 %v1011, %v1067
        %v1089 = vadd.f32 %v1012, %v1070
        %v1090 = vadd.f32 %v1013, %v1073
        %v1091 = vadd.f32 %v1014, %v1076
        %v1092 = vadd.f32 %v1015, %v1079
        %v1093 = vadd.f32 %v1016, %v1082
        %v1094 = vadd.f32 %v1017, %v1085
        %v1095 = vmul.f32 %v1087, %v374
        %v1096 = vmul.f32 %v1088, %v374
        %v1097 = vmul.f32 %v1087, %v379
        %v1098 = vmul.f32 %v1088, %v379
        %v1099 = vmul.f32 %v1087, %v384
        %v1100 = vmul.f32 %v1088, %v384
        %v1101 = vmul.f32 %v1087, %v389
        %v1102 = vmul.f32 %v1088, %v389
        %v1103 = vmul.f32 %v1087, %v394
        %v1104 = vmul.f32 %v1088, %v394
        %v1105 = vmul.f32 %v1087, %v399
        %v1106 = vmul.f32 %v1088, %v399
        %v1107 = vmul.f32 %v1087, %v404
        %v1108 = vmul.f32 %v1088, %v404
        %v1109 = vmul.f32 %v1087, %v409
        %v1110 = vmul.f32 %v1088, %v409
        %v1111 = vmul.f32 %v1087, %v414
        %v1112 = vmul.f32 %v1088, %v414
        %1115 = vrot.lane.b32.xlu0 %v877, 101
        %v1116 = vpop.permute.xlu0 %1115
        %1117 = vrot.lane.b32.xlu0 %v880, 101
        %v1118 = vpop.permute.xlu0 %1117
        %v1119 = vsel %vm417, %v1116, 0
        %v1121 = vsel %vm417, %v1118, 0
        %v1124 = vsel %vm417, %v1095, 0
        %v1127 = vsel %vm417, %v1096, 0
        %v1130 = vsel %vm417, %v1097, 0
        %v1133 = vsel %vm417, %v1098, 0
        %v1136 = vsel %vm417, %v1099, 0
        %v1139 = vsel %vm417, %v1100, 0
        %v1142 = vsel %vm417, %v1101, 0
        %v1145 = vsel %vm417, %v1102, 0
        %v1148 = vsel %vm417, %v1103, 0
        %v1151 = vsel %vm417, %v1104, 0
        %v1154 = vsel %vm417, %v1105, 0
        %v1157 = vsel %vm417, %v1106, 0
        %v1160 = vsel %vm417, %v1107, 0
        %v1163 = vsel %vm417, %v1108, 0
        %v1166 = vsel %vm417, %v1109, 0
        %v1169 = vsel %vm417, %v1110, 0
        %v1172 = vsel %vm417, %v1111, 0
        %v1175 = vsel %vm417, %v1112, 0
        %1177 = vmatpush.xpose.msra.mxu0 %v1169
        %1178 = vmatpush.xpose.msra.mxu0 %v1166
        %1179 = vmatpush.xpose.msra.mxu0 %v1163
        %1180 = vmatpush.xpose.msra.mxu0 %v1160
        %1181 = vmatpush.xpose.msra.mxu0 %v1157
        %1182 = vmatpush.xpose.msra.mxu0 %v1154
        %1183 = vmatpush.xpose.msra.mxu0 %v1151
        %1184 = vmatpush.xpose.msra.mxu0 %v1148
        %1185 = vmatpush.xpose.msra.mxu0 %v1145
        %1186 = vmatpush.xpose.msra.mxu0 %v1142
        %1187 = vmatpush.xpose.msra.mxu0 %v1139
        %1188 = vmatpush.xpose.msra.mxu0 %v1136
        %1189 = vmatpush.xpose.msra.mxu0 %v1133
        %1190 = vmatpush.xpose.msra.mxu0 %v1130
        %1191 = vmatpush.xpose.msra.mxu0 %v1127
        %1192 = vmatpush.xpose.msra.mxu0 %v1124
        %1193 = vmatmul.f32.gmra.mxu0 %v1119
        %v1194 = vpop.f32.mrf.mxu0
        %v1195 = vadd.f32 0.0, %v1194
        %1196 = vmatmul.f32.gmra.mxu0 %v1121
        %v1197 = vpop.f32.mrf.mxu0
        %v1198 = vadd.f32 0.0, %v1197
        %1199 = vdwg.mxu0
        %1200 = vmatpush.xpose.msra.mxu0 0.0
        %1201 = vmatpush.xpose.msra.mxu0 0.0
        %1202 = vmatpush.xpose.msra.mxu0 0.0
        %1203 = vmatpush.xpose.msra.mxu0 0.0
        %1204 = vmatpush.xpose.msra.mxu0 0.0
        %1205 = vmatpush.xpose.msra.mxu0 0.0
        %1206 = vmatpush.xpose.msra.mxu0 0.0
        %1207 = vmatpush.xpose.msra.mxu0 0.0
        %1208 = vmatpush.xpose.msra.mxu0 0.0
        %1209 = vmatpush.xpose.msra.mxu0 0.0
        %1210 = vmatpush.xpose.msra.mxu0 0.0
        %1211 = vmatpush.xpose.msra.mxu0 0.0
        %1212 = vmatpush.xpose.msra.mxu0 0.0
        %1213 = vmatpush.xpose.msra.mxu0 0.0
        %1214 = vmatpush.xpose.msra.mxu0 %v1175
        %1215 = vmatpush.xpose.msra.mxu0 %v1172
        %1216 = vmatmul.f32.gmra.mxu0 %v1119
        %v1217 = vpop.f32.mrf.mxu0
        %v1218 = vadd.f32 0.0, %v1217
        %1219 = vmatmul.f32.gmra.mxu0 %v1121
        %v1220 = vpop.f32.mrf.mxu0
        %v1221 = vadd.f32 0.0, %v1220
        %1222 = vdwg.mxu0
        %v1223 = vmul.f32 %v1195, 0.57735026
        %v1224 = vmul.f32 %v1218, 0.57735026
        %v1225 = vmul.f32 %v1198, 0.57735026
        %v1226 = vmul.f32 %v1221, 0.57735026
        %v1227 = vmax.f32 %v1223, %v1225
        %v1228 = vrot.slane %v1227, 4
        %v1229 = vmax.f32 %v1227, %v1228
        %v1230 = vrot.slane %v1229, 2
        %v1231 = vmax.f32 %v1229, %v1230
        %v1232 = vrot.slane %v1231, 1
        %v1233 = vmax.f32 %v1231, %v1232
        %vm1234 = vcmask 130048
        %v1235 = vsel %vm1234, %v1224, -inf
        %v1236 = vsel %vm1234, %v1226, -inf
        %v1237 = vmax.f32 %v1235, %v1236
        %v1238 = vrot.slane %v1237, 4
        %v1239 = vmax.f32 %v1237, %v1238
        %v1240 = vrot.slane %v1239, 2
        %v1241 = vmax.f32 %v1239, %v1240
        %v1242 = vrot.slane %v1241, 1
        %v1243 = vmax.f32 %v1241, %v1242
        %v1244 = vsub.f32 %v1223, %v1233
        %v1245 = vsub.f32 %v1224, %v1243
        %v1246 = vsub.f32 %v1225, %v1233
        %v1247 = vsub.f32 %v1226, %v1243
        %v1248 = vmul.f32 %v1244, 1.442695
        %v1249 = vpow.pop %v1248
        %v1250 = vmul.f32 %v1245, 1.442695
        %v1251 = vpow.pop %v1250
        %v1252 = vmul.f32 %v1246, 1.442695
        %v1253 = vpow.pop %v1252
        %v1254 = vmul.f32 %v1247, 1.442695
        %v1255 = vpow.pop %v1254
        %v1256 = vadd.f32 %v1249, %v1253
        %v1257 = vrot.slane %v1256, 4
        %v1258 = vadd.f32 %v1256, %v1257
        %v1259 = vrot.slane %v1258, 2
        %v1260 = vadd.f32 %v1258, %v1259
        %v1261 = vrot.slane %v1260, 1
        %v1262 = vadd.f32 %v1260, %v1261
        %v1263 = vsel %vm1234, %v1251, 0.0
        %v1264 = vsel %vm1234, %v1255, 0.0
        %v1265 = vadd.f32 %v1263, %v1264
        %v1266 = vrot.slane %v1265, 4
        %v1267 = vadd.f32 %v1265, %v1266
        %v1268 = vrot.slane %v1267, 2
        %v1269 = vadd.f32 %v1267, %v1268
        %v1270 = vrot.slane %v1269, 1
        %v1271 = vadd.f32 %v1269, %v1270
        %v1272 = vrcp.pop %v1262
        %v1273 = vrcp.pop %v1271
        %v1274 = vmul.f32 %v1249, %v1272
        %v1275 = vmul.f32 %v1251, %v1273
        %v1276 = vmul.f32 %v1253, %v1272
        %v1277 = vmul.f32 %v1255, %v1273
        %1278 = vxpose.xlu0.b32.start [1/16] %v1274, 128
        %1279 = vxpose.xlu0.b32.cont [2/16] %v1276, 128
        %1280 = vxpose.xlu0.b32.cont [3/16] 0.0, 128
        %1281 = vxpose.xlu0.b32.cont [4/16] 0.0, 128
        %1282 = vxpose.xlu0.b32.cont [5/16] 0.0, 128
        %1283 = vxpose.xlu0.b32.cont [6/16] 0.0, 128
        %1284 = vxpose.xlu0.b32.cont [7/16] 0.0, 128
        %1285 = vxpose.xlu0.b32.cont [8/16] 0.0, 128
        %1286 = vxpose.xlu0.b32.cont [9/16] 0.0, 128
        %1287 = vxpose.xlu0.b32.cont [10/16] 0.0, 128
        %1288 = vxpose.xlu0.b32.cont [11/16] 0.0, 128
        %1289 = vxpose.xlu0.b32.cont [12/16] 0.0, 128
        %1290 = vxpose.xlu0.b32.cont [13/16] 0.0, 128
        %1291 = vxpose.xlu0.b32.cont [14/16] 0.0, 128
        %1292 = vxpose.xlu0.b32.cont [15/16] 0.0, 128
        %1293 = vxpose.xlu0.b32.end [16/16] 0.0, 128
        %v1294 = vpop.trf.xlu0
        %v1295 = vpop.trf.xlu0
        %v1296 = vpop.trf.xlu0
        %v1297 = vpop.trf.xlu0
        %v1298 = vpop.trf.xlu0
        %v1299 = vpop.trf.xlu0
        %v1300 = vpop.trf.xlu0
        %v1301 = vpop.trf.xlu0
        %v1302 = vpop.trf.xlu0
        %v1303 = vpop.trf.xlu0
        %v1304 = vpop.trf.xlu0
        %v1305 = vpop.trf.xlu0
        %v1306 = vpop.trf.xlu0
        %v1307 = vpop.trf.xlu0
        %v1308 = vpop.trf.xlu0
        %v1309 = vpop.trf.xlu0
        %1310 = vxpose.xlu0.b32.start [1/16] %v1275, 128
        %1311 = vxpose.xlu0.b32.cont [2/16] %v1277, 128
        %1312 = vxpose.xlu0.b32.cont [3/16] 0.0, 128
        %1313 = vxpose.xlu0.b32.cont [4/16] 0.0, 128
        %1314 = vxpose.xlu0.b32.cont [5/16] 0.0, 128
        %1315 = vxpose.xlu0.b32.cont [6/16] 0.0, 128
        %1316 = vxpose.xlu0.b32.cont [7/16] 0.0, 128
        %1317 = vxpose.xlu0.b32.cont [8/16] 0.0, 128
        %1318 = vxpose.xlu0.b32.cont [9/16] 0.0, 128
        %1319 = vxpose.xlu0.b32.cont [10/16] 0.0, 128
        %1320 = vxpose.xlu0.b32.cont [11/16] 0.0, 128
        %1321 = vxpose.xlu0.b32.cont [12/16] 0.0, 128
        %1322 = vxpose.xlu0.b32.cont [13/16] 0.0, 128
        %1323 = vxpose.xlu0.b32.cont [14/16] 0.0, 128
        %1324 = vxpose.xlu0.b32.cont [15/16] 0.0, 128
        %1325 = vxpose.xlu0.b32.end [16/16] 0.0, 128
        %v1326 = vpop.trf.xlu0
        %v1327 = vpop.trf.xlu0
        %v1328 = vpop.trf.xlu0
        %v1329 = vpop.trf.xlu0
        %v1330 = vpop.trf.xlu0
        %v1331 = vpop.trf.xlu0
        %v1332 = vpop.trf.xlu0
        %v1333 = vpop.trf.xlu0
        %v1334 = vpop.trf.xlu0
        %v1335 = vpop.trf.xlu0
        %v1336 = vpop.trf.xlu0
        %v1337 = vpop.trf.xlu0
        %v1338 = vpop.trf.xlu0
        %v1339 = vpop.trf.xlu0
        %v1340 = vpop.trf.xlu0
        %v1341 = vpop.trf.xlu0
        %1342 = vrot.lane.b32.xlu0 %v877, 74
        %v1343 = vpop.permute.xlu0 %1342
        %1344 = vrot.lane.b32.xlu0 %v880, 74
        %v1345 = vpop.permute.xlu0 %1344
        %v1349 = vsel %vm1234, %v1294, 0
        %v1352 = vsel %vm1234, %v1295, 0
        %v1355 = vsel %vm1234, %v1296, 0
        %v1358 = vsel %vm1234, %v1297, 0
        %v1361 = vsel %vm1234, %v1298, 0
        %v1364 = vsel %vm1234, %v1299, 0
        %v1367 = vsel %vm1234, %v1300, 0
        %v1370 = vsel %vm1234, %v1301, 0
        %v1373 = vsel %vm1234, %v1302, 0
        %v1376 = vsel %vm1234, %v1303, 0
        %v1379 = vsel %vm1234, %v1304, 0
        %v1382 = vsel %vm1234, %v1305, 0
        %v1385 = vsel %vm1234, %v1306, 0
        %v1388 = vsel %vm1234, %v1307, 0
        %v1391 = vsel %vm1234, %v1308, 0
        %v1394 = vsel %vm1234, %v1309, 0
        %v1397 = vsel %vm1234, %v1326, 0
        %v1400 = vsel %vm1234, %v1327, 0
        %1402 = vmatpush.msra.mxu0 0.0
        %1403 = vmatpush.msra.mxu0 0.0
        %1404 = vmatpush.msra.mxu0 0.0
        %1405 = vmatpush.msra.mxu0 0.0
        %1406 = vmatpush.msra.mxu0 0.0
        %1407 = vmatpush.msra.mxu0 0.0
        %1408 = vmatpush.msra.mxu0 0.0
        %1409 = vmatpush.msra.mxu0 0.0
        %1410 = vmatpush.msra.mxu0 0.0
        %1411 = vmatpush.msra.mxu0 0.0
        %1412 = vmatpush.msra.mxu0 0.0
        %1413 = vmatpush.msra.mxu0 0.0
        %1414 = vmatpush.msra.mxu0 0.0
        %1415 = vmatpush.msra.mxu0 0.0
        %1416 = vmatpush.msra.mxu0 %v1345
        %1417 = vmatpush.msra.mxu0 %v1343
        %1418 = vmatmul.f32.gmra.mxu0 %v1349
        %v1419 = vpop.f32.mrf.mxu0
        %v1420 = vadd.f32 0.0, %v1419
        %1421 = vmatmul.f32.gmra.mxu0 %v1352
        %v1422 = vpop.f32.mrf.mxu0
        %v1423 = vadd.f32 0.0, %v1422
        %1424 = vmatmul.f32.gmra.mxu0 %v1355
        %v1425 = vpop.f32.mrf.mxu0
        %v1426 = vadd.f32 0.0, %v1425
        %1427 = vmatmul.f32.gmra.mxu0 %v1358
        %v1428 = vpop.f32.mrf.mxu0
        %v1429 = vadd.f32 0.0, %v1428
        %1430 = vmatmul.f32.gmra.mxu0 %v1361
        %v1431 = vpop.f32.mrf.mxu0
        %v1432 = vadd.f32 0.0, %v1431
        %1433 = vmatmul.f32.gmra.mxu0 %v1364
        %v1434 = vpop.f32.mrf.mxu0
        %v1435 = vadd.f32 0.0, %v1434
        %1436 = vmatmul.f32.gmra.mxu0 %v1367
        %v1437 = vpop.f32.mrf.mxu0
        %v1438 = vadd.f32 0.0, %v1437
        %1439 = vmatmul.f32.gmra.mxu0 %v1370
        %v1440 = vpop.f32.mrf.mxu0
        %v1441 = vadd.f32 0.0, %v1440
        %1442 = vmatmul.f32.gmra.mxu0 %v1373
        %v1443 = vpop.f32.mrf.mxu0
        %v1444 = vadd.f32 0.0, %v1443
        %1445 = vmatmul.f32.gmra.mxu0 %v1376
        %v1446 = vpop.f32.mrf.mxu0
        %v1447 = vadd.f32 0.0, %v1446
        %1448 = vmatmul.f32.gmra.mxu0 %v1379
        %v1449 = vpop.f32.mrf.mxu0
        %v1450 = vadd.f32 0.0, %v1449
        %1451 = vmatmul.f32.gmra.mxu0 %v1382
        %v1452 = vpop.f32.mrf.mxu0
        %v1453 = vadd.f32 0.0, %v1452
        %1454 = vmatmul.f32.gmra.mxu0 %v1385
        %v1455 = vpop.f32.mrf.mxu0
        %v1456 = vadd.f32 0.0, %v1455
        %1457 = vmatmul.f32.gmra.mxu0 %v1388
        %v1458 = vpop.f32.mrf.mxu0
        %v1459 = vadd.f32 0.0, %v1458
        %1460 = vmatmul.f32.gmra.mxu0 %v1391
        %v1461 = vpop.f32.mrf.mxu0
        %v1462 = vadd.f32 0.0, %v1461
        %1463 = vmatmul.f32.gmra.mxu0 %v1394
        %v1464 = vpop.f32.mrf.mxu0
        %v1465 = vadd.f32 0.0, %v1464
        %1466 = vmatmul.f32.gmra.mxu0 %v1397
        %v1467 = vpop.f32.mrf.mxu0
        %v1468 = vadd.f32 0.0, %v1467
        %1469 = vmatmul.f32.gmra.mxu0 %v1400
        %v1470 = vpop.f32.mrf.mxu0
        %v1471 = vadd.f32 0.0, %v1470
        %1472 = vdwg.mxu0
        %v1473 = vmul.f32 %v1420, %v374
        %v1474 = vmul.f32 %v1423, %v374
        %v1475 = vmul.f32 %v1426, %v379
        %v1476 = vmul.f32 %v1429, %v379
        %v1477 = vmul.f32 %v1432, %v384
        %v1478 = vmul.f32 %v1435, %v384
        %v1479 = vmul.f32 %v1438, %v389
        %v1480 = vmul.f32 %v1441, %v389
        %v1481 = vmul.f32 %v1444, %v394
        %v1482 = vmul.f32 %v1447, %v394
        %v1483 = vmul.f32 %v1450, %v399
        %v1484 = vmul.f32 %v1453, %v399
        %v1485 = vmul.f32 %v1456, %v404
        %v1486 = vmul.f32 %v1459, %v404
        %v1487 = vmul.f32 %v1462, %v409
        %v1488 = vmul.f32 %v1465, %v409
        %v1489 = vmul.f32 %v1468, %v414
        %v1490 = vmul.f32 %v1471, %v414
        %v1491 = vadd.f32 %v1473, %v1475
        %v1492 = vadd.f32 %v1474, %v1476
        %v1493 = vadd.f32 %v1491, %v1477
        %v1494 = vadd.f32 %v1492, %v1478
        %v1495 = vadd.f32 %v1493, %v1479
        %v1496 = vadd.f32 %v1494, %v1480
        %v1497 = vadd.f32 %v1495, %v1481
        %v1498 = vadd.f32 %v1496, %v1482
        %v1499 = vadd.f32 %v1497, %v1483
        %v1500 = vadd.f32 %v1498, %v1484
        %v1501 = vadd.f32 %v1499, %v1485
        %v1502 = vadd.f32 %v1500, %v1486
        %v1503 = vadd.f32 %v1501, %v1487
        %v1504 = vadd.f32 %v1502, %v1488
        %v1505 = vadd.f32 %v1503, %v1489
        %v1506 = vadd.f32 %v1504, %v1490
        %v1507 = vmul.f32 %v1089, %v374
        %v1508 = vmul.f32 %v1090, %v374
        %v1509 = vmul.f32 %v1089, %v379
        %v1510 = vmul.f32 %v1090, %v379
        %v1511 = vmul.f32 %v1089, %v384
        %v1512 = vmul.f32 %v1090, %v384
        %v1513 = vmul.f32 %v1089, %v389
        %v1514 = vmul.f32 %v1090, %v389
        %v1515 = vmul.f32 %v1089, %v394
        %v1516 = vmul.f32 %v1090, %v394
        %v1517 = vmul.f32 %v1089, %v399
        %v1518 = vmul.f32 %v1090, %v399
        %v1519 = vmul.f32 %v1089, %v404
        %v1520 = vmul.f32 %v1090, %v404
        %v1521 = vmul.f32 %v1089, %v409
        %v1522 = vmul.f32 %v1090, %v409
        %v1523 = vmul.f32 %v1089, %v414
        %v1524 = vmul.f32 %v1090, %v414
        %1527 = vrot.lane.b32.xlu0 %v883, 101
        %v1528 = vpop.permute.xlu0 %1527
        %1529 = vrot.lane.b32.xlu0 %v886, 101
        %v1530 = vpop.permute.xlu0 %1529
        %v1531 = vsel %vm417, %v1528, 0
        %v1533 = vsel %vm417, %v1530, 0
        %v1536 = vsel %vm417, %v1507, 0
        %v1539 = vsel %vm417, %v1508, 0
        %v1542 = vsel %vm417, %v1509, 0
        %v1545 = vsel %vm417, %v1510, 0
        %v1548 = vsel %vm417, %v1511, 0
        %v1551 = vsel %vm417, %v1512, 0
        %v1554 = vsel %vm417, %v1513, 0
        %v1557 = vsel %vm417, %v1514, 0
        %v1560 = vsel %vm417, %v1515, 0
        %v1563 = vsel %vm417, %v1516, 0
        %v1566 = vsel %vm417, %v1517, 0
        %v1569 = vsel %vm417, %v1518, 0
        %v1572 = vsel %vm417, %v1519, 0
        %v1575 = vsel %vm417, %v1520, 0
        %v1578 = vsel %vm417, %v1521, 0
        %v1581 = vsel %vm417, %v1522, 0
        %v1584 = vsel %vm417, %v1523, 0
        %v1587 = vsel %vm417, %v1524, 0
        %1589 = vmatpush.xpose.msra.mxu0 %v1581
        %1590 = vmatpush.xpose.msra.mxu0 %v1578
        %1591 = vmatpush.xpose.msra.mxu0 %v1575
        %1592 = vmatpush.xpose.msra.mxu0 %v1572
        %1593 = vmatpush.xpose.msra.mxu0 %v1569
        %1594 = vmatpush.xpose.msra.mxu0 %v1566
        %1595 = vmatpush.xpose.msra.mxu0 %v1563
        %1596 = vmatpush.xpose.msra.mxu0 %v1560
        %1597 = vmatpush.xpose.msra.mxu0 %v1557
        %1598 = vmatpush.xpose.msra.mxu0 %v1554
        %1599 = vmatpush.xpose.msra.mxu0 %v1551
        %1600 = vmatpush.xpose.msra.mxu0 %v1548
        %1601 = vmatpush.xpose.msra.mxu0 %v1545
        %1602 = vmatpush.xpose.msra.mxu0 %v1542
        %1603 = vmatpush.xpose.msra.mxu0 %v1539
        %1604 = vmatpush.xpose.msra.mxu0 %v1536
        %1605 = vmatmul.f32.gmra.mxu0 %v1531
        %v1606 = vpop.f32.mrf.mxu0
        %v1607 = vadd.f32 0.0, %v1606
        %1608 = vmatmul.f32.gmra.mxu0 %v1533
        %v1609 = vpop.f32.mrf.mxu0
        %v1610 = vadd.f32 0.0, %v1609
        %1611 = vdwg.mxu0
        %1612 = vmatpush.xpose.msra.mxu0 0.0
        %1613 = vmatpush.xpose.msra.mxu0 0.0
        %1614 = vmatpush.xpose.msra.mxu0 0.0
        %1615 = vmatpush.xpose.msra.mxu0 0.0
        %1616 = vmatpush.xpose.msra.mxu0 0.0
        %1617 = vmatpush.xpose.msra.mxu0 0.0
        %1618 = vmatpush.xpose.msra.mxu0 0.0
        %1619 = vmatpush.xpose.msra.mxu0 0.0
        %1620 = vmatpush.xpose.msra.mxu0 0.0
        %1621 = vmatpush.xpose.msra.mxu0 0.0
        %1622 = vmatpush.xpose.msra.mxu0 0.0
        %1623 = vmatpush.xpose.msra.mxu0 0.0
        %1624 = vmatpush.xpose.msra.mxu0 0.0
        %1625 = vmatpush.xpose.msra.mxu0 0.0
        %1626 = vmatpush.xpose.msra.mxu0 %v1587
        %1627 = vmatpush.xpose.msra.mxu0 %v1584
        %1628 = vmatmul.f32.gmra.mxu0 %v1531
        %v1629 = vpop.f32.mrf.mxu0
        %v1630 = vadd.f32 0.0, %v1629
        %1631 = vmatmul.f32.gmra.mxu0 %v1533
        %v1632 = vpop.f32.mrf.mxu0
        %v1633 = vadd.f32 0.0, %v1632
        %1634 = vdwg.mxu0
        %v1635 = vmul.f32 %v1607, 0.57735026
        %v1636 = vmul.f32 %v1630, 0.57735026
        %v1637 = vmul.f32 %v1610, 0.57735026
        %v1638 = vmul.f32 %v1633, 0.57735026
        %v1639 = vmax.f32 %v1635, %v1637
        %v1640 = vrot.slane %v1639, 4
        %v1641 = vmax.f32 %v1639, %v1640
        %v1642 = vrot.slane %v1641, 2
        %v1643 = vmax.f32 %v1641, %v1642
        %v1644 = vrot.slane %v1643, 1
        %v1645 = vmax.f32 %v1643, %v1644
        %v1646 = vsel %vm1234, %v1636, -inf
        %v1647 = vsel %vm1234, %v1638, -inf
        %v1648 = vmax.f32 %v1646, %v1647
        %v1649 = vrot.slane %v1648, 4
        %v1650 = vmax.f32 %v1648, %v1649
        %v1651 = vrot.slane %v1650, 2
        %v1652 = vmax.f32 %v1650, %v1651
        %v1653 = vrot.slane %v1652, 1
        %v1654 = vmax.f32 %v1652, %v1653
        %v1655 = vsub.f32 %v1635, %v1645
        %v1656 = vsub.f32 %v1636, %v1654
        %v1657 = vsub.f32 %v1637, %v1645
        %v1658 = vsub.f32 %v1638, %v1654
        %v1659 = vmul.f32 %v1655, 1.442695
        %v1660 = vpow.pop %v1659
        %v1661 = vmul.f32 %v1656, 1.442695
        %v1662 = vpow.pop %v1661
        %v1663 = vmul.f32 %v1657, 1.442695
        %v1664 = vpow.pop %v1663
        %v1665 = vmul.f32 %v1658, 1.442695
        %v1666 = vpow.pop %v1665
        %v1667 = vadd.f32 %v1660, %v1664
        %v1668 = vrot.slane %v1667, 4
        %v1669 = vadd.f32 %v1667, %v1668
        %v1670 = vrot.slane %v1669, 2
        %v1671 = vadd.f32 %v1669, %v1670
        %v1672 = vrot.slane %v1671, 1
        %v1673 = vadd.f32 %v1671, %v1672
        %v1674 = vsel %vm1234, %v1662, 0.0
        %v1675 = vsel %vm1234, %v1666, 0.0
        %v1676 = vadd.f32 %v1674, %v1675
        %v1677 = vrot.slane %v1676, 4
        %v1678 = vadd.f32 %v1676, %v1677
        %v1679 = vrot.slane %v1678, 2
        %v1680 = vadd.f32 %v1678, %v1679
        %v1681 = vrot.slane %v1680, 1
        %v1682 = vadd.f32 %v1680, %v1681
        %v1683 = vrcp.pop %v1673
        %v1684 = vrcp.pop %v1682
        %v1685 = vmul.f32 %v1660, %v1683
        %v1686 = vmul.f32 %v1662, %v1684
        %v1687 = vmul.f32 %v1664, %v1683
        %v1688 = vmul.f32 %v1666, %v1684
        %1689 = vxpose.xlu0.b32.start [1/16] %v1685, 128
        %1690 = vxpose.xlu0.b32.cont [2/16] %v1687, 128
        %1691 = vxpose.xlu0.b32.cont [3/16] 0.0, 128
        %1692 = vxpose.xlu0.b32.cont [4/16] 0.0, 128
        %1693 = vxpose.xlu0.b32.cont [5/16] 0.0, 128
        %1694 = vxpose.xlu0.b32.cont [6/16] 0.0, 128
        %1695 = vxpose.xlu0.b32.cont [7/16] 0.0, 128
        %1696 = vxpose.xlu0.b32.cont [8/16] 0.0, 128
        %1697 = vxpose.xlu0.b32.cont [9/16] 0.0, 128
        %1698 = vxpose.xlu0.b32.cont [10/16] 0.0, 128
        %1699 = vxpose.xlu0.b32.cont [11/16] 0.0, 128
        %1700 = vxpose.xlu0.b32.cont [12/16] 0.0, 128
        %1701 = vxpose.xlu0.b32.cont [13/16] 0.0, 128
        %1702 = vxpose.xlu0.b32.cont [14/16] 0.0, 128
        %1703 = vxpose.xlu0.b32.cont [15/16] 0.0, 128
        %1704 = vxpose.xlu0.b32.end [16/16] 0.0, 128
        %v1705 = vpop.trf.xlu0
        %v1706 = vpop.trf.xlu0
        %v1707 = vpop.trf.xlu0
        %v1708 = vpop.trf.xlu0
        %v1709 = vpop.trf.xlu0
        %v1710 = vpop.trf.xlu0
        %v1711 = vpop.trf.xlu0
        %v1712 = vpop.trf.xlu0
        %v1713 = vpop.trf.xlu0
        %v1714 = vpop.trf.xlu0
        %v1715 = vpop.trf.xlu0
        %v1716 = vpop.trf.xlu0
        %v1717 = vpop.trf.xlu0
        %v1718 = vpop.trf.xlu0
        %v1719 = vpop.trf.xlu0
        %v1720 = vpop.trf.xlu0
        %1721 = vxpose.xlu0.b32.start [1/16] %v1686, 128
        %1722 = vxpose.xlu0.b32.cont [2/16] %v1688, 128
        %1723 = vxpose.xlu0.b32.cont [3/16] 0.0, 128
        %1724 = vxpose.xlu0.b32.cont [4/16] 0.0, 128
        %1725 = vxpose.xlu0.b32.cont [5/16] 0.0, 128
        %1726 = vxpose.xlu0.b32.cont [6/16] 0.0, 128
        %1727 = vxpose.xlu0.b32.cont [7/16] 0.0, 128
        %1728 = vxpose.xlu0.b32.cont [8/16] 0.0, 128
        %1729 = vxpose.xlu0.b32.cont [9/16] 0.0, 128
        %1730 = vxpose.xlu0.b32.cont [10/16] 0.0, 128
        %1731 = vxpose.xlu0.b32.cont [11/16] 0.0, 128
        %1732 = vxpose.xlu0.b32.cont [12/16] 0.0, 128
        %1733 = vxpose.xlu0.b32.cont [13/16] 0.0, 128
        %1734 = vxpose.xlu0.b32.cont [14/16] 0.0, 128
        %1735 = vxpose.xlu0.b32.cont [15/16] 0.0, 128
        %1736 = vxpose.xlu0.b32.end [16/16] 0.0, 128
        %v1737 = vpop.trf.xlu0
        %v1738 = vpop.trf.xlu0
        %v1739 = vpop.trf.xlu0
        %v1740 = vpop.trf.xlu0
        %v1741 = vpop.trf.xlu0
        %v1742 = vpop.trf.xlu0
        %v1743 = vpop.trf.xlu0
        %v1744 = vpop.trf.xlu0
        %v1745 = vpop.trf.xlu0
        %v1746 = vpop.trf.xlu0
        %v1747 = vpop.trf.xlu0
        %v1748 = vpop.trf.xlu0
        %v1749 = vpop.trf.xlu0
        %v1750 = vpop.trf.xlu0
        %v1751 = vpop.trf.xlu0
        %v1752 = vpop.trf.xlu0
        %1753 = vrot.lane.b32.xlu0 %v883, 74
        %v1754 = vpop.permute.xlu0 %1753
        %1755 = vrot.lane.b32.xlu0 %v886, 74
        %v1756 = vpop.permute.xlu0 %1755
        %v1760 = vsel %vm1234, %v1705, 0
        %v1763 = vsel %vm1234, %v1706, 0
        %v1766 = vsel %vm1234, %v1707, 0
        %v1769 = vsel %vm1234, %v1708, 0
        %v1772 = vsel %vm1234, %v1709, 0
        %v1775 = vsel %vm1234, %v1710, 0
        %v1778 = vsel %vm1234, %v1711, 0
        %v1781 = vsel %vm1234, %v1712, 0
        %v1784 = vsel %vm1234, %v1713, 0
        %v1787 = vsel %vm1234, %v1714, 0
        %v1790 = vsel %vm1234, %v1715, 0
        %v1793 = vsel %vm1234, %v1716, 0
        %v1796 = vsel %vm1234, %v1717, 0
        %v1799 = vsel %vm1234, %v1718, 0
        %v1802 = vsel %vm1234, %v1719, 0
        %v1805 = vsel %vm1234, %v1720, 0
        %v1808 = vsel %vm1234, %v1737, 0
        %v1811 = vsel %vm1234, %v1738, 0
        %1813 = vmatpush.msra.mxu0 0.0
        %1814 = vmatpush.msra.mxu0 0.0
        %1815 = vmatpush.msra.mxu0 0.0
        %1816 = vmatpush.msra.mxu0 0.0
        %1817 = vmatpush.msra.mxu0 0.0
        %1818 = vmatpush.msra.mxu0 0.0
        %1819 = vmatpush.msra.mxu0 0.0
        %1820 = vmatpush.msra.mxu0 0.0
        %1821 = vmatpush.msra.mxu0 0.0
        %1822 = vmatpush.msra.mxu0 0.0
        %1823 = vmatpush.msra.mxu0 0.0
        %1824 = vmatpush.msra.mxu0 0.0
        %1825 = vmatpush.msra.mxu0 0.0
        %1826 = vmatpush.msra.mxu0 0.0
        %1827 = vmatpush.msra.mxu0 %v1756
        %1828 = vmatpush.msra.mxu0 %v1754
        %1829 = vmatmul.f32.gmra.mxu0 %v1760
        %v1830 = vpop.f32.mrf.mxu0
        %v1831 = vadd.f32 0.0, %v1830
        %1832 = vmatmul.f32.gmra.mxu0 %v1763
        %v1833 = vpop.f32.mrf.mxu0
        %v1834 = vadd.f32 0.0, %v1833
        %1835 = vmatmul.f32.gmra.mxu0 %v1766
        %v1836 = vpop.f32.mrf.mxu0
        %v1837 = vadd.f32 0.0, %v1836
        %1838 = vmatmul.f32.gmra.mxu0 %v1769
        %v1839 = vpop.f32.mrf.mxu0
        %v1840 = vadd.f32 0.0, %v1839
        %1841 = vmatmul.f32.gmra.mxu0 %v1772
        %v1842 = vpop.f32.mrf.mxu0
        %v1843 = vadd.f32 0.0, %v1842
        %1844 = vmatmul.f32.gmra.mxu0 %v1775
        %v1845 = vpop.f32.mrf.mxu0
        %v1846 = vadd.f32 0.0, %v1845
        %1847 = vmatmul.f32.gmra.mxu0 %v1778
        %v1848 = vpop.f32.mrf.mxu0
        %v1849 = vadd.f32 0.0, %v1848
        %1850 = vmatmul.f32.gmra.mxu0 %v1781
        %v1851 = vpop.f32.mrf.mxu0
        %v1852 = vadd.f32 0.0, %v1851
        %1853 = vmatmul.f32.gmra.mxu0 %v1784
        %v1854 = vpop.f32.mrf.mxu0
        %v1855 = vadd.f32 0.0, %v1854
        %1856 = vmatmul.f32.gmra.mxu0 %v1787
        %v1857 = vpop.f32.mrf.mxu0
        %v1858 = vadd.f32 0.0, %v1857
        %1859 = vmatmul.f32.gmra.mxu0 %v1790
        %v1860 = vpop.f32.mrf.mxu0
        %v1861 = vadd.f32 0.0, %v1860
        %1862 = vmatmul.f32.gmra.mxu0 %v1793
        %v1863 = vpop.f32.mrf.mxu0
        %v1864 = vadd.f32 0.0, %v1863
        %1865 = vmatmul.f32.gmra.mxu0 %v1796
        %v1866 = vpop.f32.mrf.mxu0
        %v1867 = vadd.f32 0.0, %v1866
        %1868 = vmatmul.f32.gmra.mxu0 %v1799
        %v1869 = vpop.f32.mrf.mxu0
        %v1870 = vadd.f32 0.0, %v1869
        %1871 = vmatmul.f32.gmra.mxu0 %v1802
        %v1872 = vpop.f32.mrf.mxu0
        %v1873 = vadd.f32 0.0, %v1872
        %1874 = vmatmul.f32.gmra.mxu0 %v1805
        %v1875 = vpop.f32.mrf.mxu0
        %v1876 = vadd.f32 0.0, %v1875
        %1877 = vmatmul.f32.gmra.mxu0 %v1808
        %v1878 = vpop.f32.mrf.mxu0
        %v1879 = vadd.f32 0.0, %v1878
        %1880 = vmatmul.f32.gmra.mxu0 %v1811
        %v1881 = vpop.f32.mrf.mxu0
        %v1882 = vadd.f32 0.0, %v1881
        %1883 = vdwg.mxu0
        %v1884 = vmul.f32 %v1831, %v374
        %v1885 = vmul.f32 %v1834, %v374
        %v1886 = vmul.f32 %v1837, %v379
        %v1887 = vmul.f32 %v1840, %v379
        %v1888 = vmul.f32 %v1843, %v384
        %v1889 = vmul.f32 %v1846, %v384
        %v1890 = vmul.f32 %v1849, %v389
        %v1891 = vmul.f32 %v1852, %v389
        %v1892 = vmul.f32 %v1855, %v394
        %v1893 = vmul.f32 %v1858, %v394
        %v1894 = vmul.f32 %v1861, %v399
        %v1895 = vmul.f32 %v1864, %v399
        %v1896 = vmul.f32 %v1867, %v404
        %v1897 = vmul.f32 %v1870, %v404
        %v1898 = vmul.f32 %v1873, %v409
        %v1899 = vmul.f32 %v1876, %v409
        %v1900 = vmul.f32 %v1879, %v414
        %v1901 = vmul.f32 %v1882, %v414
        %v1902 = vadd.f32 %v1884, %v1886
        %v1903 = vadd.f32 %v1885, %v1887
        %v1904 = vadd.f32 %v1902, %v1888
        %v1905 = vadd.f32 %v1903, %v1889
        %v1906 = vadd.f32 %v1904, %v1890
        %v1907 = vadd.f32 %v1905, %v1891
        %v1908 = vadd.f32 %v1906, %v1892
        %v1909 = vadd.f32 %v1907, %v1893
        %v1910 = vadd.f32 %v1908, %v1894
        %v1911 = vadd.f32 %v1909, %v1895
        %v1912 = vadd.f32 %v1910, %v1896
        %v1913 = vadd.f32 %v1911, %v1897
        %v1914 = vadd.f32 %v1912, %v1898
        %v1915 = vadd.f32 %v1913, %v1899
        %v1916 = vadd.f32 %v1914, %v1900
        %v1917 = vadd.f32 %v1915, %v1901
        %v1918 = vmul.f32 %v1091, %v374
        %v1919 = vmul.f32 %v1092, %v374
        %v1920 = vmul.f32 %v1091, %v379
        %v1921 = vmul.f32 %v1092, %v379
        %v1922 = vmul.f32 %v1091, %v384
        %v1923 = vmul.f32 %v1092, %v384
        %v1924 = vmul.f32 %v1091, %v389
        %v1925 = vmul.f32 %v1092, %v389
        %v1926 = vmul.f32 %v1091, %v394
        %v1927 = vmul.f32 %v1092, %v394
        %v1928 = vmul.f32 %v1091, %v399
        %v1929 = vmul.f32 %v1092, %v399
        %v1930 = vmul.f32 %v1091, %v404
        %v1931 = vmul.f32 %v1092, %v404
        %v1932 = vmul.f32 %v1091, %v409
        %v1933 = vmul.f32 %v1092, %v409
        %v1934 = vmul.f32 %v1091, %v414
        %v1935 = vmul.f32 %v1092, %v414
        %1938 = vrot.lane.b32.xlu0 %v889, 101
        %v1939 = vpop.permute.xlu0 %1938
        %1940 = vrot.lane.b32.xlu0 %v892, 101
        %v1941 = vpop.permute.xlu0 %1940
        %v1942 = vsel %vm417, %v1939, 0
        %v1944 = vsel %vm417, %v1941, 0
        %v1947 = vsel %vm417, %v1918, 0
        %v1950 = vsel %vm417, %v1919, 0
        %v1953 = vsel %vm417, %v1920, 0
        %v1956 = vsel %vm417, %v1921, 0
        %v1959 = vsel %vm417, %v1922, 0
        %v1962 = vsel %vm417, %v1923, 0
        %v1965 = vsel %vm417, %v1924, 0
        %v1968 = vsel %vm417, %v1925, 0
        %v1971 = vsel %vm417, %v1926, 0
        %v1974 = vsel %vm417, %v1927, 0
        %v1977 = vsel %vm417, %v1928, 0
        %v1980 = vsel %vm417, %v1929, 0
        %v1983 = vsel %vm417, %v1930, 0
        %v1986 = vsel %vm417, %v1931, 0
        %v1989 = vsel %vm417, %v1932, 0
        %v1992 = vsel %vm417, %v1933, 0
        %v1995 = vsel %vm417, %v1934, 0
        %v1998 = vsel %vm417, %v1935, 0
        %2000 = vmatpush.xpose.msra.mxu0 %v1992
        %2001 = vmatpush.xpose.msra.mxu0 %v1989
        %2002 = vmatpush.xpose.msra.mxu0 %v1986
        %2003 = vmatpush.xpose.msra.mxu0 %v1983
        %2004 = vmatpush.xpose.msra.mxu0 %v1980
        %2005 = vmatpush.xpose.msra.mxu0 %v1977
        %2006 = vmatpush.xpose.msra.mxu0 %v1974
        %2007 = vmatpush.xpose.msra.mxu0 %v1971
        %2008 = vmatpush.xpose.msra.mxu0 %v1968
        %2009 = vmatpush.xpose.msra.mxu0 %v1965
        %2010 = vmatpush.xpose.msra.mxu0 %v1962
        %2011 = vmatpush.xpose.msra.mxu0 %v1959
        %2012 = vmatpush.xpose.msra.mxu0 %v1956
        %2013 = vmatpush.xpose.msra.mxu0 %v1953
        %2014 = vmatpush.xpose.msra.mxu0 %v1950
        %2015 = vmatpush.xpose.msra.mxu0 %v1947
        %2016 = vmatmul.f32.gmra.mxu0 %v1942
        %v2017 = vpop.f32.mrf.mxu0
        %v2018 = vadd.f32 0.0, %v2017
        %2019 = vmatmul.f32.gmra.mxu0 %v1944
        %v2020 = vpop.f32.mrf.mxu0
        %v2021 = vadd.f32 0.0, %v2020
        %2022 = vdwg.mxu0
        %2023 = vmatpush.xpose.msra.mxu0 0.0
        %2024 = vmatpush.xpose.msra.mxu0 0.0
        %2025 = vmatpush.xpose.msra.mxu0 0.0
        %2026 = vmatpush.xpose.msra.mxu0 0.0
        %2027 = vmatpush.xpose.msra.mxu0 0.0
        %2028 = vmatpush.xpose.msra.mxu0 0.0
        %2029 = vmatpush.xpose.msra.mxu0 0.0
        %2030 = vmatpush.xpose.msra.mxu0 0.0
        %2031 = vmatpush.xpose.msra.mxu0 0.0
        %2032 = vmatpush.xpose.msra.mxu0 0.0
        %2033 = vmatpush.xpose.msra.mxu0 0.0
        %2034 = vmatpush.xpose.msra.mxu0 0.0
        %2035 = vmatpush.xpose.msra.mxu0 0.0
        %2036 = vmatpush.xpose.msra.mxu0 0.0
        %2037 = vmatpush.xpose.msra.mxu0 %v1998
        %2038 = vmatpush.xpose.msra.mxu0 %v1995
        %2039 = vmatmul.f32.gmra.mxu0 %v1942
        %v2040 = vpop.f32.mrf.mxu0
        %v2041 = vadd.f32 0.0, %v2040
        %2042 = vmatmul.f32.gmra.mxu0 %v1944
        %v2043 = vpop.f32.mrf.mxu0
        %v2044 = vadd.f32 0.0, %v2043
        %2045 = vdwg.mxu0
        %v2046 = vmul.f32 %v2018, 0.57735026
        %v2047 = vmul.f32 %v2041, 0.57735026
        %v2048 = vmul.f32 %v2021, 0.57735026
        %v2049 = vmul.f32 %v2044, 0.57735026
        %v2050 = vmax.f32 %v2046, %v2048
        %v2051 = vrot.slane %v2050, 4
        %v2052 = vmax.f32 %v2050, %v2051
        %v2053 = vrot.slane %v2052, 2
        %v2054 = vmax.f32 %v2052, %v2053
        %v2055 = vrot.slane %v2054, 1
        %v2056 = vmax.f32 %v2054, %v2055
        %v2057 = vsel %vm1234, %v2047, -inf
        %v2058 = vsel %vm1234, %v2049, -inf
        %v2059 = vmax.f32 %v2057, %v2058
        %v2060 = vrot.slane %v2059, 4
        %v2061 = vmax.f32 %v2059, %v2060
        %v2062 = vrot.slane %v2061, 2
        %v2063 = vmax.f32 %v2061, %v2062
        %v2064 = vrot.slane %v2063, 1
        %v2065 = vmax.f32 %v2063, %v2064
        %v2066 = vsub.f32 %v2046, %v2056
        %v2067 = vsub.f32 %v2047, %v2065
        %v2068 = vsub.f32 %v2048, %v2056
        %v2069 = vsub.f32 %v2049, %v2065
        %v2070 = vmul.f32 %v2066, 1.442695
        %v2071 = vpow.pop %v2070
        %v2072 = vmul.f32 %v2067, 1.442695
        %v2073 = vpow.pop %v2072
        %v2074 = vmul.f32 %v2068, 1.442695
        %v2075 = vpow.pop %v2074
        %v2076 = vmul.f32 %v2069, 1.442695
        %v2077 = vpow.pop %v2076
        %v2078 = vadd.f32 %v2071, %v2075
        %v2079 = vrot.slane %v2078, 4
        %v2080 = vadd.f32 %v2078, %v2079
        %v2081 = vrot.slane %v2080, 2
        %v2082 = vadd.f32 %v2080, %v2081
        %v2083 = vrot.slane %v2082, 1
        %v2084 = vadd.f32 %v2082, %v2083
        %v2085 = vsel %vm1234, %v2073, 0.0
        %v2086 = vsel %vm1234, %v2077, 0.0
        %v2087 = vadd.f32 %v2085, %v2086
        %v2088 = vrot.slane %v2087, 4
        %v2089 = vadd.f32 %v2087, %v2088
        %v2090 = vrot.slane %v2089, 2
        %v2091 = vadd.f32 %v2089, %v2090
        %v2092 = vrot.slane %v2091, 1
        %v2093 = vadd.f32 %v2091, %v2092
        %v2094 = vrcp.pop %v2084
        %v2095 = vrcp.pop %v2093
        %v2096 = vmul.f32 %v2071, %v2094
        %v2097 = vmul.f32 %v2073, %v2095
        %v2098 = vmul.f32 %v2075, %v2094
        %v2099 = vmul.f32 %v2077, %v2095
        %2100 = vxpose.xlu0.b32.start [1/16] %v2096, 128
        %2101 = vxpose.xlu0.b32.cont [2/16] %v2098, 128
        %2102 = vxpose.xlu0.b32.cont [3/16] 0.0, 128
        %2103 = vxpose.xlu0.b32.cont [4/16] 0.0, 128
        %2104 = vxpose.xlu0.b32.cont [5/16] 0.0, 128
        %2105 = vxpose.xlu0.b32.cont [6/16] 0.0, 128
        %2106 = vxpose.xlu0.b32.cont [7/16] 0.0, 128
        %2107 = vxpose.xlu0.b32.cont [8/16] 0.0, 128
        %2108 = vxpose.xlu0.b32.cont [9/16] 0.0, 128
        %2109 = vxpose.xlu0.b32.cont [10/16] 0.0, 128
        %2110 = vxpose.xlu0.b32.cont [11/16] 0.0, 128
        %2111 = vxpose.xlu0.b32.cont [12/16] 0.0, 128
        %2112 = vxpose.xlu0.b32.cont [13/16] 0.0, 128
        %2113 = vxpose.xlu0.b32.cont [14/16] 0.0, 128
        %2114 = vxpose.xlu0.b32.cont [15/16] 0.0, 128
        %2115 = vxpose.xlu0.b32.end [16/16] 0.0, 128
        %v2116 = vpop.trf.xlu0
        %v2117 = vpop.trf.xlu0
        %v2118 = vpop.trf.xlu0
        %v2119 = vpop.trf.xlu0
        %v2120 = vpop.trf.xlu0
        %v2121 = vpop.trf.xlu0
        %v2122 = vpop.trf.xlu0
        %v2123 = vpop.trf.xlu0
        %v2124 = vpop.trf.xlu0
        %v2125 = vpop.trf.xlu0
        %v2126 = vpop.trf.xlu0
        %v2127 = vpop.trf.xlu0
        %v2128 = vpop.trf.xlu0
        %v2129 = vpop.trf.xlu0
        %v2130 = vpop.trf.xlu0
        %v2131 = vpop.trf.xlu0
        %2132 = vxpose.xlu0.b32.start [1/16] %v2097, 128
        %2133 = vxpose.xlu0.b32.cont [2/16] %v2099, 128
        %2134 = vxpose.xlu0.b32.cont [3/16] 0.0, 128
        %2135 = vxpose.xlu0.b32.cont [4/16] 0.0, 128
        %2136 = vxpose.xlu0.b32.cont [5/16] 0.0, 128
        %2137 = vxpose.xlu0.b32.cont [6/16] 0.0, 128
        %2138 = vxpose.xlu0.b32.cont [7/16] 0.0, 128
        %2139 = vxpose.xlu0.b32.cont [8/16] 0.0, 128
        %2140 = vxpose.xlu0.b32.cont [9/16] 0.0, 128
        %2141 = vxpose.xlu0.b32.cont [10/16] 0.0, 128
        %2142 = vxpose.xlu0.b32.cont [11/16] 0.0, 128
        %2143 = vxpose.xlu0.b32.cont [12/16] 0.0, 128
        %2144 = vxpose.xlu0.b32.cont [13/16] 0.0, 128
        %2145 = vxpose.xlu0.b32.cont [14/16] 0.0, 128
        %2146 = vxpose.xlu0.b32.cont [15/16] 0.0, 128
        %2147 = vxpose.xlu0.b32.end [16/16] 0.0, 128
        %v2148 = vpop.trf.xlu0
        %v2149 = vpop.trf.xlu0
        %v2150 = vpop.trf.xlu0
        %v2151 = vpop.trf.xlu0
        %v2152 = vpop.trf.xlu0
        %v2153 = vpop.trf.xlu0
        %v2154 = vpop.trf.xlu0
        %v2155 = vpop.trf.xlu0
        %v2156 = vpop.trf.xlu0
        %v2157 = vpop.trf.xlu0
        %v2158 = vpop.trf.xlu0
        %v2159 = vpop.trf.xlu0
        %v2160 = vpop.trf.xlu0
        %v2161 = vpop.trf.xlu0
        %v2162 = vpop.trf.xlu0
        %v2163 = vpop.trf.xlu0
        %2164 = vrot.lane.b32.xlu0 %v889, 74
        %v2165 = vpop.permute.xlu0 %2164
        %2166 = vrot.lane.b32.xlu0 %v892, 74
        %v2167 = vpop.permute.xlu0 %2166
        %v2171 = vsel %vm1234, %v2116, 0
        %v2174 = vsel %vm1234, %v2117, 0
        %v2177 = vsel %vm1234, %v2118, 0
        %v2180 = vsel %vm1234, %v2119, 0
        %v2183 = vsel %vm1234, %v2120, 0
        %v2186 = vsel %vm1234, %v2121, 0
        %v2189 = vsel %vm1234, %v2122, 0
        %v2192 = vsel %vm1234, %v2123, 0
        %v2195 = vsel %vm1234, %v2124, 0
        %v2198 = vsel %vm1234, %v2125, 0
        %v2201 = vsel %vm1234, %v2126, 0
        %v2204 = vsel %vm1234, %v2127, 0
        %v2207 = vsel %vm1234, %v2128, 0
        %v2210 = vsel %vm1234, %v2129, 0
        %v2213 = vsel %vm1234, %v2130, 0
        %v2216 = vsel %vm1234, %v2131, 0
        %v2219 = vsel %vm1234, %v2148, 0
        %v2222 = vsel %vm1234, %v2149, 0
        %2224 = vmatpush.msra.mxu0 0.0
        %2225 = vmatpush.msra.mxu0 0.0
        %2226 = vmatpush.msra.mxu0 0.0
        %2227 = vmatpush.msra.mxu0 0.0
        %2228 = vmatpush.msra.mxu0 0.0
        %2229 = vmatpush.msra.mxu0 0.0
        %2230 = vmatpush.msra.mxu0 0.0
        %2231 = vmatpush.msra.mxu0 0.0
        %2232 = vmatpush.msra.mxu0 0.0
        %2233 = vmatpush.msra.mxu0 0.0
        %2234 = vmatpush.msra.mxu0 0.0
        %2235 = vmatpush.msra.mxu0 0.0
        %2236 = vmatpush.msra.mxu0 0.0
        %2237 = vmatpush.msra.mxu0 0.0
        %2238 = vmatpush.msra.mxu0 %v2167
        %2239 = vmatpush.msra.mxu0 %v2165
        %2240 = vmatmul.f32.gmra.mxu0 %v2171
        %v2241 = vpop.f32.mrf.mxu0
        %v2242 = vadd.f32 0.0, %v2241
        %2243 = vmatmul.f32.gmra.mxu0 %v2174
        %v2244 = vpop.f32.mrf.mxu0
        %v2245 = vadd.f32 0.0, %v2244
        %2246 = vmatmul.f32.gmra.mxu0 %v2177
        %v2247 = vpop.f32.mrf.mxu0
        %v2248 = vadd.f32 0.0, %v2247
        %2249 = vmatmul.f32.gmra.mxu0 %v2180
        %v2250 = vpop.f32.mrf.mxu0
        %v2251 = vadd.f32 0.0, %v2250
        %2252 = vmatmul.f32.gmra.mxu0 %v2183
        %v2253 = vpop.f32.mrf.mxu0
        %v2254 = vadd.f32 0.0, %v2253
        %2255 = vmatmul.f32.gmra.mxu0 %v2186
        %v2256 = vpop.f32.mrf.mxu0
        %v2257 = vadd.f32 0.0, %v2256
        %2258 = vmatmul.f32.gmra.mxu0 %v2189
        %v2259 = vpop.f32.mrf.mxu0
        %v2260 = vadd.f32 0.0, %v2259
        %2261 = vmatmul.f32.gmra.mxu0 %v2192
        %v2262 = vpop.f32.mrf.mxu0
        %v2263 = vadd.f32 0.0, %v2262
        %2264 = vmatmul.f32.gmra.mxu0 %v2195
        %v2265 = vpop.f32.mrf.mxu0
        %v2266 = vadd.f32 0.0, %v2265
        %2267 = vmatmul.f32.gmra.mxu0 %v2198
        %v2268 = vpop.f32.mrf.mxu0
        %v2269 = vadd.f32 0.0, %v2268
        %2270 = vmatmul.f32.gmra.mxu0 %v2201
        %v2271 = vpop.f32.mrf.mxu0
        %v2272 = vadd.f32 0.0, %v2271
        %2273 = vmatmul.f32.gmra.mxu0 %v2204
        %v2274 = vpop.f32.mrf.mxu0
        %v2275 = vadd.f32 0.0, %v2274
        %2276 = vmatmul.f32.gmra.mxu0 %v2207
        %v2277 = vpop.f32.mrf.mxu0
        %v2278 = vadd.f32 0.0, %v2277
        %2279 = vmatmul.f32.gmra.mxu0 %v2210
        %v2280 = vpop.f32.mrf.mxu0
        %v2281 = vadd.f32 0.0, %v2280
        %2282 = vmatmul.f32.gmra.mxu0 %v2213
        %v2283 = vpop.f32.mrf.mxu0
        %v2284 = vadd.f32 0.0, %v2283
        %2285 = vmatmul.f32.gmra.mxu0 %v2216
        %v2286 = vpop.f32.mrf.mxu0
        %v2287 = vadd.f32 0.0, %v2286
        %2288 = vmatmul.f32.gmra.mxu0 %v2219
        %v2289 = vpop.f32.mrf.mxu0
        %v2290 = vadd.f32 0.0, %v2289
        %2291 = vmatmul.f32.gmra.mxu0 %v2222
        %v2292 = vpop.f32.mrf.mxu0
        %v2293 = vadd.f32 0.0, %v2292
        %2294 = vdwg.mxu0
        %v2295 = vmul.f32 %v2242, %v374
        %v2296 = vmul.f32 %v2245, %v374
        %v2297 = vmul.f32 %v2248, %v379
        %v2298 = vmul.f32 %v2251, %v379
        %v2299 = vmul.f32 %v2254, %v384
        %v2300 = vmul.f32 %v2257, %v384
        %v2301 = vmul.f32 %v2260, %v389
        %v2302 = vmul.f32 %v2263, %v389
        %v2303 = vmul.f32 %v2266, %v394
        %v2304 = vmul.f32 %v2269, %v394
        %v2305 = vmul.f32 %v2272, %v399
        %v2306 = vmul.f32 %v2275, %v399
        %v2307 = vmul.f32 %v2278, %v404
        %v2308 = vmul.f32 %v2281, %v404
        %v2309 = vmul.f32 %v2284, %v409
        %v2310 = vmul.f32 %v2287, %v409
        %v2311 = vmul.f32 %v2290, %v414
        %v2312 = vmul.f32 %v2293, %v414
        %v2313 = vadd.f32 %v2295, %v2297
        %v2314 = vadd.f32 %v2296, %v2298
        %v2315 = vadd.f32 %v2313, %v2299
        %v2316 = vadd.f32 %v2314, %v2300
        %v2317 = vadd.f32 %v2315, %v2301
        %v2318 = vadd.f32 %v2316, %v2302
        %v2319 = vadd.f32 %v2317, %v2303
        %v2320 = vadd.f32 %v2318, %v2304
        %v2321 = vadd.f32 %v2319, %v2305
        %v2322 = vadd.f32 %v2320, %v2306
        %v2323 = vadd.f32 %v2321, %v2307
        %v2324 = vadd.f32 %v2322, %v2308
        %v2325 = vadd.f32 %v2323, %v2309
        %v2326 = vadd.f32 %v2324, %v2310
        %v2327 = vadd.f32 %v2325, %v2311
        %v2328 = vadd.f32 %v2326, %v2312
        %v2329 = vmul.f32 %v1093, %v374
        %v2330 = vmul.f32 %v1094, %v374
        %v2331 = vmul.f32 %v1093, %v379
        %v2332 = vmul.f32 %v1094, %v379
        %v2333 = vmul.f32 %v1093, %v384
        %v2334 = vmul.f32 %v1094, %v384
        %v2335 = vmul.f32 %v1093, %v389
        %v2336 = vmul.f32 %v1094, %v389
        %v2337 = vmul.f32 %v1093, %v394
        %v2338 = vmul.f32 %v1094, %v394
        %v2339 = vmul.f32 %v1093, %v399
        %v2340 = vmul.f32 %v1094, %v399
        %v2341 = vmul.f32 %v1093, %v404
        %v2342 = vmul.f32 %v1094, %v404
        %v2343 = vmul.f32 %v1093, %v409
        %v2344 = vmul.f32 %v1094, %v409
        %v2345 = vmul.f32 %v1093, %v414
        %v2346 = vmul.f32 %v1094, %v414
        %2349 = vrot.lane.b32.xlu0 %v895, 101
        %v2350 = vpop.permute.xlu0 %2349
        %2351 = vrot.lane.b32.xlu0 %v898, 101
        %v2352 = vpop.permute.xlu0 %2351
        %v2353 = vsel %vm417, %v2350, 0
        %v2355 = vsel %vm417, %v2352, 0
        %v2358 = vsel %vm417, %v2329, 0
        %v2361 = vsel %vm417, %v2330, 0
        %v2364 = vsel %vm417, %v2331, 0
        %v2367 = vsel %vm417, %v2332, 0
        %v2370 = vsel %vm417, %v2333, 0
        %v2373 = vsel %vm417, %v2334, 0
        %v2376 = vsel %vm417, %v2335, 0
        %v2379 = vsel %vm417, %v2336, 0
        %v2382 = vsel %vm417, %v2337, 0
        %v2385 = vsel %vm417, %v2338, 0
        %v2388 = vsel %vm417, %v2339, 0
        %v2391 = vsel %vm417, %v2340, 0
        %v2394 = vsel %vm417, %v2341, 0
        %v2397 = vsel %vm417, %v2342, 0
        %v2400 = vsel %vm417, %v2343, 0
        %v2403 = vsel %vm417, %v2344, 0
        %v2406 = vsel %vm417, %v2345, 0
        %v2409 = vsel %vm417, %v2346, 0
        %2411 = vmatpush.xpose.msra.mxu0 %v2403
        %2412 = vmatpush.xpose.msra.mxu0 %v2400
        %2413 = vmatpush.xpose.msra.mxu0 %v2397
        %2414 = vmatpush.xpose.msra.mxu0 %v2394
        %2415 = vmatpush.xpose.msra.mxu0 %v2391
        %2416 = vmatpush.xpose.msra.mxu0 %v2388
        %2417 = vmatpush.xpose.msra.mxu0 %v2385
        %2418 = vmatpush.xpose.msra.mxu0 %v2382
        %2419 = vmatpush.xpose.msra.mxu0 %v2379
        %2420 = vmatpush.xpose.msra.mxu0 %v2376
        %2421 = vmatpush.xpose.msra.mxu0 %v2373
        %2422 = vmatpush.xpose.msra.mxu0 %v2370
        %2423 = vmatpush.xpose.msra.mxu0 %v2367
        %2424 = vmatpush.xpose.msra.mxu0 %v2364
        %2425 = vmatpush.xpose.msra.mxu0 %v2361
        %2426 = vmatpush.xpose.msra.mxu0 %v2358
        %2427 = vmatmul.f32.gmra.mxu0 %v2353
        %v2428 = vpop.f32.mrf.mxu0
        %v2429 = vadd.f32 0.0, %v2428
        %2430 = vmatmul.f32.gmra.mxu0 %v2355
        %v2431 = vpop.f32.mrf.mxu0
        %v2432 = vadd.f32 0.0, %v2431
        %2433 = vdwg.mxu0
        %2434 = vmatpush.xpose.msra.mxu0 0.0
        %2435 = vmatpush.xpose.msra.mxu0 0.0
        %2436 = vmatpush.xpose.msra.mxu0 0.0
        %2437 = vmatpush.xpose.msra.mxu0 0.0
        %2438 = vmatpush.xpose.msra.mxu0 0.0
        %2439 = vmatpush.xpose.msra.mxu0 0.0
        %2440 = vmatpush.xpose.msra.mxu0 0.0
        %2441 = vmatpush.xpose.msra.mxu0 0.0
        %2442 = vmatpush.xpose.msra.mxu0 0.0
        %2443 = vmatpush.xpose.msra.mxu0 0.0
        %2444 = vmatpush.xpose.msra.mxu0 0.0
        %2445 = vmatpush.xpose.msra.mxu0 0.0
        %2446 = vmatpush.xpose.msra.mxu0 0.0
        %2447 = vmatpush.xpose.msra.mxu0 0.0
        %2448 = vmatpush.xpose.msra.mxu0 %v2409
        %2449 = vmatpush.xpose.msra.mxu0 %v2406
        %2450 = vmatmul.f32.gmra.mxu0 %v2353
        %v2451 = vpop.f32.mrf.mxu0
        %v2452 = vadd.f32 0.0, %v2451
        %2453 = vmatmul.f32.gmra.mxu0 %v2355
        %v2454 = vpop.f32.mrf.mxu0
        %v2455 = vadd.f32 0.0, %v2454
        %2456 = vdwg.mxu0
        %v2457 = vmul.f32 %v2429, 0.57735026
        %v2458 = vmul.f32 %v2452, 0.57735026
        %v2459 = vmul.f32 %v2432, 0.57735026
        %v2460 = vmul.f32 %v2455, 0.57735026
        %v2461 = vmax.f32 %v2457, %v2459
        %v2462 = vrot.slane %v2461, 4
        %v2463 = vmax.f32 %v2461, %v2462
        %v2464 = vrot.slane %v2463, 2
        %v2465 = vmax.f32 %v2463, %v2464
        %v2466 = vrot.slane %v2465, 1
        %v2467 = vmax.f32 %v2465, %v2466
        %v2468 = vsel %vm1234, %v2458, -inf
        %v2469 = vsel %vm1234, %v2460, -inf
        %v2470 = vmax.f32 %v2468, %v2469
        %v2471 = vrot.slane %v2470, 4
        %v2472 = vmax.f32 %v2470, %v2471
        %v2473 = vrot.slane %v2472, 2
        %v2474 = vmax.f32 %v2472, %v2473
        %v2475 = vrot.slane %v2474, 1
        %v2476 = vmax.f32 %v2474, %v2475
        %v2477 = vsub.f32 %v2457, %v2467
        %v2478 = vsub.f32 %v2458, %v2476
        %v2479 = vsub.f32 %v2459, %v2467
        %v2480 = vsub.f32 %v2460, %v2476
        %v2481 = vmul.f32 %v2477, 1.442695
        %v2482 = vpow.pop %v2481
        %v2483 = vmul.f32 %v2478, 1.442695
        %v2484 = vpow.pop %v2483
        %v2485 = vmul.f32 %v2479, 1.442695
        %v2486 = vpow.pop %v2485
        %v2487 = vmul.f32 %v2480, 1.442695
        %v2488 = vpow.pop %v2487
        %v2489 = vadd.f32 %v2482, %v2486
        %v2490 = vrot.slane %v2489, 4
        %v2491 = vadd.f32 %v2489, %v2490
        %v2492 = vrot.slane %v2491, 2
        %v2493 = vadd.f32 %v2491, %v2492
        %v2494 = vrot.slane %v2493, 1
        %v2495 = vadd.f32 %v2493, %v2494
        %v2496 = vsel %vm1234, %v2484, 0.0
        %v2497 = vsel %vm1234, %v2488, 0.0
        %v2498 = vadd.f32 %v2496, %v2497
        %v2499 = vrot.slane %v2498, 4
        %v2500 = vadd.f32 %v2498, %v2499
        %v2501 = vrot.slane %v2500, 2
        %v2502 = vadd.f32 %v2500, %v2501
        %v2503 = vrot.slane %v2502, 1
        %v2504 = vadd.f32 %v2502, %v2503
        %v2505 = vrcp.pop %v2495
        %v2506 = vrcp.pop %v2504
        %v2507 = vmul.f32 %v2482, %v2505
        %v2508 = vmul.f32 %v2484, %v2506
        %v2509 = vmul.f32 %v2486, %v2505
        %v2510 = vmul.f32 %v2488, %v2506
        %2511 = vxpose.xlu0.b32.start [1/16] %v2507, 128
        %2512 = vxpose.xlu0.b32.cont [2/16] %v2509, 128
        %2513 = vxpose.xlu0.b32.cont [3/16] 0.0, 128
        %2514 = vxpose.xlu0.b32.cont [4/16] 0.0, 128
        %2515 = vxpose.xlu0.b32.cont [5/16] 0.0, 128
        %2516 = vxpose.xlu0.b32.cont [6/16] 0.0, 128
        %2517 = vxpose.xlu0.b32.cont [7/16] 0.0, 128
        %2518 = vxpose.xlu0.b32.cont [8/16] 0.0, 128
        %2519 = vxpose.xlu0.b32.cont [9/16] 0.0, 128
        %2520 = vxpose.xlu0.b32.cont [10/16] 0.0, 128
        %2521 = vxpose.xlu0.b32.cont [11/16] 0.0, 128
        %2522 = vxpose.xlu0.b32.cont [12/16] 0.0, 128
        %2523 = vxpose.xlu0.b32.cont [13/16] 0.0, 128
        %2524 = vxpose.xlu0.b32.cont [14/16] 0.0, 128
        %2525 = vxpose.xlu0.b32.cont [15/16] 0.0, 128
        %2526 = vxpose.xlu0.b32.end [16/16] 0.0, 128
        %v2527 = vpop.trf.xlu0
        %v2528 = vpop.trf.xlu0
        %v2529 = vpop.trf.xlu0
        %v2530 = vpop.trf.xlu0
        %v2531 = vpop.trf.xlu0
        %v2532 = vpop.trf.xlu0
        %v2533 = vpop.trf.xlu0
        %v2534 = vpop.trf.xlu0
        %v2535 = vpop.trf.xlu0
        %v2536 = vpop.trf.xlu0
        %v2537 = vpop.trf.xlu0
        %v2538 = vpop.trf.xlu0
        %v2539 = vpop.trf.xlu0
        %v2540 = vpop.trf.xlu0
        %v2541 = vpop.trf.xlu0
        %v2542 = vpop.trf.xlu0
        %2543 = vxpose.xlu0.b32.start [1/16] %v2508, 128
        %2544 = vxpose.xlu0.b32.cont [2/16] %v2510, 128
        %2545 = vxpose.xlu0.b32.cont [3/16] 0.0, 128
        %2546 = vxpose.xlu0.b32.cont [4/16] 0.0, 128
        %2547 = vxpose.xlu0.b32.cont [5/16] 0.0, 128
        %2548 = vxpose.xlu0.b32.cont [6/16] 0.0, 128
        %2549 = vxpose.xlu0.b32.cont [7/16] 0.0, 128
        %2550 = vxpose.xlu0.b32.cont [8/16] 0.0, 128
        %2551 = vxpose.xlu0.b32.cont [9/16] 0.0, 128
        %2552 = vxpose.xlu0.b32.cont [10/16] 0.0, 128
        %2553 = vxpose.xlu0.b32.cont [11/16] 0.0, 128
        %2554 = vxpose.xlu0.b32.cont [12/16] 0.0, 128
        %2555 = vxpose.xlu0.b32.cont [13/16] 0.0, 128
        %2556 = vxpose.xlu0.b32.cont [14/16] 0.0, 128
        %2557 = vxpose.xlu0.b32.cont [15/16] 0.0, 128
        %2558 = vxpose.xlu0.b32.end [16/16] 0.0, 128
        %v2559 = vpop.trf.xlu0
        %v2560 = vpop.trf.xlu0
        %v2561 = vpop.trf.xlu0
        %v2562 = vpop.trf.xlu0
        %v2563 = vpop.trf.xlu0
        %v2564 = vpop.trf.xlu0
        %v2565 = vpop.trf.xlu0
        %v2566 = vpop.trf.xlu0
        %v2567 = vpop.trf.xlu0
        %v2568 = vpop.trf.xlu0
        %v2569 = vpop.trf.xlu0
        %v2570 = vpop.trf.xlu0
        %v2571 = vpop.trf.xlu0
        %v2572 = vpop.trf.xlu0
        %v2573 = vpop.trf.xlu0
        %v2574 = vpop.trf.xlu0
        %2575 = vrot.lane.b32.xlu0 %v895, 74
        %v2576 = vpop.permute.xlu0 %2575
        %2577 = vrot.lane.b32.xlu0 %v898, 74
        %v2578 = vpop.permute.xlu0 %2577
        %v2582 = vsel %vm1234, %v2527, 0
        %v2585 = vsel %vm1234, %v2528, 0
        %v2588 = vsel %vm1234, %v2529, 0
        %v2591 = vsel %vm1234, %v2530, 0
        %v2594 = vsel %vm1234, %v2531, 0
        %v2597 = vsel %vm1234, %v2532, 0
        %v2600 = vsel %vm1234, %v2533, 0
        %v2603 = vsel %vm1234, %v2534, 0
        %v2606 = vsel %vm1234, %v2535, 0
        %v2609 = vsel %vm1234, %v2536, 0
        %v2612 = vsel %vm1234, %v2537, 0
        %v2615 = vsel %vm1234, %v2538, 0
        %v2618 = vsel %vm1234, %v2539, 0
        %v2621 = vsel %vm1234, %v2540, 0
        %v2624 = vsel %vm1234, %v2541, 0
        %v2627 = vsel %vm1234, %v2542, 0
        %v2630 = vsel %vm1234, %v2559, 0
        %v2633 = vsel %vm1234, %v2560, 0
        %2635 = vmatpush.msra.mxu0 0.0
        %2636 = vmatpush.msra.mxu0 0.0
        %2637 = vmatpush.msra.mxu0 0.0
        %2638 = vmatpush.msra.mxu0 0.0
        %2639 = vmatpush.msra.mxu0 0.0
        %2640 = vmatpush.msra.mxu0 0.0
        %2641 = vmatpush.msra.mxu0 0.0
        %2642 = vmatpush.msra.mxu0 0.0
        %2643 = vmatpush.msra.mxu0 0.0
        %2644 = vmatpush.msra.mxu0 0.0
        %2645 = vmatpush.msra.mxu0 0.0
        %2646 = vmatpush.msra.mxu0 0.0
        %2647 = vmatpush.msra.mxu0 0.0
        %2648 = vmatpush.msra.mxu0 0.0
        %2649 = vmatpush.msra.mxu0 %v2578
        %2650 = vmatpush.msra.mxu0 %v2576
        %2651 = vmatmul.f32.gmra.mxu0 %v2582
        %v2652 = vpop.f32.mrf.mxu0
        %v2653 = vadd.f32 0.0, %v2652
        %2654 = vmatmul.f32.gmra.mxu0 %v2585
        %v2655 = vpop.f32.mrf.mxu0
        %v2656 = vadd.f32 0.0, %v2655
        %2657 = vmatmul.f32.gmra.mxu0 %v2588
        %v2658 = vpop.f32.mrf.mxu0
        %v2659 = vadd.f32 0.0, %v2658
        %2660 = vmatmul.f32.gmra.mxu0 %v2591
        %v2661 = vpop.f32.mrf.mxu0
        %v2662 = vadd.f32 0.0, %v2661
        %2663 = vmatmul.f32.gmra.mxu0 %v2594
        %v2664 = vpop.f32.mrf.mxu0
        %v2665 = vadd.f32 0.0, %v2664
        %2666 = vmatmul.f32.gmra.mxu0 %v2597
        %v2667 = vpop.f32.mrf.mxu0
        %v2668 = vadd.f32 0.0, %v2667
        %2669 = vmatmul.f32.gmra.mxu0 %v2600
        %v2670 = vpop.f32.mrf.mxu0
        %v2671 = vadd.f32 0.0, %v2670
        %2672 = vmatmul.f32.gmra.mxu0 %v2603
        %v2673 = vpop.f32.mrf.mxu0
        %v2674 = vadd.f32 0.0, %v2673
        %2675 = vmatmul.f32.gmra.mxu0 %v2606
        %v2676 = vpop.f32.mrf.mxu0
        %v2677 = vadd.f32 0.0, %v2676
        %2678 = vmatmul.f32.gmra.mxu0 %v2609
        %v2679 = vpop.f32.mrf.mxu0
        %v2680 = vadd.f32 0.0, %v2679
        %2681 = vmatmul.f32.gmra.mxu0 %v2612
        %v2682 = vpop.f32.mrf.mxu0
        %v2683 = vadd.f32 0.0, %v2682
        %2684 = vmatmul.f32.gmra.mxu0 %v2615
        %v2685 = vpop.f32.mrf.mxu0
        %v2686 = vadd.f32 0.0, %v2685
        %2687 = vmatmul.f32.gmra.mxu0 %v2618
        %v2688 = vpop.f32.mrf.mxu0
        %v2689 = vadd.f32 0.0, %v2688
        %2690 = vmatmul.f32.gmra.mxu0 %v2621
        %v2691 = vpop.f32.mrf.mxu0
        %v2692 = vadd.f32 0.0, %v2691
        %2693 = vmatmul.f32.gmra.mxu0 %v2624
        %v2694 = vpop.f32.mrf.mxu0
        %v2695 = vadd.f32 0.0, %v2694
        %2696 = vmatmul.f32.gmra.mxu0 %v2627
        %v2697 = vpop.f32.mrf.mxu0
        %v2698 = vadd.f32 0.0, %v2697
        %2699 = vmatmul.f32.gmra.mxu0 %v2630
        %v2700 = vpop.f32.mrf.mxu0
        %v2701 = vadd.f32 0.0, %v2700
        %2702 = vmatmul.f32.gmra.mxu0 %v2633
        %v2703 = vpop.f32.mrf.mxu0
        %v2704 = vadd.f32 0.0, %v2703
        %2705 = vdwg.mxu0
        %v2706 = vmul.f32 %v2653, %v374
        %v2707 = vmul.f32 %v2656, %v374
        %v2708 = vmul.f32 %v2659, %v379
        %v2709 = vmul.f32 %v2662, %v379
        %v2710 = vmul.f32 %v2665, %v384
        %v2711 = vmul.f32 %v2668, %v384
        %v2712 = vmul.f32 %v2671, %v389
        %v2713 = vmul.f32 %v2674, %v389
        %v2714 = vmul.f32 %v2677, %v394
        %v2715 = vmul.f32 %v2680, %v394
        %v2716 = vmul.f32 %v2683, %v399
        %v2717 = vmul.f32 %v2686, %v399
        %v2718 = vmul.f32 %v2689, %v404
        %v2719 = vmul.f32 %v2692, %v404
        %v2720 = vmul.f32 %v2695, %v409
        %v2721 = vmul.f32 %v2698, %v409
        %v2722 = vmul.f32 %v2701, %v414
        %v2723 = vmul.f32 %v2704, %v414
        %v2724 = vadd.f32 %v2706, %v2708
        %v2725 = vadd.f32 %v2707, %v2709
        %v2726 = vadd.f32 %v2724, %v2710
        %v2727 = vadd.f32 %v2725, %v2711
        %v2728 = vadd.f32 %v2726, %v2712
        %v2729 = vadd.f32 %v2727, %v2713
        %v2730 = vadd.f32 %v2728, %v2714
        %v2731 = vadd.f32 %v2729, %v2715
        %v2732 = vadd.f32 %v2730, %v2716
        %v2733 = vadd.f32 %v2731, %v2717
        %v2734 = vadd.f32 %v2732, %v2718
        %v2735 = vadd.f32 %v2733, %v2719
        %v2736 = vadd.f32 %v2734, %v2720
        %v2737 = vadd.f32 %v2735, %v2721
        %v2738 = vadd.f32 %v2736, %v2722
        %v2739 = vadd.f32 %v2737, %v2723
        %v2740 = vld [vmem:[%s1 + $0x5] sm:$0x1]
        %v2741 = vsub.f32 %v1087, %v1505
        %v2742 = vsub.f32 %v1088, %v1506
        %v2743 = vsub.f32 %v1089, %v1916
        %v2744 = vsub.f32 %v1090, %v1917
        %v2745 = vsub.f32 %v1091, %v2327
        %v2746 = vsub.f32 %v1092, %v2328
        %v2747 = vsub.f32 %v1093, %v2738
        %v2748 = vsub.f32 %v1094, %v2739
        %s2749 = scalar_lea.vmem %s2, 64
        %v2750 = vld [vmem:[%s2749] sm:$0xff]
        %v2751 = vld [vmem:[%s2749 + $0x8] sm:$0xff]
        %v2752 = vld [vmem:[%s2749 + $0x10] sm:$0xff]
        %v2753 = vld [vmem:[%s2749 + $0x18] sm:$0x7]
        %v2754 = vperm.slane %v2740, 0
        %v2756 = vsel %vm417, %v2741, 0
        %v2759 = vsel %vm417, %v2742, 0
        %v2762 = vsel %vm417, %v2743, 0
        %v2765 = vsel %vm417, %v2744, 0
        %v2768 = vsel %vm417, %v2745, 0
        %v2771 = vsel %vm417, %v2746, 0
        %v2774 = vsel %vm417, %v2747, 0
        %v2777 = vsel %vm417, %v2748, 0
        %v2780 = vsel %vm855, %v2753, 0
        %2782 = vmatpush.msra.mxu0 0.0
        %2783 = vmatpush.msra.mxu0 0.0
        %2784 = vmatpush.msra.mxu0 0.0
        %2785 = vmatpush.msra.mxu0 0.0
        %2786 = vmatpush.msra.mxu0 0.0
        %2787 = vmatpush.msra.mxu0 0.0
        %2788 = vmatpush.msra.mxu0 0.0
        %2789 = vmatpush.msra.mxu0 0.0
        %2790 = vmatpush.msra.mxu0 0.0
        %2791 = vmatpush.msra.mxu0 0.0
        %2792 = vmatpush.msra.mxu0 0.0
        %2793 = vmatpush.msra.mxu0 0.0
        %2794 = vmatpush.msra.mxu0 %v2780
        %2795 = vmatpush.msra.mxu0 %v2752
        %2796 = vmatpush.msra.mxu0 %v2751
        %2797 = vmatpush.msra.mxu0 %v2750
        %2798 = vmatmul.f32.gmra.mxu0 %v2756
        %v2799 = vpop.f32.mrf.mxu0
        %v2800 = vadd.f32 %v2754, %v2799
        %2801 = vmatmul.f32.gmra.mxu0 %v2759
        %v2802 = vpop.f32.mrf.mxu0
        %v2803 = vadd.f32 %v2754, %v2802
        %2804 = vmatmul.f32.gmra.mxu0 %v2762
        %v2805 = vpop.f32.mrf.mxu0
        %v2806 = vadd.f32 %v2754, %v2805
        %2807 = vmatmul.f32.gmra.mxu0 %v2765
        %v2808 = vpop.f32.mrf.mxu0
        %v2809 = vadd.f32 %v2754, %v2808
        %2810 = vmatmul.f32.gmra.mxu0 %v2768
        %v2811 = vpop.f32.mrf.mxu0
        %v2812 = vadd.f32 %v2754, %v2811
        %2813 = vmatmul.f32.gmra.mxu0 %v2771
        %v2814 = vpop.f32.mrf.mxu0
        %v2815 = vadd.f32 %v2754, %v2814
        %2816 = vmatmul.f32.gmra.mxu0 %v2774
        %v2817 = vpop.f32.mrf.mxu0
        %v2818 = vadd.f32 %v2754, %v2817
        %2819 = vmatmul.f32.gmra.mxu0 %v2777
        %v2820 = vpop.f32.mrf.mxu0
        %v2821 = vadd.f32 %v2754, %v2820
        %2822 = vdwg.mxu0
        %v2823 = vadd.f32 %v621, %v2800
        %v2824 = vadd.f32 %v622, %v2803
        %v2825 = vadd.f32 %v623, %v2806
        %v2826 = vadd.f32 %v624, %v2809
        %v2827 = vadd.f32 %v625, %v2812
        %v2828 = vadd.f32 %v626, %v2815
        %v2829 = vadd.f32 %v627, %v2818
        %v2830 = vadd.f32 %v628, %v2821
        %v2831 = vld [vmem:[%s1 + $0x6] sm:$0x1]
        %v2832 = vld [vmem:[%s1 + $0x7] sm:$0x1]
        %v2833 = vsel %vm417, %v2823, 0.0
        %2834 = vadd.xlane.f32.xlu0 %v2833
        %v2835 = vpop.xlane.xlu0 %2834
        %v2836 = vsel %vm417, %v2824, 0.0
        %2837 = vadd.xlane.f32.xlu0 %v2836
        %v2838 = vpop.xlane.xlu0 %2837
        %v2839 = vsel %vm417, %v2825, 0.0
        %2840 = vadd.xlane.f32.xlu0 %v2839
        %v2841 = vpop.xlane.xlu0 %2840
        %v2842 = vsel %vm417, %v2826, 0.0
        %2843 = vadd.xlane.f32.xlu0 %v2842
        %v2844 = vpop.xlane.xlu0 %2843
        %v2845 = vsel %vm417, %v2827, 0.0
        %2846 = vadd.xlane.f32.xlu0 %v2845
        %v2847 = vpop.xlane.xlu0 %2846
        %v2848 = vsel %vm417, %v2828, 0.0
        %2849 = vadd.xlane.f32.xlu0 %v2848
        %v2850 = vpop.xlane.xlu0 %2849
        %v2851 = vsel %vm417, %v2829, 0.0
        %2852 = vadd.xlane.f32.xlu0 %v2851
        %v2853 = vpop.xlane.xlu0 %2852
        %v2854 = vsel %vm417, %v2830, 0.0
        %2855 = vadd.xlane.f32.xlu0 %v2854
        %v2856 = vpop.xlane.xlu0 %2855
        %v2857 = vmul.f32 %v2835, %v448
        %v2858 = vmul.f32 %v2838, %v448
        %v2859 = vmul.f32 %v2841, %v448
        %v2860 = vmul.f32 %v2844, %v448
        %v2861 = vmul.f32 %v2847, %v448
        %v2862 = vmul.f32 %v2850, %v448
        %v2863 = vmul.f32 %v2853, %v448
        %v2864 = vmul.f32 %v2856, %v448
        %v2865 = vsub.f32 %v2823, %v2857
        %v2866 = vsub.f32 %v2824, %v2858
        %v2867 = vsub.f32 %v2825, %v2859
        %v2868 = vsub.f32 %v2826, %v2860
        %v2869 = vsub.f32 %v2827, %v2861
        %v2870 = vsub.f32 %v2828, %v2862
        %v2871 = vsub.f32 %v2829, %v2863
        %v2872 = vsub.f32 %v2830, %v2864
        %v2873 = vmul.f32 %v2865, %v2865
        %v2874 = vmul.f32 %v2866, %v2866
        %v2875 = vmul.f32 %v2867, %v2867
        %v2876 = vmul.f32 %v2868, %v2868
        %v2877 = vmul.f32 %v2869, %v2869
        %v2878 = vmul.f32 %v2870, %v2870
        %v2879 = vmul.f32 %v2871, %v2871
        %v2880 = vmul.f32 %v2872, %v2872
        %v2881 = vsel %vm417, %v2873, 0.0
        %2882 = vadd.xlane.f32.xlu0 %v2881
        %v2883 = vpop.xlane.xlu0 %2882
        %v2884 = vsel %vm417, %v2874, 0.0
        %2885 = vadd.xlane.f32.xlu0 %v2884
        %v2886 = vpop.xlane.xlu0 %2885
        %v2887 = vsel %vm417, %v2875, 0.0
        %2888 = vadd.xlane.f32.xlu0 %v2887
        %v2889 = vpop.xlane.xlu0 %2888
        %v2890 = vsel %vm417, %v2876, 0.0
        %2891 = vadd.xlane.f32.xlu0 %v2890
        %v2892 = vpop.xlane.xlu0 %2891
        %v2893 = vsel %vm417, %v2877, 0.0
        %2894 = vadd.xlane.f32.xlu0 %v2893
        %v2895 = vpop.xlane.xlu0 %2894
        %v2896 = vsel %vm417, %v2878, 0.0
        %2897 = vadd.xlane.f32.xlu0 %v2896
        %v2898 = vpop.xlane.xlu0 %2897
        %v2899 = vsel %vm417, %v2879, 0.0
        %2900 = vadd.xlane.f32.xlu0 %v2899
        %v2901 = vpop.xlane.xlu0 %2900
        %v2902 = vsel %vm417, %v2880, 0.0
        %2903 = vadd.xlane.f32.xlu0 %v2902
        %v2904 = vpop.xlane.xlu0 %2903
        %v2905 = vmul.f32 %v2883, %v448
        %v2906 = vmul.f32 %v2886, %v448
        %v2907 = vmul.f32 %v2889, %v448
        %v2908 = vmul.f32 %v2892, %v448
        %v2909 = vmul.f32 %v2895, %v448
        %v2910 = vmul.f32 %v2898, %v448
        %v2911 = vmul.f32 %v2901, %v448
        %v2912 = vmul.f32 %v2904, %v448
        %v2913 = vadd.f32 %v2905, 1e-06
        %v2914 = vadd.f32 %v2906, 1e-06
        %v2915 = vadd.f32 %v2907, 1e-06
        %v2916 = vadd.f32 %v2908, 1e-06
        %v2917 = vadd.f32 %v2909, 1e-06
        %v2918 = vadd.f32 %v2910, 1e-06
        %v2919 = vadd.f32 %v2911, 1e-06
        %v2920 = vadd.f32 %v2912, 1e-06
        %v2921 = vrsqrt.pop %v2913
        %v2922 = vmul.f32 %v2921, %v2913
        %v2923 = vmul.f32 %v2922, %v2921
        %v2924 = vmul.f32 0.5, %v2923
        %v2925 = vsub.f32 1.5, %v2924
        %v2926 = vmul.f32 %v2921, %v2925
        %vm2927 = vweird.f32 %v2913
        %vm2928 = vweird.f32 %v2921
        %vm2929 = vmor %vm2927, %vm2928
        %v2930 = vsel %vm2929, %v2921, %v2926
        %v2931 = vrsqrt.pop %v2914
        %v2932 = vmul.f32 %v2931, %v2914
        %v2933 = vmul.f32 %v2932, %v2931
        %v2934 = vmul.f32 0.5, %v2933
        %v2935 = vsub.f32 1.5, %v2934
        %v2936 = vmul.f32 %v2931, %v2935
        %vm2937 = vweird.f32 %v2914
        %vm2938 = vweird.f32 %v2931
        %vm2939 = vmor %vm2937, %vm2938
        %v2940 = vsel %vm2939, %v2931, %v2936
        %v2941 = vrsqrt.pop %v2915
        %v2942 = vmul.f32 %v2941, %v2915
        %v2943 = vmul.f32 %v2942, %v2941
        %v2944 = vmul.f32 0.5, %v2943
        %v2945 = vsub.f32 1.5, %v2944
        %v2946 = vmul.f32 %v2941, %v2945
        %vm2947 = vweird.f32 %v2915
        %vm2948 = vweird.f32 %v2941
        %vm2949 = vmor %vm2947, %vm2948
        %v2950 = vsel %vm2949, %v2941, %v2946
        %v2951 = vrsqrt.pop %v2916
        %v2952 = vmul.f32 %v2951, %v2916
        %v2953 = vmul.f32 %v2952, %v2951
        %v2954 = vmul.f32 0.5, %v2953
        %v2955 = vsub.f32 1.5, %v2954
        %v2956 = vmul.f32 %v2951, %v2955
        %vm2957 = vweird.f32 %v2916
        %vm2958 = vweird.f32 %v2951
        %vm2959 = vmor %vm2957, %vm2958
        %v2960 = vsel %vm2959, %v2951, %v2956
        %v2961 = vrsqrt.pop %v2917
        %v2962 = vmul.f32 %v2961, %v2917
        %v2963 = vmul.f32 %v2962, %v2961
        %v2964 = vmul.f32 0.5, %v2963
        %v2965 = vsub.f32 1.5, %v2964
        %v2966 = vmul.f32 %v2961, %v2965
        %vm2967 = vweird.f32 %v2917
        %vm2968 = vweird.f32 %v2961
        %vm2969 = vmor %vm2967, %vm2968
        %v2970 = vsel %vm2969, %v2961, %v2966
        %v2971 = vrsqrt.pop %v2918
        %v2972 = vmul.f32 %v2971, %v2918
        %v2973 = vmul.f32 %v2972, %v2971
        %v2974 = vmul.f32 0.5, %v2973
        %v2975 = vsub.f32 1.5, %v2974
        %v2976 = vmul.f32 %v2971, %v2975
        %vm2977 = vweird.f32 %v2918
        %vm2978 = vweird.f32 %v2971
        %vm2979 = vmor %vm2977, %vm2978
        %v2980 = vsel %vm2979, %v2971, %v2976
        %v2981 = vrsqrt.pop %v2919
        %v2982 = vmul.f32 %v2981, %v2919
        %v2983 = vmul.f32 %v2982, %v2981
        %v2984 = vmul.f32 0.5, %v2983
        %v2985 = vsub.f32 1.5, %v2984
        %v2986 = vmul.f32 %v2981, %v2985
        %vm2987 = vweird.f32 %v2919
        %vm2988 = vweird.f32 %v2981
        %vm2989 = vmor %vm2987, %vm2988
        %v2990 = vsel %vm2989, %v2981, %v2986
        %v2991 = vrsqrt.pop %v2920
        %v2992 = vmul.f32 %v2991, %v2920
        %v2993 = vmul.f32 %v2992, %v2991
        %v2994 = vmul.f32 0.5, %v2993
        %v2995 = vsub.f32 1.5, %v2994
        %v2996 = vmul.f32 %v2991, %v2995
        %vm2997 = vweird.f32 %v2920
        %vm2998 = vweird.f32 %v2991
        %vm2999 = vmor %vm2997, %vm2998
        %v3000 = vsel %vm2999, %v2991, %v2996
        %v3001 = vmul.f32 %v2865, %v2930
        %v3002 = vmul.f32 %v2866, %v2940
        %v3003 = vmul.f32 %v2867, %v2950
        %v3004 = vmul.f32 %v2868, %v2960
        %v3005 = vmul.f32 %v2869, %v2970
        %v3006 = vmul.f32 %v2870, %v2980
        %v3007 = vmul.f32 %v2871, %v2990
        %v3008 = vmul.f32 %v2872, %v3000
        %v3009 = vperm.slane %v2831, 0
        %v3010 = vmul.f32 %v3001, %v3009
        %v3011 = vmul.f32 %v3002, %v3009
        %v3012 = vmul.f32 %v3003, %v3009
        %v3013 = vmul.f32 %v3004, %v3009
        %v3014 = vmul.f32 %v3005, %v3009
        %v3015 = vmul.f32 %v3006, %v3009
        %v3016 = vmul.f32 %v3007, %v3009
        %v3017 = vmul.f32 %v3008, %v3009
        %v3018 = vperm.slane %v2832, 0
        %v3019 = vadd.f32 %v3010, %v3018
        %v3020 = vadd.f32 %v3011, %v3018
        %v3021 = vadd.f32 %v3012, %v3018
        %v3022 = vadd.f32 %v3013, %v3018
        %v3023 = vadd.f32 %v3014, %v3018
        %v3024 = vadd.f32 %v3015, %v3018
        %v3025 = vadd.f32 %v3016, %v3018
        %v3026 = vadd.f32 %v3017, %v3018
        %v3027 = vld [vmem:[%s1 + $0x8] sm:$0x1]
        %v3028 = vld [vmem:[%s4] sm:$0xff]
        %v3029 = vld [vmem:[%s4 + $0x8] sm:$0xff]
        %v3030 = vld [vmem:[%s4 + $0x10] sm:$0xff]
        %v3031 = vld [vmem:[%s4 + $0x18] sm:$0x7]
        %v3032 = vperm.slane %v3027, 0
        %v3034 = vsel %vm417, %v3019, 0
        %v3037 = vsel %vm417, %v3020, 0
        %v3040 = vsel %vm417, %v3021, 0
        %v3043 = vsel %vm417, %v3022, 0
        %v3046 = vsel %vm417, %v3023, 0
        %v3049 = vsel %vm417, %v3024, 0
        %v3052 = vsel %vm417, %v3025, 0
        %v3055 = vsel %vm417, %v3026, 0
        %v3058 = vsel %vm855, %v3031, 0
        %3060 = vmatpush.msra.mxu0 0.0
        %3061 = vmatpush.msra.mxu0 0.0
        %3062 = vmatpush.msra.mxu0 0.0
        %3063 = vmatpush.msra.mxu0 0.0
        %3064 = vmatpush.msra.mxu0 0.0
        %3065 = vmatpush.msra.mxu0 0.0
        %3066 = vmatpush.msra.mxu0 0.0
        %3067 = vmatpush.msra.mxu0 0.0
        %3068 = vmatpush.msra.mxu0 0.0
        %3069 = vmatpush.msra.mxu0 0.0
        %3070 = vmatpush.msra.mxu0 0.0
        %3071 = vmatpush.msra.mxu0 0.0
        %3072 = vmatpush.msra.mxu0 %v3058
        %3073 = vmatpush.msra.mxu0 %v3030
        %3074 = vmatpush.msra.mxu0 %v3029
        %3075 = vmatpush.msra.mxu0 %v3028
        %3076 = vmatmul.f32.gmra.mxu0 %v3034
        %v3077 = vpop.f32.mrf.mxu0
        %v3078 = vadd.f32 %v3032, %v3077
        %3079 = vmatmul.f32.gmra.mxu0 %v3037
        %v3080 = vpop.f32.mrf.mxu0
        %v3081 = vadd.f32 %v3032, %v3080
        %3082 = vmatmul.f32.gmra.mxu0 %v3040
        %v3083 = vpop.f32.mrf.mxu0
        %v3084 = vadd.f32 %v3032, %v3083
        %3085 = vmatmul.f32.gmra.mxu0 %v3043
        %v3086 = vpop.f32.mrf.mxu0
        %v3087 = vadd.f32 %v3032, %v3086
        %3088 = vmatmul.f32.gmra.mxu0 %v3046
        %v3089 = vpop.f32.mrf.mxu0
        %v3090 = vadd.f32 %v3032, %v3089
        %3091 = vmatmul.f32.gmra.mxu0 %v3049
        %v3092 = vpop.f32.mrf.mxu0
        %v3093 = vadd.f32 %v3032, %v3092
        %3094 = vmatmul.f32.gmra.mxu0 %v3052
        %v3095 = vpop.f32.mrf.mxu0
        %v3096 = vadd.f32 %v3032, %v3095
        %3097 = vmatmul.f32.gmra.mxu0 %v3055
        %v3098 = vpop.f32.mrf.mxu0
        %v3099 = vadd.f32 %v3032, %v3098
        %3100 = vdwg.mxu0
        %v3101 = vmul.f32 %v3078, 0.5
        %v3102 = vmul.f32 %v3081, 0.5
        %v3103 = vmul.f32 %v3084, 0.5
        %v3104 = vmul.f32 %v3087, 0.5
        %v3105 = vmul.f32 %v3090, 0.5
        %v3106 = vmul.f32 %v3093, 0.5
        %v3107 = vmul.f32 %v3096, 0.5
        %v3108 = vmul.f32 %v3099, 0.5
        %v3109 = vmul.f32 %v3078, 0.044715
        %v3110 = vmul.f32 %v3081, 0.044715
        %v3111 = vmul.f32 %v3084, 0.044715
        %v3112 = vmul.f32 %v3087, 0.044715
        %v3113 = vmul.f32 %v3090, 0.044715
        %v3114 = vmul.f32 %v3093, 0.044715
        %v3115 = vmul.f32 %v3096, 0.044715
        %v3116 = vmul.f32 %v3099, 0.044715
        %v3117 = vmul.f32 %v3109, %v3078
        %v3118 = vmul.f32 %v3110, %v3081
        %v3119 = vmul.f32 %v3111, %v3084
        %v3120 = vmul.f32 %v3112, %v3087
        %v3121 = vmul.f32 %v3113, %v3090
        %v3122 = vmul.f32 %v3114, %v3093
        %v3123 = vmul.f32 %v3115, %v3096
        %v3124 = vmul.f32 %v3116, %v3099
        %v3125 = vmul.f32 %v3117, %v3078
        %v3126 = vmul.f32 %v3118, %v3081
        %v3127 = vmul.f32 %v3119, %v3084
        %v3128 = vmul.f32 %v3120, %v3087
        %v3129 = vmul.f32 %v3121, %v3090
        %v3130 = vmul.f32 %v3122, %v3093
        %v3131 = vmul.f32 %v3123, %v3096
        %v3132 = vmul.f32 %v3124, %v3099
        %v3133 = vadd.f32 %v3078, %v3125
        %v3134 = vadd.f32 %v3081, %v3126
        %v3135 = vadd.f32 %v3084, %v3127
        %v3136 = vadd.f32 %v3087, %v3128
        %v3137 = vadd.f32 %v3090, %v3129
        %v3138 = vadd.f32 %v3093, %v3130
        %v3139 = vadd.f32 %v3096, %v3131
        %v3140 = vadd.f32 %v3099, %v3132
        %v3141 = vmul.f32 %v3133, 0.7978846
        %v3142 = vmul.f32 %v3134, 0.7978846
        %v3143 = vmul.f32 %v3135, 0.7978846
        %v3144 = vmul.f32 %v3136, 0.7978846
        %v3145 = vmul.f32 %v3137, 0.7978846
        %v3146 = vmul.f32 %v3138, 0.7978846
        %v3147 = vmul.f32 %v3139, 0.7978846
        %v3148 = vmul.f32 %v3140, 0.7978846
        %v3149 = vtanh.pop %v3141
        %v3150 = vtanh.pop %v3142
        %v3151 = vtanh.pop %v3143
        %v3152 = vtanh.pop %v3144
        %v3153 = vtanh.pop %v3145
        %v3154 = vtanh.pop %v3146
        %v3155 = vtanh.pop %v3147
        %v3156 = vtanh.pop %v3148
        %v3157 = vadd.f32 %v3149, 1.0
        %v3158 = vadd.f32 %v3150, 1.0
        %v3159 = vadd.f32 %v3151, 1.0
        %v3160 = vadd.f32 %v3152, 1.0
        %v3161 = vadd.f32 %v3153, 1.0
        %v3162 = vadd.f32 %v3154, 1.0
        %v3163 = vadd.f32 %v3155, 1.0
        %v3164 = vadd.f32 %v3156, 1.0
        %v3165 = vmul.f32 %v3101, %v3157
        %v3166 = vmul.f32 %v3102, %v3158
        %v3167 = vmul.f32 %v3103, %v3159
        %v3168 = vmul.f32 %v3104, %v3160
        %v3169 = vmul.f32 %v3105, %v3161
        %v3170 = vmul.f32 %v3106, %v3162
        %v3171 = vmul.f32 %v3107, %v3163
        %v3172 = vmul.f32 %v3108, %v3164
        %v3173 = vld [vmem:[%s1 + $0x9] sm:$0x1]
        %v3174 = vld [vmem:[%s5] sm:$0xff]
        %v3175 = vld [vmem:[%s5 + $0x8] sm:$0xff]
        %v3176 = vld [vmem:[%s5 + $0x10] sm:$0xff]
        %v3177 = vld [vmem:[%s5 + $0x18] sm:$0xff]
        %v3178 = vld [vmem:[%s5 + $0x20] sm:$0xff]
        %v3179 = vld [vmem:[%s5 + $0x28] sm:$0xff]
        %v3180 = vld [vmem:[%s5 + $0x30] sm:$0x3f]
        %v3181 = vperm.slane %v3173, 0
        %vm3182 = vcmask 441344
        %v3184 = vsel %vm3182, %v3165, 0
        %v3187 = vsel %vm3182, %v3166, 0
        %v3190 = vsel %vm3182, %v3167, 0
        %v3193 = vsel %vm3182, %v3168, 0
        %v3196 = vsel %vm3182, %v3169, 0
        %v3199 = vsel %vm3182, %v3170, 0
        %v3202 = vsel %vm3182, %v3171, 0
        %v3205 = vsel %vm3182, %v3172, 0
        %vm3207 = vcmask 1045504
        %v3209 = vsel %vm3207, %v3180, 0
        %3211 = vmatpush.msra.mxu0 0.0
        %3212 = vmatpush.msra.mxu0 0.0
        %3213 = vmatpush.msra.mxu0 0.0
        %3214 = vmatpush.msra.mxu0 0.0
        %3215 = vmatpush.msra.mxu0 0.0
        %3216 = vmatpush.msra.mxu0 0.0
        %3217 = vmatpush.msra.mxu0 0.0
        %3218 = vmatpush.msra.mxu0 0.0
        %3219 = vmatpush.msra.mxu0 0.0
        %3220 = vmatpush.msra.mxu0 %v3209
        %3221 = vmatpush.msra.mxu0 %v3179
        %3222 = vmatpush.msra.mxu0 %v3178
        %3223 = vmatpush.msra.mxu0 %v3177
        %3224 = vmatpush.msra.mxu0 %v3176
        %3225 = vmatpush.msra.mxu0 %v3175
        %3226 = vmatpush.msra.mxu0 %v3174
        %3227 = vmatmul.f32.gmra.mxu0 %v3184
        %v3228 = vpop.f32.mrf.mxu0
        %v3229 = vadd.f32 %v3181, %v3228
        %3230 = vmatmul.f32.gmra.mxu0 %v3187
        %v3231 = vpop.f32.mrf.mxu0
        %v3232 = vadd.f32 %v3181, %v3231
        %3233 = vmatmul.f32.gmra.mxu0 %v3190
        %v3234 = vpop.f32.mrf.mxu0
        %v3235 = vadd.f32 %v3181, %v3234
        %3236 = vmatmul.f32.gmra.mxu0 %v3193
        %v3237 = vpop.f32.mrf.mxu0
        %v3238 = vadd.f32 %v3181, %v3237
        %3239 = vmatmul.f32.gmra.mxu0 %v3196
        %v3240 = vpop.f32.mrf.mxu0
        %v3241 = vadd.f32 %v3181, %v3240
        %3242 = vmatmul.f32.gmra.mxu0 %v3199
        %v3243 = vpop.f32.mrf.mxu0
        %v3244 = vadd.f32 %v3181, %v3243
        %3245 = vmatmul.f32.gmra.mxu0 %v3202
        %v3246 = vpop.f32.mrf.mxu0
        %v3247 = vadd.f32 %v3181, %v3246
        %3248 = vmatmul.f32.gmra.mxu0 %v3205
        %v3249 = vpop.f32.mrf.mxu0
        %v3250 = vadd.f32 %v3181, %v3249
        %3251 = vdwg.mxu0
        %v3252 = vadd.f32 %v2823, %v3229
        %v3253 = vadd.f32 %v2824, %v3232
        %v3254 = vadd.f32 %v2825, %v3235
        %v3255 = vadd.f32 %v2826, %v3238
        %v3256 = vadd.f32 %v2827, %v3241
        %v3257 = vadd.f32 %v2828, %v3244
        %v3258 = vadd.f32 %v2829, %v3247
        %v3259 = vadd.f32 %v2830, %v3250
        %v3260 = vld [vmem:[%s1 + $0xa] sm:$0x1]
        %v3261 = vld [vmem:[%s1 + $0xb] sm:$0x1]
        %v3262 = vsel %vm417, %v3252, 0.0
        %3263 = vadd.xlane.f32.xlu0 %v3262
        %v3264 = vpop.xlane.xlu0 %3263
        %v3265 = vsel %vm417, %v3253, 0.0
        %3266 = vadd.xlane.f32.xlu0 %v3265
        %v3267 = vpop.xlane.xlu0 %3266
        %v3268 = vsel %vm417, %v3254, 0.0
        %3269 = vadd.xlane.f32.xlu0 %v3268
        %v3270 = vpop.xlane.xlu0 %3269
        %v3271 = vsel %vm417, %v3255, 0.0
        %3272 = vadd.xlane.f32.xlu0 %v3271
        %v3273 = vpop.xlane.xlu0 %3272
        %v3274 = vsel %vm417, %v3256, 0.0
        %3275 = vadd.xlane.f32.xlu0 %v3274
        %v3276 = vpop.xlane.xlu0 %3275
        %v3277 = vsel %vm417, %v3257, 0.0
        %3278 = vadd.xlane.f32.xlu0 %v3277
        %v3279 = vpop.xlane.xlu0 %3278
        %v3280 = vsel %vm417, %v3258, 0.0
        %3281 = vadd.xlane.f32.xlu0 %v3280
        %v3282 = vpop.xlane.xlu0 %3281
        %v3283 = vsel %vm417, %v3259, 0.0
        %3284 = vadd.xlane.f32.xlu0 %v3283
        %v3285 = vpop.xlane.xlu0 %3284
        %v3286 = vmul.f32 %v3264, %v448
        %v3287 = vmul.f32 %v3267, %v448
        %v3288 = vmul.f32 %v3270, %v448
        %v3289 = vmul.f32 %v3273, %v448
        %v3290 = vmul.f32 %v3276, %v448
        %v3291 = vmul.f32 %v3279, %v448
        %v3292 = vmul.f32 %v3282, %v448
        %v3293 = vmul.f32 %v3285, %v448
        %v3294 = vsub.f32 %v3252, %v3286
        %v3295 = vsub.f32 %v3253, %v3287
        %v3296 = vsub.f32 %v3254, %v3288
        %v3297 = vsub.f32 %v3255, %v3289
        %v3298 = vsub.f32 %v3256, %v3290
        %v3299 = vsub.f32 %v3257, %v3291
        %v3300 = vsub.f32 %v3258, %v3292
        %v3301 = vsub.f32 %v3259, %v3293
        %v3302 = vmul.f32 %v3294, %v3294
        %v3303 = vmul.f32 %v3295, %v3295
        %v3304 = vmul.f32 %v3296, %v3296
        %v3305 = vmul.f32 %v3297, %v3297
        %v3306 = vmul.f32 %v3298, %v3298
        %v3307 = vmul.f32 %v3299, %v3299
        %v3308 = vmul.f32 %v3300, %v3300
        %v3309 = vmul.f32 %v3301, %v3301
        %v3310 = vsel %vm417, %v3302, 0.0
        %3311 = vadd.xlane.f32.xlu0 %v3310
        %v3312 = vpop.xlane.xlu0 %3311
        %v3313 = vsel %vm417, %v3303, 0.0
        %3314 = vadd.xlane.f32.xlu0 %v3313
        %v3315 = vpop.xlane.xlu0 %3314
        %v3316 = vsel %vm417, %v3304, 0.0
        %3317 = vadd.xlane.f32.xlu0 %v3316
        %v3318 = vpop.xlane.xlu0 %3317
        %v3319 = vsel %vm417, %v3305, 0.0
        %3320 = vadd.xlane.f32.xlu0 %v3319
        %v3321 = vpop.xlane.xlu0 %3320
        %v3322 = vsel %vm417, %v3306, 0.0
        %3323 = vadd.xlane.f32.xlu0 %v3322
        %v3324 = vpop.xlane.xlu0 %3323
        %v3325 = vsel %vm417, %v3307, 0.0
        %3326 = vadd.xlane.f32.xlu0 %v3325
        %v3327 = vpop.xlane.xlu0 %3326
        %v3328 = vsel %vm417, %v3308, 0.0
        %3329 = vadd.xlane.f32.xlu0 %v3328
        %v3330 = vpop.xlane.xlu0 %3329
        %v3331 = vsel %vm417, %v3309, 0.0
        %3332 = vadd.xlane.f32.xlu0 %v3331
        %v3333 = vpop.xlane.xlu0 %3332
        %v3334 = vmul.f32 %v3312, %v448
        %v3335 = vmul.f32 %v3315, %v448
        %v3336 = vmul.f32 %v3318, %v448
        %v3337 = vmul.f32 %v3321, %v448
        %v3338 = vmul.f32 %v3324, %v448
        %v3339 = vmul.f32 %v3327, %v448
        %v3340 = vmul.f32 %v3330, %v448
        %v3341 = vmul.f32 %v3333, %v448
        %v3342 = vadd.f32 %v3334, 1e-06
        %v3343 = vadd.f32 %v3335, 1e-06
        %v3344 = vadd.f32 %v3336, 1e-06
        %v3345 = vadd.f32 %v3337, 1e-06
        %v3346 = vadd.f32 %v3338, 1e-06
        %v3347 = vadd.f32 %v3339, 1e-06
        %v3348 = vadd.f32 %v3340, 1e-06
        %v3349 = vadd.f32 %v3341, 1e-06
        %v3350 = vrsqrt.pop %v3342
        %v3351 = vmul.f32 %v3350, %v3342
        %v3352 = vmul.f32 %v3351, %v3350
        %v3353 = vmul.f32 0.5, %v3352
        %v3354 = vsub.f32 1.5, %v3353
        %v3355 = vmul.f32 %v3350, %v3354
        %vm3356 = vweird.f32 %v3342
        %vm3357 = vweird.f32 %v3350
        %vm3358 = vmor %vm3356, %vm3357
        %v3359 = vsel %vm3358, %v3350, %v3355
        %v3360 = vrsqrt.pop %v3343
        %v3361 = vmul.f32 %v3360, %v3343
        %v3362 = vmul.f32 %v3361, %v3360
        %v3363 = vmul.f32 0.5, %v3362
        %v3364 = vsub.f32 1.5, %v3363
        %v3365 = vmul.f32 %v3360, %v3364
        %vm3366 = vweird.f32 %v3343
        %vm3367 = vweird.f32 %v3360
        %vm3368 = vmor %vm3366, %vm3367
        %v3369 = vsel %vm3368, %v3360, %v3365
        %v3370 = vrsqrt.pop %v3344
        %v3371 = vmul.f32 %v3370, %v3344
        %v3372 = vmul.f32 %v3371, %v3370
        %v3373 = vmul.f32 0.5, %v3372
        %v3374 = vsub.f32 1.5, %v3373
        %v3375 = vmul.f32 %v3370, %v3374
        %vm3376 = vweird.f32 %v3344
        %vm3377 = vweird.f32 %v3370
        %vm3378 = vmor %vm3376, %vm3377
        %v3379 = vsel %vm3378, %v3370, %v3375
        %v3380 = vrsqrt.pop %v3345
        %v3381 = vmul.f32 %v3380, %v3345
        %v3382 = vmul.f32 %v3381, %v3380
        %v3383 = vmul.f32 0.5, %v3382
        %v3384 = vsub.f32 1.5, %v3383
        %v3385 = vmul.f32 %v3380, %v3384
        %vm3386 = vweird.f32 %v3345
        %vm3387 = vweird.f32 %v3380
        %vm3388 = vmor %vm3386, %vm3387
        %v3389 = vsel %vm3388, %v3380, %v3385
        %v3390 = vrsqrt.pop %v3346
        %v3391 = vmul.f32 %v3390, %v3346
        %v3392 = vmul.f32 %v3391, %v3390
        %v3393 = vmul.f32 0.5, %v3392
        %v3394 = vsub.f32 1.5, %v3393
        %v3395 = vmul.f32 %v3390, %v3394
        %vm3396 = vweird.f32 %v3346
        %vm3397 = vweird.f32 %v3390
        %vm3398 = vmor %vm3396, %vm3397
        %v3399 = vsel %vm3398, %v3390, %v3395
        %v3400 = vrsqrt.pop %v3347
        %v3401 = vmul.f32 %v3400, %v3347
        %v3402 = vmul.f32 %v3401, %v3400
        %v3403 = vmul.f32 0.5, %v3402
        %v3404 = vsub.f32 1.5, %v3403
        %v3405 = vmul.f32 %v3400, %v3404
        %vm3406 = vweird.f32 %v3347
        %vm3407 = vweird.f32 %v3400
        %vm3408 = vmor %vm3406, %vm3407
        %v3409 = vsel %vm3408, %v3400, %v3405
        %v3410 = vrsqrt.pop %v3348
        %v3411 = vmul.f32 %v3410, %v3348
        %v3412 = vmul.f32 %v3411, %v3410
        %v3413 = vmul.f32 0.5, %v3412
        %v3414 = vsub.f32 1.5, %v3413
        %v3415 = vmul.f32 %v3410, %v3414
        %vm3416 = vweird.f32 %v3348
        %vm3417 = vweird.f32 %v3410
        %vm3418 = vmor %vm3416, %vm3417
        %v3419 = vsel %vm3418, %v3410, %v3415
        %v3420 = vrsqrt.pop %v3349
        %v3421 = vmul.f32 %v3420, %v3349
        %v3422 = vmul.f32 %v3421, %v3420
        %v3423 = vmul.f32 0.5, %v3422
        %v3424 = vsub.f32 1.5, %v3423
        %v3425 = vmul.f32 %v3420, %v3424
        %vm3426 = vweird.f32 %v3349
        %vm3427 = vweird.f32 %v3420
        %vm3428 = vmor %vm3426, %vm3427
        %v3429 = vsel %vm3428, %v3420, %v3425
        %v3430 = vmul.f32 %v3294, %v3359
        %v3431 = vmul.f32 %v3295, %v3369
        %v3432 = vmul.f32 %v3296, %v3379
        %v3433 = vmul.f32 %v3297, %v3389
        %v3434 = vmul.f32 %v3298, %v3399
        %v3435 = vmul.f32 %v3299, %v3409
        %v3436 = vmul.f32 %v3300, %v3419
        %v3437 = vmul.f32 %v3301, %v3429
        %v3438 = vperm.slane %v3260, 0
        %v3439 = vmul.f32 %v3430, %v3438
        %v3440 = vmul.f32 %v3431, %v3438
        %v3441 = vmul.f32 %v3432, %v3438
        %v3442 = vmul.f32 %v3433, %v3438
        %v3443 = vmul.f32 %v3434, %v3438
        %v3444 = vmul.f32 %v3435, %v3438
        %v3445 = vmul.f32 %v3436, %v3438
        %v3446 = vmul.f32 %v3437, %v3438
        %v3447 = vperm.slane %v3261, 0
        %v3448 = vadd.f32 %v3439, %v3447
        %v3449 = vadd.f32 %v3440, %v3447
        %v3450 = vadd.f32 %v3441, %v3447
        %v3451 = vadd.f32 %v3442, %v3447
        %v3452 = vadd.f32 %v3443, %v3447
        %v3453 = vadd.f32 %v3444, %v3447
        %v3454 = vadd.f32 %v3445, %v3447
        %v3455 = vadd.f32 %v3446, %v3447
        %v3456 = vadd.f32 %v360, %v3448
        %v3457 = vadd.f32 %v361, %v3449
        %v3458 = vadd.f32 %v362, %v3450
        %v3459 = vadd.f32 %v363, %v3451
        %v3460 = vadd.f32 %v364, %v3452
        %v3461 = vadd.f32 %v365, %v3453
        %v3462 = vadd.f32 %v366, %v3454
        %v3463 = vadd.f32 %v367, %v3455
        %v3464 = vld [vmem:[%s1 + $0xc] sm:$0x1]
        %v3465 = vld [vmem:[%s1 + $0xd] sm:$0x1]
        %v3466 = vsel %vm417, %v3456, 0.0
        %3467 = vadd.xlane.f32.xlu0 %v3466
        %v3468 = vpop.xlane.xlu0 %3467
        %v3469 = vsel %vm417, %v3457, 0.0
        %3470 = vadd.xlane.f32.xlu0 %v3469
        %v3471 = vpop.xlane.xlu0 %3470
        %v3472 = vsel %vm417, %v3458, 0.0
        %3473 = vadd.xlane.f32.xlu0 %v3472
        %v3474 = vpop.xlane.xlu0 %3473
        %v3475 = vsel %vm417, %v3459, 0.0
        %3476 = vadd.xlane.f32.xlu0 %v3475
        %v3477 = vpop.xlane.xlu0 %3476
        %v3478 = vsel %vm417, %v3460, 0.0
        %3479 = vadd.xlane.f32.xlu0 %v3478
        %v3480 = vpop.xlane.xlu0 %3479
        %v3481 = vsel %vm417, %v3461, 0.0
        %3482 = vadd.xlane.f32.xlu0 %v3481
        %v3483 = vpop.xlane.xlu0 %3482
        %v3484 = vsel %vm417, %v3462, 0.0
        %3485 = vadd.xlane.f32.xlu0 %v3484
        %v3486 = vpop.xlane.xlu0 %3485
        %v3487 = vsel %vm417, %v3463, 0.0
        %3488 = vadd.xlane.f32.xlu0 %v3487
        %v3489 = vpop.xlane.xlu0 %3488
        %v3490 = vmul.f32 %v3468, %v448
        %v3491 = vmul.f32 %v3471, %v448
        %v3492 = vmul.f32 %v3474, %v448
        %v3493 = vmul.f32 %v3477, %v448
        %v3494 = vmul.f32 %v3480, %v448
        %v3495 = vmul.f32 %v3483, %v448
        %v3496 = vmul.f32 %v3486, %v448
        %v3497 = vmul.f32 %v3489, %v448
        %v3498 = vsub.f32 %v3456, %v3490
        %v3499 = vsub.f32 %v3457, %v3491
        %v3500 = vsub.f32 %v3458, %v3492
        %v3501 = vsub.f32 %v3459, %v3493
        %v3502 = vsub.f32 %v3460, %v3494
        %v3503 = vsub.f32 %v3461, %v3495
        %v3504 = vsub.f32 %v3462, %v3496
        %v3505 = vsub.f32 %v3463, %v3497
        %v3506 = vmul.f32 %v3498, %v3498
        %v3507 = vmul.f32 %v3499, %v3499
        %v3508 = vmul.f32 %v3500, %v3500
        %v3509 = vmul.f32 %v3501, %v3501
        %v3510 = vmul.f32 %v3502, %v3502
        %v3511 = vmul.f32 %v3503, %v3503
        %v3512 = vmul.f32 %v3504, %v3504
        %v3513 = vmul.f32 %v3505, %v3505
        %v3514 = vsel %vm417, %v3506, 0.0
        %3515 = vadd.xlane.f32.xlu0 %v3514
        %v3516 = vpop.xlane.xlu0 %3515
        %v3517 = vsel %vm417, %v3507, 0.0
        %3518 = vadd.xlane.f32.xlu0 %v3517
        %v3519 = vpop.xlane.xlu0 %3518
        %v3520 = vsel %vm417, %v3508, 0.0
        %3521 = vadd.xlane.f32.xlu0 %v3520
        %v3522 = vpop.xlane.xlu0 %3521
        %v3523 = vsel %vm417, %v3509, 0.0
        %3524 = vadd.xlane.f32.xlu0 %v3523
        %v3525 = vpop.xlane.xlu0 %3524
        %v3526 = vsel %vm417, %v3510, 0.0
        %3527 = vadd.xlane.f32.xlu0 %v3526
        %v3528 = vpop.xlane.xlu0 %3527
        %v3529 = vsel %vm417, %v3511, 0.0
        %3530 = vadd.xlane.f32.xlu0 %v3529
        %v3531 = vpop.xlane.xlu0 %3530
        %v3532 = vsel %vm417, %v3512, 0.0
        %3533 = vadd.xlane.f32.xlu0 %v3532
        %v3534 = vpop.xlane.xlu0 %3533
        %v3535 = vsel %vm417, %v3513, 0.0
        %3536 = vadd.xlane.f32.xlu0 %v3535
        %v3537 = vpop.xlane.xlu0 %3536
        %v3538 = vmul.f32 %v3516, %v448
        %v3539 = vmul.f32 %v3519, %v448
        %v3540 = vmul.f32 %v3522, %v448
        %v3541 = vmul.f32 %v3525, %v448
        %v3542 = vmul.f32 %v3528, %v448
        %v3543 = vmul.f32 %v3531, %v448
        %v3544 = vmul.f32 %v3534, %v448
        %v3545 = vmul.f32 %v3537, %v448
        %v3546 = vadd.f32 %v3538, 1e-05
        %v3547 = vadd.f32 %v3539, 1e-05
        %v3548 = vadd.f32 %v3540, 1e-05
        %v3549 = vadd.f32 %v3541, 1e-05
        %v3550 = vadd.f32 %v3542, 1e-05
        %v3551 = vadd.f32 %v3543, 1e-05
        %v3552 = vadd.f32 %v3544, 1e-05
        %v3553 = vadd.f32 %v3545, 1e-05
        %v3554 = vrsqrt.pop %v3546
        %v3555 = vmul.f32 %v3554, %v3546
        %v3556 = vmul.f32 %v3555, %v3554
        %v3557 = vmul.f32 0.5, %v3556
        %v3558 = vsub.f32 1.5, %v3557
        %v3559 = vmul.f32 %v3554, %v3558
        %vm3560 = vweird.f32 %v3546
        %vm3561 = vweird.f32 %v3554
        %vm3562 = vmor %vm3560, %vm3561
        %v3563 = vsel %vm3562, %v3554, %v3559
        %v3564 = vrsqrt.pop %v3547
        %v3565 = vmul.f32 %v3564, %v3547
        %v3566 = vmul.f32 %v3565, %v3564
        %v3567 = vmul.f32 0.5, %v3566
        %v3568 = vsub.f32 1.5, %v3567
        %v3569 = vmul.f32 %v3564, %v3568
        %vm3570 = vweird.f32 %v3547
        %vm3571 = vweird.f32 %v3564
        %vm3572 = vmor %vm3570, %vm3571
        %v3573 = vsel %vm3572, %v3564, %v3569
        %v3574 = vrsqrt.pop %v3548
        %v3575 = vmul.f32 %v3574, %v3548
        %v3576 = vmul.f32 %v3575, %v3574
        %v3577 = vmul.f32 0.5, %v3576
        %v3578 = vsub.f32 1.5, %v3577
        %v3579 = vmul.f32 %v3574, %v3578
        %vm3580 = vweird.f32 %v3548
        %vm3581 = vweird.f32 %v3574
        %vm3582 = vmor %vm3580, %vm3581
        %v3583 = vsel %vm3582, %v3574, %v3579
        %v3584 = vrsqrt.pop %v3549
        %v3585 = vmul.f32 %v3584, %v3549
        %v3586 = vmul.f32 %v3585, %v3584
        %v3587 = vmul.f32 0.5, %v3586
        %v3588 = vsub.f32 1.5, %v3587
        %v3589 = vmul.f32 %v3584, %v3588
        %vm3590 = vweird.f32 %v3549
        %vm3591 = vweird.f32 %v3584
        %vm3592 = vmor %vm3590, %vm3591
        %v3593 = vsel %vm3592, %v3584, %v3589
        %v3594 = vrsqrt.pop %v3550
        %v3595 = vmul.f32 %v3594, %v3550
        %v3596 = vmul.f32 %v3595, %v3594
        %v3597 = vmul.f32 0.5, %v3596
        %v3598 = vsub.f32 1.5, %v3597
        %v3599 = vmul.f32 %v3594, %v3598
        %vm3600 = vweird.f32 %v3550
        %vm3601 = vweird.f32 %v3594
        %vm3602 = vmor %vm3600, %vm3601
        %v3603 = vsel %vm3602, %v3594, %v3599
        %v3604 = vrsqrt.pop %v3551
        %v3605 = vmul.f32 %v3604, %v3551
        %v3606 = vmul.f32 %v3605, %v3604
        %v3607 = vmul.f32 0.5, %v3606
        %v3608 = vsub.f32 1.5, %v3607
        %v3609 = vmul.f32 %v3604, %v3608
        %vm3610 = vweird.f32 %v3551
        %vm3611 = vweird.f32 %v3604
        %vm3612 = vmor %vm3610, %vm3611
        %v3613 = vsel %vm3612, %v3604, %v3609
        %v3614 = vrsqrt.pop %v3552
        %v3615 = vmul.f32 %v3614, %v3552
        %v3616 = vmul.f32 %v3615, %v3614
        %v3617 = vmul.f32 0.5, %v3616
        %v3618 = vsub.f32 1.5, %v3617
        %v3619 = vmul.f32 %v3614, %v3618
        %vm3620 = vweird.f32 %v3552
        %vm3621 = vweird.f32 %v3614
        %vm3622 = vmor %vm3620, %vm3621
        %v3623 = vsel %vm3622, %v3614, %v3619
        %v3624 = vrsqrt.pop %v3553
        %v3625 = vmul.f32 %v3624, %v3553
        %v3626 = vmul.f32 %v3625, %v3624
        %v3627 = vmul.f32 0.5, %v3626
        %v3628 = vsub.f32 1.5, %v3627
        %v3629 = vmul.f32 %v3624, %v3628
        %vm3630 = vweird.f32 %v3553
        %vm3631 = vweird.f32 %v3624
        %vm3632 = vmor %vm3630, %vm3631
        %v3633 = vsel %vm3632, %v3624, %v3629
        %v3634 = vmul.f32 %v3498, %v3563
        %v3635 = vmul.f32 %v3499, %v3573
        %v3636 = vmul.f32 %v3500, %v3583
        %v3637 = vmul.f32 %v3501, %v3593
        %v3638 = vmul.f32 %v3502, %v3603
        %v3639 = vmul.f32 %v3503, %v3613
        %v3640 = vmul.f32 %v3504, %v3623
        %v3641 = vmul.f32 %v3505, %v3633
        %v3642 = vperm.slane %v3464, 0
        %v3643 = vmul.f32 %v3634, %v3642
        %v3644 = vmul.f32 %v3635, %v3642
        %v3645 = vmul.f32 %v3636, %v3642
        %v3646 = vmul.f32 %v3637, %v3642
        %v3647 = vmul.f32 %v3638, %v3642
        %v3648 = vmul.f32 %v3639, %v3642
        %v3649 = vmul.f32 %v3640, %v3642
        %v3650 = vmul.f32 %v3641, %v3642
        %v3651 = vperm.slane %v3465, 0
        %v3652 = vadd.f32 %v3643, %v3651
        %v3653 = vadd.f32 %v3644, %v3651
        %v3654 = vadd.f32 %v3645, %v3651
        %v3655 = vadd.f32 %v3646, %v3651
        %v3656 = vadd.f32 %v3647, %v3651
        %v3657 = vadd.f32 %v3648, %v3651
        %v3658 = vadd.f32 %v3649, %v3651
        %v3659 = vadd.f32 %v3650, %v3651
        %s3660 = scalar_lea.vmem %s6, 16
        %v3661 = vld [vmem:[%s3660] sm:$0xff]
        %v3662 = vld [vmem:[%s3660 + $0x8] sm:$0xff]
        %v3663 = vadd.f32 %v3652, %v3661
        %v3664 = vadd.f32 %v3653, %v3662
        %v3665 = vadd.f32 %v3654, %v3661
        %v3666 = vadd.f32 %v3655, %v3662
        %v3667 = vadd.f32 %v3656, %v3661
        %v3668 = vadd.f32 %v3657, %v3662
        %v3669 = vadd.f32 %v3658, %v3661
        %v3670 = vadd.f32 %v3659, %v3662
        %v3671 = vld [vmem:[%s1 + $0xe] sm:$0x1]
        %v3672 = vld [vmem:[%s1 + $0xf] sm:$0x1]
        %v3673 = vsel %vm417, %v3663, 0.0
        %3674 = vadd.xlane.f32.xlu0 %v3673
        %v3675 = vpop.xlane.xlu0 %3674
        %v3676 = vsel %vm417, %v3664, 0.0
        %3677 = vadd.xlane.f32.xlu0 %v3676
        %v3678 = vpop.xlane.xlu0 %3677
        %v3679 = vsel %vm417, %v3665, 0.0
        %3680 = vadd.xlane.f32.xlu0 %v3679
        %v3681 = vpop.xlane.xlu0 %3680
        %v3682 = vsel %vm417, %v3666, 0.0
        %3683 = vadd.xlane.f32.xlu0 %v3682
        %v3684 = vpop.xlane.xlu0 %3683
        %v3685 = vsel %vm417, %v3667, 0.0
        %3686 = vadd.xlane.f32.xlu0 %v3685
        %v3687 = vpop.xlane.xlu0 %3686
        %v3688 = vsel %vm417, %v3668, 0.0
        %3689 = vadd.xlane.f32.xlu0 %v3688
        %v3690 = vpop.xlane.xlu0 %3689
        %v3691 = vsel %vm417, %v3669, 0.0
        %3692 = vadd.xlane.f32.xlu0 %v3691
        %v3693 = vpop.xlane.xlu0 %3692
        %v3694 = vsel %vm417, %v3670, 0.0
        %3695 = vadd.xlane.f32.xlu0 %v3694
        %v3696 = vpop.xlane.xlu0 %3695
        %v3697 = vmul.f32 %v3675, %v448
        %v3698 = vmul.f32 %v3678, %v448
        %v3699 = vmul.f32 %v3681, %v448
        %v3700 = vmul.f32 %v3684, %v448
        %v3701 = vmul.f32 %v3687, %v448
        %v3702 = vmul.f32 %v3690, %v448
        %v3703 = vmul.f32 %v3693, %v448
        %v3704 = vmul.f32 %v3696, %v448
        %v3705 = vsub.f32 %v3663, %v3697
        %v3706 = vsub.f32 %v3664, %v3698
        %v3707 = vsub.f32 %v3665, %v3699
        %v3708 = vsub.f32 %v3666, %v3700
        %v3709 = vsub.f32 %v3667, %v3701
        %v3710 = vsub.f32 %v3668, %v3702
        %v3711 = vsub.f32 %v3669, %v3703
        %v3712 = vsub.f32 %v3670, %v3704
        %v3713 = vmul.f32 %v3705, %v3705
        %v3714 = vmul.f32 %v3706, %v3706
        %v3715 = vmul.f32 %v3707, %v3707
        %v3716 = vmul.f32 %v3708, %v3708
        %v3717 = vmul.f32 %v3709, %v3709
        %v3718 = vmul.f32 %v3710, %v3710
        %v3719 = vmul.f32 %v3711, %v3711
        %v3720 = vmul.f32 %v3712, %v3712
        %v3721 = vsel %vm417, %v3713, 0.0
        %3722 = vadd.xlane.f32.xlu0 %v3721
        %v3723 = vpop.xlane.xlu0 %3722
        %v3724 = vsel %vm417, %v3714, 0.0
        %3725 = vadd.xlane.f32.xlu0 %v3724
        %v3726 = vpop.xlane.xlu0 %3725
        %v3727 = vsel %vm417, %v3715, 0.0
        %3728 = vadd.xlane.f32.xlu0 %v3727
        %v3729 = vpop.xlane.xlu0 %3728
        %v3730 = vsel %vm417, %v3716, 0.0
        %3731 = vadd.xlane.f32.xlu0 %v3730
        %v3732 = vpop.xlane.xlu0 %3731
        %v3733 = vsel %vm417, %v3717, 0.0
        %3734 = vadd.xlane.f32.xlu0 %v3733
        %v3735 = vpop.xlane.xlu0 %3734
        %v3736 = vsel %vm417, %v3718, 0.0
        %3737 = vadd.xlane.f32.xlu0 %v3736
        %v3738 = vpop.xlane.xlu0 %3737
        %v3739 = vsel %vm417, %v3719, 0.0
        %3740 = vadd.xlane.f32.xlu0 %v3739
        %v3741 = vpop.xlane.xlu0 %3740
        %v3742 = vsel %vm417, %v3720, 0.0
        %3743 = vadd.xlane.f32.xlu0 %v3742
        %v3744 = vpop.xlane.xlu0 %3743
        %v3745 = vmul.f32 %v3723, %v448
        %v3746 = vmul.f32 %v3726, %v448
        %v3747 = vmul.f32 %v3729, %v448
        %v3748 = vmul.f32 %v3732, %v448
        %v3749 = vmul.f32 %v3735, %v448
        %v3750 = vmul.f32 %v3738, %v448
        %v3751 = vmul.f32 %v3741, %v448
        %v3752 = vmul.f32 %v3744, %v448
        %v3753 = vadd.f32 %v3745, 1e-06
        %v3754 = vadd.f32 %v3746, 1e-06
        %v3755 = vadd.f32 %v3747, 1e-06
        %v3756 = vadd.f32 %v3748, 1e-06
        %v3757 = vadd.f32 %v3749, 1e-06
        %v3758 = vadd.f32 %v3750, 1e-06
        %v3759 = vadd.f32 %v3751, 1e-06
        %v3760 = vadd.f32 %v3752, 1e-06
        %v3761 = vrsqrt.pop %v3753
        %v3762 = vmul.f32 %v3761, %v3753
        %v3763 = vmul.f32 %v3762, %v3761
        %v3764 = vmul.f32 0.5, %v3763
        %v3765 = vsub.f32 1.5, %v3764
        %v3766 = vmul.f32 %v3761, %v3765
        %vm3767 = vweird.f32 %v3753
        %vm3768 = vweird.f32 %v3761
        %vm3769 = vmor %vm3767, %vm3768
        %v3770 = vsel %vm3769, %v3761, %v3766
        %v3771 = vrsqrt.pop %v3754
        %v3772 = vmul.f32 %v3771, %v3754
        %v3773 = vmul.f32 %v3772, %v3771
        %v3774 = vmul.f32 0.5, %v3773
        %v3775 = vsub.f32 1.5, %v3774
        %v3776 = vmul.f32 %v3771, %v3775
        %vm3777 = vweird.f32 %v3754
        %vm3778 = vweird.f32 %v3771
        %vm3779 = vmor %vm3777, %vm3778
        %v3780 = vsel %vm3779, %v3771, %v3776
        %v3781 = vrsqrt.pop %v3755
        %v3782 = vmul.f32 %v3781, %v3755
        %v3783 = vmul.f32 %v3782, %v3781
        %v3784 = vmul.f32 0.5, %v3783
        %v3785 = vsub.f32 1.5, %v3784
        %v3786 = vmul.f32 %v3781, %v3785
        %vm3787 = vweird.f32 %v3755
        %vm3788 = vweird.f32 %v3781
        %vm3789 = vmor %vm3787, %vm3788
        %v3790 = vsel %vm3789, %v3781, %v3786
        %v3791 = vrsqrt.pop %v3756
        %v3792 = vmul.f32 %v3791, %v3756
        %v3793 = vmul.f32 %v3792, %v3791
        %v3794 = vmul.f32 0.5, %v3793
        %v3795 = vsub.f32 1.5, %v3794
        %v3796 = vmul.f32 %v3791, %v3795
        %vm3797 = vweird.f32 %v3756
        %vm3798 = vweird.f32 %v3791
        %vm3799 = vmor %vm3797, %vm3798
        %v3800 = vsel %vm3799, %v3791, %v3796
        %v3801 = vrsqrt.pop %v3757
        %v3802 = vmul.f32 %v3801, %v3757
        %v3803 = vmul.f32 %v3802, %v3801
        %v3804 = vmul.f32 0.5, %v3803
        %v3805 = vsub.f32 1.5, %v3804
        %v3806 = vmul.f32 %v3801, %v3805
        %vm3807 = vweird.f32 %v3757
        %vm3808 = vweird.f32 %v3801
        %vm3809 = vmor %vm3807, %vm3808
        %v3810 = vsel %vm3809, %v3801, %v3806
        %v3811 = vrsqrt.pop %v3758
        %v3812 = vmul.f32 %v3811, %v3758
        %v3813 = vmul.f32 %v3812, %v3811
        %v3814 = vmul.f32 0.5, %v3813
        %v3815 = vsub.f32 1.5, %v3814
        %v3816 = vmul.f32 %v3811, %v3815
        %vm3817 = vweird.f32 %v3758
        %vm3818 = vweird.f32 %v3811
        %vm3819 = vmor %vm3817, %vm3818
        %v3820 = vsel %vm3819, %v3811, %v3816
        %v3821 = vrsqrt.pop %v3759
        %v3822 = vmul.f32 %v3821, %v3759
        %v3823 = vmul.f32 %v3822, %v3821
        %v3824 = vmul.f32 0.5, %v3823
        %v3825 = vsub.f32 1.5, %v3824
        %v3826 = vmul.f32 %v3821, %v3825
        %vm3827 = vweird.f32 %v3759
        %vm3828 = vweird.f32 %v3821
        %vm3829 = vmor %vm3827, %vm3828
        %v3830 = vsel %vm3829, %v3821, %v3826
        %v3831 = vrsqrt.pop %v3760
        %v3832 = vmul.f32 %v3831, %v3760
        %v3833 = vmul.f32 %v3832, %v3831
        %v3834 = vmul.f32 0.5, %v3833
        %v3835 = vsub.f32 1.5, %v3834
        %v3836 = vmul.f32 %v3831, %v3835
        %vm3837 = vweird.f32 %v3760
        %vm3838 = vweird.f32 %v3831
        %vm3839 = vmor %vm3837, %vm3838
        %v3840 = vsel %vm3839, %v3831, %v3836
        %v3841 = vmul.f32 %v3705, %v3770
        %v3842 = vmul.f32 %v3706, %v3780
        %v3843 = vmul.f32 %v3707, %v3790
        %v3844 = vmul.f32 %v3708, %v3800
        %v3845 = vmul.f32 %v3709, %v3810
        %v3846 = vmul.f32 %v3710, %v3820
        %v3847 = vmul.f32 %v3711, %v3830
        %v3848 = vmul.f32 %v3712, %v3840
        %v3849 = vperm.slane %v3671, 0
        %v3850 = vmul.f32 %v3841, %v3849
        %v3851 = vmul.f32 %v3842, %v3849
        %v3852 = vmul.f32 %v3843, %v3849
        %v3853 = vmul.f32 %v3844, %v3849
        %v3854 = vmul.f32 %v3845, %v3849
        %v3855 = vmul.f32 %v3846, %v3849
        %v3856 = vmul.f32 %v3847, %v3849
        %v3857 = vmul.f32 %v3848, %v3849
        %v3858 = vperm.slane %v3672, 0
        %v3859 = vadd.f32 %v3850, %v3858
        %v3860 = vadd.f32 %v3851, %v3858
        %v3861 = vadd.f32 %v3852, %v3858
        %v3862 = vadd.f32 %v3853, %v3858
        %v3863 = vadd.f32 %v3854, %v3858
        %v3864 = vadd.f32 %v3855, %v3858
        %v3865 = vadd.f32 %v3856, %v3858
        %v3866 = vadd.f32 %v3857, %v3858
        %v3867 = vld [vmem:[%s1 + $0x10] sm:$0x1]
        %s3868 = scalar_lea.vmem %s3, 32
        %v3869 = vld [vmem:[%s3868] sm:$0xff]
        %v3870 = vld [vmem:[%s3868 + $0x8] sm:$0xff]
        %v3871 = vld [vmem:[%s3868 + $0x10] sm:$0xff]
        %v3872 = vld [vmem:[%s3868 + $0x18] sm:$0x7]
        %v3873 = vperm.slane %v3867, 0
        %v3875 = vsel %vm417, %v3859, 0
        %v3878 = vsel %vm417, %v3860, 0
        %v3881 = vsel %vm417, %v3861, 0
        %v3884 = vsel %vm417, %v3862, 0
        %v3887 = vsel %vm417, %v3863, 0
        %v3890 = vsel %vm417, %v3864, 0
        %v3893 = vsel %vm417, %v3865, 0
        %v3896 = vsel %vm417, %v3866, 0
        %v3899 = vsel %vm855, %v3872, 0
        %3901 = vmatpush.msra.mxu0 0.0
        %3902 = vmatpush.msra.mxu0 0.0
        %3903 = vmatpush.msra.mxu0 0.0
        %3904 = vmatpush.msra.mxu0 0.0
        %3905 = vmatpush.msra.mxu0 0.0
        %3906 = vmatpush.msra.mxu0 0.0
        %3907 = vmatpush.msra.mxu0 0.0
        %3908 = vmatpush.msra.mxu0 0.0
        %3909 = vmatpush.msra.mxu0 0.0
        %3910 = vmatpush.msra.mxu0 0.0
        %3911 = vmatpush.msra.mxu0 0.0
        %3912 = vmatpush.msra.mxu0 0.0
        %3913 = vmatpush.msra.mxu0 %v3899
        %3914 = vmatpush.msra.mxu0 %v3871
        %3915 = vmatpush.msra.mxu0 %v3870
        %3916 = vmatpush.msra.mxu0 %v3869
        %3917 = vmatmul.f32.gmra.mxu0 %v3875
        %v3918 = vpop.f32.mrf.mxu0
        %v3919 = vadd.f32 %v3873, %v3918
        %3920 = vmatmul.f32.gmra.mxu0 %v3878
        %v3921 = vpop.f32.mrf.mxu0
        %v3922 = vadd.f32 %v3873, %v3921
        %3923 = vmatmul.f32.gmra.mxu0 %v3881
        %v3924 = vpop.f32.mrf.mxu0
        %v3925 = vadd.f32 %v3873, %v3924
        %3926 = vmatmul.f32.gmra.mxu0 %v3884
        %v3927 = vpop.f32.mrf.mxu0
        %v3928 = vadd.f32 %v3873, %v3927
        %3929 = vmatmul.f32.gmra.mxu0 %v3887
        %v3930 = vpop.f32.mrf.mxu0
        %v3931 = vadd.f32 %v3873, %v3930
        %3932 = vmatmul.f32.gmra.mxu0 %v3890
        %v3933 = vpop.f32.mrf.mxu0
        %v3934 = vadd.f32 %v3873, %v3933
        %3935 = vmatmul.f32.gmra.mxu0 %v3893
        %v3936 = vpop.f32.mrf.mxu0
        %v3937 = vadd.f32 %v3873, %v3936
        %3938 = vmatmul.f32.gmra.mxu0 %v3896
        %v3939 = vpop.f32.mrf.mxu0
        %v3940 = vadd.f32 %v3873, %v3939
        %3941 = vdwg.mxu0
        %v3942 = vrot.slane %v3859, 7
        %v3943 = vrot.slane %v3860, 7
        %v3944 = vsel %vm900, %v3942, %v3943
        %v3945 = vrot.slane %v3861, 7
        %v3946 = vrot.slane %v3862, 7
        %v3947 = vsel %vm900, %v3945, %v3946
        %v3948 = vrot.slane %v3863, 7
        %v3949 = vrot.slane %v3864, 7
        %v3950 = vsel %vm900, %v3948, %v3949
        %v3951 = vrot.slane %v3865, 7
        %v3952 = vrot.slane %v3866, 7
        %v3953 = vsel %vm900, %v3951, %v3952
        %v3958 = vsel %vm900, 0.0, %v3942
        %v3959 = vsel %vm900, 0.0, %v3945
        %v3960 = vsel %vm900, 0.0, %v3948
        %v3961 = vsel %vm900, 0.0, %v3951
        %v3962 = vrot.slane %v3859, 1
        %v3963 = vrot.slane %v3860, 1
        %v3964 = vsel %vm921, %v3962, %v3963
        %v3965 = vrot.slane %v3861, 1
        %v3966 = vrot.slane %v3862, 1
        %v3967 = vsel %vm921, %v3965, %v3966
        %v3968 = vrot.slane %v3863, 1
        %v3969 = vrot.slane %v3864, 1
        %v3970 = vsel %vm921, %v3968, %v3969
        %v3971 = vrot.slane %v3865, 1
        %v3972 = vrot.slane %v3866, 1
        %v3973 = vsel %vm921, %v3971, %v3972
        %v3978 = vsel %vm921, %v3963, 0.0
        %v3979 = vsel %vm921, %v3966, 0.0
        %v3980 = vsel %vm921, %v3969, 0.0
        %v3981 = vsel %vm921, %v3972, 0.0
        %s3982 = scalar_lea.vmem %s2, 96
        %v3983 = vld [vmem:[%s3982] sm:$0xff]
        %v3984 = vld [vmem:[%s3982 + $0x8] sm:$0xff]
        %v3985 = vld [vmem:[%s3982 + $0x10] sm:$0xff]
        %v3986 = vld [vmem:[%s3982 + $0x18] sm:$0x7]
        %v3988 = vsel %vm417, %v3958, 0
        %v3990 = vsel %vm417, %v3944, 0
        %v3993 = vsel %vm417, %v3959, 0
        %v3995 = vsel %vm417, %v3947, 0
        %v3998 = vsel %vm417, %v3960, 0
        %v4000 = vsel %vm417, %v3950, 0
        %v4003 = vsel %vm417, %v3961, 0
        %v4005 = vsel %vm417, %v3953, 0
        %v4008 = vsel %vm855, %v3986, 0
        %4010 = vmatpush.msra.mxu0 0.0
        %4011 = vmatpush.msra.mxu0 0.0
        %4012 = vmatpush.msra.mxu0 0.0
        %4013 = vmatpush.msra.mxu0 0.0
        %4014 = vmatpush.msra.mxu0 0.0
        %4015 = vmatpush.msra.mxu0 0.0
        %4016 = vmatpush.msra.mxu0 0.0
        %4017 = vmatpush.msra.mxu0 0.0
        %4018 = vmatpush.msra.mxu0 0.0
        %4019 = vmatpush.msra.mxu0 0.0
        %4020 = vmatpush.msra.mxu0 0.0
        %4021 = vmatpush.msra.mxu0 0.0
        %4022 = vmatpush.msra.mxu0 %v4008
        %4023 = vmatpush.msra.mxu0 %v3985
        %4024 = vmatpush.msra.mxu0 %v3984
        %4025 = vmatpush.msra.mxu0 %v3983
        %4026 = vmatmul.f32.gmra.mxu0 %v3988
        %v4027 = vpop.f32.mrf.mxu0
        %v4028 = vadd.f32 0.0, %v4027
        %4029 = vmatmul.f32.gmra.mxu0 %v3990
        %v4030 = vpop.f32.mrf.mxu0
        %v4031 = vadd.f32 0.0, %v4030
        %4032 = vmatmul.f32.gmra.mxu0 %v3993
        %v4033 = vpop.f32.mrf.mxu0
        %v4034 = vadd.f32 0.0, %v4033
        %4035 = vmatmul.f32.gmra.mxu0 %v3995
        %v4036 = vpop.f32.mrf.mxu0
        %v4037 = vadd.f32 0.0, %v4036
        %4038 = vmatmul.f32.gmra.mxu0 %v3998
        %v4039 = vpop.f32.mrf.mxu0
        %v4040 = vadd.f32 0.0, %v4039
        %4041 = vmatmul.f32.gmra.mxu0 %v4000
        %v4042 = vpop.f32.mrf.mxu0
        %v4043 = vadd.f32 0.0, %v4042
        %4044 = vmatmul.f32.gmra.mxu0 %v4003
        %v4045 = vpop.f32.mrf.mxu0
        %v4046 = vadd.f32 0.0, %v4045
        %4047 = vmatmul.f32.gmra.mxu0 %v4005
        %v4048 = vpop.f32.mrf.mxu0
        %v4049 = vadd.f32 0.0, %v4048
        %4050 = vdwg.mxu0
        %v4051 = vadd.f32 %v3919, %v4028
        %v4052 = vadd.f32 %v3922, %v4031
        %v4053 = vadd.f32 %v3925, %v4034
        %v4054 = vadd.f32 %v3928, %v4037
        %v4055 = vadd.f32 %v3931, %v4040
        %v4056 = vadd.f32 %v3934, %v4043
        %v4057 = vadd.f32 %v3937, %v4046
        %v4058 = vadd.f32 %v3940, %v4049
        %s4059 = scalar_lea.vmem %s2, 128
        %v4060 = vld [vmem:[%s4059] sm:$0xff]
        %v4061 = vld [vmem:[%s4059 + $0x8] sm:$0xff]
        %v4062 = vld [vmem:[%s4059 + $0x10] sm:$0xff]
        %v4063 = vld [vmem:[%s4059 + $0x18] sm:$0x7]
        %v4064 = vsel %vm417, %v3964, 0
        %v4067 = vsel %vm417, %v3978, 0
        %v4069 = vsel %vm417, %v3967, 0
        %v4072 = vsel %vm417, %v3979, 0
        %v4074 = vsel %vm417, %v3970, 0
        %v4077 = vsel %vm417, %v3980, 0
        %v4079 = vsel %vm417, %v3973, 0
        %v4082 = vsel %vm417, %v3981, 0
        %v4085 = vsel %vm855, %v4063, 0
        %4087 = vmatpush.msra.mxu0 0.0
        %4088 = vmatpush.msra.mxu0 0.0
        %4089 = vmatpush.msra.mxu0 0.0
        %4090 = vmatpush.msra.mxu0 0.0
        %4091 = vmatpush.msra.mxu0 0.0
        %4092 = vmatpush.msra.mxu0 0.0
        %4093 = vmatpush.msra.mxu0 0.0
        %4094 = vmatpush.msra.mxu0 0.0
        %4095 = vmatpush.msra.mxu0 0.0
        %4096 = vmatpush.msra.mxu0 0.0
        %4097 = vmatpush.msra.mxu0 0.0
        %4098 = vmatpush.msra.mxu0 0.0
        %4099 = vmatpush.msra.mxu0 %v4085
        %4100 = vmatpush.msra.mxu0 %v4062
        %4101 = vmatpush.msra.mxu0 %v4061
        %4102 = vmatpush.msra.mxu0 %v4060
        %4103 = vmatmul.f32.gmra.mxu0 %v4064
        %v4104 = vpop.f32.mrf.mxu0
        %v4105 = vadd.f32 0.0, %v4104
        %4106 = vmatmul.f32.gmra.mxu0 %v4067
        %v4107 = vpop.f32.mrf.mxu0
        %v4108 = vadd.f32 0.0, %v4107
        %4109 = vmatmul.f32.gmra.mxu0 %v4069
        %v4110 = vpop.f32.mrf.mxu0
        %v4111 = vadd.f32 0.0, %v4110
        %4112 = vmatmul.f32.gmra.mxu0 %v4072
        %v4113 = vpop.f32.mrf.mxu0
        %v4114 = vadd.f32 0.0, %v4113
        %4115 = vmatmul.f32.gmra.mxu0 %v4074
        %v4116 = vpop.f32.mrf.mxu0
        %v4117 = vadd.f32 0.0, %v4116
        %4118 = vmatmul.f32.gmra.mxu0 %v4077
        %v4119 = vpop.f32.mrf.mxu0
        %v4120 = vadd.f32 0.0, %v4119
        %4121 = vmatmul.f32.gmra.mxu0 %v4079
        %v4122 = vpop.f32.mrf.mxu0
        %v4123 = vadd.f32 0.0, %v4122
        %4124 = vmatmul.f32.gmra.mxu0 %v4082
        %v4125 = vpop.f32.mrf.mxu0
        %v4126 = vadd.f32 0.0, %v4125
        %4127 = vdwg.mxu0
        %v4128 = vadd.f32 %v4051, %v4105
        %v4129 = vadd.f32 %v4052, %v4108
        %v4130 = vadd.f32 %v4053, %v4111
        %v4131 = vadd.f32 %v4054, %v4114
        %v4132 = vadd.f32 %v4055, %v4117
        %v4133 = vadd.f32 %v4056, %v4120
        %v4134 = vadd.f32 %v4057, %v4123
        %v4135 = vadd.f32 %v4058, %v4126
        %v4136 = vmul.f32 %v4128, %v374
        %v4137 = vmul.f32 %v4129, %v374
        %v4138 = vmul.f32 %v4128, %v379
        %v4139 = vmul.f32 %v4129, %v379
        %v4140 = vmul.f32 %v4128, %v384
        %v4141 = vmul.f32 %v4129, %v384
        %v4142 = vmul.f32 %v4128, %v389
        %v4143 = vmul.f32 %v4129, %v389
        %v4144 = vmul.f32 %v4128, %v394
        %v4145 = vmul.f32 %v4129, %v394
        %v4146 = vmul.f32 %v4128, %v399
        %v4147 = vmul.f32 %v4129, %v399
        %v4148 = vmul.f32 %v4128, %v404
        %v4149 = vmul.f32 %v4129, %v404
        %v4150 = vmul.f32 %v4128, %v409
        %v4151 = vmul.f32 %v4129, %v409
        %v4152 = vmul.f32 %v4128, %v414
        %v4153 = vmul.f32 %v4129, %v414
        %4156 = vrot.lane.b32.xlu0 %v3919, 101
        %v4157 = vpop.permute.xlu0 %4156
        %4158 = vrot.lane.b32.xlu0 %v3922, 101
        %v4159 = vpop.permute.xlu0 %4158
        %v4160 = vsel %vm417, %v4157, 0
        %v4162 = vsel %vm417, %v4159, 0
        %v4165 = vsel %vm417, %v4136, 0
        %v4168 = vsel %vm417, %v4137, 0
        %v4171 = vsel %vm417, %v4138, 0
        %v4174 = vsel %vm417, %v4139, 0
        %v4177 = vsel %vm417, %v4140, 0
        %v4180 = vsel %vm417, %v4141, 0
        %v4183 = vsel %vm417, %v4142, 0
        %v4186 = vsel %vm417, %v4143, 0
        %v4189 = vsel %vm417, %v4144, 0
        %v4192 = vsel %vm417, %v4145, 0
        %v4195 = vsel %vm417, %v4146, 0
        %v4198 = vsel %vm417, %v4147, 0
        %v4201 = vsel %vm417, %v4148, 0
        %v4204 = vsel %vm417, %v4149, 0
        %v4207 = vsel %vm417, %v4150, 0
        %v4210 = vsel %vm417, %v4151, 0
        %v4213 = vsel %vm417, %v4152, 0
        %v4216 = vsel %vm417, %v4153, 0
        %4218 = vmatpush.xpose.msra.mxu0 %v4210
        %4219 = vmatpush.xpose.msra.mxu0 %v4207
        %4220 = vmatpush.xpose.msra.mxu0 %v4204
        %4221 = vmatpush.xpose.msra.mxu0 %v4201
        %4222 = vmatpush.xpose.msra.mxu0 %v4198
        %4223 = vmatpush.xpose.msra.mxu0 %v4195
        %4224 = vmatpush.xpose.msra.mxu0 %v4192
        %4225 = vmatpush.xpose.msra.mxu0 %v4189
        %4226 = vmatpush.xpose.msra.mxu0 %v4186
        %4227 = vmatpush.xpose.msra.mxu0 %v4183
        %4228 = vmatpush.xpose.msra.mxu0 %v4180
        %4229 = vmatpush.xpose.msra.mxu0 %v4177
        %4230 = vmatpush.xpose.msra.mxu0 %v4174
        %4231 = vmatpush.xpose.msra.mxu0 %v4171
        %4232 = vmatpush.xpose.msra.mxu0 %v4168
        %4233 = vmatpush.xpose.msra.mxu0 %v4165
        %4234 = vmatmul.f32.gmra.mxu0 %v4160
        %v4235 = vpop.f32.mrf.mxu0
        %v4236 = vadd.f32 0.0, %v4235
        %4237 = vmatmul.f32.gmra.mxu0 %v4162
        %v4238 = vpop.f32.mrf.mxu0
        %v4239 = vadd.f32 0.0, %v4238
        %4240 = vdwg.mxu0
        %4241 = vmatpush.xpose.msra.mxu0 0.0
        %4242 = vmatpush.xpose.msra.mxu0 0.0
        %4243 = vmatpush.xpose.msra.mxu0 0.0
        %4244 = vmatpush.xpose.msra.mxu0 0.0
        %4245 = vmatpush.xpose.msra.mxu0 0.0
        %4246 = vmatpush.xpose.msra.mxu0 0.0
        %4247 = vmatpush.xpose.msra.mxu0 0.0
        %4248 = vmatpush.xpose.msra.mxu0 0.0
        %4249 = vmatpush.xpose.msra.mxu0 0.0
        %4250 = vmatpush.xpose.msra.mxu0 0.0
        %4251 = vmatpush.xpose.msra.mxu0 0.0
        %4252 = vmatpush.xpose.msra.mxu0 0.0
        %4253 = vmatpush.xpose.msra.mxu0 0.0
        %4254 = vmatpush.xpose.msra.mxu0 0.0
        %4255 = vmatpush.xpose.msra.mxu0 %v4216
        %4256 = vmatpush.xpose.msra.mxu0 %v4213
        %4257 = vmatmul.f32.gmra.mxu0 %v4160
        %v4258 = vpop.f32.mrf.mxu0
        %v4259 = vadd.f32 0.0, %v4258
        %4260 = vmatmul.f32.gmra.mxu0 %v4162
        %v4261 = vpop.f32.mrf.mxu0
        %v4262 = vadd.f32 0.0, %v4261
        %4263 = vdwg.mxu0
        %v4264 = vmul.f32 %v4236, 0.57735026
        %v4265 = vmul.f32 %v4259, 0.57735026
        %v4266 = vmul.f32 %v4239, 0.57735026
        %v4267 = vmul.f32 %v4262, 0.57735026
        %v4268 = vmax.f32 %v4264, %v4266
        %v4269 = vrot.slane %v4268, 4
        %v4270 = vmax.f32 %v4268, %v4269
        %v4271 = vrot.slane %v4270, 2
        %v4272 = vmax.f32 %v4270, %v4271
        %v4273 = vrot.slane %v4272, 1
        %v4274 = vmax.f32 %v4272, %v4273
        %v4275 = vsel %vm1234, %v4265, -inf
        %v4276 = vsel %vm1234, %v4267, -inf
        %v4277 = vmax.f32 %v4275, %v4276
        %v4278 = vrot.slane %v4277, 4
        %v4279 = vmax.f32 %v4277, %v4278
        %v4280 = vrot.slane %v4279, 2
        %v4281 = vmax.f32 %v4279, %v4280
        %v4282 = vrot.slane %v4281, 1
        %v4283 = vmax.f32 %v4281, %v4282
        %v4284 = vsub.f32 %v4264, %v4274
        %v4285 = vsub.f32 %v4265, %v4283
        %v4286 = vsub.f32 %v4266, %v4274
        %v4287 = vsub.f32 %v4267, %v4283
        %v4288 = vmul.f32 %v4284, 1.442695
        %v4289 = vpow.pop %v4288
        %v4290 = vmul.f32 %v4285, 1.442695
        %v4291 = vpow.pop %v4290
        %v4292 = vmul.f32 %v4286, 1.442695
        %v4293 = vpow.pop %v4292
        %v4294 = vmul.f32 %v4287, 1.442695
        %v4295 = vpow.pop %v4294
        %v4296 = vadd.f32 %v4289, %v4293
        %v4297 = vrot.slane %v4296, 4
        %v4298 = vadd.f32 %v4296, %v4297
        %v4299 = vrot.slane %v4298, 2
        %v4300 = vadd.f32 %v4298, %v4299
        %v4301 = vrot.slane %v4300, 1
        %v4302 = vadd.f32 %v4300, %v4301
        %v4303 = vsel %vm1234, %v4291, 0.0
        %v4304 = vsel %vm1234, %v4295, 0.0
        %v4305 = vadd.f32 %v4303, %v4304
        %v4306 = vrot.slane %v4305, 4
        %v4307 = vadd.f32 %v4305, %v4306
        %v4308 = vrot.slane %v4307, 2
        %v4309 = vadd.f32 %v4307, %v4308
        %v4310 = vrot.slane %v4309, 1
        %v4311 = vadd.f32 %v4309, %v4310
        %v4312 = vrcp.pop %v4302
        %v4313 = vrcp.pop %v4311
        %v4314 = vmul.f32 %v4289, %v4312
        %v4315 = vmul.f32 %v4291, %v4313
        %v4316 = vmul.f32 %v4293, %v4312
        %v4317 = vmul.f32 %v4295, %v4313
        %4318 = vxpose.xlu0.b32.start [1/16] %v4314, 128
        %4319 = vxpose.xlu0.b32.cont [2/16] %v4316, 128
        %4320 = vxpose.xlu0.b32.cont [3/16] 0.0, 128
        %4321 = vxpose.xlu0.b32.cont [4/16] 0.0, 128
        %4322 = vxpose.xlu0.b32.cont [5/16] 0.0, 128
        %4323 = vxpose.xlu0.b32.cont [6/16] 0.0, 128
        %4324 = vxpose.xlu0.b32.cont [7/16] 0.0, 128
        %4325 = vxpose.xlu0.b32.cont [8/16] 0.0, 128
        %4326 = vxpose.xlu0.b32.cont [9/16] 0.0, 128
        %4327 = vxpose.xlu0.b32.cont [10/16] 0.0, 128
        %4328 = vxpose.xlu0.b32.cont [11/16] 0.0, 128
        %4329 = vxpose.xlu0.b32.cont [12/16] 0.0, 128
        %4330 = vxpose.xlu0.b32.cont [13/16] 0.0, 128
        %4331 = vxpose.xlu0.b32.cont [14/16] 0.0, 128
        %4332 = vxpose.xlu0.b32.cont [15/16] 0.0, 128
        %4333 = vxpose.xlu0.b32.end [16/16] 0.0, 128
        %v4334 = vpop.trf.xlu0
        %v4335 = vpop.trf.xlu0
        %v4336 = vpop.trf.xlu0
        %v4337 = vpop.trf.xlu0
        %v4338 = vpop.trf.xlu0
        %v4339 = vpop.trf.xlu0
        %v4340 = vpop.trf.xlu0
        %v4341 = vpop.trf.xlu0
        %v4342 = vpop.trf.xlu0
        %v4343 = vpop.trf.xlu0
        %v4344 = vpop.trf.xlu0
        %v4345 = vpop.trf.xlu0
        %v4346 = vpop.trf.xlu0
        %v4347 = vpop.trf.xlu0
        %v4348 = vpop.trf.xlu0
        %v4349 = vpop.trf.xlu0
        %4350 = vxpose.xlu0.b32.start [1/16] %v4315, 128
        %4351 = vxpose.xlu0.b32.cont [2/16] %v4317, 128
        %4352 = vxpose.xlu0.b32.cont [3/16] 0.0, 128
        %4353 = vxpose.xlu0.b32.cont [4/16] 0.0, 128
        %4354 = vxpose.xlu0.b32.cont [5/16] 0.0, 128
        %4355 = vxpose.xlu0.b32.cont [6/16] 0.0, 128
        %4356 = vxpose.xlu0.b32.cont [7/16] 0.0, 128
        %4357 = vxpose.xlu0.b32.cont [8/16] 0.0, 128
        %4358 = vxpose.xlu0.b32.cont [9/16] 0.0, 128
        %4359 = vxpose.xlu0.b32.cont [10/16] 0.0, 128
        %4360 = vxpose.xlu0.b32.cont [11/16] 0.0, 128
        %4361 = vxpose.xlu0.b32.cont [12/16] 0.0, 128
        %4362 = vxpose.xlu0.b32.cont [13/16] 0.0, 128
        %4363 = vxpose.xlu0.b32.cont [14/16] 0.0, 128
        %4364 = vxpose.xlu0.b32.cont [15/16] 0.0, 128
        %4365 = vxpose.xlu0.b32.end [16/16] 0.0, 128
        %v4366 = vpop.trf.xlu0
        %v4367 = vpop.trf.xlu0
        %v4368 = vpop.trf.xlu0
        %v4369 = vpop.trf.xlu0
        %v4370 = vpop.trf.xlu0
        %v4371 = vpop.trf.xlu0
        %v4372 = vpop.trf.xlu0
        %v4373 = vpop.trf.xlu0
        %v4374 = vpop.trf.xlu0
        %v4375 = vpop.trf.xlu0
        %v4376 = vpop.trf.xlu0
        %v4377 = vpop.trf.xlu0
        %v4378 = vpop.trf.xlu0
        %v4379 = vpop.trf.xlu0
        %v4380 = vpop.trf.xlu0
        %v4381 = vpop.trf.xlu0
        %4382 = vrot.lane.b32.xlu0 %v3919, 74
        %v4383 = vpop.permute.xlu0 %4382
        %4384 = vrot.lane.b32.xlu0 %v3922, 74
        %v4385 = vpop.permute.xlu0 %4384
        %v4389 = vsel %vm1234, %v4334, 0
        %v4392 = vsel %vm1234, %v4335, 0
        %v4395 = vsel %vm1234, %v4336, 0
        %v4398 = vsel %vm1234, %v4337, 0
        %v4401 = vsel %vm1234, %v4338, 0
        %v4404 = vsel %vm1234, %v4339, 0
        %v4407 = vsel %vm1234, %v4340, 0
        %v4410 = vsel %vm1234, %v4341, 0
        %v4413 = vsel %vm1234, %v4342, 0
        %v4416 = vsel %vm1234, %v4343, 0
        %v4419 = vsel %vm1234, %v4344, 0
        %v4422 = vsel %vm1234, %v4345, 0
        %v4425 = vsel %vm1234, %v4346, 0
        %v4428 = vsel %vm1234, %v4347, 0
        %v4431 = vsel %vm1234, %v4348, 0
        %v4434 = vsel %vm1234, %v4349, 0
        %v4437 = vsel %vm1234, %v4366, 0
        %v4440 = vsel %vm1234, %v4367, 0
        %4442 = vmatpush.msra.mxu0 0.0
        %4443 = vmatpush.msra.mxu0 0.0
        %4444 = vmatpush.msra.mxu0 0.0
        %4445 = vmatpush.msra.mxu0 0.0
        %4446 = vmatpush.msra.mxu0 0.0
        %4447 = vmatpush.msra.mxu0 0.0
        %4448 = vmatpush.msra.mxu0 0.0
        %4449 = vmatpush.msra.mxu0 0.0
        %4450 = vmatpush.msra.mxu0 0.0
        %4451 = vmatpush.msra.mxu0 0.0
        %4452 = vmatpush.msra.mxu0 0.0
        %4453 = vmatpush.msra.mxu0 0.0
        %4454 = vmatpush.msra.mxu0 0.0
        %4455 = vmatpush.msra.mxu0 0.0
        %4456 = vmatpush.msra.mxu0 %v4385
        %4457 = vmatpush.msra.mxu0 %v4383
        %4458 = vmatmul.f32.gmra.mxu0 %v4389
        %v4459 = vpop.f32.mrf.mxu0
        %v4460 = vadd.f32 0.0, %v4459
        %4461 = vmatmul.f32.gmra.mxu0 %v4392
        %v4462 = vpop.f32.mrf.mxu0
        %v4463 = vadd.f32 0.0, %v4462
        %4464 = vmatmul.f32.gmra.mxu0 %v4395
        %v4465 = vpop.f32.mrf.mxu0
        %v4466 = vadd.f32 0.0, %v4465
        %4467 = vmatmul.f32.gmra.mxu0 %v4398
        %v4468 = vpop.f32.mrf.mxu0
        %v4469 = vadd.f32 0.0, %v4468
        %4470 = vmatmul.f32.gmra.mxu0 %v4401
        %v4471 = vpop.f32.mrf.mxu0
        %v4472 = vadd.f32 0.0, %v4471
        %4473 = vmatmul.f32.gmra.mxu0 %v4404
        %v4474 = vpop.f32.mrf.mxu0
        %v4475 = vadd.f32 0.0, %v4474
        %4476 = vmatmul.f32.gmra.mxu0 %v4407
        %v4477 = vpop.f32.mrf.mxu0
        %v4478 = vadd.f32 0.0, %v4477
        %4479 = vmatmul.f32.gmra.mxu0 %v4410
        %v4480 = vpop.f32.mrf.mxu0
        %v4481 = vadd.f32 0.0, %v4480
        %4482 = vmatmul.f32.gmra.mxu0 %v4413
        %v4483 = vpop.f32.mrf.mxu0
        %v4484 = vadd.f32 0.0, %v4483
        %4485 = vmatmul.f32.gmra.mxu0 %v4416
        %v4486 = vpop.f32.mrf.mxu0
        %v4487 = vadd.f32 0.0, %v4486
        %4488 = vmatmul.f32.gmra.mxu0 %v4419
        %v4489 = vpop.f32.mrf.mxu0
        %v4490 = vadd.f32 0.0, %v4489
        %4491 = vmatmul.f32.gmra.mxu0 %v4422
        %v4492 = vpop.f32.mrf.mxu0
        %v4493 = vadd.f32 0.0, %v4492
        %4494 = vmatmul.f32.gmra.mxu0 %v4425
        %v4495 = vpop.f32.mrf.mxu0
        %v4496 = vadd.f32 0.0, %v4495
        %4497 = vmatmul.f32.gmra.mxu0 %v4428
        %v4498 = vpop.f32.mrf.mxu0
        %v4499 = vadd.f32 0.0, %v4498
        %4500 = vmatmul.f32.gmra.mxu0 %v4431
        %v4501 = vpop.f32.mrf.mxu0
        %v4502 = vadd.f32 0.0, %v4501
        %4503 = vmatmul.f32.gmra.mxu0 %v4434
        %v4504 = vpop.f32.mrf.mxu0
        %v4505 = vadd.f32 0.0, %v4504
        %4506 = vmatmul.f32.gmra.mxu0 %v4437
        %v4507 = vpop.f32.mrf.mxu0
        %v4508 = vadd.f32 0.0, %v4507
        %4509 = vmatmul.f32.gmra.mxu0 %v4440
        %v4510 = vpop.f32.mrf.mxu0
        %v4511 = vadd.f32 0.0, %v4510
        %4512 = vdwg.mxu0
        %v4513 = vmul.f32 %v4460, %v374
        %v4514 = vmul.f32 %v4463, %v374
        %v4515 = vmul.f32 %v4466, %v379
        %v4516 = vmul.f32 %v4469, %v379
        %v4517 = vmul.f32 %v4472, %v384
        %v4518 = vmul.f32 %v4475, %v384
        %v4519 = vmul.f32 %v4478, %v389
        %v4520 = vmul.f32 %v4481, %v389
        %v4521 = vmul.f32 %v4484, %v394
        %v4522 = vmul.f32 %v4487, %v394
        %v4523 = vmul.f32 %v4490, %v399
        %v4524 = vmul.f32 %v4493, %v399
        %v4525 = vmul.f32 %v4496, %v404
        %v4526 = vmul.f32 %v4499, %v404
        %v4527 = vmul.f32 %v4502, %v409
        %v4528 = vmul.f32 %v4505, %v409
        %v4529 = vmul.f32 %v4508, %v414
        %v4530 = vmul.f32 %v4511, %v414
        %v4531 = vadd.f32 %v4513, %v4515
        %v4532 = vadd.f32 %v4514, %v4516
        %v4533 = vadd.f32 %v4531, %v4517
        %v4534 = vadd.f32 %v4532, %v4518
        %v4535 = vadd.f32 %v4533, %v4519
        %v4536 = vadd.f32 %v4534, %v4520
        %v4537 = vadd.f32 %v4535, %v4521
        %v4538 = vadd.f32 %v4536, %v4522
        %v4539 = vadd.f32 %v4537, %v4523
        %v4540 = vadd.f32 %v4538, %v4524
        %v4541 = vadd.f32 %v4539, %v4525
        %v4542 = vadd.f32 %v4540, %v4526
        %v4543 = vadd.f32 %v4541, %v4527
        %v4544 = vadd.f32 %v4542, %v4528
        %v4545 = vadd.f32 %v4543, %v4529
        %v4546 = vadd.f32 %v4544, %v4530
        %v4547 = vmul.f32 %v4130, %v374
        %v4548 = vmul.f32 %v4131, %v374
        %v4549 = vmul.f32 %v4130, %v379
        %v4550 = vmul.f32 %v4131, %v379
        %v4551 = vmul.f32 %v4130, %v384
        %v4552 = vmul.f32 %v4131, %v384
        %v4553 = vmul.f32 %v4130, %v389
        %v4554 = vmul.f32 %v4131, %v389
        %v4555 = vmul.f32 %v4130, %v394
        %v4556 = vmul.f32 %v4131, %v394
        %v4557 = vmul.f32 %v4130, %v399
        %v4558 = vmul.f32 %v4131, %v399
        %v4559 = vmul.f32 %v4130, %v404
        %v4560 = vmul.f32 %v4131, %v404
        %v4561 = vmul.f32 %v4130, %v409
        %v4562 = vmul.f32 %v4131, %v409
        %v4563 = vmul.f32 %v4130, %v414
        %v4564 = vmul.f32 %v4131, %v414
        %4567 = vrot.lane.b32.xlu0 %v3925, 101
        %v4568 = vpop.permute.xlu0 %4567
        %4569 = vrot.lane.b32.xlu0 %v3928, 101
        %v4570 = vpop.permute.xlu0 %4569
        %v4571 = vsel %vm417, %v4568, 0
        %v4573 = vsel %vm417, %v4570, 0
        %v4576 = vsel %vm417, %v4547, 0
        %v4579 = vsel %vm417, %v4548, 0
        %v4582 = vsel %vm417, %v4549, 0
        %v4585 = vsel %vm417, %v4550, 0
        %v4588 = vsel %vm417, %v4551, 0
        %v4591 = vsel %vm417, %v4552, 0
        %v4594 = vsel %vm417, %v4553, 0
        %v4597 = vsel %vm417, %v4554, 0
        %v4600 = vsel %vm417, %v4555, 0
        %v4603 = vsel %vm417, %v4556, 0
        %v4606 = vsel %vm417, %v4557, 0
        %v4609 = vsel %vm417, %v4558, 0
        %v4612 = vsel %vm417, %v4559, 0
        %v4615 = vsel %vm417, %v4560, 0
        %v4618 = vsel %vm417, %v4561, 0
        %v4621 = vsel %vm417, %v4562, 0
        %v4624 = vsel %vm417, %v4563, 0
        %v4627 = vsel %vm417, %v4564, 0
        %4629 = vmatpush.xpose.msra.mxu0 %v4621
        %4630 = vmatpush.xpose.msra.mxu0 %v4618
        %4631 = vmatpush.xpose.msra.mxu0 %v4615
        %4632 = vmatpush.xpose.msra.mxu0 %v4612
        %4633 = vmatpush.xpose.msra.mxu0 %v4609
        %4634 = vmatpush.xpose.msra.mxu0 %v4606
        %4635 = vmatpush.xpose.msra.mxu0 %v4603
        %4636 = vmatpush.xpose.msra.mxu0 %v4600
        %4637 = vmatpush.xpose.msra.mxu0 %v4597
        %4638 = vmatpush.xpose.msra.mxu0 %v4594
        %4639 = vmatpush.xpose.msra.mxu0 %v4591
        %4640 = vmatpush.xpose.msra.mxu0 %v4588
        %4641 = vmatpush.xpose.msra.mxu0 %v4585
        %4642 = vmatpush.xpose.msra.mxu0 %v4582
        %4643 = vmatpush.xpose.msra.mxu0 %v4579
        %4644 = vmatpush.xpose.msra.mxu0 %v4576
        %4645 = vmatmul.f32.gmra.mxu0 %v4571
        %v4646 = vpop.f32.mrf.mxu0
        %v4647 = vadd.f32 0.0, %v4646
        %4648 = vmatmul.f32.gmra.mxu0 %v4573
        %v4649 = vpop.f32.mrf.mxu0
        %v4650 = vadd.f32 0.0, %v4649
        %4651 = vdwg.mxu0
        %4652 = vmatpush.xpose.msra.mxu0 0.0
        %4653 = vmatpush.xpose.msra.mxu0 0.0
        %4654 = vmatpush.xpose.msra.mxu0 0.0
        %4655 = vmatpush.xpose.msra.mxu0 0.0
        %4656 = vmatpush.xpose.msra.mxu0 0.0
        %4657 = vmatpush.xpose.msra.mxu0 0.0
        %4658 = vmatpush.xpose.msra.mxu0 0.0
        %4659 = vmatpush.xpose.msra.mxu0 0.0
        %4660 = vmatpush.xpose.msra.mxu0 0.0
        %4661 = vmatpush.xpose.msra.mxu0 0.0
        %4662 = vmatpush.xpose.msra.mxu0 0.0
        %4663 = vmatpush.xpose.msra.mxu0 0.0
        %4664 = vmatpush.xpose.msra.mxu0 0.0
        %4665 = vmatpush.xpose.msra.mxu0 0.0
        %4666 = vmatpush.xpose.msra.mxu0 %v4627
        %4667 = vmatpush.xpose.msra.mxu0 %v4624
        %4668 = vmatmul.f32.gmra.mxu0 %v4571
        %v4669 = vpop.f32.mrf.mxu0
        %v4670 = vadd.f32 0.0, %v4669
        %4671 = vmatmul.f32.gmra.mxu0 %v4573
        %v4672 = vpop.f32.mrf.mxu0
        %v4673 = vadd.f32 0.0, %v4672
        %4674 = vdwg.mxu0
        %v4675 = vmul.f32 %v4647, 0.57735026
        %v4676 = vmul.f32 %v4670, 0.57735026
        %v4677 = vmul.f32 %v4650, 0.57735026
        %v4678 = vmul.f32 %v4673, 0.57735026
        %v4679 = vmax.f32 %v4675, %v4677
        %v4680 = vrot.slane %v4679, 4
        %v4681 = vmax.f32 %v4679, %v4680
        %v4682 = vrot.slane %v4681, 2
        %v4683 = vmax.f32 %v4681, %v4682
        %v4684 = vrot.slane %v4683, 1
        %v4685 = vmax.f32 %v4683, %v4684
        %v4686 = vsel %vm1234, %v4676, -inf
        %v4687 = vsel %vm1234, %v4678, -inf
        %v4688 = vmax.f32 %v4686, %v4687
        %v4689 = vrot.slane %v4688, 4
        %v4690 = vmax.f32 %v4688, %v4689
        %v4691 = vrot.slane %v4690, 2
        %v4692 = vmax.f32 %v4690, %v4691
        %v4693 = vrot.slane %v4692, 1
        %v4694 = vmax.f32 %v4692, %v4693
        %v4695 = vsub.f32 %v4675, %v4685
        %v4696 = vsub.f32 %v4676, %v4694
        %v4697 = vsub.f32 %v4677, %v4685
        %v4698 = vsub.f32 %v4678, %v4694
        %v4699 = vmul.f32 %v4695, 1.442695
        %v4700 = vpow.pop %v4699
        %v4701 = vmul.f32 %v4696, 1.442695
        %v4702 = vpow.pop %v4701
        %v4703 = vmul.f32 %v4697, 1.442695
        %v4704 = vpow.pop %v4703
        %v4705 = vmul.f32 %v4698, 1.442695
        %v4706 = vpow.pop %v4705
        %v4707 = vadd.f32 %v4700, %v4704
        %v4708 = vrot.slane %v4707, 4
        %v4709 = vadd.f32 %v4707, %v4708
        %v4710 = vrot.slane %v4709, 2
        %v4711 = vadd.f32 %v4709, %v4710
        %v4712 = vrot.slane %v4711, 1
        %v4713 = vadd.f32 %v4711, %v4712
        %v4714 = vsel %vm1234, %v4702, 0.0
        %v4715 = vsel %vm1234, %v4706, 0.0
        %v4716 = vadd.f32 %v4714, %v4715
        %v4717 = vrot.slane %v4716, 4
        %v4718 = vadd.f32 %v4716, %v4717
        %v4719 = vrot.slane %v4718, 2
        %v4720 = vadd.f32 %v4718, %v4719
        %v4721 = vrot.slane %v4720, 1
        %v4722 = vadd.f32 %v4720, %v4721
        %v4723 = vrcp.pop %v4713
        %v4724 = vrcp.pop %v4722
        %v4725 = vmul.f32 %v4700, %v4723
        %v4726 = vmul.f32 %v4702, %v4724
        %v4727 = vmul.f32 %v4704, %v4723
        %v4728 = vmul.f32 %v4706, %v4724
        %4729 = vxpose.xlu0.b32.start [1/16] %v4725, 128
        %4730 = vxpose.xlu0.b32.cont [2/16] %v4727, 128
        %4731 = vxpose.xlu0.b32.cont [3/16] 0.0, 128
        %4732 = vxpose.xlu0.b32.cont [4/16] 0.0, 128
        %4733 = vxpose.xlu0.b32.cont [5/16] 0.0, 128
        %4734 = vxpose.xlu0.b32.cont [6/16] 0.0, 128
        %4735 = vxpose.xlu0.b32.cont [7/16] 0.0, 128
        %4736 = vxpose.xlu0.b32.cont [8/16] 0.0, 128
        %4737 = vxpose.xlu0.b32.cont [9/16] 0.0, 128
        %4738 = vxpose.xlu0.b32.cont [10/16] 0.0, 128
        %4739 = vxpose.xlu0.b32.cont [11/16] 0.0, 128
        %4740 = vxpose.xlu0.b32.cont [12/16] 0.0, 128
        %4741 = vxpose.xlu0.b32.cont [13/16] 0.0, 128
        %4742 = vxpose.xlu0.b32.cont [14/16] 0.0, 128
        %4743 = vxpose.xlu0.b32.cont [15/16] 0.0, 128
        %4744 = vxpose.xlu0.b32.end [16/16] 0.0, 128
        %v4745 = vpop.trf.xlu0
        %v4746 = vpop.trf.xlu0
        %v4747 = vpop.trf.xlu0
        %v4748 = vpop.trf.xlu0
        %v4749 = vpop.trf.xlu0
        %v4750 = vpop.trf.xlu0
        %v4751 = vpop.trf.xlu0
        %v4752 = vpop.trf.xlu0
        %v4753 = vpop.trf.xlu0
        %v4754 = vpop.trf.xlu0
        %v4755 = vpop.trf.xlu0
        %v4756 = vpop.trf.xlu0
        %v4757 = vpop.trf.xlu0
        %v4758 = vpop.trf.xlu0
        %v4759 = vpop.trf.xlu0
        %v4760 = vpop.trf.xlu0
        %4761 = vxpose.xlu0.b32.start [1/16] %v4726, 128
        %4762 = vxpose.xlu0.b32.cont [2/16] %v4728, 128
        %4763 = vxpose.xlu0.b32.cont [3/16] 0.0, 128
        %4764 = vxpose.xlu0.b32.cont [4/16] 0.0, 128
        %4765 = vxpose.xlu0.b32.cont [5/16] 0.0, 128
        %4766 = vxpose.xlu0.b32.cont [6/16] 0.0, 128
        %4767 = vxpose.xlu0.b32.cont [7/16] 0.0, 128
        %4768 = vxpose.xlu0.b32.cont [8/16] 0.0, 128
        %4769 = vxpose.xlu0.b32.cont [9/16] 0.0, 128
        %4770 = vxpose.xlu0.b32.cont [10/16] 0.0, 128
        %4771 = vxpose.xlu0.b32.cont [11/16] 0.0, 128
        %4772 = vxpose.xlu0.b32.cont [12/16] 0.0, 128
        %4773 = vxpose.xlu0.b32.cont [13/16] 0.0, 128
        %4774 = vxpose.xlu0.b32.cont [14/16] 0.0, 128
        %4775 = vxpose.xlu0.b32.cont [15/16] 0.0, 128
        %4776 = vxpose.xlu0.b32.end [16/16] 0.0, 128
        %v4777 = vpop.trf.xlu0
        %v4778 = vpop.trf.xlu0
        %v4779 = vpop.trf.xlu0
        %v4780 = vpop.trf.xlu0
        %v4781 = vpop.trf.xlu0
        %v4782 = vpop.trf.xlu0
        %v4783 = vpop.trf.xlu0
        %v4784 = vpop.trf.xlu0
        %v4785 = vpop.trf.xlu0
        %v4786 = vpop.trf.xlu0
        %v4787 = vpop.trf.xlu0
        %v4788 = vpop.trf.xlu0
        %v4789 = vpop.trf.xlu0
        %v4790 = vpop.trf.xlu0
        %v4791 = vpop.trf.xlu0
        %v4792 = vpop.trf.xlu0
        %4793 = vrot.lane.b32.xlu0 %v3925, 74
        %v4794 = vpop.permute.xlu0 %4793
        %4795 = vrot.lane.b32.xlu0 %v3928, 74
        %v4796 = vpop.permute.xlu0 %4795
        %v4800 = vsel %vm1234, %v4745, 0
        %v4803 = vsel %vm1234, %v4746, 0
        %v4806 = vsel %vm1234, %v4747, 0
        %v4809 = vsel %vm1234, %v4748, 0
        %v4812 = vsel %vm1234, %v4749, 0
        %v4815 = vsel %vm1234, %v4750, 0
        %v4818 = vsel %vm1234, %v4751, 0
        %v4821 = vsel %vm1234, %v4752, 0
        %v4824 = vsel %vm1234, %v4753, 0
        %v4827 = vsel %vm1234, %v4754, 0
        %v4830 = vsel %vm1234, %v4755, 0
        %v4833 = vsel %vm1234, %v4756, 0
        %v4836 = vsel %vm1234, %v4757, 0
        %v4839 = vsel %vm1234, %v4758, 0
        %v4842 = vsel %vm1234, %v4759, 0
        %v4845 = vsel %vm1234, %v4760, 0
        %v4848 = vsel %vm1234, %v4777, 0
        %v4851 = vsel %vm1234, %v4778, 0
        %4853 = vmatpush.msra.mxu0 0.0
        %4854 = vmatpush.msra.mxu0 0.0
        %4855 = vmatpush.msra.mxu0 0.0
        %4856 = vmatpush.msra.mxu0 0.0
        %4857 = vmatpush.msra.mxu0 0.0
        %4858 = vmatpush.msra.mxu0 0.0
        %4859 = vmatpush.msra.mxu0 0.0
        %4860 = vmatpush.msra.mxu0 0.0
        %4861 = vmatpush.msra.mxu0 0.0
        %4862 = vmatpush.msra.mxu0 0.0
        %4863 = vmatpush.msra.mxu0 0.0
        %4864 = vmatpush.msra.mxu0 0.0
        %4865 = vmatpush.msra.mxu0 0.0
        %4866 = vmatpush.msra.mxu0 0.0
        %4867 = vmatpush.msra.mxu0 %v4796
        %4868 = vmatpush.msra.mxu0 %v4794
        %4869 = vmatmul.f32.gmra.mxu0 %v4800
        %v4870 = vpop.f32.mrf.mxu0
        %v4871 = vadd.f32 0.0, %v4870
        %4872 = vmatmul.f32.gmra.mxu0 %v4803
        %v4873 = vpop.f32.mrf.mxu0
        %v4874 = vadd.f32 0.0, %v4873
        %4875 = vmatmul.f32.gmra.mxu0 %v4806
        %v4876 = vpop.f32.mrf.mxu0
        %v4877 = vadd.f32 0.0, %v4876
        %4878 = vmatmul.f32.gmra.mxu0 %v4809
        %v4879 = vpop.f32.mrf.mxu0
        %v4880 = vadd.f32 0.0, %v4879
        %4881 = vmatmul.f32.gmra.mxu0 %v4812
        %v4882 = vpop.f32.mrf.mxu0
        %v4883 = vadd.f32 0.0, %v4882
        %4884 = vmatmul.f32.gmra.mxu0 %v4815
        %v4885 = vpop.f32.mrf.mxu0
        %v4886 = vadd.f32 0.0, %v4885
        %4887 = vmatmul.f32.gmra.mxu0 %v4818
        %v4888 = vpop.f32.mrf.mxu0
        %v4889 = vadd.f32 0.0, %v4888
        %4890 = vmatmul.f32.gmra.mxu0 %v4821
        %v4891 = vpop.f32.mrf.mxu0
        %v4892 = vadd.f32 0.0, %v4891
        %4893 = vmatmul.f32.gmra.mxu0 %v4824
        %v4894 = vpop.f32.mrf.mxu0
        %v4895 = vadd.f32 0.0, %v4894
        %4896 = vmatmul.f32.gmra.mxu0 %v4827
        %v4897 = vpop.f32.mrf.mxu0
        %v4898 = vadd.f32 0.0, %v4897
        %4899 = vmatmul.f32.gmra.mxu0 %v4830
        %v4900 = vpop.f32.mrf.mxu0
        %v4901 = vadd.f32 0.0, %v4900
        %4902 = vmatmul.f32.gmra.mxu0 %v4833
        %v4903 = vpop.f32.mrf.mxu0
        %v4904 = vadd.f32 0.0, %v4903
        %4905 = vmatmul.f32.gmra.mxu0 %v4836
        %v4906 = vpop.f32.mrf.mxu0
        %v4907 = vadd.f32 0.0, %v4906
        %4908 = vmatmul.f32.gmra.mxu0 %v4839
        %v4909 = vpop.f32.mrf.mxu0
        %v4910 = vadd.f32 0.0, %v4909
        %4911 = vmatmul.f32.gmra.mxu0 %v4842
        %v4912 = vpop.f32.mrf.mxu0
        %v4913 = vadd.f32 0.0, %v4912
        %4914 = vmatmul.f32.gmra.mxu0 %v4845
        %v4915 = vpop.f32.mrf.mxu0
        %v4916 = vadd.f32 0.0, %v4915
        %4917 = vmatmul.f32.gmra.mxu0 %v4848
        %v4918 = vpop.f32.mrf.mxu0
        %v4919 = vadd.f32 0.0, %v4918
        %4920 = vmatmul.f32.gmra.mxu0 %v4851
        %v4921 = vpop.f32.mrf.mxu0
        %v4922 = vadd.f32 0.0, %v4921
        %4923 = vdwg.mxu0
        %v4924 = vmul.f32 %v4871, %v374
        %v4925 = vmul.f32 %v4874, %v374
        %v4926 = vmul.f32 %v4877, %v379
        %v4927 = vmul.f32 %v4880, %v379
        %v4928 = vmul.f32 %v4883, %v384
        %v4929 = vmul.f32 %v4886, %v384
        %v4930 = vmul.f32 %v4889, %v389
        %v4931 = vmul.f32 %v4892, %v389
        %v4932 = vmul.f32 %v4895, %v394
        %v4933 = vmul.f32 %v4898, %v394
        %v4934 = vmul.f32 %v4901, %v399
        %v4935 = vmul.f32 %v4904, %v399
        %v4936 = vmul.f32 %v4907, %v404
        %v4937 = vmul.f32 %v4910, %v404
        %v4938 = vmul.f32 %v4913, %v409
        %v4939 = vmul.f32 %v4916, %v409
        %v4940 = vmul.f32 %v4919, %v414
        %v4941 = vmul.f32 %v4922, %v414
        %v4942 = vadd.f32 %v4924, %v4926
        %v4943 = vadd.f32 %v4925, %v4927
        %v4944 = vadd.f32 %v4942, %v4928
        %v4945 = vadd.f32 %v4943, %v4929
        %v4946 = vadd.f32 %v4944, %v4930
        %v4947 = vadd.f32 %v4945, %v4931
        %v4948 = vadd.f32 %v4946, %v4932
        %v4949 = vadd.f32 %v4947, %v4933
        %v4950 = vadd.f32 %v4948, %v4934
        %v4951 = vadd.f32 %v4949, %v4935
        %v4952 = vadd.f32 %v4950, %v4936
        %v4953 = vadd.f32 %v4951, %v4937
        %v4954 = vadd.f32 %v4952, %v4938
        %v4955 = vadd.f32 %v4953, %v4939
        %v4956 = vadd.f32 %v4954, %v4940
        %v4957 = vadd.f32 %v4955, %v4941
        %v4958 = vmul.f32 %v4132, %v374
        %v4959 = vmul.f32 %v4133, %v374
        %v4960 = vmul.f32 %v4132, %v379
        %v4961 = vmul.f32 %v4133, %v379
        %v4962 = vmul.f32 %v4132, %v384
        %v4963 = vmul.f32 %v4133, %v384
        %v4964 = vmul.f32 %v4132, %v389
        %v4965 = vmul.f32 %v4133, %v389
        %v4966 = vmul.f32 %v4132, %v394
        %v4967 = vmul.f32 %v4133, %v394
        %v4968 = vmul.f32 %v4132, %v399
        %v4969 = vmul.f32 %v4133, %v399
        %v4970 = vmul.f32 %v4132, %v404
        %v4971 = vmul.f32 %v4133, %v404
        %v4972 = vmul.f32 %v4132, %v409
        %v4973 = vmul.f32 %v4133, %v409
        %v4974 = vmul.f32 %v4132, %v414
        %v4975 = vmul.f32 %v4133, %v414
        %4978 = vrot.lane.b32.xlu0 %v3931, 101
        %v4979 = vpop.permute.xlu0 %4978
        %4980 = vrot.lane.b32.xlu0 %v3934, 101
        %v4981 = vpop.permute.xlu0 %4980
        %v4982 = vsel %vm417, %v4979, 0
        %v4984 = vsel %vm417, %v4981, 0
        %v4987 = vsel %vm417, %v4958, 0
        %v4990 = vsel %vm417, %v4959, 0
        %v4993 = vsel %vm417, %v4960, 0
        %v4996 = vsel %vm417, %v4961, 0
        %v4999 = vsel %vm417, %v4962, 0
        %v5002 = vsel %vm417, %v4963, 0
        %v5005 = vsel %vm417, %v4964, 0
        %v5008 = vsel %vm417, %v4965, 0
        %v5011 = vsel %vm417, %v4966, 0
        %v5014 = vsel %vm417, %v4967, 0
        %v5017 = vsel %vm417, %v4968, 0
        %v5020 = vsel %vm417, %v4969, 0
        %v5023 = vsel %vm417, %v4970, 0
        %v5026 = vsel %vm417, %v4971, 0
        %v5029 = vsel %vm417, %v4972, 0
        %v5032 = vsel %vm417, %v4973, 0
        %v5035 = vsel %vm417, %v4974, 0
        %v5038 = vsel %vm417, %v4975, 0
        %5040 = vmatpush.xpose.msra.mxu0 %v5032
        %5041 = vmatpush.xpose.msra.mxu0 %v5029
        %5042 = vmatpush.xpose.msra.mxu0 %v5026
        %5043 = vmatpush.xpose.msra.mxu0 %v5023
        %5044 = vmatpush.xpose.msra.mxu0 %v5020
        %5045 = vmatpush.xpose.msra.mxu0 %v5017
        %5046 = vmatpush.xpose.msra.mxu0 %v5014
        %5047 = vmatpush.xpose.msra.mxu0 %v5011
        %5048 = vmatpush.xpose.msra.mxu0 %v5008
        %5049 = vmatpush.xpose.msra.mxu0 %v5005
        %5050 = vmatpush.xpose.msra.mxu0 %v5002
        %5051 = vmatpush.xpose.msra.mxu0 %v4999
        %5052 = vmatpush.xpose.msra.mxu0 %v4996
        %5053 = vmatpush.xpose.msra.mxu0 %v4993
        %5054 = vmatpush.xpose.msra.mxu0 %v4990
        %5055 = vmatpush.xpose.msra.mxu0 %v4987
        %5056 = vmatmul.f32.gmra.mxu0 %v4982
        %v5057 = vpop.f32.mrf.mxu0
        %v5058 = vadd.f32 0.0, %v5057
        %5059 = vmatmul.f32.gmra.mxu0 %v4984
        %v5060 = vpop.f32.mrf.mxu0
        %v5061 = vadd.f32 0.0, %v5060
        %5062 = vdwg.mxu0
        %5063 = vmatpush.xpose.msra.mxu0 0.0
        %5064 = vmatpush.xpose.msra.mxu0 0.0
        %5065 = vmatpush.xpose.msra.mxu0 0.0
        %5066 = vmatpush.xpose.msra.mxu0 0.0
        %5067 = vmatpush.xpose.msra.mxu0 0.0
        %5068 = vmatpush.xpose.msra.mxu0 0.0
        %5069 = vmatpush.xpose.msra.mxu0 0.0
        %5070 = vmatpush.xpose.msra.mxu0 0.0
        %5071 = vmatpush.xpose.msra.mxu0 0.0
        %5072 = vmatpush.xpose.msra.mxu0 0.0
        %5073 = vmatpush.xpose.msra.mxu0 0.0
        %5074 = vmatpush.xpose.msra.mxu0 0.0
        %5075 = vmatpush.xpose.msra.mxu0 0.0
        %5076 = vmatpush.xpose.msra.mxu0 0.0
        %5077 = vmatpush.xpose.msra.mxu0 %v5038
        %5078 = vmatpush.xpose.msra.mxu0 %v5035
        %5079 = vmatmul.f32.gmra.mxu0 %v4982
        %v5080 = vpop.f32.mrf.mxu0
        %v5081 = vadd.f32 0.0, %v5080
        %5082 = vmatmul.f32.gmra.mxu0 %v4984
        %v5083 = vpop.f32.mrf.mxu0
        %v5084 = vadd.f32 0.0, %v5083
        %5085 = vdwg.mxu0
        %v5086 = vmul.f32 %v5058, 0.57735026
        %v5087 = vmul.f32 %v5081, 0.57735026
        %v5088 = vmul.f32 %v5061, 0.57735026
        %v5089 = vmul.f32 %v5084, 0.57735026
        %v5090 = vmax.f32 %v5086, %v5088
        %v5091 = vrot.slane %v5090, 4
        %v5092 = vmax.f32 %v5090, %v5091
        %v5093 = vrot.slane %v5092, 2
        %v5094 = vmax.f32 %v5092, %v5093
        %v5095 = vrot.slane %v5094, 1
        %v5096 = vmax.f32 %v5094, %v5095
        %v5097 = vsel %vm1234, %v5087, -inf
        %v5098 = vsel %vm1234, %v5089, -inf
        %v5099 = vmax.f32 %v5097, %v5098
        %v5100 = vrot.slane %v5099, 4
        %v5101 = vmax.f32 %v5099, %v5100
        %v5102 = vrot.slane %v5101, 2
        %v5103 = vmax.f32 %v5101, %v5102
        %v5104 = vrot.slane %v5103, 1
        %v5105 = vmax.f32 %v5103, %v5104
        %v5106 = vsub.f32 %v5086, %v5096
        %v5107 = vsub.f32 %v5087, %v5105
        %v5108 = vsub.f32 %v5088, %v5096
        %v5109 = vsub.f32 %v5089, %v5105
        %v5110 = vmul.f32 %v5106, 1.442695
        %v5111 = vpow.pop %v5110
        %v5112 = vmul.f32 %v5107, 1.442695
        %v5113 = vpow.pop %v5112
        %v5114 = vmul.f32 %v5108, 1.442695
        %v5115 = vpow.pop %v5114
        %v5116 = vmul.f32 %v5109, 1.442695
        %v5117 = vpow.pop %v5116
        %v5118 = vadd.f32 %v5111, %v5115
        %v5119 = vrot.slane %v5118, 4
        %v5120 = vadd.f32 %v5118, %v5119
        %v5121 = vrot.slane %v5120, 2
        %v5122 = vadd.f32 %v5120, %v5121
        %v5123 = vrot.slane %v5122, 1
        %v5124 = vadd.f32 %v5122, %v5123
        %v5125 = vsel %vm1234, %v5113, 0.0
        %v5126 = vsel %vm1234, %v5117, 0.0
        %v5127 = vadd.f32 %v5125, %v5126
        %v5128 = vrot.slane %v5127, 4
        %v5129 = vadd.f32 %v5127, %v5128
        %v5130 = vrot.slane %v5129, 2
        %v5131 = vadd.f32 %v5129, %v5130
        %v5132 = vrot.slane %v5131, 1
        %v5133 = vadd.f32 %v5131, %v5132
        %v5134 = vrcp.pop %v5124
        %v5135 = vrcp.pop %v5133
        %v5136 = vmul.f32 %v5111, %v5134
        %v5137 = vmul.f32 %v5113, %v5135
        %v5138 = vmul.f32 %v5115, %v5134
        %v5139 = vmul.f32 %v5117, %v5135
        %5140 = vxpose.xlu0.b32.start [1/16] %v5136, 128
        %5141 = vxpose.xlu0.b32.cont [2/16] %v5138, 128
        %5142 = vxpose.xlu0.b32.cont [3/16] 0.0, 128
        %5143 = vxpose.xlu0.b32.cont [4/16] 0.0, 128
        %5144 = vxpose.xlu0.b32.cont [5/16] 0.0, 128
        %5145 = vxpose.xlu0.b32.cont [6/16] 0.0, 128
        %5146 = vxpose.xlu0.b32.cont [7/16] 0.0, 128
        %5147 = vxpose.xlu0.b32.cont [8/16] 0.0, 128
        %5148 = vxpose.xlu0.b32.cont [9/16] 0.0, 128
        %5149 = vxpose.xlu0.b32.cont [10/16] 0.0, 128
        %5150 = vxpose.xlu0.b32.cont [11/16] 0.0, 128
        %5151 = vxpose.xlu0.b32.cont [12/16] 0.0, 128
        %5152 = vxpose.xlu0.b32.cont [13/16] 0.0, 128
        %5153 = vxpose.xlu0.b32.cont [14/16] 0.0, 128
        %5154 = vxpose.xlu0.b32.cont [15/16] 0.0, 128
        %5155 = vxpose.xlu0.b32.end [16/16] 0.0, 128
        %v5156 = vpop.trf.xlu0
        %v5157 = vpop.trf.xlu0
        %v5158 = vpop.trf.xlu0
        %v5159 = vpop.trf.xlu0
        %v5160 = vpop.trf.xlu0
        %v5161 = vpop.trf.xlu0
        %v5162 = vpop.trf.xlu0
        %v5163 = vpop.trf.xlu0
        %v5164 = vpop.trf.xlu0
        %v5165 = vpop.trf.xlu0
        %v5166 = vpop.trf.xlu0
        %v5167 = vpop.trf.xlu0
        %v5168 = vpop.trf.xlu0
        %v5169 = vpop.trf.xlu0
        %v5170 = vpop.trf.xlu0
        %v5171 = vpop.trf.xlu0
        %5172 = vxpose.xlu0.b32.start [1/16] %v5137, 128
        %5173 = vxpose.xlu0.b32.cont [2/16] %v5139, 128
        %5174 = vxpose.xlu0.b32.cont [3/16] 0.0, 128
        %5175 = vxpose.xlu0.b32.cont [4/16] 0.0, 128
        %5176 = vxpose.xlu0.b32.cont [5/16] 0.0, 128
        %5177 = vxpose.xlu0.b32.cont [6/16] 0.0, 128
        %5178 = vxpose.xlu0.b32.cont [7/16] 0.0, 128
        %5179 = vxpose.xlu0.b32.cont [8/16] 0.0, 128
        %5180 = vxpose.xlu0.b32.cont [9/16] 0.0, 128
        %5181 = vxpose.xlu0.b32.cont [10/16] 0.0, 128
        %5182 = vxpose.xlu0.b32.cont [11/16] 0.0, 128
        %5183 = vxpose.xlu0.b32.cont [12/16] 0.0, 128
        %5184 = vxpose.xlu0.b32.cont [13/16] 0.0, 128
        %5185 = vxpose.xlu0.b32.cont [14/16] 0.0, 128
        %5186 = vxpose.xlu0.b32.cont [15/16] 0.0, 128
        %5187 = vxpose.xlu0.b32.end [16/16] 0.0, 128
        %v5188 = vpop.trf.xlu0
        %v5189 = vpop.trf.xlu0
        %v5190 = vpop.trf.xlu0
        %v5191 = vpop.trf.xlu0
        %v5192 = vpop.trf.xlu0
        %v5193 = vpop.trf.xlu0
        %v5194 = vpop.trf.xlu0
        %v5195 = vpop.trf.xlu0
        %v5196 = vpop.trf.xlu0
        %v5197 = vpop.trf.xlu0
        %v5198 = vpop.trf.xlu0
        %v5199 = vpop.trf.xlu0
        %v5200 = vpop.trf.xlu0
        %v5201 = vpop.trf.xlu0
        %v5202 = vpop.trf.xlu0
        %v5203 = vpop.trf.xlu0
        %5204 = vrot.lane.b32.xlu0 %v3931, 74
        %v5205 = vpop.permute.xlu0 %5204
        %5206 = vrot.lane.b32.xlu0 %v3934, 74
        %v5207 = vpop.permute.xlu0 %5206
        %v5211 = vsel %vm1234, %v5156, 0
        %v5214 = vsel %vm1234, %v5157, 0
        %v5217 = vsel %vm1234, %v5158, 0
        %v5220 = vsel %vm1234, %v5159, 0
        %v5223 = vsel %vm1234, %v5160, 0
        %v5226 = vsel %vm1234, %v5161, 0
        %v5229 = vsel %vm1234, %v5162, 0
        %v5232 = vsel %vm1234, %v5163, 0
        %v5235 = vsel %vm1234, %v5164, 0
        %v5238 = vsel %vm1234, %v5165, 0
        %v5241 = vsel %vm1234, %v5166, 0
        %v5244 = vsel %vm1234, %v5167, 0
        %v5247 = vsel %vm1234, %v5168, 0
        %v5250 = vsel %vm1234, %v5169, 0
        %v5253 = vsel %vm1234, %v5170, 0
        %v5256 = vsel %vm1234, %v5171, 0
        %v5259 = vsel %vm1234, %v5188, 0
        %v5262 = vsel %vm1234, %v5189, 0
        %5264 = vmatpush.msra.mxu0 0.0
        %5265 = vmatpush.msra.mxu0 0.0
        %5266 = vmatpush.msra.mxu0 0.0
        %5267 = vmatpush.msra.mxu0 0.0
        %5268 = vmatpush.msra.mxu0 0.0
        %5269 = vmatpush.msra.mxu0 0.0
        %5270 = vmatpush.msra.mxu0 0.0
        %5271 = vmatpush.msra.mxu0 0.0
        %5272 = vmatpush.msra.mxu0 0.0
        %5273 = vmatpush.msra.mxu0 0.0
        %5274 = vmatpush.msra.mxu0 0.0
        %5275 = vmatpush.msra.mxu0 0.0
        %5276 = vmatpush.msra.mxu0 0.0
        %5277 = vmatpush.msra.mxu0 0.0
        %5278 = vmatpush.msra.mxu0 %v5207
        %5279 = vmatpush.msra.mxu0 %v5205
        %5280 = vmatmul.f32.gmra.mxu0 %v5211
        %v5281 = vpop.f32.mrf.mxu0
        %v5282 = vadd.f32 0.0, %v5281
        %5283 = vmatmul.f32.gmra.mxu0 %v5214
        %v5284 = vpop.f32.mrf.mxu0
        %v5285 = vadd.f32 0.0, %v5284
        %5286 = vmatmul.f32.gmra.mxu0 %v5217
        %v5287 = vpop.f32.mrf.mxu0
        %v5288 = vadd.f32 0.0, %v5287
        %5289 = vmatmul.f32.gmra.mxu0 %v5220
        %v5290 = vpop.f32.mrf.mxu0
        %v5291 = vadd.f32 0.0, %v5290
        %5292 = vmatmul.f32.gmra.mxu0 %v5223
        %v5293 = vpop.f32.mrf.mxu0
        %v5294 = vadd.f32 0.0, %v5293
        %5295 = vmatmul.f32.gmra.mxu0 %v5226
        %v5296 = vpop.f32.mrf.mxu0
        %v5297 = vadd.f32 0.0, %v5296
        %5298 = vmatmul.f32.gmra.mxu0 %v5229
        %v5299 = vpop.f32.mrf.mxu0
        %v5300 = vadd.f32 0.0, %v5299
        %5301 = vmatmul.f32.gmra.mxu0 %v5232
        %v5302 = vpop.f32.mrf.mxu0
        %v5303 = vadd.f32 0.0, %v5302
        %5304 = vmatmul.f32.gmra.mxu0 %v5235
        %v5305 = vpop.f32.mrf.mxu0
        %v5306 = vadd.f32 0.0, %v5305
        %5307 = vmatmul.f32.gmra.mxu0 %v5238
        %v5308 = vpop.f32.mrf.mxu0
        %v5309 = vadd.f32 0.0, %v5308
        %5310 = vmatmul.f32.gmra.mxu0 %v5241
        %v5311 = vpop.f32.mrf.mxu0
        %v5312 = vadd.f32 0.0, %v5311
        %5313 = vmatmul.f32.gmra.mxu0 %v5244
        %v5314 = vpop.f32.mrf.mxu0
        %v5315 = vadd.f32 0.0, %v5314
        %5316 = vmatmul.f32.gmra.mxu0 %v5247
        %v5317 = vpop.f32.mrf.mxu0
        %v5318 = vadd.f32 0.0, %v5317
        %5319 = vmatmul.f32.gmra.mxu0 %v5250
        %v5320 = vpop.f32.mrf.mxu0
        %v5321 = vadd.f32 0.0, %v5320
        %5322 = vmatmul.f32.gmra.mxu0 %v5253
        %v5323 = vpop.f32.mrf.mxu0
        %v5324 = vadd.f32 0.0, %v5323
        %5325 = vmatmul.f32.gmra.mxu0 %v5256
        %v5326 = vpop.f32.mrf.mxu0
        %v5327 = vadd.f32 0.0, %v5326
        %5328 = vmatmul.f32.gmra.mxu0 %v5259
        %v5329 = vpop.f32.mrf.mxu0
        %v5330 = vadd.f32 0.0, %v5329
        %5331 = vmatmul.f32.gmra.mxu0 %v5262
        %v5332 = vpop.f32.mrf.mxu0
        %v5333 = vadd.f32 0.0, %v5332
        %5334 = vdwg.mxu0
        %v5335 = vmul.f32 %v5282, %v374
        %v5336 = vmul.f32 %v5285, %v374
        %v5337 = vmul.f32 %v5288, %v379
        %v5338 = vmul.f32 %v5291, %v379
        %v5339 = vmul.f32 %v5294, %v384
        %v5340 = vmul.f32 %v5297, %v384
        %v5341 = vmul.f32 %v5300, %v389
        %v5342 = vmul.f32 %v5303, %v389
        %v5343 = vmul.f32 %v5306, %v394
        %v5344 = vmul.f32 %v5309, %v394
        %v5345 = vmul.f32 %v5312, %v399
        %v5346 = vmul.f32 %v5315, %v399
        %v5347 = vmul.f32 %v5318, %v404
        %v5348 = vmul.f32 %v5321, %v404
        %v5349 = vmul.f32 %v5324, %v409
        %v5350 = vmul.f32 %v5327, %v409
        %v5351 = vmul.f32 %v5330, %v414
        %v5352 = vmul.f32 %v5333, %v414
        %v5353 = vadd.f32 %v5335, %v5337
        %v5354 = vadd.f32 %v5336, %v5338
        %v5355 = vadd.f32 %v5353, %v5339
        %v5356 = vadd.f32 %v5354, %v5340
        %v5357 = vadd.f32 %v5355, %v5341
        %v5358 = vadd.f32 %v5356, %v5342
        %v5359 = vadd.f32 %v5357, %v5343
        %v5360 = vadd.f32 %v5358, %v5344
        %v5361 = vadd.f32 %v5359, %v5345
        %v5362 = vadd.f32 %v5360, %v5346
        %v5363 = vadd.f32 %v5361, %v5347
        %v5364 = vadd.f32 %v5362, %v5348
        %v5365 = vadd.f32 %v5363, %v5349
        %v5366 = vadd.f32 %v5364, %v5350
        %v5367 = vadd.f32 %v5365, %v5351
        %v5368 = vadd.f32 %v5366, %v5352
        %v5369 = vmul.f32 %v4134, %v374
        %v5370 = vmul.f32 %v4135, %v374
        %v5371 = vmul.f32 %v4134, %v379
        %v5372 = vmul.f32 %v4135, %v379
        %v5373 = vmul.f32 %v4134, %v384
        %v5374 = vmul.f32 %v4135, %v384
        %v5375 = vmul.f32 %v4134, %v389
        %v5376 = vmul.f32 %v4135, %v389
        %v5377 = vmul.f32 %v4134, %v394
        %v5378 = vmul.f32 %v4135, %v394
        %v5379 = vmul.f32 %v4134, %v399
        %v5380 = vmul.f32 %v4135, %v399
        %v5381 = vmul.f32 %v4134, %v404
        %v5382 = vmul.f32 %v4135, %v404
        %v5383 = vmul.f32 %v4134, %v409
        %v5384 = vmul.f32 %v4135, %v409
        %v5385 = vmul.f32 %v4134, %v414
        %v5386 = vmul.f32 %v4135, %v414
        %5389 = vrot.lane.b32.xlu0 %v3937, 101
        %v5390 = vpop.permute.xlu0 %5389
        %5391 = vrot.lane.b32.xlu0 %v3940, 101
        %v5392 = vpop.permute.xlu0 %5391
        %v5393 = vsel %vm417, %v5390, 0
        %v5395 = vsel %vm417, %v5392, 0
        %v5398 = vsel %vm417, %v5369, 0
        %v5401 = vsel %vm417, %v5370, 0
        %v5404 = vsel %vm417, %v5371, 0
        %v5407 = vsel %vm417, %v5372, 0
        %v5410 = vsel %vm417, %v5373, 0
        %v5413 = vsel %vm417, %v5374, 0
        %v5416 = vsel %vm417, %v5375, 0
        %v5419 = vsel %vm417, %v5376, 0
        %v5422 = vsel %vm417, %v5377, 0
        %v5425 = vsel %vm417, %v5378, 0
        %v5428 = vsel %vm417, %v5379, 0
        %v5431 = vsel %vm417, %v5380, 0
        %v5434 = vsel %vm417, %v5381, 0
        %v5437 = vsel %vm417, %v5382, 0
        %v5440 = vsel %vm417, %v5383, 0
        %v5443 = vsel %vm417, %v5384, 0
        %v5446 = vsel %vm417, %v5385, 0
        %v5449 = vsel %vm417, %v5386, 0
        %5451 = vmatpush.xpose.msra.mxu0 %v5443
        %5452 = vmatpush.xpose.msra.mxu0 %v5440
        %5453 = vmatpush.xpose.msra.mxu0 %v5437
        %5454 = vmatpush.xpose.msra.mxu0 %v5434
        %5455 = vmatpush.xpose.msra.mxu0 %v5431
        %5456 = vmatpush.xpose.msra.mxu0 %v5428
        %5457 = vmatpush.xpose.msra.mxu0 %v5425
        %5458 = vmatpush.xpose.msra.mxu0 %v5422
        %5459 = vmatpush.xpose.msra.mxu0 %v5419
        %5460 = vmatpush.xpose.msra.mxu0 %v5416
        %5461 = vmatpush.xpose.msra.mxu0 %v5413
        %5462 = vmatpush.xpose.msra.mxu0 %v5410
        %5463 = vmatpush.xpose.msra.mxu0 %v5407
        %5464 = vmatpush.xpose.msra.mxu0 %v5404
        %5465 = vmatpush.xpose.msra.mxu0 %v5401
        %5466 = vmatpush.xpose.msra.mxu0 %v5398
        %5467 = vmatmul.f32.gmra.mxu0 %v5393
        %v5468 = vpop.f32.mrf.mxu0
        %v5469 = vadd.f32 0.0, %v5468
        %5470 = vmatmul.f32.gmra.mxu0 %v5395
        %v5471 = vpop.f32.mrf.mxu0
        %v5472 = vadd.f32 0.0, %v5471
        %5473 = vdwg.mxu0
        %5474 = vmatpush.xpose.msra.mxu0 0.0
        %5475 = vmatpush.xpose.msra.mxu0 0.0
        %5476 = vmatpush.xpose.msra.mxu0 0.0
        %5477 = vmatpush.xpose.msra.mxu0 0.0
        %5478 = vmatpush.xpose.msra.mxu0 0.0
        %5479 = vmatpush.xpose.msra.mxu0 0.0
        %5480 = vmatpush.xpose.msra.mxu0 0.0
        %5481 = vmatpush.xpose.msra.mxu0 0.0
        %5482 = vmatpush.xpose.msra.mxu0 0.0
        %5483 = vmatpush.xpose.msra.mxu0 0.0
        %5484 = vmatpush.xpose.msra.mxu0 0.0
        %5485 = vmatpush.xpose.msra.mxu0 0.0
        %5486 = vmatpush.xpose.msra.mxu0 0.0
        %5487 = vmatpush.xpose.msra.mxu0 0.0
        %5488 = vmatpush.xpose.msra.mxu0 %v5449
        %5489 = vmatpush.xpose.msra.mxu0 %v5446
        %5490 = vmatmul.f32.gmra.mxu0 %v5393
        %v5491 = vpop.f32.mrf.mxu0
        %v5492 = vadd.f32 0.0, %v5491
        %5493 = vmatmul.f32.gmra.mxu0 %v5395
        %v5494 = vpop.f32.mrf.mxu0
        %v5495 = vadd.f32 0.0, %v5494
        %5496 = vdwg.mxu0
        %v5497 = vmul.f32 %v5469, 0.57735026
        %v5498 = vmul.f32 %v5492, 0.57735026
        %v5499 = vmul.f32 %v5472, 0.57735026
        %v5500 = vmul.f32 %v5495, 0.57735026
        %v5501 = vmax.f32 %v5497, %v5499
        %v5502 = vrot.slane %v5501, 4
        %v5503 = vmax.f32 %v5501, %v5502
        %v5504 = vrot.slane %v5503, 2
        %v5505 = vmax.f32 %v5503, %v5504
        %v5506 = vrot.slane %v5505, 1
        %v5507 = vmax.f32 %v5505, %v5506
        %v5508 = vsel %vm1234, %v5498, -inf
        %v5509 = vsel %vm1234, %v5500, -inf
        %v5510 = vmax.f32 %v5508, %v5509
        %v5511 = vrot.slane %v5510, 4
        %v5512 = vmax.f32 %v5510, %v5511
        %v5513 = vrot.slane %v5512, 2
        %v5514 = vmax.f32 %v5512, %v5513
        %v5515 = vrot.slane %v5514, 1
        %v5516 = vmax.f32 %v5514, %v5515
        %v5517 = vsub.f32 %v5497, %v5507
        %v5518 = vsub.f32 %v5498, %v5516
        %v5519 = vsub.f32 %v5499, %v5507
        %v5520 = vsub.f32 %v5500, %v5516
        %v5521 = vmul.f32 %v5517, 1.442695
        %v5522 = vpow.pop %v5521
        %v5523 = vmul.f32 %v5518, 1.442695
        %v5524 = vpow.pop %v5523
        %v5525 = vmul.f32 %v5519, 1.442695
        %v5526 = vpow.pop %v5525
        %v5527 = vmul.f32 %v5520, 1.442695
        %v5528 = vpow.pop %v5527
        %v5529 = vadd.f32 %v5522, %v5526
        %v5530 = vrot.slane %v5529, 4
        %v5531 = vadd.f32 %v5529, %v5530
        %v5532 = vrot.slane %v5531, 2
        %v5533 = vadd.f32 %v5531, %v5532
        %v5534 = vrot.slane %v5533, 1
        %v5535 = vadd.f32 %v5533, %v5534
        %v5536 = vsel %vm1234, %v5524, 0.0
        %v5537 = vsel %vm1234, %v5528, 0.0
        %v5538 = vadd.f32 %v5536, %v5537
        %v5539 = vrot.slane %v5538, 4
        %v5540 = vadd.f32 %v5538, %v5539
        %v5541 = vrot.slane %v5540, 2
        %v5542 = vadd.f32 %v5540, %v5541
        %v5543 = vrot.slane %v5542, 1
        %v5544 = vadd.f32 %v5542, %v5543
        %v5545 = vrcp.pop %v5535
        %v5546 = vrcp.pop %v5544
        %v5547 = vmul.f32 %v5522, %v5545
        %v5548 = vmul.f32 %v5524, %v5546
        %v5549 = vmul.f32 %v5526, %v5545
        %v5550 = vmul.f32 %v5528, %v5546
        %5551 = vxpose.xlu0.b32.start [1/16] %v5547, 128
        %5552 = vxpose.xlu0.b32.cont [2/16] %v5549, 128
        %5553 = vxpose.xlu0.b32.cont [3/16] 0.0, 128
        %5554 = vxpose.xlu0.b32.cont [4/16] 0.0, 128
        %5555 = vxpose.xlu0.b32.cont [5/16] 0.0, 128
        %5556 = vxpose.xlu0.b32.cont [6/16] 0.0, 128
        %5557 = vxpose.xlu0.b32.cont [7/16] 0.0, 128
        %5558 = vxpose.xlu0.b32.cont [8/16] 0.0, 128
        %5559 = vxpose.xlu0.b32.cont [9/16] 0.0, 128
        %5560 = vxpose.xlu0.b32.cont [10/16] 0.0, 128
        %5561 = vxpose.xlu0.b32.cont [11/16] 0.0, 128
        %5562 = vxpose.xlu0.b32.cont [12/16] 0.0, 128
        %5563 = vxpose.xlu0.b32.cont [13/16] 0.0, 128
        %5564 = vxpose.xlu0.b32.cont [14/16] 0.0, 128
        %5565 = vxpose.xlu0.b32.cont [15/16] 0.0, 128
        %5566 = vxpose.xlu0.b32.end [16/16] 0.0, 128
        %v5567 = vpop.trf.xlu0
        %v5568 = vpop.trf.xlu0
        %v5569 = vpop.trf.xlu0
        %v5570 = vpop.trf.xlu0
        %v5571 = vpop.trf.xlu0
        %v5572 = vpop.trf.xlu0
        %v5573 = vpop.trf.xlu0
        %v5574 = vpop.trf.xlu0
        %v5575 = vpop.trf.xlu0
        %v5576 = vpop.trf.xlu0
        %v5577 = vpop.trf.xlu0
        %v5578 = vpop.trf.xlu0
        %v5579 = vpop.trf.xlu0
        %v5580 = vpop.trf.xlu0
        %v5581 = vpop.trf.xlu0
        %v5582 = vpop.trf.xlu0
        %5583 = vxpose.xlu0.b32.start [1/16] %v5548, 128
        %5584 = vxpose.xlu0.b32.cont [2/16] %v5550, 128
        %5585 = vxpose.xlu0.b32.cont [3/16] 0.0, 128
        %5586 = vxpose.xlu0.b32.cont [4/16] 0.0, 128
        %5587 = vxpose.xlu0.b32.cont [5/16] 0.0, 128
        %5588 = vxpose.xlu0.b32.cont [6/16] 0.0, 128
        %5589 = vxpose.xlu0.b32.cont [7/16] 0.0, 128
        %5590 = vxpose.xlu0.b32.cont [8/16] 0.0, 128
        %5591 = vxpose.xlu0.b32.cont [9/16] 0.0, 128
        %5592 = vxpose.xlu0.b32.cont [10/16] 0.0, 128
        %5593 = vxpose.xlu0.b32.cont [11/16] 0.0, 128
        %5594 = vxpose.xlu0.b32.cont [12/16] 0.0, 128
        %5595 = vxpose.xlu0.b32.cont [13/16] 0.0, 128
        %5596 = vxpose.xlu0.b32.cont [14/16] 0.0, 128
        %5597 = vxpose.xlu0.b32.cont [15/16] 0.0, 128
        %5598 = vxpose.xlu0.b32.end [16/16] 0.0, 128
        %v5599 = vpop.trf.xlu0
        %v5600 = vpop.trf.xlu0
        %v5601 = vpop.trf.xlu0
        %v5602 = vpop.trf.xlu0
        %v5603 = vpop.trf.xlu0
        %v5604 = vpop.trf.xlu0
        %v5605 = vpop.trf.xlu0
        %v5606 = vpop.trf.xlu0
        %v5607 = vpop.trf.xlu0
        %v5608 = vpop.trf.xlu0
        %v5609 = vpop.trf.xlu0
        %v5610 = vpop.trf.xlu0
        %v5611 = vpop.trf.xlu0
        %v5612 = vpop.trf.xlu0
        %v5613 = vpop.trf.xlu0
        %v5614 = vpop.trf.xlu0
        %5615 = vrot.lane.b32.xlu0 %v3937, 74
        %v5616 = vpop.permute.xlu0 %5615
        %5617 = vrot.lane.b32.xlu0 %v3940, 74
        %v5618 = vpop.permute.xlu0 %5617
        %v5622 = vsel %vm1234, %v5567, 0
        %v5625 = vsel %vm1234, %v5568, 0
        %v5628 = vsel %vm1234, %v5569, 0
        %v5631 = vsel %vm1234, %v5570, 0
        %v5634 = vsel %vm1234, %v5571, 0
        %v5637 = vsel %vm1234, %v5572, 0
        %v5640 = vsel %vm1234, %v5573, 0
        %v5643 = vsel %vm1234, %v5574, 0
        %v5646 = vsel %vm1234, %v5575, 0
        %v5649 = vsel %vm1234, %v5576, 0
        %v5652 = vsel %vm1234, %v5577, 0
        %v5655 = vsel %vm1234, %v5578, 0
        %v5658 = vsel %vm1234, %v5579, 0
        %v5661 = vsel %vm1234, %v5580, 0
        %v5664 = vsel %vm1234, %v5581, 0
        %v5667 = vsel %vm1234, %v5582, 0
        %v5670 = vsel %vm1234, %v5599, 0
        %v5673 = vsel %vm1234, %v5600, 0
        %5675 = vmatpush.msra.mxu0 0.0
        %5676 = vmatpush.msra.mxu0 0.0
        %5677 = vmatpush.msra.mxu0 0.0
        %5678 = vmatpush.msra.mxu0 0.0
        %5679 = vmatpush.msra.mxu0 0.0
        %5680 = vmatpush.msra.mxu0 0.0
        %5681 = vmatpush.msra.mxu0 0.0
        %5682 = vmatpush.msra.mxu0 0.0
        %5683 = vmatpush.msra.mxu0 0.0
        %5684 = vmatpush.msra.mxu0 0.0
        %5685 = vmatpush.msra.mxu0 0.0
        %5686 = vmatpush.msra.mxu0 0.0
        %5687 = vmatpush.msra.mxu0 0.0
        %5688 = vmatpush.msra.mxu0 0.0
        %5689 = vmatpush.msra.mxu0 %v5618
        %5690 = vmatpush.msra.mxu0 %v5616
        %5691 = vmatmul.f32.gmra.mxu0 %v5622
        %v5692 = vpop.f32.mrf.mxu0
        %v5693 = vadd.f32 0.0, %v5692
        %5694 = vmatmul.f32.gmra.mxu0 %v5625
        %v5695 = vpop.f32.mrf.mxu0
        %v5696 = vadd.f32 0.0, %v5695
        %5697 = vmatmul.f32.gmra.mxu0 %v5628
        %v5698 = vpop.f32.mrf.mxu0
        %v5699 = vadd.f32 0.0, %v5698
        %5700 = vmatmul.f32.gmra.mxu0 %v5631
        %v5701 = vpop.f32.mrf.mxu0
        %v5702 = vadd.f32 0.0, %v5701
        %5703 = vmatmul.f32.gmra.mxu0 %v5634
        %v5704 = vpop.f32.mrf.mxu0
        %v5705 = vadd.f32 0.0, %v5704
        %5706 = vmatmul.f32.gmra.mxu0 %v5637
        %v5707 = vpop.f32.mrf.mxu0
        %v5708 = vadd.f32 0.0, %v5707
        %5709 = vmatmul.f32.gmra.mxu0 %v5640
        %v5710 = vpop.f32.mrf.mxu0
        %v5711 = vadd.f32 0.0, %v5710
        %5712 = vmatmul.f32.gmra.mxu0 %v5643
        %v5713 = vpop.f32.mrf.mxu0
        %v5714 = vadd.f32 0.0, %v5713
        %5715 = vmatmul.f32.gmra.mxu0 %v5646
        %v5716 = vpop.f32.mrf.mxu0
        %v5717 = vadd.f32 0.0, %v5716
        %5718 = vmatmul.f32.gmra.mxu0 %v5649
        %v5719 = vpop.f32.mrf.mxu0
        %v5720 = vadd.f32 0.0, %v5719
        %5721 = vmatmul.f32.gmra.mxu0 %v5652
        %v5722 = vpop.f32.mrf.mxu0
        %v5723 = vadd.f32 0.0, %v5722
        %5724 = vmatmul.f32.gmra.mxu0 %v5655
        %v5725 = vpop.f32.mrf.mxu0
        %v5726 = vadd.f32 0.0, %v5725
        %5727 = vmatmul.f32.gmra.mxu0 %v5658
        %v5728 = vpop.f32.mrf.mxu0
        %v5729 = vadd.f32 0.0, %v5728
        %5730 = vmatmul.f32.gmra.mxu0 %v5661
        %v5731 = vpop.f32.mrf.mxu0
        %v5732 = vadd.f32 0.0, %v5731
        %5733 = vmatmul.f32.gmra.mxu0 %v5664
        %v5734 = vpop.f32.mrf.mxu0
        %v5735 = vadd.f32 0.0, %v5734
        %5736 = vmatmul.f32.gmra.mxu0 %v5667
        %v5737 = vpop.f32.mrf.mxu0
        %v5738 = vadd.f32 0.0, %v5737
        %5739 = vmatmul.f32.gmra.mxu0 %v5670
        %v5740 = vpop.f32.mrf.mxu0
        %v5741 = vadd.f32 0.0, %v5740
        %5742 = vmatmul.f32.gmra.mxu0 %v5673
        %v5743 = vpop.f32.mrf.mxu0
        %v5744 = vadd.f32 0.0, %v5743
        %5745 = vdwg.mxu0
        %v5746 = vmul.f32 %v5693, %v374
        %v5747 = vmul.f32 %v5696, %v374
        %v5748 = vmul.f32 %v5699, %v379
        %v5749 = vmul.f32 %v5702, %v379
        %v5750 = vmul.f32 %v5705, %v384
        %v5751 = vmul.f32 %v5708, %v384
        %v5752 = vmul.f32 %v5711, %v389
        %v5753 = vmul.f32 %v5714, %v389
        %v5754 = vmul.f32 %v5717, %v394
        %v5755 = vmul.f32 %v5720, %v394
        %v5756 = vmul.f32 %v5723, %v399
        %v5757 = vmul.f32 %v5726, %v399
        %v5758 = vmul.f32 %v5729, %v404
        %v5759 = vmul.f32 %v5732, %v404
        %v5760 = vmul.f32 %v5735, %v409
        %v5761 = vmul.f32 %v5738, %v409
        %v5762 = vmul.f32 %v5741, %v414
        %v5763 = vmul.f32 %v5744, %v414
        %v5764 = vadd.f32 %v5746, %v5748
        %v5765 = vadd.f32 %v5747, %v5749
        %v5766 = vadd.f32 %v5764, %v5750
        %v5767 = vadd.f32 %v5765, %v5751
        %v5768 = vadd.f32 %v5766, %v5752
        %v5769 = vadd.f32 %v5767, %v5753
        %v5770 = vadd.f32 %v5768, %v5754
        %v5771 = vadd.f32 %v5769, %v5755
        %v5772 = vadd.f32 %v5770, %v5756
        %v5773 = vadd.f32 %v5771, %v5757
        %v5774 = vadd.f32 %v5772, %v5758
        %v5775 = vadd.f32 %v5773, %v5759
        %v5776 = vadd.f32 %v5774, %v5760
        %v5777 = vadd.f32 %v5775, %v5761
        %v5778 = vadd.f32 %v5776, %v5762
        %v5779 = vadd.f32 %v5777, %v5763
        %v5780 = vld [vmem:[%s1 + $0x11] sm:$0x1]
        %v5781 = vsub.f32 %v4128, %v4545
        %v5782 = vsub.f32 %v4129, %v4546
        %v5783 = vsub.f32 %v4130, %v4956
        %v5784 = vsub.f32 %v4131, %v4957
        %v5785 = vsub.f32 %v4132, %v5367
        %v5786 = vsub.f32 %v4133, %v5368
        %v5787 = vsub.f32 %v4134, %v5778
        %v5788 = vsub.f32 %v4135, %v5779
        %s5789 = scalar_lea.vmem %s2, 160
        %v5790 = vld [vmem:[%s5789] sm:$0xff]
        %v5791 = vld [vmem:[%s5789 + $0x8] sm:$0xff]
        %v5792 = vld [vmem:[%s5789 + $0x10] sm:$0xff]
        %v5793 = vld [vmem:[%s5789 + $0x18] sm:$0x7]
        %v5794 = vperm.slane %v5780, 0
        %v5796 = vsel %vm417, %v5781, 0
        %v5799 = vsel %vm417, %v5782, 0
        %v5802 = vsel %vm417, %v5783, 0
        %v5805 = vsel %vm417, %v5784, 0
        %v5808 = vsel %vm417, %v5785, 0
        %v5811 = vsel %vm417, %v5786, 0
        %v5814 = vsel %vm417, %v5787, 0
        %v5817 = vsel %vm417, %v5788, 0
        %v5820 = vsel %vm855, %v5793, 0
        %5822 = vmatpush.msra.mxu0 0.0
        %5823 = vmatpush.msra.mxu0 0.0
        %5824 = vmatpush.msra.mxu0 0.0
        %5825 = vmatpush.msra.mxu0 0.0
        %5826 = vmatpush.msra.mxu0 0.0
        %5827 = vmatpush.msra.mxu0 0.0
        %5828 = vmatpush.msra.mxu0 0.0
        %5829 = vmatpush.msra.mxu0 0.0
        %5830 = vmatpush.msra.mxu0 0.0
        %5831 = vmatpush.msra.mxu0 0.0
        %5832 = vmatpush.msra.mxu0 0.0
        %5833 = vmatpush.msra.mxu0 0.0
        %5834 = vmatpush.msra.mxu0 %v5820
        %5835 = vmatpush.msra.mxu0 %v5792
        %5836 = vmatpush.msra.mxu0 %v5791
        %5837 = vmatpush.msra.mxu0 %v5790
        %5838 = vmatmul.f32.gmra.mxu0 %v5796
        %v5839 = vpop.f32.mrf.mxu0
        %v5840 = vadd.f32 %v5794, %v5839
        %5841 = vmatmul.f32.gmra.mxu0 %v5799
        %v5842 = vpop.f32.mrf.mxu0
        %v5843 = vadd.f32 %v5794, %v5842
        %5844 = vmatmul.f32.gmra.mxu0 %v5802
        %v5845 = vpop.f32.mrf.mxu0
        %v5846 = vadd.f32 %v5794, %v5845
        %5847 = vmatmul.f32.gmra.mxu0 %v5805
        %v5848 = vpop.f32.mrf.mxu0
        %v5849 = vadd.f32 %v5794, %v5848
        %5850 = vmatmul.f32.gmra.mxu0 %v5808
        %v5851 = vpop.f32.mrf.mxu0
        %v5852 = vadd.f32 %v5794, %v5851
        %5853 = vmatmul.f32.gmra.mxu0 %v5811
        %v5854 = vpop.f32.mrf.mxu0
        %v5855 = vadd.f32 %v5794, %v5854
        %5856 = vmatmul.f32.gmra.mxu0 %v5814
        %v5857 = vpop.f32.mrf.mxu0
        %v5858 = vadd.f32 %v5794, %v5857
        %5859 = vmatmul.f32.gmra.mxu0 %v5817
        %v5860 = vpop.f32.mrf.mxu0
        %v5861 = vadd.f32 %v5794, %v5860
        %5862 = vdwg.mxu0
        %v5863 = vadd.f32 %v3663, %v5840
        %v5864 = vadd.f32 %v3664, %v5843
        %v5865 = vadd.f32 %v3665, %v5846
        %v5866 = vadd.f32 %v3666, %v5849
        %v5867 = vadd.f32 %v3667, %v5852
        %v5868 = vadd.f32 %v3668, %v5855
        %v5869 = vadd.f32 %v3669, %v5858
        %v5870 = vadd.f32 %v3670, %v5861
        %v5871 = vld [vmem:[%s1 + $0x12] sm:$0x1]
        %v5872 = vld [vmem:[%s1 + $0x13] sm:$0x1]
        %v5873 = vsel %vm417, %v5863, 0.0
        %5874 = vadd.xlane.f32.xlu0 %v5873
        %v5875 = vpop.xlane.xlu0 %5874
        %v5876 = vsel %vm417, %v5864, 0.0
        %5877 = vadd.xlane.f32.xlu0 %v5876
        %v5878 = vpop.xlane.xlu0 %5877
        %v5879 = vsel %vm417, %v5865, 0.0
        %5880 = vadd.xlane.f32.xlu0 %v5879
        %v5881 = vpop.xlane.xlu0 %5880
        %v5882 = vsel %vm417, %v5866, 0.0
        %5883 = vadd.xlane.f32.xlu0 %v5882
        %v5884 = vpop.xlane.xlu0 %5883
        %v5885 = vsel %vm417, %v5867, 0.0
        %5886 = vadd.xlane.f32.xlu0 %v5885
        %v5887 = vpop.xlane.xlu0 %5886
        %v5888 = vsel %vm417, %v5868, 0.0
        %5889 = vadd.xlane.f32.xlu0 %v5888
        %v5890 = vpop.xlane.xlu0 %5889
        %v5891 = vsel %vm417, %v5869, 0.0
        %5892 = vadd.xlane.f32.xlu0 %v5891
        %v5893 = vpop.xlane.xlu0 %5892
        %v5894 = vsel %vm417, %v5870, 0.0
        %5895 = vadd.xlane.f32.xlu0 %v5894
        %v5896 = vpop.xlane.xlu0 %5895
        %v5897 = vmul.f32 %v5875, %v448
        %v5898 = vmul.f32 %v5878, %v448
        %v5899 = vmul.f32 %v5881, %v448
        %v5900 = vmul.f32 %v5884, %v448
        %v5901 = vmul.f32 %v5887, %v448
        %v5902 = vmul.f32 %v5890, %v448
        %v5903 = vmul.f32 %v5893, %v448
        %v5904 = vmul.f32 %v5896, %v448
        %v5905 = vsub.f32 %v5863, %v5897
        %v5906 = vsub.f32 %v5864, %v5898
        %v5907 = vsub.f32 %v5865, %v5899
        %v5908 = vsub.f32 %v5866, %v5900
        %v5909 = vsub.f32 %v5867, %v5901
        %v5910 = vsub.f32 %v5868, %v5902
        %v5911 = vsub.f32 %v5869, %v5903
        %v5912 = vsub.f32 %v5870, %v5904
        %v5913 = vmul.f32 %v5905, %v5905
        %v5914 = vmul.f32 %v5906, %v5906
        %v5915 = vmul.f32 %v5907, %v5907
        %v5916 = vmul.f32 %v5908, %v5908
        %v5917 = vmul.f32 %v5909, %v5909
        %v5918 = vmul.f32 %v5910, %v5910
        %v5919 = vmul.f32 %v5911, %v5911
        %v5920 = vmul.f32 %v5912, %v5912
        %v5921 = vsel %vm417, %v5913, 0.0
        %5922 = vadd.xlane.f32.xlu0 %v5921
        %v5923 = vpop.xlane.xlu0 %5922
        %v5924 = vsel %vm417, %v5914, 0.0
        %5925 = vadd.xlane.f32.xlu0 %v5924
        %v5926 = vpop.xlane.xlu0 %5925
        %v5927 = vsel %vm417, %v5915, 0.0
        %5928 = vadd.xlane.f32.xlu0 %v5927
        %v5929 = vpop.xlane.xlu0 %5928
        %v5930 = vsel %vm417, %v5916, 0.0
        %5931 = vadd.xlane.f32.xlu0 %v5930
        %v5932 = vpop.xlane.xlu0 %5931
        %v5933 = vsel %vm417, %v5917, 0.0
        %5934 = vadd.xlane.f32.xlu0 %v5933
        %v5935 = vpop.xlane.xlu0 %5934
        %v5936 = vsel %vm417, %v5918, 0.0
        %5937 = vadd.xlane.f32.xlu0 %v5936
        %v5938 = vpop.xlane.xlu0 %5937
        %v5939 = vsel %vm417, %v5919, 0.0
        %5940 = vadd.xlane.f32.xlu0 %v5939
        %v5941 = vpop.xlane.xlu0 %5940
        %v5942 = vsel %vm417, %v5920, 0.0
        %5943 = vadd.xlane.f32.xlu0 %v5942
        %v5944 = vpop.xlane.xlu0 %5943
        %v5945 = vmul.f32 %v5923, %v448
        %v5946 = vmul.f32 %v5926, %v448
        %v5947 = vmul.f32 %v5929, %v448
        %v5948 = vmul.f32 %v5932, %v448
        %v5949 = vmul.f32 %v5935, %v448
        %v5950 = vmul.f32 %v5938, %v448
        %v5951 = vmul.f32 %v5941, %v448
        %v5952 = vmul.f32 %v5944, %v448
        %v5953 = vadd.f32 %v5945, 1e-06
        %v5954 = vadd.f32 %v5946, 1e-06
        %v5955 = vadd.f32 %v5947, 1e-06
        %v5956 = vadd.f32 %v5948, 1e-06
        %v5957 = vadd.f32 %v5949, 1e-06
        %v5958 = vadd.f32 %v5950, 1e-06
        %v5959 = vadd.f32 %v5951, 1e-06
        %v5960 = vadd.f32 %v5952, 1e-06
        %v5961 = vrsqrt.pop %v5953
        %v5962 = vmul.f32 %v5961, %v5953
        %v5963 = vmul.f32 %v5962, %v5961
        %v5964 = vmul.f32 0.5, %v5963
        %v5965 = vsub.f32 1.5, %v5964
        %v5966 = vmul.f32 %v5961, %v5965
        %vm5967 = vweird.f32 %v5953
        %vm5968 = vweird.f32 %v5961
        %vm5969 = vmor %vm5967, %vm5968
        %v5970 = vsel %vm5969, %v5961, %v5966
        %v5971 = vrsqrt.pop %v5954
        %v5972 = vmul.f32 %v5971, %v5954
        %v5973 = vmul.f32 %v5972, %v5971
        %v5974 = vmul.f32 0.5, %v5973
        %v5975 = vsub.f32 1.5, %v5974
        %v5976 = vmul.f32 %v5971, %v5975
        %vm5977 = vweird.f32 %v5954
        %vm5978 = vweird.f32 %v5971
        %vm5979 = vmor %vm5977, %vm5978
        %v5980 = vsel %vm5979, %v5971, %v5976
        %v5981 = vrsqrt.pop %v5955
        %v5982 = vmul.f32 %v5981, %v5955
        %v5983 = vmul.f32 %v5982, %v5981
        %v5984 = vmul.f32 0.5, %v5983
        %v5985 = vsub.f32 1.5, %v5984
        %v5986 = vmul.f32 %v5981, %v5985
        %vm5987 = vweird.f32 %v5955
        %vm5988 = vweird.f32 %v5981
        %vm5989 = vmor %vm5987, %vm5988
        %v5990 = vsel %vm5989, %v5981, %v5986
        %v5991 = vrsqrt.pop %v5956
        %v5992 = vmul.f32 %v5991, %v5956
        %v5993 = vmul.f32 %v5992, %v5991
        %v5994 = vmul.f32 0.5, %v5993
        %v5995 = vsub.f32 1.5, %v5994
        %v5996 = vmul.f32 %v5991, %v5995
        %vm5997 = vweird.f32 %v5956
        %vm5998 = vweird.f32 %v5991
        %vm5999 = vmor %vm5997, %vm5998
        %v6000 = vsel %vm5999, %v5991, %v5996
        %v6001 = vrsqrt.pop %v5957
        %v6002 = vmul.f32 %v6001, %v5957
        %v6003 = vmul.f32 %v6002, %v6001
        %v6004 = vmul.f32 0.5, %v6003
        %v6005 = vsub.f32 1.5, %v6004
        %v6006 = vmul.f32 %v6001, %v6005
        %vm6007 = vweird.f32 %v5957
        %vm6008 = vweird.f32 %v6001
        %vm6009 = vmor %vm6007, %vm6008
        %v6010 = vsel %vm6009, %v6001, %v6006
        %v6011 = vrsqrt.pop %v5958
        %v6012 = vmul.f32 %v6011, %v5958
        %v6013 = vmul.f32 %v6012, %v6011
        %v6014 = vmul.f32 0.5, %v6013
        %v6015 = vsub.f32 1.5, %v6014
        %v6016 = vmul.f32 %v6011, %v6015
        %vm6017 = vweird.f32 %v5958
        %vm6018 = vweird.f32 %v6011
        %vm6019 = vmor %vm6017, %vm6018
        %v6020 = vsel %vm6019, %v6011, %v6016
        %v6021 = vrsqrt.pop %v5959
        %v6022 = vmul.f32 %v6021, %v5959
        %v6023 = vmul.f32 %v6022, %v6021
        %v6024 = vmul.f32 0.5, %v6023
        %v6025 = vsub.f32 1.5, %v6024
        %v6026 = vmul.f32 %v6021, %v6025
        %vm6027 = vweird.f32 %v5959
        %vm6028 = vweird.f32 %v6021
        %vm6029 = vmor %vm6027, %vm6028
        %v6030 = vsel %vm6029, %v6021, %v6026
        %v6031 = vrsqrt.pop %v5960
        %v6032 = vmul.f32 %v6031, %v5960
        %v6033 = vmul.f32 %v6032, %v6031
        %v6034 = vmul.f32 0.5, %v6033
        %v6035 = vsub.f32 1.5, %v6034
        %v6036 = vmul.f32 %v6031, %v6035
        %vm6037 = vweird.f32 %v5960
        %vm6038 = vweird.f32 %v6031
        %vm6039 = vmor %vm6037, %vm6038
        %v6040 = vsel %vm6039, %v6031, %v6036
        %v6041 = vmul.f32 %v5905, %v5970
        %v6042 = vmul.f32 %v5906, %v5980
        %v6043 = vmul.f32 %v5907, %v5990
        %v6044 = vmul.f32 %v5908, %v6000
        %v6045 = vmul.f32 %v5909, %v6010
        %v6046 = vmul.f32 %v5910, %v6020
        %v6047 = vmul.f32 %v5911, %v6030
        %v6048 = vmul.f32 %v5912, %v6040
        %v6049 = vperm.slane %v5871, 0
        %v6050 = vmul.f32 %v6041, %v6049
        %v6051 = vmul.f32 %v6042, %v6049
        %v6052 = vmul.f32 %v6043, %v6049
        %v6053 = vmul.f32 %v6044, %v6049
        %v6054 = vmul.f32 %v6045, %v6049
        %v6055 = vmul.f32 %v6046, %v6049
        %v6056 = vmul.f32 %v6047, %v6049
        %v6057 = vmul.f32 %v6048, %v6049
        %v6058 = vperm.slane %v5872, 0
        %v6059 = vadd.f32 %v6050, %v6058
        %v6060 = vadd.f32 %v6051, %v6058
        %v6061 = vadd.f32 %v6052, %v6058
        %v6062 = vadd.f32 %v6053, %v6058
        %v6063 = vadd.f32 %v6054, %v6058
        %v6064 = vadd.f32 %v6055, %v6058
        %v6065 = vadd.f32 %v6056, %v6058
        %v6066 = vadd.f32 %v6057, %v6058
        %v6067 = vld [vmem:[%s1 + $0x14] sm:$0x1]
        %s6068 = scalar_lea.vmem %s4, 32
        %v6069 = vld [vmem:[%s6068] sm:$0xff]
        %v6070 = vld [vmem:[%s6068 + $0x8] sm:$0xff]
        %v6071 = vld [vmem:[%s6068 + $0x10] sm:$0xff]
        %v6072 = vld [vmem:[%s6068 + $0x18] sm:$0x7]
        %v6073 = vperm.slane %v6067, 0
        %v6075 = vsel %vm417, %v6059, 0
        %v6078 = vsel %vm417, %v6060, 0
        %v6081 = vsel %vm417, %v6061, 0
        %v6084 = vsel %vm417, %v6062, 0
        %v6087 = vsel %vm417, %v6063, 0
        %v6090 = vsel %vm417, %v6064, 0
        %v6093 = vsel %vm417, %v6065, 0
        %v6096 = vsel %vm417, %v6066, 0
        %v6099 = vsel %vm855, %v6072, 0
        %6101 = vmatpush.msra.mxu0 0.0
        %6102 = vmatpush.msra.mxu0 0.0
        %6103 = vmatpush.msra.mxu0 0.0
        %6104 = vmatpush.msra.mxu0 0.0
        %6105 = vmatpush.msra.mxu0 0.0
        %6106 = vmatpush.msra.mxu0 0.0
        %6107 = vmatpush.msra.mxu0 0.0
        %6108 = vmatpush.msra.mxu0 0.0
        %6109 = vmatpush.msra.mxu0 0.0
        %6110 = vmatpush.msra.mxu0 0.0
        %6111 = vmatpush.msra.mxu0 0.0
        %6112 = vmatpush.msra.mxu0 0.0
        %6113 = vmatpush.msra.mxu0 %v6099
        %6114 = vmatpush.msra.mxu0 %v6071
        %6115 = vmatpush.msra.mxu0 %v6070
        %6116 = vmatpush.msra.mxu0 %v6069
        %6117 = vmatmul.f32.gmra.mxu0 %v6075
        %v6118 = vpop.f32.mrf.mxu0
        %v6119 = vadd.f32 %v6073, %v6118
        %6120 = vmatmul.f32.gmra.mxu0 %v6078
        %v6121 = vpop.f32.mrf.mxu0
        %v6122 = vadd.f32 %v6073, %v6121
        %6123 = vmatmul.f32.gmra.mxu0 %v6081
        %v6124 = vpop.f32.mrf.mxu0
        %v6125 = vadd.f32 %v6073, %v6124
        %6126 = vmatmul.f32.gmra.mxu0 %v6084
        %v6127 = vpop.f32.mrf.mxu0
        %v6128 = vadd.f32 %v6073, %v6127
        %6129 = vmatmul.f32.gmra.mxu0 %v6087
        %v6130 = vpop.f32.mrf.mxu0
        %v6131 = vadd.f32 %v6073, %v6130
        %6132 = vmatmul.f32.gmra.mxu0 %v6090
        %v6133 = vpop.f32.mrf.mxu0
        %v6134 = vadd.f32 %v6073, %v6133
        %6135 = vmatmul.f32.gmra.mxu0 %v6093
        %v6136 = vpop.f32.mrf.mxu0
        %v6137 = vadd.f32 %v6073, %v6136
        %6138 = vmatmul.f32.gmra.mxu0 %v6096
        %v6139 = vpop.f32.mrf.mxu0
        %v6140 = vadd.f32 %v6073, %v6139
        %6141 = vdwg.mxu0
        %v6142 = vmul.f32 %v6119, 0.5
        %v6143 = vmul.f32 %v6122, 0.5
        %v6144 = vmul.f32 %v6125, 0.5
        %v6145 = vmul.f32 %v6128, 0.5
        %v6146 = vmul.f32 %v6131, 0.5
        %v6147 = vmul.f32 %v6134, 0.5
        %v6148 = vmul.f32 %v6137, 0.5
        %v6149 = vmul.f32 %v6140, 0.5
        %v6150 = vmul.f32 %v6119, 0.044715
        %v6151 = vmul.f32 %v6122, 0.044715
        %v6152 = vmul.f32 %v6125, 0.044715
        %v6153 = vmul.f32 %v6128, 0.044715
        %v6154 = vmul.f32 %v6131, 0.044715
        %v6155 = vmul.f32 %v6134, 0.044715
        %v6156 = vmul.f32 %v6137, 0.044715
        %v6157 = vmul.f32 %v6140, 0.044715
        %v6158 = vmul.f32 %v6150, %v6119
        %v6159 = vmul.f32 %v6151, %v6122
        %v6160 = vmul.f32 %v6152, %v6125
        %v6161 = vmul.f32 %v6153, %v6128
        %v6162 = vmul.f32 %v6154, %v6131
        %v6163 = vmul.f32 %v6155, %v6134
        %v6164 = vmul.f32 %v6156, %v6137
        %v6165 = vmul.f32 %v6157, %v6140
        %v6166 = vmul.f32 %v6158, %v6119
        %v6167 = vmul.f32 %v6159, %v6122
        %v6168 = vmul.f32 %v6160, %v6125
        %v6169 = vmul.f32 %v6161, %v6128
        %v6170 = vmul.f32 %v6162, %v6131
        %v6171 = vmul.f32 %v6163, %v6134
        %v6172 = vmul.f32 %v6164, %v6137
        %v6173 = vmul.f32 %v6165, %v6140
        %v6174 = vadd.f32 %v6119, %v6166
        %v6175 = vadd.f32 %v6122, %v6167
        %v6176 = vadd.f32 %v6125, %v6168
        %v6177 = vadd.f32 %v6128, %v6169
        %v6178 = vadd.f32 %v6131, %v6170
        %v6179 = vadd.f32 %v6134, %v6171
        %v6180 = vadd.f32 %v6137, %v6172
        %v6181 = vadd.f32 %v6140, %v6173
        %v6182 = vmul.f32 %v6174, 0.7978846
        %v6183 = vmul.f32 %v6175, 0.7978846
        %v6184 = vmul.f32 %v6176, 0.7978846
        %v6185 = vmul.f32 %v6177, 0.7978846
        %v6186 = vmul.f32 %v6178, 0.7978846
        %v6187 = vmul.f32 %v6179, 0.7978846
        %v6188 = vmul.f32 %v6180, 0.7978846
        %v6189 = vmul.f32 %v6181, 0.7978846
        %v6190 = vtanh.pop %v6182
        %v6191 = vtanh.pop %v6183
        %v6192 = vtanh.pop %v6184
        %v6193 = vtanh.pop %v6185
        %v6194 = vtanh.pop %v6186
        %v6195 = vtanh.pop %v6187
        %v6196 = vtanh.pop %v6188
        %v6197 = vtanh.pop %v6189
        %v6198 = vadd.f32 %v6190, 1.0
        %v6199 = vadd.f32 %v6191, 1.0
        %v6200 = vadd.f32 %v6192, 1.0
        %v6201 = vadd.f32 %v6193, 1.0
        %v6202 = vadd.f32 %v6194, 1.0
        %v6203 = vadd.f32 %v6195, 1.0
        %v6204 = vadd.f32 %v6196, 1.0
        %v6205 = vadd.f32 %v6197, 1.0
        %v6206 = vmul.f32 %v6142, %v6198
        %v6207 = vmul.f32 %v6143, %v6199
        %v6208 = vmul.f32 %v6144, %v6200
        %v6209 = vmul.f32 %v6145, %v6201
        %v6210 = vmul.f32 %v6146, %v6202
        %v6211 = vmul.f32 %v6147, %v6203
        %v6212 = vmul.f32 %v6148, %v6204
        %v6213 = vmul.f32 %v6149, %v6205
        %v6214 = vld [vmem:[%s1 + $0x15] sm:$0x1]
        %s6215 = scalar_lea.vmem %s5, 56
        %v6216 = vld [vmem:[%s6215] sm:$0xff]
        %v6217 = vld [vmem:[%s6215 + $0x8] sm:$0xff]
        %v6218 = vld [vmem:[%s6215 + $0x10] sm:$0xff]
        %v6219 = vld [vmem:[%s6215 + $0x18] sm:$0xff]
        %v6220 = vld [vmem:[%s6215 + $0x20] sm:$0xff]
        %v6221 = vld [vmem:[%s6215 + $0x28] sm:$0xff]
        %v6222 = vld [vmem:[%s6215 + $0x30] sm:$0x3f]
        %v6223 = vperm.slane %v6214, 0
        %v6225 = vsel %vm3182, %v6206, 0
        %v6228 = vsel %vm3182, %v6207, 0
        %v6231 = vsel %vm3182, %v6208, 0
        %v6234 = vsel %vm3182, %v6209, 0
        %v6237 = vsel %vm3182, %v6210, 0
        %v6240 = vsel %vm3182, %v6211, 0
        %v6243 = vsel %vm3182, %v6212, 0
        %v6246 = vsel %vm3182, %v6213, 0
        %v6249 = vsel %vm3207, %v6222, 0
        %6251 = vmatpush.msra.mxu0 0.0
        %6252 = vmatpush.msra.mxu0 0.0
        %6253 = vmatpush.msra.mxu0 0.0
        %6254 = vmatpush.msra.mxu0 0.0
        %6255 = vmatpush.msra.mxu0 0.0
        %6256 = vmatpush.msra.mxu0 0.0
        %6257 = vmatpush.msra.mxu0 0.0
        %6258 = vmatpush.msra.mxu0 0.0
        %6259 = vmatpush.msra.mxu0 0.0
        %6260 = vmatpush.msra.mxu0 %v6249
        %6261 = vmatpush.msra.mxu0 %v6221
        %6262 = vmatpush.msra.mxu0 %v6220
        %6263 = vmatpush.msra.mxu0 %v6219
        %6264 = vmatpush.msra.mxu0 %v6218
        %6265 = vmatpush.msra.mxu0 %v6217
        %6266 = vmatpush.msra.mxu0 %v6216
        %6267 = vmatmul.f32.gmra.mxu0 %v6225
        %v6268 = vpop.f32.mrf.mxu0
        %v6269 = vadd.f32 %v6223, %v6268
        %6270 = vmatmul.f32.gmra.mxu0 %v6228
        %v6271 = vpop.f32.mrf.mxu0
        %v6272 = vadd.f32 %v6223, %v6271
        %6273 = vmatmul.f32.gmra.mxu0 %v6231
        %v6274 = vpop.f32.mrf.mxu0
        %v6275 = vadd.f32 %v6223, %v6274
        %6276 = vmatmul.f32.gmra.mxu0 %v6234
        %v6277 = vpop.f32.mrf.mxu0
        %v6278 = vadd.f32 %v6223, %v6277
        %6279 = vmatmul.f32.gmra.mxu0 %v6237
        %v6280 = vpop.f32.mrf.mxu0
        %v6281 = vadd.f32 %v6223, %v6280
        %6282 = vmatmul.f32.gmra.mxu0 %v6240
        %v6283 = vpop.f32.mrf.mxu0
        %v6284 = vadd.f32 %v6223, %v6283
        %6285 = vmatmul.f32.gmra.mxu0 %v6243
        %v6286 = vpop.f32.mrf.mxu0
        %v6287 = vadd.f32 %v6223, %v6286
        %6288 = vmatmul.f32.gmra.mxu0 %v6246
        %v6289 = vpop.f32.mrf.mxu0
        %v6290 = vadd.f32 %v6223, %v6289
        %6291 = vdwg.mxu0
        %v6292 = vadd.f32 %v5863, %v6269
        %v6293 = vadd.f32 %v5864, %v6272
        %v6294 = vadd.f32 %v5865, %v6275
        %v6295 = vadd.f32 %v5866, %v6278
        %v6296 = vadd.f32 %v5867, %v6281
        %v6297 = vadd.f32 %v5868, %v6284
        %v6298 = vadd.f32 %v5869, %v6287
        %v6299 = vadd.f32 %v5870, %v6290
        %v6300 = vld [vmem:[%s1 + $0x16] sm:$0x1]
        %v6301 = vld [vmem:[%s1 + $0x17] sm:$0x1]
        %v6302 = vsel %vm417, %v6292, 0.0
        %6303 = vadd.xlane.f32.xlu0 %v6302
        %v6304 = vpop.xlane.xlu0 %6303
        %v6305 = vsel %vm417, %v6293, 0.0
        %6306 = vadd.xlane.f32.xlu0 %v6305
        %v6307 = vpop.xlane.xlu0 %6306
        %v6308 = vsel %vm417, %v6294, 0.0
        %6309 = vadd.xlane.f32.xlu0 %v6308
        %v6310 = vpop.xlane.xlu0 %6309
        %v6311 = vsel %vm417, %v6295, 0.0
        %6312 = vadd.xlane.f32.xlu0 %v6311
        %v6313 = vpop.xlane.xlu0 %6312
        %v6314 = vsel %vm417, %v6296, 0.0
        %6315 = vadd.xlane.f32.xlu0 %v6314
        %v6316 = vpop.xlane.xlu0 %6315
        %v6317 = vsel %vm417, %v6297, 0.0
        %6318 = vadd.xlane.f32.xlu0 %v6317
        %v6319 = vpop.xlane.xlu0 %6318
        %v6320 = vsel %vm417, %v6298, 0.0
        %6321 = vadd.xlane.f32.xlu0 %v6320
        %v6322 = vpop.xlane.xlu0 %6321
        %v6323 = vsel %vm417, %v6299, 0.0
        %6324 = vadd.xlane.f32.xlu0 %v6323
        %v6325 = vpop.xlane.xlu0 %6324
        %v6326 = vmul.f32 %v6304, %v448
        %v6327 = vmul.f32 %v6307, %v448
        %v6328 = vmul.f32 %v6310, %v448
        %v6329 = vmul.f32 %v6313, %v448
        %v6330 = vmul.f32 %v6316, %v448
        %v6331 = vmul.f32 %v6319, %v448
        %v6332 = vmul.f32 %v6322, %v448
        %v6333 = vmul.f32 %v6325, %v448
        %v6334 = vsub.f32 %v6292, %v6326
        %v6335 = vsub.f32 %v6293, %v6327
        %v6336 = vsub.f32 %v6294, %v6328
        %v6337 = vsub.f32 %v6295, %v6329
        %v6338 = vsub.f32 %v6296, %v6330
        %v6339 = vsub.f32 %v6297, %v6331
        %v6340 = vsub.f32 %v6298, %v6332
        %v6341 = vsub.f32 %v6299, %v6333
        %v6342 = vmul.f32 %v6334, %v6334
        %v6343 = vmul.f32 %v6335, %v6335
        %v6344 = vmul.f32 %v6336, %v6336
        %v6345 = vmul.f32 %v6337, %v6337
        %v6346 = vmul.f32 %v6338, %v6338
        %v6347 = vmul.f32 %v6339, %v6339
        %v6348 = vmul.f32 %v6340, %v6340
        %v6349 = vmul.f32 %v6341, %v6341
        %v6350 = vsel %vm417, %v6342, 0.0
        %6351 = vadd.xlane.f32.xlu0 %v6350
        %v6352 = vpop.xlane.xlu0 %6351
        %v6353 = vsel %vm417, %v6343, 0.0
        %6354 = vadd.xlane.f32.xlu0 %v6353
        %v6355 = vpop.xlane.xlu0 %6354
        %v6356 = vsel %vm417, %v6344, 0.0
        %6357 = vadd.xlane.f32.xlu0 %v6356
        %v6358 = vpop.xlane.xlu0 %6357
        %v6359 = vsel %vm417, %v6345, 0.0
        %6360 = vadd.xlane.f32.xlu0 %v6359
        %v6361 = vpop.xlane.xlu0 %6360
        %v6362 = vsel %vm417, %v6346, 0.0
        %6363 = vadd.xlane.f32.xlu0 %v6362
        %v6364 = vpop.xlane.xlu0 %6363
        %v6365 = vsel %vm417, %v6347, 0.0
        %6366 = vadd.xlane.f32.xlu0 %v6365
        %v6367 = vpop.xlane.xlu0 %6366
        %v6368 = vsel %vm417, %v6348, 0.0
        %6369 = vadd.xlane.f32.xlu0 %v6368
        %v6370 = vpop.xlane.xlu0 %6369
        %v6371 = vsel %vm417, %v6349, 0.0
        %6372 = vadd.xlane.f32.xlu0 %v6371
        %v6373 = vpop.xlane.xlu0 %6372
        %v6374 = vmul.f32 %v6352, %v448
        %v6375 = vmul.f32 %v6355, %v448
        %v6376 = vmul.f32 %v6358, %v448
        %v6377 = vmul.f32 %v6361, %v448
        %v6378 = vmul.f32 %v6364, %v448
        %v6379 = vmul.f32 %v6367, %v448
        %v6380 = vmul.f32 %v6370, %v448
        %v6381 = vmul.f32 %v6373, %v448
        %v6382 = vadd.f32 %v6374, 1e-06
        %v6383 = vadd.f32 %v6375, 1e-06
        %v6384 = vadd.f32 %v6376, 1e-06
        %v6385 = vadd.f32 %v6377, 1e-06
        %v6386 = vadd.f32 %v6378, 1e-06
        %v6387 = vadd.f32 %v6379, 1e-06
        %v6388 = vadd.f32 %v6380, 1e-06
        %v6389 = vadd.f32 %v6381, 1e-06
        %v6390 = vrsqrt.pop %v6382
        %v6391 = vmul.f32 %v6390, %v6382
        %v6392 = vmul.f32 %v6391, %v6390
        %v6393 = vmul.f32 0.5, %v6392
        %v6394 = vsub.f32 1.5, %v6393
        %v6395 = vmul.f32 %v6390, %v6394
        %vm6396 = vweird.f32 %v6382
        %vm6397 = vweird.f32 %v6390
        %vm6398 = vmor %vm6396, %vm6397
        %v6399 = vsel %vm6398, %v6390, %v6395
        %v6400 = vrsqrt.pop %v6383
        %v6401 = vmul.f32 %v6400, %v6383
        %v6402 = vmul.f32 %v6401, %v6400
        %v6403 = vmul.f32 0.5, %v6402
        %v6404 = vsub.f32 1.5, %v6403
        %v6405 = vmul.f32 %v6400, %v6404
        %vm6406 = vweird.f32 %v6383
        %vm6407 = vweird.f32 %v6400
        %vm6408 = vmor %vm6406, %vm6407
        %v6409 = vsel %vm6408, %v6400, %v6405
        %v6410 = vrsqrt.pop %v6384
        %v6411 = vmul.f32 %v6410, %v6384
        %v6412 = vmul.f32 %v6411, %v6410
        %v6413 = vmul.f32 0.5, %v6412
        %v6414 = vsub.f32 1.5, %v6413
        %v6415 = vmul.f32 %v6410, %v6414
        %vm6416 = vweird.f32 %v6384
        %vm6417 = vweird.f32 %v6410
        %vm6418 = vmor %vm6416, %vm6417
        %v6419 = vsel %vm6418, %v6410, %v6415
        %v6420 = vrsqrt.pop %v6385
        %v6421 = vmul.f32 %v6420, %v6385
        %v6422 = vmul.f32 %v6421, %v6420
        %v6423 = vmul.f32 0.5, %v6422
        %v6424 = vsub.f32 1.5, %v6423
        %v6425 = vmul.f32 %v6420, %v6424
        %vm6426 = vweird.f32 %v6385
        %vm6427 = vweird.f32 %v6420
        %vm6428 = vmor %vm6426, %vm6427
        %v6429 = vsel %vm6428, %v6420, %v6425
        %v6430 = vrsqrt.pop %v6386
        %v6431 = vmul.f32 %v6430, %v6386
        %v6432 = vmul.f32 %v6431, %v6430
        %v6433 = vmul.f32 0.5, %v6432
        %v6434 = vsub.f32 1.5, %v6433
        %v6435 = vmul.f32 %v6430, %v6434
        %vm6436 = vweird.f32 %v6386
        %vm6437 = vweird.f32 %v6430
        %vm6438 = vmor %vm6436, %vm6437
        %v6439 = vsel %vm6438, %v6430, %v6435
        %v6440 = vrsqrt.pop %v6387
        %v6441 = vmul.f32 %v6440, %v6387
        %v6442 = vmul.f32 %v6441, %v6440
        %v6443 = vmul.f32 0.5, %v6442
        %v6444 = vsub.f32 1.5, %v6443
        %v6445 = vmul.f32 %v6440, %v6444
        %vm6446 = vweird.f32 %v6387
        %vm6447 = vweird.f32 %v6440
        %vm6448 = vmor %vm6446, %vm6447
        %v6449 = vsel %vm6448, %v6440, %v6445
        %v6450 = vrsqrt.pop %v6388
        %v6451 = vmul.f32 %v6450, %v6388
        %v6452 = vmul.f32 %v6451, %v6450
        %v6453 = vmul.f32 0.5, %v6452
        %v6454 = vsub.f32 1.5, %v6453
        %v6455 = vmul.f32 %v6450, %v6454
        %vm6456 = vweird.f32 %v6388
        %vm6457 = vweird.f32 %v6450
        %vm6458 = vmor %vm6456, %vm6457
        %v6459 = vsel %vm6458, %v6450, %v6455
        %v6460 = vrsqrt.pop %v6389
        %v6461 = vmul.f32 %v6460, %v6389
        %v6462 = vmul.f32 %v6461, %v6460
        %v6463 = vmul.f32 0.5, %v6462
        %v6464 = vsub.f32 1.5, %v6463
        %v6465 = vmul.f32 %v6460, %v6464
        %vm6466 = vweird.f32 %v6389
        %vm6467 = vweird.f32 %v6460
        %vm6468 = vmor %vm6466, %vm6467
        %v6469 = vsel %vm6468, %v6460, %v6465
        %v6470 = vmul.f32 %v6334, %v6399
        %v6471 = vmul.f32 %v6335, %v6409
        %v6472 = vmul.f32 %v6336, %v6419
        %v6473 = vmul.f32 %v6337, %v6429
        %v6474 = vmul.f32 %v6338, %v6439
        %v6475 = vmul.f32 %v6339, %v6449
        %v6476 = vmul.f32 %v6340, %v6459
        %v6477 = vmul.f32 %v6341, %v6469
        %v6478 = vperm.slane %v6300, 0
        %v6479 = vmul.f32 %v6470, %v6478
        %v6480 = vmul.f32 %v6471, %v6478
        %v6481 = vmul.f32 %v6472, %v6478
        %v6482 = vmul.f32 %v6473, %v6478
        %v6483 = vmul.f32 %v6474, %v6478
        %v6484 = vmul.f32 %v6475, %v6478
        %v6485 = vmul.f32 %v6476, %v6478
        %v6486 = vmul.f32 %v6477, %v6478
        %v6487 = vperm.slane %v6301, 0
        %v6488 = vadd.f32 %v6479, %v6487
        %v6489 = vadd.f32 %v6480, %v6487
        %v6490 = vadd.f32 %v6481, %v6487
        %v6491 = vadd.f32 %v6482, %v6487
        %v6492 = vadd.f32 %v6483, %v6487
        %v6493 = vadd.f32 %v6484, %v6487
        %v6494 = vadd.f32 %v6485, %v6487
        %v6495 = vadd.f32 %v6486, %v6487
        %v6496 = vadd.f32 %v3456, %v6488
        %v6497 = vadd.f32 %v3457, %v6489
        %v6498 = vadd.f32 %v3458, %v6490
        %v6499 = vadd.f32 %v3459, %v6491
        %v6500 = vadd.f32 %v3460, %v6492
        %v6501 = vadd.f32 %v3461, %v6493
        %v6502 = vadd.f32 %v3462, %v6494
        %v6503 = vadd.f32 %v3463, %v6495
        %v6504 = vld [vmem:[%s1 + $0x18] sm:$0x1]
        %v6505 = vld [vmem:[%s1 + $0x19] sm:$0x1]
        %v6506 = vsel %vm417, %v6496, 0.0
        %6507 = vadd.xlane.f32.xlu0 %v6506
        %v6508 = vpop.xlane.xlu0 %6507
        %v6509 = vsel %vm417, %v6497, 0.0
        %6510 = vadd.xlane.f32.xlu0 %v6509
        %v6511 = vpop.xlane.xlu0 %6510
        %v6512 = vsel %vm417, %v6498, 0.0
        %6513 = vadd.xlane.f32.xlu0 %v6512
        %v6514 = vpop.xlane.xlu0 %6513
        %v6515 = vsel %vm417, %v6499, 0.0
        %6516 = vadd.xlane.f32.xlu0 %v6515
        %v6517 = vpop.xlane.xlu0 %6516
        %v6518 = vsel %vm417, %v6500, 0.0
        %6519 = vadd.xlane.f32.xlu0 %v6518
        %v6520 = vpop.xlane.xlu0 %6519
        %v6521 = vsel %vm417, %v6501, 0.0
        %6522 = vadd.xlane.f32.xlu0 %v6521
        %v6523 = vpop.xlane.xlu0 %6522
        %v6524 = vsel %vm417, %v6502, 0.0
        %6525 = vadd.xlane.f32.xlu0 %v6524
        %v6526 = vpop.xlane.xlu0 %6525
        %v6527 = vsel %vm417, %v6503, 0.0
        %6528 = vadd.xlane.f32.xlu0 %v6527
        %v6529 = vpop.xlane.xlu0 %6528
        %v6530 = vmul.f32 %v6508, %v448
        %v6531 = vmul.f32 %v6511, %v448
        %v6532 = vmul.f32 %v6514, %v448
        %v6533 = vmul.f32 %v6517, %v448
        %v6534 = vmul.f32 %v6520, %v448
        %v6535 = vmul.f32 %v6523, %v448
        %v6536 = vmul.f32 %v6526, %v448
        %v6537 = vmul.f32 %v6529, %v448
        %v6538 = vsub.f32 %v6496, %v6530
        %v6539 = vsub.f32 %v6497, %v6531
        %v6540 = vsub.f32 %v6498, %v6532
        %v6541 = vsub.f32 %v6499, %v6533
        %v6542 = vsub.f32 %v6500, %v6534
        %v6543 = vsub.f32 %v6501, %v6535
        %v6544 = vsub.f32 %v6502, %v6536
        %v6545 = vsub.f32 %v6503, %v6537
        %v6546 = vmul.f32 %v6538, %v6538
        %v6547 = vmul.f32 %v6539, %v6539
        %v6548 = vmul.f32 %v6540, %v6540
        %v6549 = vmul.f32 %v6541, %v6541
        %v6550 = vmul.f32 %v6542, %v6542
        %v6551 = vmul.f32 %v6543, %v6543
        %v6552 = vmul.f32 %v6544, %v6544
        %v6553 = vmul.f32 %v6545, %v6545
        %v6554 = vsel %vm417, %v6546, 0.0
        %6555 = vadd.xlane.f32.xlu0 %v6554
        %v6556 = vpop.xlane.xlu0 %6555
        %v6557 = vsel %vm417, %v6547, 0.0
        %6558 = vadd.xlane.f32.xlu0 %v6557
        %v6559 = vpop.xlane.xlu0 %6558
        %v6560 = vsel %vm417, %v6548, 0.0
        %6561 = vadd.xlane.f32.xlu0 %v6560
        %v6562 = vpop.xlane.xlu0 %6561
        %v6563 = vsel %vm417, %v6549, 0.0
        %6564 = vadd.xlane.f32.xlu0 %v6563
        %v6565 = vpop.xlane.xlu0 %6564
        %v6566 = vsel %vm417, %v6550, 0.0
        %6567 = vadd.xlane.f32.xlu0 %v6566
        %v6568 = vpop.xlane.xlu0 %6567
        %v6569 = vsel %vm417, %v6551, 0.0
        %6570 = vadd.xlane.f32.xlu0 %v6569
        %v6571 = vpop.xlane.xlu0 %6570
        %v6572 = vsel %vm417, %v6552, 0.0
        %6573 = vadd.xlane.f32.xlu0 %v6572
        %v6574 = vpop.xlane.xlu0 %6573
        %v6575 = vsel %vm417, %v6553, 0.0
        %6576 = vadd.xlane.f32.xlu0 %v6575
        %v6577 = vpop.xlane.xlu0 %6576
        %v6578 = vmul.f32 %v6556, %v448
        %v6579 = vmul.f32 %v6559, %v448
        %v6580 = vmul.f32 %v6562, %v448
        %v6581 = vmul.f32 %v6565, %v448
        %v6582 = vmul.f32 %v6568, %v448
        %v6583 = vmul.f32 %v6571, %v448
        %v6584 = vmul.f32 %v6574, %v448
        %v6585 = vmul.f32 %v6577, %v448
        %v6586 = vadd.f32 %v6578, 1e-05
        %v6587 = vadd.f32 %v6579, 1e-05
        %v6588 = vadd.f32 %v6580, 1e-05
        %v6589 = vadd.f32 %v6581, 1e-05
        %v6590 = vadd.f32 %v6582, 1e-05
        %v6591 = vadd.f32 %v6583, 1e-05
        %v6592 = vadd.f32 %v6584, 1e-05
        %v6593 = vadd.f32 %v6585, 1e-05
        %v6594 = vrsqrt.pop %v6586
        %v6595 = vmul.f32 %v6594, %v6586
        %v6596 = vmul.f32 %v6595, %v6594
        %v6597 = vmul.f32 0.5, %v6596
        %v6598 = vsub.f32 1.5, %v6597
        %v6599 = vmul.f32 %v6594, %v6598
        %vm6600 = vweird.f32 %v6586
        %vm6601 = vweird.f32 %v6594
        %vm6602 = vmor %vm6600, %vm6601
        %v6603 = vsel %vm6602, %v6594, %v6599
        %v6604 = vrsqrt.pop %v6587
        %v6605 = vmul.f32 %v6604, %v6587
        %v6606 = vmul.f32 %v6605, %v6604
        %v6607 = vmul.f32 0.5, %v6606
        %v6608 = vsub.f32 1.5, %v6607
        %v6609 = vmul.f32 %v6604, %v6608
        %vm6610 = vweird.f32 %v6587
        %vm6611 = vweird.f32 %v6604
        %vm6612 = vmor %vm6610, %vm6611
        %v6613 = vsel %vm6612, %v6604, %v6609
        %v6614 = vrsqrt.pop %v6588
        %v6615 = vmul.f32 %v6614, %v6588
        %v6616 = vmul.f32 %v6615, %v6614
        %v6617 = vmul.f32 0.5, %v6616
        %v6618 = vsub.f32 1.5, %v6617
        %v6619 = vmul.f32 %v6614, %v6618
        %vm6620 = vweird.f32 %v6588
        %vm6621 = vweird.f32 %v6614
        %vm6622 = vmor %vm6620, %vm6621
        %v6623 = vsel %vm6622, %v6614, %v6619
        %v6624 = vrsqrt.pop %v6589
        %v6625 = vmul.f32 %v6624, %v6589
        %v6626 = vmul.f32 %v6625, %v6624
        %v6627 = vmul.f32 0.5, %v6626
        %v6628 = vsub.f32 1.5, %v6627
        %v6629 = vmul.f32 %v6624, %v6628
        %vm6630 = vweird.f32 %v6589
        %vm6631 = vweird.f32 %v6624
        %vm6632 = vmor %vm6630, %vm6631
        %v6633 = vsel %vm6632, %v6624, %v6629
        %v6634 = vrsqrt.pop %v6590
        %v6635 = vmul.f32 %v6634, %v6590
        %v6636 = vmul.f32 %v6635, %v6634
        %v6637 = vmul.f32 0.5, %v6636
        %v6638 = vsub.f32 1.5, %v6637
        %v6639 = vmul.f32 %v6634, %v6638
        %vm6640 = vweird.f32 %v6590
        %vm6641 = vweird.f32 %v6634
        %vm6642 = vmor %vm6640, %vm6641
        %v6643 = vsel %vm6642, %v6634, %v6639
        %v6644 = vrsqrt.pop %v6591
        %v6645 = vmul.f32 %v6644, %v6591
        %v6646 = vmul.f32 %v6645, %v6644
        %v6647 = vmul.f32 0.5, %v6646
        %v6648 = vsub.f32 1.5, %v6647
        %v6649 = vmul.f32 %v6644, %v6648
        %vm6650 = vweird.f32 %v6591
        %vm6651 = vweird.f32 %v6644
        %vm6652 = vmor %vm6650, %vm6651
        %v6653 = vsel %vm6652, %v6644, %v6649
        %v6654 = vrsqrt.pop %v6592
        %v6655 = vmul.f32 %v6654, %v6592
        %v6656 = vmul.f32 %v6655, %v6654
        %v6657 = vmul.f32 0.5, %v6656
        %v6658 = vsub.f32 1.5, %v6657
        %v6659 = vmul.f32 %v6654, %v6658
        %vm6660 = vweird.f32 %v6592
        %vm6661 = vweird.f32 %v6654
        %vm6662 = vmor %vm6660, %vm6661
        %v6663 = vsel %vm6662, %v6654, %v6659
        %v6664 = vrsqrt.pop %v6593
        %v6665 = vmul.f32 %v6664, %v6593
        %v6666 = vmul.f32 %v6665, %v6664
        %v6667 = vmul.f32 0.5, %v6666
        %v6668 = vsub.f32 1.5, %v6667
        %v6669 = vmul.f32 %v6664, %v6668
        %vm6670 = vweird.f32 %v6593
        %vm6671 = vweird.f32 %v6664
        %vm6672 = vmor %vm6670, %vm6671
        %v6673 = vsel %vm6672, %v6664, %v6669
        %v6674 = vmul.f32 %v6538, %v6603
        %v6675 = vmul.f32 %v6539, %v6613
        %v6676 = vmul.f32 %v6540, %v6623
        %v6677 = vmul.f32 %v6541, %v6633
        %v6678 = vmul.f32 %v6542, %v6643
        %v6679 = vmul.f32 %v6543, %v6653
        %v6680 = vmul.f32 %v6544, %v6663
        %v6681 = vmul.f32 %v6545, %v6673
        %v6682 = vperm.slane %v6504, 0
        %v6683 = vmul.f32 %v6674, %v6682
        %v6684 = vmul.f32 %v6675, %v6682
        %v6685 = vmul.f32 %v6676, %v6682
        %v6686 = vmul.f32 %v6677, %v6682
        %v6687 = vmul.f32 %v6678, %v6682
        %v6688 = vmul.f32 %v6679, %v6682
        %v6689 = vmul.f32 %v6680, %v6682
        %v6690 = vmul.f32 %v6681, %v6682
        %v6691 = vperm.slane %v6505, 0
        %v6692 = vadd.f32 %v6683, %v6691
        %v6693 = vadd.f32 %v6684, %v6691
        %v6694 = vadd.f32 %v6685, %v6691
        %v6695 = vadd.f32 %v6686, %v6691
        %v6696 = vadd.f32 %v6687, %v6691
        %v6697 = vadd.f32 %v6688, %v6691
        %v6698 = vadd.f32 %v6689, %v6691
        %v6699 = vadd.f32 %v6690, %v6691
        %s6700 = scalar_lea.vmem %s6, 32
        %v6701 = vld [vmem:[%s6700] sm:$0xff]
        %v6702 = vld [vmem:[%s6700 + $0x8] sm:$0xff]
        %v6703 = vadd.f32 %v6692, %v6701
        %v6704 = vadd.f32 %v6693, %v6702
        %v6705 = vadd.f32 %v6694, %v6701
        %v6706 = vadd.f32 %v6695, %v6702
        %v6707 = vadd.f32 %v6696, %v6701
        %v6708 = vadd.f32 %v6697, %v6702
        %v6709 = vadd.f32 %v6698, %v6701
        %v6710 = vadd.f32 %v6699, %v6702
        %v6711 = vld [vmem:[%s1 + $0x1a] sm:$0x1]
        %v6712 = vld [vmem:[%s1 + $0x1b] sm:$0x1]
        %v6713 = vsel %vm417, %v6703, 0.0
        %6714 = vadd.xlane.f32.xlu0 %v6713
        %v6715 = vpop.xlane.xlu0 %6714
        %v6716 = vsel %vm417, %v6704, 0.0
        %6717 = vadd.xlane.f32.xlu0 %v6716
        %v6718 = vpop.xlane.xlu0 %6717
        %v6719 = vsel %vm417, %v6705, 0.0
        %6720 = vadd.xlane.f32.xlu0 %v6719
        %v6721 = vpop.xlane.xlu0 %6720
        %v6722 = vsel %vm417, %v6706, 0.0
        %6723 = vadd.xlane.f32.xlu0 %v6722
        %v6724 = vpop.xlane.xlu0 %6723
        %v6725 = vsel %vm417, %v6707, 0.0
        %6726 = vadd.xlane.f32.xlu0 %v6725
        %v6727 = vpop.xlane.xlu0 %6726
        %v6728 = vsel %vm417, %v6708, 0.0
        %6729 = vadd.xlane.f32.xlu0 %v6728
        %v6730 = vpop.xlane.xlu0 %6729
        %v6731 = vsel %vm417, %v6709, 0.0
        %6732 = vadd.xlane.f32.xlu0 %v6731
        %v6733 = vpop.xlane.xlu0 %6732
        %v6734 = vsel %vm417, %v6710, 0.0
        %6735 = vadd.xlane.f32.xlu0 %v6734
        %v6736 = vpop.xlane.xlu0 %6735
        %v6737 = vmul.f32 %v6715, %v448
        %v6738 = vmul.f32 %v6718, %v448
        %v6739 = vmul.f32 %v6721, %v448
        %v6740 = vmul.f32 %v6724, %v448
        %v6741 = vmul.f32 %v6727, %v448
        %v6742 = vmul.f32 %v6730, %v448
        %v6743 = vmul.f32 %v6733, %v448
        %v6744 = vmul.f32 %v6736, %v448
        %v6745 = vsub.f32 %v6703, %v6737
        %v6746 = vsub.f32 %v6704, %v6738
        %v6747 = vsub.f32 %v6705, %v6739
        %v6748 = vsub.f32 %v6706, %v6740
        %v6749 = vsub.f32 %v6707, %v6741
        %v6750 = vsub.f32 %v6708, %v6742
        %v6751 = vsub.f32 %v6709, %v6743
        %v6752 = vsub.f32 %v6710, %v6744
        %v6753 = vmul.f32 %v6745, %v6745
        %v6754 = vmul.f32 %v6746, %v6746
        %v6755 = vmul.f32 %v6747, %v6747
        %v6756 = vmul.f32 %v6748, %v6748
        %v6757 = vmul.f32 %v6749, %v6749
        %v6758 = vmul.f32 %v6750, %v6750
        %v6759 = vmul.f32 %v6751, %v6751
        %v6760 = vmul.f32 %v6752, %v6752
        %v6761 = vsel %vm417, %v6753, 0.0
        %6762 = vadd.xlane.f32.xlu0 %v6761
        %v6763 = vpop.xlane.xlu0 %6762
        %v6764 = vsel %vm417, %v6754, 0.0
        %6765 = vadd.xlane.f32.xlu0 %v6764
        %v6766 = vpop.xlane.xlu0 %6765
        %v6767 = vsel %vm417, %v6755, 0.0
        %6768 = vadd.xlane.f32.xlu0 %v6767
        %v6769 = vpop.xlane.xlu0 %6768
        %v6770 = vsel %vm417, %v6756, 0.0
        %6771 = vadd.xlane.f32.xlu0 %v6770
        %v6772 = vpop.xlane.xlu0 %6771
        %v6773 = vsel %vm417, %v6757, 0.0
        %6774 = vadd.xlane.f32.xlu0 %v6773
        %v6775 = vpop.xlane.xlu0 %6774
        %v6776 = vsel %vm417, %v6758, 0.0
        %6777 = vadd.xlane.f32.xlu0 %v6776
        %v6778 = vpop.xlane.xlu0 %6777
        %v6779 = vsel %vm417, %v6759, 0.0
        %6780 = vadd.xlane.f32.xlu0 %v6779
        %v6781 = vpop.xlane.xlu0 %6780
        %v6782 = vsel %vm417, %v6760, 0.0
        %6783 = vadd.xlane.f32.xlu0 %v6782
        %v6784 = vpop.xlane.xlu0 %6783
        %v6785 = vmul.f32 %v6763, %v448
        %v6786 = vmul.f32 %v6766, %v448
        %v6787 = vmul.f32 %v6769, %v448
        %v6788 = vmul.f32 %v6772, %v448
        %v6789 = vmul.f32 %v6775, %v448
        %v6790 = vmul.f32 %v6778, %v448
        %v6791 = vmul.f32 %v6781, %v448
        %v6792 = vmul.f32 %v6784, %v448
        %v6793 = vadd.f32 %v6785, 1e-06
        %v6794 = vadd.f32 %v6786, 1e-06
        %v6795 = vadd.f32 %v6787, 1e-06
        %v6796 = vadd.f32 %v6788, 1e-06
        %v6797 = vadd.f32 %v6789, 1e-06
        %v6798 = vadd.f32 %v6790, 1e-06
        %v6799 = vadd.f32 %v6791, 1e-06
        %v6800 = vadd.f32 %v6792, 1e-06
        %v6801 = vrsqrt.pop %v6793
        %v6802 = vmul.f32 %v6801, %v6793
        %v6803 = vmul.f32 %v6802, %v6801
        %v6804 = vmul.f32 0.5, %v6803
        %v6805 = vsub.f32 1.5, %v6804
        %v6806 = vmul.f32 %v6801, %v6805
        %vm6807 = vweird.f32 %v6793
        %vm6808 = vweird.f32 %v6801
        %vm6809 = vmor %vm6807, %vm6808
        %v6810 = vsel %vm6809, %v6801, %v6806
        %v6811 = vrsqrt.pop %v6794
        %v6812 = vmul.f32 %v6811, %v6794
        %v6813 = vmul.f32 %v6812, %v6811
        %v6814 = vmul.f32 0.5, %v6813
        %v6815 = vsub.f32 1.5, %v6814
        %v6816 = vmul.f32 %v6811, %v6815
        %vm6817 = vweird.f32 %v6794
        %vm6818 = vweird.f32 %v6811
        %vm6819 = vmor %vm6817, %vm6818
        %v6820 = vsel %vm6819, %v6811, %v6816
        %v6821 = vrsqrt.pop %v6795
        %v6822 = vmul.f32 %v6821, %v6795
        %v6823 = vmul.f32 %v6822, %v6821
        %v6824 = vmul.f32 0.5, %v6823
        %v6825 = vsub.f32 1.5, %v6824
        %v6826 = vmul.f32 %v6821, %v6825
        %vm6827 = vweird.f32 %v6795
        %vm6828 = vweird.f32 %v6821
        %vm6829 = vmor %vm6827, %vm6828
        %v6830 = vsel %vm6829, %v6821, %v6826
        %v6831 = vrsqrt.pop %v6796
        %v6832 = vmul.f32 %v6831, %v6796
        %v6833 = vmul.f32 %v6832, %v6831
        %v6834 = vmul.f32 0.5, %v6833
        %v6835 = vsub.f32 1.5, %v6834
        %v6836 = vmul.f32 %v6831, %v6835
        %vm6837 = vweird.f32 %v6796
        %vm6838 = vweird.f32 %v6831
        %vm6839 = vmor %vm6837, %vm6838
        %v6840 = vsel %vm6839, %v6831, %v6836
        %v6841 = vrsqrt.pop %v6797
        %v6842 = vmul.f32 %v6841, %v6797
        %v6843 = vmul.f32 %v6842, %v6841
        %v6844 = vmul.f32 0.5, %v6843
        %v6845 = vsub.f32 1.5, %v6844
        %v6846 = vmul.f32 %v6841, %v6845
        %vm6847 = vweird.f32 %v6797
        %vm6848 = vweird.f32 %v6841
        %vm6849 = vmor %vm6847, %vm6848
        %v6850 = vsel %vm6849, %v6841, %v6846
        %v6851 = vrsqrt.pop %v6798
        %v6852 = vmul.f32 %v6851, %v6798
        %v6853 = vmul.f32 %v6852, %v6851
        %v6854 = vmul.f32 0.5, %v6853
        %v6855 = vsub.f32 1.5, %v6854
        %v6856 = vmul.f32 %v6851, %v6855
        %vm6857 = vweird.f32 %v6798
        %vm6858 = vweird.f32 %v6851
        %vm6859 = vmor %vm6857, %vm6858
        %v6860 = vsel %vm6859, %v6851, %v6856
        %v6861 = vrsqrt.pop %v6799
        %v6862 = vmul.f32 %v6861, %v6799
        %v6863 = vmul.f32 %v6862, %v6861
        %v6864 = vmul.f32 0.5, %v6863
        %v6865 = vsub.f32 1.5, %v6864
        %v6866 = vmul.f32 %v6861, %v6865
        %vm6867 = vweird.f32 %v6799
        %vm6868 = vweird.f32 %v6861
        %vm6869 = vmor %vm6867, %vm6868
        %v6870 = vsel %vm6869, %v6861, %v6866
        %v6871 = vrsqrt.pop %v6800
        %v6872 = vmul.f32 %v6871, %v6800
        %v6873 = vmul.f32 %v6872, %v6871
        %v6874 = vmul.f32 0.5, %v6873
        %v6875 = vsub.f32 1.5, %v6874
        %v6876 = vmul.f32 %v6871, %v6875
        %vm6877 = vweird.f32 %v6800
        %vm6878 = vweird.f32 %v6871
        %vm6879 = vmor %vm6877, %vm6878
        %v6880 = vsel %vm6879, %v6871, %v6876
        %v6881 = vmul.f32 %v6745, %v6810
        %v6882 = vmul.f32 %v6746, %v6820
        %v6883 = vmul.f32 %v6747, %v6830
        %v6884 = vmul.f32 %v6748, %v6840
        %v6885 = vmul.f32 %v6749, %v6850
        %v6886 = vmul.f32 %v6750, %v6860
        %v6887 = vmul.f32 %v6751, %v6870
        %v6888 = vmul.f32 %v6752, %v6880
        %v6889 = vperm.slane %v6711, 0
        %v6890 = vmul.f32 %v6881, %v6889
        %v6891 = vmul.f32 %v6882, %v6889
        %v6892 = vmul.f32 %v6883, %v6889
        %v6893 = vmul.f32 %v6884, %v6889
        %v6894 = vmul.f32 %v6885, %v6889
        %v6895 = vmul.f32 %v6886, %v6889
        %v6896 = vmul.f32 %v6887, %v6889
        %v6897 = vmul.f32 %v6888, %v6889
        %v6898 = vperm.slane %v6712, 0
        %v6899 = vadd.f32 %v6890, %v6898
        %v6900 = vadd.f32 %v6891, %v6898
        %v6901 = vadd.f32 %v6892, %v6898
        %v6902 = vadd.f32 %v6893, %v6898
        %v6903 = vadd.f32 %v6894, %v6898
        %v6904 = vadd.f32 %v6895, %v6898
        %v6905 = vadd.f32 %v6896, %v6898
        %v6906 = vadd.f32 %v6897, %v6898
        %v6907 = vld [vmem:[%s1 + $0x1c] sm:$0x1]
        %s6908 = scalar_lea.vmem %s3, 64
        %v6909 = vld [vmem:[%s6908] sm:$0xff]
        %v6910 = vld [vmem:[%s6908 + $0x8] sm:$0xff]
        %v6911 = vld [vmem:[%s6908 + $0x10] sm:$0xff]
        %v6912 = vld [vmem:[%s6908 + $0x18] sm:$0x7]
        %v6913 = vperm.slane %v6907, 0
        %v6915 = vsel %vm417, %v6899, 0
        %v6918 = vsel %vm417, %v6900, 0
        %v6921 = vsel %vm417, %v6901, 0
        %v6924 = vsel %vm417, %v6902, 0
        %v6927 = vsel %vm417, %v6903, 0
        %v6930 = vsel %vm417, %v6904, 0
        %v6933 = vsel %vm417, %v6905, 0
        %v6936 = vsel %vm417, %v6906, 0
        %v6939 = vsel %vm855, %v6912, 0
        %6941 = vmatpush.msra.mxu0 0.0
        %6942 = vmatpush.msra.mxu0 0.0
        %6943 = vmatpush.msra.mxu0 0.0
        %6944 = vmatpush.msra.mxu0 0.0
        %6945 = vmatpush.msra.mxu0 0.0
        %6946 = vmatpush.msra.mxu0 0.0
        %6947 = vmatpush.msra.mxu0 0.0
        %6948 = vmatpush.msra.mxu0 0.0
        %6949 = vmatpush.msra.mxu0 0.0
        %6950 = vmatpush.msra.mxu0 0.0
        %6951 = vmatpush.msra.mxu0 0.0
        %6952 = vmatpush.msra.mxu0 0.0
        %6953 = vmatpush.msra.mxu0 %v6939
        %6954 = vmatpush.msra.mxu0 %v6911
        %6955 = vmatpush.msra.mxu0 %v6910
        %6956 = vmatpush.msra.mxu0 %v6909
        %6957 = vmatmul.f32.gmra.mxu0 %v6915
        %v6958 = vpop.f32.mrf.mxu0
        %v6959 = vadd.f32 %v6913, %v6958
        %6960 = vmatmul.f32.gmra.mxu0 %v6918
        %v6961 = vpop.f32.mrf.mxu0
        %v6962 = vadd.f32 %v6913, %v6961
        %6963 = vmatmul.f32.gmra.mxu0 %v6921
        %v6964 = vpop.f32.mrf.mxu0
        %v6965 = vadd.f32 %v6913, %v6964
        %6966 = vmatmul.f32.gmra.mxu0 %v6924
        %v6967 = vpop.f32.mrf.mxu0
        %v6968 = vadd.f32 %v6913, %v6967
        %6969 = vmatmul.f32.gmra.mxu0 %v6927
        %v6970 = vpop.f32.mrf.mxu0
        %v6971 = vadd.f32 %v6913, %v6970
        %6972 = vmatmul.f32.gmra.mxu0 %v6930
        %v6973 = vpop.f32.mrf.mxu0
        %v6974 = vadd.f32 %v6913, %v6973
        %6975 = vmatmul.f32.gmra.mxu0 %v6933
        %v6976 = vpop.f32.mrf.mxu0
        %v6977 = vadd.f32 %v6913, %v6976
        %6978 = vmatmul.f32.gmra.mxu0 %v6936
        %v6979 = vpop.f32.mrf.mxu0
        %v6980 = vadd.f32 %v6913, %v6979
        %6981 = vdwg.mxu0
        %v6982 = vrot.slane %v6899, 7
        %v6983 = vrot.slane %v6900, 7
        %v6984 = vsel %vm900, %v6982, %v6983
        %v6985 = vrot.slane %v6901, 7
        %v6986 = vrot.slane %v6902, 7
        %v6987 = vsel %vm900, %v6985, %v6986
        %v6988 = vrot.slane %v6903, 7
        %v6989 = vrot.slane %v6904, 7
        %v6990 = vsel %vm900, %v6988, %v6989
        %v6991 = vrot.slane %v6905, 7
        %v6992 = vrot.slane %v6906, 7
        %v6993 = vsel %vm900, %v6991, %v6992
        %v6998 = vsel %vm900, 0.0, %v6982
        %v6999 = vsel %vm900, 0.0, %v6985
        %v7000 = vsel %vm900, 0.0, %v6988
        %v7001 = vsel %vm900, 0.0, %v6991
        %v7002 = vrot.slane %v6899, 1
        %v7003 = vrot.slane %v6900, 1
        %v7004 = vsel %vm921, %v7002, %v7003
        %v7005 = vrot.slane %v6901, 1
        %v7006 = vrot.slane %v6902, 1
        %v7007 = vsel %vm921, %v7005, %v7006
        %v7008 = vrot.slane %v6903, 1
        %v7009 = vrot.slane %v6904, 1
        %v7010 = vsel %vm921, %v7008, %v7009
        %v7011 = vrot.slane %v6905, 1
        %v7012 = vrot.slane %v6906, 1
        %v7013 = vsel %vm921, %v7011, %v7012
        %v7018 = vsel %vm921, %v7003, 0.0
        %v7019 = vsel %vm921, %v7006, 0.0
        %v7020 = vsel %vm921, %v7009, 0.0
        %v7021 = vsel %vm921, %v7012, 0.0
        %s7022 = scalar_lea.vmem %s2, 192
        %v7023 = vld [vmem:[%s7022] sm:$0xff]
        %v7024 = vld [vmem:[%s7022 + $0x8] sm:$0xff]
        %v7025 = vld [vmem:[%s7022 + $0x10] sm:$0xff]
        %v7026 = vld [vmem:[%s7022 + $0x18] sm:$0x7]
        %v7028 = vsel %vm417, %v6998, 0
        %v7030 = vsel %vm417, %v6984, 0
        %v7033 = vsel %vm417, %v6999, 0
        %v7035 = vsel %vm417, %v6987, 0
        %v7038 = vsel %vm417, %v7000, 0
        %v7040 = vsel %vm417, %v6990, 0
        %v7043 = vsel %vm417, %v7001, 0
        %v7045 = vsel %vm417, %v6993, 0
        %v7048 = vsel %vm855, %v7026, 0
        %7050 = vmatpush.msra.mxu0 0.0
        %7051 = vmatpush.msra.mxu0 0.0
        %7052 = vmatpush.msra.mxu0 0.0
        %7053 = vmatpush.msra.mxu0 0.0
        %7054 = vmatpush.msra.mxu0 0.0
        %7055 = vmatpush.msra.mxu0 0.0
        %7056 = vmatpush.msra.mxu0 0.0
        %7057 = vmatpush.msra.mxu0 0.0
        %7058 = vmatpush.msra.mxu0 0.0
        %7059 = vmatpush.msra.mxu0 0.0
        %7060 = vmatpush.msra.mxu0 0.0
        %7061 = vmatpush.msra.mxu0 0.0
        %7062 = vmatpush.msra.mxu0 %v7048
        %7063 = vmatpush.msra.mxu0 %v7025
        %7064 = vmatpush.msra.mxu0 %v7024
        %7065 = vmatpush.msra.mxu0 %v7023
        %7066 = vmatmul.f32.gmra.mxu0 %v7028
        %v7067 = vpop.f32.mrf.mxu0
        %v7068 = vadd.f32 0.0, %v7067
        %7069 = vmatmul.f32.gmra.mxu0 %v7030
        %v7070 = vpop.f32.mrf.mxu0
        %v7071 = vadd.f32 0.0, %v7070
        %7072 = vmatmul.f32.gmra.mxu0 %v7033
        %v7073 = vpop.f32.mrf.mxu0
        %v7074 = vadd.f32 0.0, %v7073
        %7075 = vmatmul.f32.gmra.mxu0 %v7035
        %v7076 = vpop.f32.mrf.mxu0
        %v7077 = vadd.f32 0.0, %v7076
        %7078 = vmatmul.f32.gmra.mxu0 %v7038
        %v7079 = vpop.f32.mrf.mxu0
        %v7080 = vadd.f32 0.0, %v7079
        %7081 = vmatmul.f32.gmra.mxu0 %v7040
        %v7082 = vpop.f32.mrf.mxu0
        %v7083 = vadd.f32 0.0, %v7082
        %7084 = vmatmul.f32.gmra.mxu0 %v7043
        %v7085 = vpop.f32.mrf.mxu0
        %v7086 = vadd.f32 0.0, %v7085
        %7087 = vmatmul.f32.gmra.mxu0 %v7045
        %v7088 = vpop.f32.mrf.mxu0
        %v7089 = vadd.f32 0.0, %v7088
        %7090 = vdwg.mxu0
        %v7091 = vadd.f32 %v6959, %v7068
        %v7092 = vadd.f32 %v6962, %v7071
        %v7093 = vadd.f32 %v6965, %v7074
        %v7094 = vadd.f32 %v6968, %v7077
        %v7095 = vadd.f32 %v6971, %v7080
        %v7096 = vadd.f32 %v6974, %v7083
        %v7097 = vadd.f32 %v6977, %v7086
        %v7098 = vadd.f32 %v6980, %v7089
        %s7099 = scalar_lea.vmem %s2, 224
        %v7100 = vld [vmem:[%s7099] sm:$0xff]
        %v7101 = vld [vmem:[%s7099 + $0x8] sm:$0xff]
        %v7102 = vld [vmem:[%s7099 + $0x10] sm:$0xff]
        %v7103 = vld [vmem:[%s7099 + $0x18] sm:$0x7]
        %v7104 = vsel %vm417, %v7004, 0
        %v7107 = vsel %vm417, %v7018, 0
        %v7109 = vsel %vm417, %v7007, 0
        %v7112 = vsel %vm417, %v7019, 0
        %v7114 = vsel %vm417, %v7010, 0
        %v7117 = vsel %vm417, %v7020, 0
        %v7119 = vsel %vm417, %v7013, 0
        %v7122 = vsel %vm417, %v7021, 0
        %v7125 = vsel %vm855, %v7103, 0
        %7127 = vmatpush.msra.mxu0 0.0
        %7128 = vmatpush.msra.mxu0 0.0
        %7129 = vmatpush.msra.mxu0 0.0
        %7130 = vmatpush.msra.mxu0 0.0
        %7131 = vmatpush.msra.mxu0 0.0
        %7132 = vmatpush.msra.mxu0 0.0
        %7133 = vmatpush.msra.mxu0 0.0
        %7134 = vmatpush.msra.mxu0 0.0
        %7135 = vmatpush.msra.mxu0 0.0
        %7136 = vmatpush.msra.mxu0 0.0
        %7137 = vmatpush.msra.mxu0 0.0
        %7138 = vmatpush.msra.mxu0 0.0
        %7139 = vmatpush.msra.mxu0 %v7125
        %7140 = vmatpush.msra.mxu0 %v7102
        %7141 = vmatpush.msra.mxu0 %v7101
        %7142 = vmatpush.msra.mxu0 %v7100
        %7143 = vmatmul.f32.gmra.mxu0 %v7104
        %v7144 = vpop.f32.mrf.mxu0
        %v7145 = vadd.f32 0.0, %v7144
        %7146 = vmatmul.f32.gmra.mxu0 %v7107
        %v7147 = vpop.f32.mrf.mxu0
        %v7148 = vadd.f32 0.0, %v7147
        %7149 = vmatmul.f32.gmra.mxu0 %v7109
        %v7150 = vpop.f32.mrf.mxu0
        %v7151 = vadd.f32 0.0, %v7150
        %7152 = vmatmul.f32.gmra.mxu0 %v7112
        %v7153 = vpop.f32.mrf.mxu0
        %v7154 = vadd.f32 0.0, %v7153
        %7155 = vmatmul.f32.gmra.mxu0 %v7114
        %v7156 = vpop.f32.mrf.mxu0
        %v7157 = vadd.f32 0.0, %v7156
        %7158 = vmatmul.f32.gmra.mxu0 %v7117
        %v7159 = vpop.f32.mrf.mxu0
        %v7160 = vadd.f32 0.0, %v7159
        %7161 = vmatmul.f32.gmra.mxu0 %v7119
        %v7162 = vpop.f32.mrf.mxu0
        %v7163 = vadd.f32 0.0, %v7162
        %7164 = vmatmul.f32.gmra.mxu0 %v7122
        %v7165 = vpop.f32.mrf.mxu0
        %v7166 = vadd.f32 0.0, %v7165
        %7167 = vdwg.mxu0
        %v7168 = vadd.f32 %v7091, %v7145
        %v7169 = vadd.f32 %v7092, %v7148
        %v7170 = vadd.f32 %v7093, %v7151
        %v7171 = vadd.f32 %v7094, %v7154
        %v7172 = vadd.f32 %v7095, %v7157
        %v7173 = vadd.f32 %v7096, %v7160
        %v7174 = vadd.f32 %v7097, %v7163
        %v7175 = vadd.f32 %v7098, %v7166
        %v7176 = vmul.f32 %v7168, %v374
        %v7177 = vmul.f32 %v7169, %v374
        %v7178 = vmul.f32 %v7168, %v379
        %v7179 = vmul.f32 %v7169, %v379
        %v7180 = vmul.f32 %v7168, %v384
        %v7181 = vmul.f32 %v7169, %v384
        %v7182 = vmul.f32 %v7168, %v389
        %v7183 = vmul.f32 %v7169, %v389
        %v7184 = vmul.f32 %v7168, %v394
        %v7185 = vmul.f32 %v7169, %v394
        %v7186 = vmul.f32 %v7168, %v399
        %v7187 = vmul.f32 %v7169, %v399
        %v7188 = vmul.f32 %v7168, %v404
        %v7189 = vmul.f32 %v7169, %v404
        %v7190 = vmul.f32 %v7168, %v409
        %v7191 = vmul.f32 %v7169, %v409
        %v7192 = vmul.f32 %v7168, %v414
        %v7193 = vmul.f32 %v7169, %v414
        %7196 = vrot.lane.b32.xlu0 %v6959, 101
        %v7197 = vpop.permute.xlu0 %7196
        %7198 = vrot.lane.b32.xlu0 %v6962, 101
        %v7199 = vpop.permute.xlu0 %7198
        %v7200 = vsel %vm417, %v7197, 0
        %v7202 = vsel %vm417, %v7199, 0
        %v7205 = vsel %vm417, %v7176, 0
        %v7208 = vsel %vm417, %v7177, 0
        %v7211 = vsel %vm417, %v7178, 0
        %v7214 = vsel %vm417, %v7179, 0
        %v7217 = vsel %vm417, %v7180, 0
        %v7220 = vsel %vm417, %v7181, 0
        %v7223 = vsel %vm417, %v7182, 0
        %v7226 = vsel %vm417, %v7183, 0
        %v7229 = vsel %vm417, %v7184, 0
        %v7232 = vsel %vm417, %v7185, 0
        %v7235 = vsel %vm417, %v7186, 0
        %v7238 = vsel %vm417, %v7187, 0
        %v7241 = vsel %vm417, %v7188, 0
        %v7244 = vsel %vm417, %v7189, 0
        %v7247 = vsel %vm417, %v7190, 0
        %v7250 = vsel %vm417, %v7191, 0
        %v7253 = vsel %vm417, %v7192, 0
        %v7256 = vsel %vm417, %v7193, 0
        %7258 = vmatpush.xpose.msra.mxu0 %v7250
        %7259 = vmatpush.xpose.msra.mxu0 %v7247
        %7260 = vmatpush.xpose.msra.mxu0 %v7244
        %7261 = vmatpush.xpose.msra.mxu0 %v7241
        %7262 = vmatpush.xpose.msra.mxu0 %v7238
        %7263 = vmatpush.xpose.msra.mxu0 %v7235
        %7264 = vmatpush.xpose.msra.mxu0 %v7232
        %7265 = vmatpush.xpose.msra.mxu0 %v7229
        %7266 = vmatpush.xpose.msra.mxu0 %v7226
        %7267 = vmatpush.xpose.msra.mxu0 %v7223
        %7268 = vmatpush.xpose.msra.mxu0 %v7220
        %7269 = vmatpush.xpose.msra.mxu0 %v7217
        %7270 = vmatpush.xpose.msra.mxu0 %v7214
        %7271 = vmatpush.xpose.msra.mxu0 %v7211
        %7272 = vmatpush.xpose.msra.mxu0 %v7208
        %7273 = vmatpush.xpose.msra.mxu0 %v7205
        %7274 = vmatmul.f32.gmra.mxu0 %v7200
        %v7275 = vpop.f32.mrf.mxu0
        %v7276 = vadd.f32 0.0, %v7275
        %7277 = vmatmul.f32.gmra.mxu0 %v7202
        %v7278 = vpop.f32.mrf.mxu0
        %v7279 = vadd.f32 0.0, %v7278
        %7280 = vdwg.mxu0
        %7281 = vmatpush.xpose.msra.mxu0 0.0
        %7282 = vmatpush.xpose.msra.mxu0 0.0
        %7283 = vmatpush.xpose.msra.mxu0 0.0
        %7284 = vmatpush.xpose.msra.mxu0 0.0
        %7285 = vmatpush.xpose.msra.mxu0 0.0
        %7286 = vmatpush.xpose.msra.mxu0 0.0
        %7287 = vmatpush.xpose.msra.mxu0 0.0
        %7288 = vmatpush.xpose.msra.mxu0 0.0
        %7289 = vmatpush.xpose.msra.mxu0 0.0
        %7290 = vmatpush.xpose.msra.mxu0 0.0
        %7291 = vmatpush.xpose.msra.mxu0 0.0
        %7292 = vmatpush.xpose.msra.mxu0 0.0
        %7293 = vmatpush.xpose.msra.mxu0 0.0
        %7294 = vmatpush.xpose.msra.mxu0 0.0
        %7295 = vmatpush.xpose.msra.mxu0 %v7256
        %7296 = vmatpush.xpose.msra.mxu0 %v7253
        %7297 = vmatmul.f32.gmra.mxu0 %v7200
        %v7298 = vpop.f32.mrf.mxu0
        %v7299 = vadd.f32 0.0, %v7298
        %7300 = vmatmul.f32.gmra.mxu0 %v7202
        %v7301 = vpop.f32.mrf.mxu0
        %v7302 = vadd.f32 0.0, %v7301
        %7303 = vdwg.mxu0
        %v7304 = vmul.f32 %v7276, 0.57735026
        %v7305 = vmul.f32 %v7299, 0.57735026
        %v7306 = vmul.f32 %v7279, 0.57735026
        %v7307 = vmul.f32 %v7302, 0.57735026
        %v7308 = vmax.f32 %v7304, %v7306
        %v7309 = vrot.slane %v7308, 4
        %v7310 = vmax.f32 %v7308, %v7309
        %v7311 = vrot.slane %v7310, 2
        %v7312 = vmax.f32 %v7310, %v7311
        %v7313 = vrot.slane %v7312, 1
        %v7314 = vmax.f32 %v7312, %v7313
        %v7315 = vsel %vm1234, %v7305, -inf
        %v7316 = vsel %vm1234, %v7307, -inf
        %v7317 = vmax.f32 %v7315, %v7316
        %v7318 = vrot.slane %v7317, 4
        %v7319 = vmax.f32 %v7317, %v7318
        %v7320 = vrot.slane %v7319, 2
        %v7321 = vmax.f32 %v7319, %v7320
        %v7322 = vrot.slane %v7321, 1
        %v7323 = vmax.f32 %v7321, %v7322
        %v7324 = vsub.f32 %v7304, %v7314
        %v7325 = vsub.f32 %v7305, %v7323
        %v7326 = vsub.f32 %v7306, %v7314
        %v7327 = vsub.f32 %v7307, %v7323
        %v7328 = vmul.f32 %v7324, 1.442695
        %v7329 = vpow.pop %v7328
        %v7330 = vmul.f32 %v7325, 1.442695
        %v7331 = vpow.pop %v7330
        %v7332 = vmul.f32 %v7326, 1.442695
        %v7333 = vpow.pop %v7332
        %v7334 = vmul.f32 %v7327, 1.442695
        %v7335 = vpow.pop %v7334
        %v7336 = vadd.f32 %v7329, %v7333
        %v7337 = vrot.slane %v7336, 4
        %v7338 = vadd.f32 %v7336, %v7337
        %v7339 = vrot.slane %v7338, 2
        %v7340 = vadd.f32 %v7338, %v7339
        %v7341 = vrot.slane %v7340, 1
        %v7342 = vadd.f32 %v7340, %v7341
        %v7343 = vsel %vm1234, %v7331, 0.0
        %v7344 = vsel %vm1234, %v7335, 0.0
        %v7345 = vadd.f32 %v7343, %v7344
        %v7346 = vrot.slane %v7345, 4
        %v7347 = vadd.f32 %v7345, %v7346
        %v7348 = vrot.slane %v7347, 2
        %v7349 = vadd.f32 %v7347, %v7348
        %v7350 = vrot.slane %v7349, 1
        %v7351 = vadd.f32 %v7349, %v7350
        %v7352 = vrcp.pop %v7342
        %v7353 = vrcp.pop %v7351
        %v7354 = vmul.f32 %v7329, %v7352
        %v7355 = vmul.f32 %v7331, %v7353
        %v7356 = vmul.f32 %v7333, %v7352
        %v7357 = vmul.f32 %v7335, %v7353
        %7358 = vxpose.xlu0.b32.start [1/16] %v7354, 128
        %7359 = vxpose.xlu0.b32.cont [2/16] %v7356, 128
        %7360 = vxpose.xlu0.b32.cont [3/16] 0.0, 128
        %7361 = vxpose.xlu0.b32.cont [4/16] 0.0, 128
        %7362 = vxpose.xlu0.b32.cont [5/16] 0.0, 128
        %7363 = vxpose.xlu0.b32.cont [6/16] 0.0, 128
        %7364 = vxpose.xlu0.b32.cont [7/16] 0.0, 128
        %7365 = vxpose.xlu0.b32.cont [8/16] 0.0, 128
        %7366 = vxpose.xlu0.b32.cont [9/16] 0.0, 128
        %7367 = vxpose.xlu0.b32.cont [10/16] 0.0, 128
        %7368 = vxpose.xlu0.b32.cont [11/16] 0.0, 128
        %7369 = vxpose.xlu0.b32.cont [12/16] 0.0, 128
        %7370 = vxpose.xlu0.b32.cont [13/16] 0.0, 128
        %7371 = vxpose.xlu0.b32.cont [14/16] 0.0, 128
        %7372 = vxpose.xlu0.b32.cont [15/16] 0.0, 128
        %7373 = vxpose.xlu0.b32.end [16/16] 0.0, 128
        %v7374 = vpop.trf.xlu0
        %v7375 = vpop.trf.xlu0
        %v7376 = vpop.trf.xlu0
        %v7377 = vpop.trf.xlu0
        %v7378 = vpop.trf.xlu0
        %v7379 = vpop.trf.xlu0
        %v7380 = vpop.trf.xlu0
        %v7381 = vpop.trf.xlu0
        %v7382 = vpop.trf.xlu0
        %v7383 = vpop.trf.xlu0
        %v7384 = vpop.trf.xlu0
        %v7385 = vpop.trf.xlu0
        %v7386 = vpop.trf.xlu0
        %v7387 = vpop.trf.xlu0
        %v7388 = vpop.trf.xlu0
        %v7389 = vpop.trf.xlu0
        %7390 = vxpose.xlu0.b32.start [1/16] %v7355, 128
        %7391 = vxpose.xlu0.b32.cont [2/16] %v7357, 128
        %7392 = vxpose.xlu0.b32.cont [3/16] 0.0, 128
        %7393 = vxpose.xlu0.b32.cont [4/16] 0.0, 128
        %7394 = vxpose.xlu0.b32.cont [5/16] 0.0, 128
        %7395 = vxpose.xlu0.b32.cont [6/16] 0.0, 128
        %7396 = vxpose.xlu0.b32.cont [7/16] 0.0, 128
        %7397 = vxpose.xlu0.b32.cont [8/16] 0.0, 128
        %7398 = vxpose.xlu0.b32.cont [9/16] 0.0, 128
        %7399 = vxpose.xlu0.b32.cont [10/16] 0.0, 128
        %7400 = vxpose.xlu0.b32.cont [11/16] 0.0, 128
        %7401 = vxpose.xlu0.b32.cont [12/16] 0.0, 128
        %7402 = vxpose.xlu0.b32.cont [13/16] 0.0, 128
        %7403 = vxpose.xlu0.b32.cont [14/16] 0.0, 128
        %7404 = vxpose.xlu0.b32.cont [15/16] 0.0, 128
        %7405 = vxpose.xlu0.b32.end [16/16] 0.0, 128
        %v7406 = vpop.trf.xlu0
        %v7407 = vpop.trf.xlu0
        %v7408 = vpop.trf.xlu0
        %v7409 = vpop.trf.xlu0
        %v7410 = vpop.trf.xlu0
        %v7411 = vpop.trf.xlu0
        %v7412 = vpop.trf.xlu0
        %v7413 = vpop.trf.xlu0
        %v7414 = vpop.trf.xlu0
        %v7415 = vpop.trf.xlu0
        %v7416 = vpop.trf.xlu0
        %v7417 = vpop.trf.xlu0
        %v7418 = vpop.trf.xlu0
        %v7419 = vpop.trf.xlu0
        %v7420 = vpop.trf.xlu0
        %v7421 = vpop.trf.xlu0
        %7422 = vrot.lane.b32.xlu0 %v6959, 74
        %v7423 = vpop.permute.xlu0 %7422
        %7424 = vrot.lane.b32.xlu0 %v6962, 74
        %v7425 = vpop.permute.xlu0 %7424
        %v7429 = vsel %vm1234, %v7374, 0
        %v7432 = vsel %vm1234, %v7375, 0
        %v7435 = vsel %vm1234, %v7376, 0
        %v7438 = vsel %vm1234, %v7377, 0
        %v7441 = vsel %vm1234, %v7378, 0
        %v7444 = vsel %vm1234, %v7379, 0
        %v7447 = vsel %vm1234, %v7380, 0
        %v7450 = vsel %vm1234, %v7381, 0
        %v7453 = vsel %vm1234, %v7382, 0
        %v7456 = vsel %vm1234, %v7383, 0
        %v7459 = vsel %vm1234, %v7384, 0
        %v7462 = vsel %vm1234, %v7385, 0
        %v7465 = vsel %vm1234, %v7386, 0
        %v7468 = vsel %vm1234, %v7387, 0
        %v7471 = vsel %vm1234, %v7388, 0
        %v7474 = vsel %vm1234, %v7389, 0
        %v7477 = vsel %vm1234, %v7406, 0
        %v7480 = vsel %vm1234, %v7407, 0
        %7482 = vmatpush.msra.mxu0 0.0
        %7483 = vmatpush.msra.mxu0 0.0
        %7484 = vmatpush.msra.mxu0 0.0
        %7485 = vmatpush.msra.mxu0 0.0
        %7486 = vmatpush.msra.mxu0 0.0
        %7487 = vmatpush.msra.mxu0 0.0
        %7488 = vmatpush.msra.mxu0 0.0
        %7489 = vmatpush.msra.mxu0 0.0
        %7490 = vmatpush.msra.mxu0 0.0
        %7491 = vmatpush.msra.mxu0 0.0
        %7492 = vmatpush.msra.mxu0 0.0
        %7493 = vmatpush.msra.mxu0 0.0
        %7494 = vmatpush.msra.mxu0 0.0
        %7495 = vmatpush.msra.mxu0 0.0
        %7496 = vmatpush.msra.mxu0 %v7425
        %7497 = vmatpush.msra.mxu0 %v7423
        %7498 = vmatmul.f32.gmra.mxu0 %v7429
        %v7499 = vpop.f32.mrf.mxu0
        %v7500 = vadd.f32 0.0, %v7499
        %7501 = vmatmul.f32.gmra.mxu0 %v7432
        %v7502 = vpop.f32.mrf.mxu0
        %v7503 = vadd.f32 0.0, %v7502
        %7504 = vmatmul.f32.gmra.mxu0 %v7435
        %v7505 = vpop.f32.mrf.mxu0
        %v7506 = vadd.f32 0.0, %v7505
        %7507 = vmatmul.f32.gmra.mxu0 %v7438
        %v7508 = vpop.f32.mrf.mxu0
        %v7509 = vadd.f32 0.0, %v7508
        %7510 = vmatmul.f32.gmra.mxu0 %v7441
        %v7511 = vpop.f32.mrf.mxu0
        %v7512 = vadd.f32 0.0, %v7511
        %7513 = vmatmul.f32.gmra.mxu0 %v7444
        %v7514 = vpop.f32.mrf.mxu0
        %v7515 = vadd.f32 0.0, %v7514
        %7516 = vmatmul.f32.gmra.mxu0 %v7447
        %v7517 = vpop.f32.mrf.mxu0
        %v7518 = vadd.f32 0.0, %v7517
        %7519 = vmatmul.f32.gmra.mxu0 %v7450
        %v7520 = vpop.f32.mrf.mxu0
        %v7521 = vadd.f32 0.0, %v7520
        %7522 = vmatmul.f32.gmra.mxu0 %v7453
        %v7523 = vpop.f32.mrf.mxu0
        %v7524 = vadd.f32 0.0, %v7523
        %7525 = vmatmul.f32.gmra.mxu0 %v7456
        %v7526 = vpop.f32.mrf.mxu0
        %v7527 = vadd.f32 0.0, %v7526
        %7528 = vmatmul.f32.gmra.mxu0 %v7459
        %v7529 = vpop.f32.mrf.mxu0
        %v7530 = vadd.f32 0.0, %v7529
        %7531 = vmatmul.f32.gmra.mxu0 %v7462
        %v7532 = vpop.f32.mrf.mxu0
        %v7533 = vadd.f32 0.0, %v7532
        %7534 = vmatmul.f32.gmra.mxu0 %v7465
        %v7535 = vpop.f32.mrf.mxu0
        %v7536 = vadd.f32 0.0, %v7535
        %7537 = vmatmul.f32.gmra.mxu0 %v7468
        %v7538 = vpop.f32.mrf.mxu0
        %v7539 = vadd.f32 0.0, %v7538
        %7540 = vmatmul.f32.gmra.mxu0 %v7471
        %v7541 = vpop.f32.mrf.mxu0
        %v7542 = vadd.f32 0.0, %v7541
        %7543 = vmatmul.f32.gmra.mxu0 %v7474
        %v7544 = vpop.f32.mrf.mxu0
        %v7545 = vadd.f32 0.0, %v7544
        %7546 = vmatmul.f32.gmra.mxu0 %v7477
        %v7547 = vpop.f32.mrf.mxu0
        %v7548 = vadd.f32 0.0, %v7547
        %7549 = vmatmul.f32.gmra.mxu0 %v7480
        %v7550 = vpop.f32.mrf.mxu0
        %v7551 = vadd.f32 0.0, %v7550
        %7552 = vdwg.mxu0
        %v7553 = vmul.f32 %v7500, %v374
        %v7554 = vmul.f32 %v7503, %v374
        %v7555 = vmul.f32 %v7506, %v379
        %v7556 = vmul.f32 %v7509, %v379
        %v7557 = vmul.f32 %v7512, %v384
        %v7558 = vmul.f32 %v7515, %v384
        %v7559 = vmul.f32 %v7518, %v389
        %v7560 = vmul.f32 %v7521, %v389
        %v7561 = vmul.f32 %v7524, %v394
        %v7562 = vmul.f32 %v7527, %v394
        %v7563 = vmul.f32 %v7530, %v399
        %v7564 = vmul.f32 %v7533, %v399
        %v7565 = vmul.f32 %v7536, %v404
        %v7566 = vmul.f32 %v7539, %v404
        %v7567 = vmul.f32 %v7542, %v409
        %v7568 = vmul.f32 %v7545, %v409
        %v7569 = vmul.f32 %v7548, %v414
        %v7570 = vmul.f32 %v7551, %v414
        %v7571 = vadd.f32 %v7553, %v7555
        %v7572 = vadd.f32 %v7554, %v7556
        %v7573 = vadd.f32 %v7571, %v7557
        %v7574 = vadd.f32 %v7572, %v7558
        %v7575 = vadd.f32 %v7573, %v7559
        %v7576 = vadd.f32 %v7574, %v7560
        %v7577 = vadd.f32 %v7575, %v7561
        %v7578 = vadd.f32 %v7576, %v7562
        %v7579 = vadd.f32 %v7577, %v7563
        %v7580 = vadd.f32 %v7578, %v7564
        %v7581 = vadd.f32 %v7579, %v7565
        %v7582 = vadd.f32 %v7580, %v7566
        %v7583 = vadd.f32 %v7581, %v7567
        %v7584 = vadd.f32 %v7582, %v7568
        %v7585 = vadd.f32 %v7583, %v7569
        %v7586 = vadd.f32 %v7584, %v7570
        %v7587 = vmul.f32 %v7170, %v374
        %v7588 = vmul.f32 %v7171, %v374
        %v7589 = vmul.f32 %v7170, %v379
        %v7590 = vmul.f32 %v7171, %v379
        %v7591 = vmul.f32 %v7170, %v384
        %v7592 = vmul.f32 %v7171, %v384
        %v7593 = vmul.f32 %v7170, %v389
        %v7594 = vmul.f32 %v7171, %v389
        %v7595 = vmul.f32 %v7170, %v394
        %v7596 = vmul.f32 %v7171, %v394
        %v7597 = vmul.f32 %v7170, %v399
        %v7598 = vmul.f32 %v7171, %v399
        %v7599 = vmul.f32 %v7170, %v404
        %v7600 = vmul.f32 %v7171, %v404
        %v7601 = vmul.f32 %v7170, %v409
        %v7602 = vmul.f32 %v7171, %v409
        %v7603 = vmul.f32 %v7170, %v414
        %v7604 = vmul.f32 %v7171, %v414
        %7607 = vrot.lane.b32.xlu0 %v6965, 101
        %v7608 = vpop.permute.xlu0 %7607
        %7609 = vrot.lane.b32.xlu0 %v6968, 101
        %v7610 = vpop.permute.xlu0 %7609
        %v7611 = vsel %vm417, %v7608, 0
        %v7613 = vsel %vm417, %v7610, 0
        %v7616 = vsel %vm417, %v7587, 0
        %v7619 = vsel %vm417, %v7588, 0
        %v7622 = vsel %vm417, %v7589, 0
        %v7625 = vsel %vm417, %v7590, 0
        %v7628 = vsel %vm417, %v7591, 0
        %v7631 = vsel %vm417, %v7592, 0
        %v7634 = vsel %vm417, %v7593, 0
        %v7637 = vsel %vm417, %v7594, 0
        %v7640 = vsel %vm417, %v7595, 0
        %v7643 = vsel %vm417, %v7596, 0
        %v7646 = vsel %vm417, %v7597, 0
        %v7649 = vsel %vm417, %v7598, 0
        %v7652 = vsel %vm417, %v7599, 0
        %v7655 = vsel %vm417, %v7600, 0
        %v7658 = vsel %vm417, %v7601, 0
        %v7661 = vsel %vm417, %v7602, 0
        %v7664 = vsel %vm417, %v7603, 0
        %v7667 = vsel %vm417, %v7604, 0
        %7669 = vmatpush.xpose.msra.mxu0 %v7661
        %7670 = vmatpush.xpose.msra.mxu0 %v7658
        %7671 = vmatpush.xpose.msra.mxu0 %v7655
        %7672 = vmatpush.xpose.msra.mxu0 %v7652
        %7673 = vmatpush.xpose.msra.mxu0 %v7649
        %7674 = vmatpush.xpose.msra.mxu0 %v7646
        %7675 = vmatpush.xpose.msra.mxu0 %v7643
        %7676 = vmatpush.xpose.msra.mxu0 %v7640
        %7677 = vmatpush.xpose.msra.mxu0 %v7637
        %7678 = vmatpush.xpose.msra.mxu0 %v7634
        %7679 = vmatpush.xpose.msra.mxu0 %v7631
        %7680 = vmatpush.xpose.msra.mxu0 %v7628
        %7681 = vmatpush.xpose.msra.mxu0 %v7625
        %7682 = vmatpush.xpose.msra.mxu0 %v7622
        %7683 = vmatpush.xpose.msra.mxu0 %v7619
        %7684 = vmatpush.xpose.msra.mxu0 %v7616
        %7685 = vmatmul.f32.gmra.mxu0 %v7611
        %v7686 = vpop.f32.mrf.mxu0
        %v7687 = vadd.f32 0.0, %v7686
        %7688 = vmatmul.f32.gmra.mxu0 %v7613
        %v7689 = vpop.f32.mrf.mxu0
        %v7690 = vadd.f32 0.0, %v7689
        %7691 = vdwg.mxu0
        %7692 = vmatpush.xpose.msra.mxu0 0.0
        %7693 = vmatpush.xpose.msra.mxu0 0.0
        %7694 = vmatpush.xpose.msra.mxu0 0.0
        %7695 = vmatpush.xpose.msra.mxu0 0.0
        %7696 = vmatpush.xpose.msra.mxu0 0.0
        %7697 = vmatpush.xpose.msra.mxu0 0.0
        %7698 = vmatpush.xpose.msra.mxu0 0.0
        %7699 = vmatpush.xpose.msra.mxu0 0.0
        %7700 = vmatpush.xpose.msra.mxu0 0.0
        %7701 = vmatpush.xpose.msra.mxu0 0.0
        %7702 = vmatpush.xpose.msra.mxu0 0.0
        %7703 = vmatpush.xpose.msra.mxu0 0.0
        %7704 = vmatpush.xpose.msra.mxu0 0.0
        %7705 = vmatpush.xpose.msra.mxu0 0.0
        %7706 = vmatpush.xpose.msra.mxu0 %v7667
        %7707 = vmatpush.xpose.msra.mxu0 %v7664
        %7708 = vmatmul.f32.gmra.mxu0 %v7611
        %v7709 = vpop.f32.mrf.mxu0
        %v7710 = vadd.f32 0.0, %v7709
        %7711 = vmatmul.f32.gmra.mxu0 %v7613
        %v7712 = vpop.f32.mrf.mxu0
        %v7713 = vadd.f32 0.0, %v7712
        %7714 = vdwg.mxu0
        %v7715 = vmul.f32 %v7687, 0.57735026
        %v7716 = vmul.f32 %v7710, 0.57735026
        %v7717 = vmul.f32 %v7690, 0.57735026
        %v7718 = vmul.f32 %v7713, 0.57735026
        %v7719 = vmax.f32 %v7715, %v7717
        %v7720 = vrot.slane %v7719, 4
        %v7721 = vmax.f32 %v7719, %v7720
        %v7722 = vrot.slane %v7721, 2
        %v7723 = vmax.f32 %v7721, %v7722
        %v7724 = vrot.slane %v7723, 1
        %v7725 = vmax.f32 %v7723, %v7724
        %v7726 = vsel %vm1234, %v7716, -inf
        %v7727 = vsel %vm1234, %v7718, -inf
        %v7728 = vmax.f32 %v7726, %v7727
        %v7729 = vrot.slane %v7728, 4
        %v7730 = vmax.f32 %v7728, %v7729
        %v7731 = vrot.slane %v7730, 2
        %v7732 = vmax.f32 %v7730, %v7731
        %v7733 = vrot.slane %v7732, 1
        %v7734 = vmax.f32 %v7732, %v7733
        %v7735 = vsub.f32 %v7715, %v7725
        %v7736 = vsub.f32 %v7716, %v7734
        %v7737 = vsub.f32 %v7717, %v7725
        %v7738 = vsub.f32 %v7718, %v7734
        %v7739 = vmul.f32 %v7735, 1.442695
        %v7740 = vpow.pop %v7739
        %v7741 = vmul.f32 %v7736, 1.442695
        %v7742 = vpow.pop %v7741
        %v7743 = vmul.f32 %v7737, 1.442695
        %v7744 = vpow.pop %v7743
        %v7745 = vmul.f32 %v7738, 1.442695
        %v7746 = vpow.pop %v7745
        %v7747 = vadd.f32 %v7740, %v7744
        %v7748 = vrot.slane %v7747, 4
        %v7749 = vadd.f32 %v7747, %v7748
        %v7750 = vrot.slane %v7749, 2
        %v7751 = vadd.f32 %v7749, %v7750
        %v7752 = vrot.slane %v7751, 1
        %v7753 = vadd.f32 %v7751, %v7752
        %v7754 = vsel %vm1234, %v7742, 0.0
        %v7755 = vsel %vm1234, %v7746, 0.0
        %v7756 = vadd.f32 %v7754, %v7755
        %v7757 = vrot.slane %v7756, 4
        %v7758 = vadd.f32 %v7756, %v7757
        %v7759 = vrot.slane %v7758, 2
        %v7760 = vadd.f32 %v7758, %v7759
        %v7761 = vrot.slane %v7760, 1
        %v7762 = vadd.f32 %v7760, %v7761
        %v7763 = vrcp.pop %v7753
        %v7764 = vrcp.pop %v7762
        %v7765 = vmul.f32 %v7740, %v7763
        %v7766 = vmul.f32 %v7742, %v7764
        %v7767 = vmul.f32 %v7744, %v7763
        %v7768 = vmul.f32 %v7746, %v7764
        %7769 = vxpose.xlu0.b32.start [1/16] %v7765, 128
        %7770 = vxpose.xlu0.b32.cont [2/16] %v7767, 128
        %7771 = vxpose.xlu0.b32.cont [3/16] 0.0, 128
        %7772 = vxpose.xlu0.b32.cont [4/16] 0.0, 128
        %7773 = vxpose.xlu0.b32.cont [5/16] 0.0, 128
        %7774 = vxpose.xlu0.b32.cont [6/16] 0.0, 128
        %7775 = vxpose.xlu0.b32.cont [7/16] 0.0, 128
        %7776 = vxpose.xlu0.b32.cont [8/16] 0.0, 128
        %7777 = vxpose.xlu0.b32.cont [9/16] 0.0, 128
        %7778 = vxpose.xlu0.b32.cont [10/16] 0.0, 128
        %7779 = vxpose.xlu0.b32.cont [11/16] 0.0, 128
        %7780 = vxpose.xlu0.b32.cont [12/16] 0.0, 128
        %7781 = vxpose.xlu0.b32.cont [13/16] 0.0, 128
        %7782 = vxpose.xlu0.b32.cont [14/16] 0.0, 128
        %7783 = vxpose.xlu0.b32.cont [15/16] 0.0, 128
        %7784 = vxpose.xlu0.b32.end [16/16] 0.0, 128
        %v7785 = vpop.trf.xlu0
        %v7786 = vpop.trf.xlu0
        %v7787 = vpop.trf.xlu0
        %v7788 = vpop.trf.xlu0
        %v7789 = vpop.trf.xlu0
        %v7790 = vpop.trf.xlu0
        %v7791 = vpop.trf.xlu0
        %v7792 = vpop.trf.xlu0
        %v7793 = vpop.trf.xlu0
        %v7794 = vpop.trf.xlu0
        %v7795 = vpop.trf.xlu0
        %v7796 = vpop.trf.xlu0
        %v7797 = vpop.trf.xlu0
        %v7798 = vpop.trf.xlu0
        %v7799 = vpop.trf.xlu0
        %v7800 = vpop.trf.xlu0
        %7801 = vxpose.xlu0.b32.start [1/16] %v7766, 128
        %7802 = vxpose.xlu0.b32.cont [2/16] %v7768, 128
        %7803 = vxpose.xlu0.b32.cont [3/16] 0.0, 128
        %7804 = vxpose.xlu0.b32.cont [4/16] 0.0, 128
        %7805 = vxpose.xlu0.b32.cont [5/16] 0.0, 128
        %7806 = vxpose.xlu0.b32.cont [6/16] 0.0, 128
        %7807 = vxpose.xlu0.b32.cont [7/16] 0.0, 128
        %7808 = vxpose.xlu0.b32.cont [8/16] 0.0, 128
        %7809 = vxpose.xlu0.b32.cont [9/16] 0.0, 128
        %7810 = vxpose.xlu0.b32.cont [10/16] 0.0, 128
        %7811 = vxpose.xlu0.b32.cont [11/16] 0.0, 128
        %7812 = vxpose.xlu0.b32.cont [12/16] 0.0, 128
        %7813 = vxpose.xlu0.b32.cont [13/16] 0.0, 128
        %7814 = vxpose.xlu0.b32.cont [14/16] 0.0, 128
        %7815 = vxpose.xlu0.b32.cont [15/16] 0.0, 128
        %7816 = vxpose.xlu0.b32.end [16/16] 0.0, 128
        %v7817 = vpop.trf.xlu0
        %v7818 = vpop.trf.xlu0
        %v7819 = vpop.trf.xlu0
        %v7820 = vpop.trf.xlu0
        %v7821 = vpop.trf.xlu0
        %v7822 = vpop.trf.xlu0
        %v7823 = vpop.trf.xlu0
        %v7824 = vpop.trf.xlu0
        %v7825 = vpop.trf.xlu0
        %v7826 = vpop.trf.xlu0
        %v7827 = vpop.trf.xlu0
        %v7828 = vpop.trf.xlu0
        %v7829 = vpop.trf.xlu0
        %v7830 = vpop.trf.xlu0
        %v7831 = vpop.trf.xlu0
        %v7832 = vpop.trf.xlu0
        %7833 = vrot.lane.b32.xlu0 %v6965, 74
        %v7834 = vpop.permute.xlu0 %7833
        %7835 = vrot.lane.b32.xlu0 %v6968, 74
        %v7836 = vpop.permute.xlu0 %7835
        %v7840 = vsel %vm1234, %v7785, 0
        %v7843 = vsel %vm1234, %v7786, 0
        %v7846 = vsel %vm1234, %v7787, 0
        %v7849 = vsel %vm1234, %v7788, 0
        %v7852 = vsel %vm1234, %v7789, 0
        %v7855 = vsel %vm1234, %v7790, 0
        %v7858 = vsel %vm1234, %v7791, 0
        %v7861 = vsel %vm1234, %v7792, 0
        %v7864 = vsel %vm1234, %v7793, 0
        %v7867 = vsel %vm1234, %v7794, 0
        %v7870 = vsel %vm1234, %v7795, 0
        %v7873 = vsel %vm1234, %v7796, 0
        %v7876 = vsel %vm1234, %v7797, 0
        %v7879 = vsel %vm1234, %v7798, 0
        %v7882 = vsel %vm1234, %v7799, 0
        %v7885 = vsel %vm1234, %v7800, 0
        %v7888 = vsel %vm1234, %v7817, 0
        %v7891 = vsel %vm1234, %v7818, 0
        %7893 = vmatpush.msra.mxu0 0.0
        %7894 = vmatpush.msra.mxu0 0.0
        %7895 = vmatpush.msra.mxu0 0.0
        %7896 = vmatpush.msra.mxu0 0.0
        %7897 = vmatpush.msra.mxu0 0.0
        %7898 = vmatpush.msra.mxu0 0.0
        %7899 = vmatpush.msra.mxu0 0.0
        %7900 = vmatpush.msra.mxu0 0.0
        %7901 = vmatpush.msra.mxu0 0.0
        %7902 = vmatpush.msra.mxu0 0.0
        %7903 = vmatpush.msra.mxu0 0.0
        %7904 = vmatpush.msra.mxu0 0.0
        %7905 = vmatpush.msra.mxu0 0.0
        %7906 = vmatpush.msra.mxu0 0.0
        %7907 = vmatpush.msra.mxu0 %v7836
        %7908 = vmatpush.msra.mxu0 %v7834
        %7909 = vmatmul.f32.gmra.mxu0 %v7840
        %v7910 = vpop.f32.mrf.mxu0
        %v7911 = vadd.f32 0.0, %v7910
        %7912 = vmatmul.f32.gmra.mxu0 %v7843
        %v7913 = vpop.f32.mrf.mxu0
        %v7914 = vadd.f32 0.0, %v7913
        %7915 = vmatmul.f32.gmra.mxu0 %v7846
        %v7916 = vpop.f32.mrf.mxu0
        %v7917 = vadd.f32 0.0, %v7916
        %7918 = vmatmul.f32.gmra.mxu0 %v7849
        %v7919 = vpop.f32.mrf.mxu0
        %v7920 = vadd.f32 0.0, %v7919
        %7921 = vmatmul.f32.gmra.mxu0 %v7852
        %v7922 = vpop.f32.mrf.mxu0
        %v7923 = vadd.f32 0.0, %v7922
        %7924 = vmatmul.f32.gmra.mxu0 %v7855
        %v7925 = vpop.f32.mrf.mxu0
        %v7926 = vadd.f32 0.0, %v7925
        %7927 = vmatmul.f32.gmra.mxu0 %v7858
        %v7928 = vpop.f32.mrf.mxu0
        %v7929 = vadd.f32 0.0, %v7928
        %7930 = vmatmul.f32.gmra.mxu0 %v7861
        %v7931 = vpop.f32.mrf.mxu0
        %v7932 = vadd.f32 0.0, %v7931
        %7933 = vmatmul.f32.gmra.mxu0 %v7864
        %v7934 = vpop.f32.mrf.mxu0
        %v7935 = vadd.f32 0.0, %v7934
        %7936 = vmatmul.f32.gmra.mxu0 %v7867
        %v7937 = vpop.f32.mrf.mxu0
        %v7938 = vadd.f32 0.0, %v7937
        %7939 = vmatmul.f32.gmra.mxu0 %v7870
        %v7940 = vpop.f32.mrf.mxu0
        %v7941 = vadd.f32 0.0, %v7940
        %7942 = vmatmul.f32.gmra.mxu0 %v7873
        %v7943 = vpop.f32.mrf.mxu0
        %v7944 = vadd.f32 0.0, %v7943
        %7945 = vmatmul.f32.gmra.mxu0 %v7876
        %v7946 = vpop.f32.mrf.mxu0
        %v7947 = vadd.f32 0.0, %v7946
        %7948 = vmatmul.f32.gmra.mxu0 %v7879
        %v7949 = vpop.f32.mrf.mxu0
        %v7950 = vadd.f32 0.0, %v7949
        %7951 = vmatmul.f32.gmra.mxu0 %v7882
        %v7952 = vpop.f32.mrf.mxu0
        %v7953 = vadd.f32 0.0, %v7952
        %7954 = vmatmul.f32.gmra.mxu0 %v7885
        %v7955 = vpop.f32.mrf.mxu0
        %v7956 = vadd.f32 0.0, %v7955
        %7957 = vmatmul.f32.gmra.mxu0 %v7888
        %v7958 = vpop.f32.mrf.mxu0
        %v7959 = vadd.f32 0.0, %v7958
        %7960 = vmatmul.f32.gmra.mxu0 %v7891
        %v7961 = vpop.f32.mrf.mxu0
        %v7962 = vadd.f32 0.0, %v7961
        %7963 = vdwg.mxu0
        %v7964 = vmul.f32 %v7911, %v374
        %v7965 = vmul.f32 %v7914, %v374
        %v7966 = vmul.f32 %v7917, %v379
        %v7967 = vmul.f32 %v7920, %v379
        %v7968 = vmul.f32 %v7923, %v384
        %v7969 = vmul.f32 %v7926, %v384
        %v7970 = vmul.f32 %v7929, %v389
        %v7971 = vmul.f32 %v7932, %v389
        %v7972 = vmul.f32 %v7935, %v394
        %v7973 = vmul.f32 %v7938, %v394
        %v7974 = vmul.f32 %v7941, %v399
        %v7975 = vmul.f32 %v7944, %v399
        %v7976 = vmul.f32 %v7947, %v404
        %v7977 = vmul.f32 %v7950, %v404
        %v7978 = vmul.f32 %v7953, %v409
        %v7979 = vmul.f32 %v7956, %v409
        %v7980 = vmul.f32 %v7959, %v414
        %v7981 = vmul.f32 %v7962, %v414
        %v7982 = vadd.f32 %v7964, %v7966
        %v7983 = vadd.f32 %v7965, %v7967
        %v7984 = vadd.f32 %v7982, %v7968
        %v7985 = vadd.f32 %v7983, %v7969
        %v7986 = vadd.f32 %v7984, %v7970
        %v7987 = vadd.f32 %v7985, %v7971
        %v7988 = vadd.f32 %v7986, %v7972
        %v7989 = vadd.f32 %v7987, %v7973
        %v7990 = vadd.f32 %v7988, %v7974
        %v7991 = vadd.f32 %v7989, %v7975
        %v7992 = vadd.f32 %v7990, %v7976
        %v7993 = vadd.f32 %v7991, %v7977
        %v7994 = vadd.f32 %v7992, %v7978
        %v7995 = vadd.f32 %v7993, %v7979
        %v7996 = vadd.f32 %v7994, %v7980
        %v7997 = vadd.f32 %v7995, %v7981
        %v7998 = vmul.f32 %v7172, %v374
        %v7999 = vmul.f32 %v7173, %v374
        %v8000 = vmul.f32 %v7172, %v379
        %v8001 = vmul.f32 %v7173, %v379
        %v8002 = vmul.f32 %v7172, %v384
        %v8003 = vmul.f32 %v7173, %v384
        %v8004 = vmul.f32 %v7172, %v389
        %v8005 = vmul.f32 %v7173, %v389
        %v8006 = vmul.f32 %v7172, %v394
        %v8007 = vmul.f32 %v7173, %v394
        %v8008 = vmul.f32 %v7172, %v399
        %v8009 = vmul.f32 %v7173, %v399
        %v8010 = vmul.f32 %v7172, %v404
        %v8011 = vmul.f32 %v7173, %v404
        %v8012 = vmul.f32 %v7172, %v409
        %v8013 = vmul.f32 %v7173, %v409
        %v8014 = vmul.f32 %v7172, %v414
        %v8015 = vmul.f32 %v7173, %v414
        %8018 = vrot.lane.b32.xlu0 %v6971, 101
        %v8019 = vpop.permute.xlu0 %8018
        %8020 = vrot.lane.b32.xlu0 %v6974, 101
        %v8021 = vpop.permute.xlu0 %8020
        %v8022 = vsel %vm417, %v8019, 0
        %v8024 = vsel %vm417, %v8021, 0
        %v8027 = vsel %vm417, %v7998, 0
        %v8030 = vsel %vm417, %v7999, 0
        %v8033 = vsel %vm417, %v8000, 0
        %v8036 = vsel %vm417, %v8001, 0
        %v8039 = vsel %vm417, %v8002, 0
        %v8042 = vsel %vm417, %v8003, 0
        %v8045 = vsel %vm417, %v8004, 0
        %v8048 = vsel %vm417, %v8005, 0
        %v8051 = vsel %vm417, %v8006, 0
        %v8054 = vsel %vm417, %v8007, 0
        %v8057 = vsel %vm417, %v8008, 0
        %v8060 = vsel %vm417, %v8009, 0
        %v8063 = vsel %vm417, %v8010, 0
        %v8066 = vsel %vm417, %v8011, 0
        %v8069 = vsel %vm417, %v8012, 0
        %v8072 = vsel %vm417, %v8013, 0
        %v8075 = vsel %vm417, %v8014, 0
        %v8078 = vsel %vm417, %v8015, 0
        %8080 = vmatpush.xpose.msra.mxu0 %v8072
        %8081 = vmatpush.xpose.msra.mxu0 %v8069
        %8082 = vmatpush.xpose.msra.mxu0 %v8066
        %8083 = vmatpush.xpose.msra.mxu0 %v8063
        %8084 = vmatpush.xpose.msra.mxu0 %v8060
        %8085 = vmatpush.xpose.msra.mxu0 %v8057
        %8086 = vmatpush.xpose.msra.mxu0 %v8054
        %8087 = vmatpush.xpose.msra.mxu0 %v8051
        %8088 = vmatpush.xpose.msra.mxu0 %v8048
        %8089 = vmatpush.xpose.msra.mxu0 %v8045
        %8090 = vmatpush.xpose.msra.mxu0 %v8042
        %8091 = vmatpush.xpose.msra.mxu0 %v8039
        %8092 = vmatpush.xpose.msra.mxu0 %v8036
        %8093 = vmatpush.xpose.msra.mxu0 %v8033
        %8094 = vmatpush.xpose.msra.mxu0 %v8030
        %8095 = vmatpush.xpose.msra.mxu0 %v8027
        %8096 = vmatmul.f32.gmra.mxu0 %v8022
        %v8097 = vpop.f32.mrf.mxu0
        %v8098 = vadd.f32 0.0, %v8097
        %8099 = vmatmul.f32.gmra.mxu0 %v8024
        %v8100 = vpop.f32.mrf.mxu0
        %v8101 = vadd.f32 0.0, %v8100
        %8102 = vdwg.mxu0
        %8103 = vmatpush.xpose.msra.mxu0 0.0
        %8104 = vmatpush.xpose.msra.mxu0 0.0
        %8105 = vmatpush.xpose.msra.mxu0 0.0
        %8106 = vmatpush.xpose.msra.mxu0 0.0
        %8107 = vmatpush.xpose.msra.mxu0 0.0
        %8108 = vmatpush.xpose.msra.mxu0 0.0
        %8109 = vmatpush.xpose.msra.mxu0 0.0
        %8110 = vmatpush.xpose.msra.mxu0 0.0
        %8111 = vmatpush.xpose.msra.mxu0 0.0
        %8112 = vmatpush.xpose.msra.mxu0 0.0
        %8113 = vmatpush.xpose.msra.mxu0 0.0
        %8114 = vmatpush.xpose.msra.mxu0 0.0
        %8115 = vmatpush.xpose.msra.mxu0 0.0
        %8116 = vmatpush.xpose.msra.mxu0 0.0
        %8117 = vmatpush.xpose.msra.mxu0 %v8078
        %8118 = vmatpush.xpose.msra.mxu0 %v8075
        %8119 = vmatmul.f32.gmra.mxu0 %v8022
        %v8120 = vpop.f32.mrf.mxu0
        %v8121 = vadd.f32 0.0, %v8120
        %8122 = vmatmul.f32.gmra.mxu0 %v8024
        %v8123 = vpop.f32.mrf.mxu0
        %v8124 = vadd.f32 0.0, %v8123
        %8125 = vdwg.mxu0
        %v8126 = vmul.f32 %v8098, 0.57735026
        %v8127 = vmul.f32 %v8121, 0.57735026
        %v8128 = vmul.f32 %v8101, 0.57735026
        %v8129 = vmul.f32 %v8124, 0.57735026
        %v8130 = vmax.f32 %v8126, %v8128
        %v8131 = vrot.slane %v8130, 4
        %v8132 = vmax.f32 %v8130, %v8131
        %v8133 = vrot.slane %v8132, 2
        %v8134 = vmax.f32 %v8132, %v8133
        %v8135 = vrot.slane %v8134, 1
        %v8136 = vmax.f32 %v8134, %v8135
        %v8137 = vsel %vm1234, %v8127, -inf
        %v8138 = vsel %vm1234, %v8129, -inf
        %v8139 = vmax.f32 %v8137, %v8138
        %v8140 = vrot.slane %v8139, 4
        %v8141 = vmax.f32 %v8139, %v8140
        %v8142 = vrot.slane %v8141, 2
        %v8143 = vmax.f32 %v8141, %v8142
        %v8144 = vrot.slane %v8143, 1
        %v8145 = vmax.f32 %v8143, %v8144
        %v8146 = vsub.f32 %v8126, %v8136
        %v8147 = vsub.f32 %v8127, %v8145
        %v8148 = vsub.f32 %v8128, %v8136
        %v8149 = vsub.f32 %v8129, %v8145
        %v8150 = vmul.f32 %v8146, 1.442695
        %v8151 = vpow.pop %v8150
        %v8152 = vmul.f32 %v8147, 1.442695
        %v8153 = vpow.pop %v8152
        %v8154 = vmul.f32 %v8148, 1.442695
        %v8155 = vpow.pop %v8154
        %v8156 = vmul.f32 %v8149, 1.442695
        %v8157 = vpow.pop %v8156
        %v8158 = vadd.f32 %v8151, %v8155
        %v8159 = vrot.slane %v8158, 4
        %v8160 = vadd.f32 %v8158, %v8159
        %v8161 = vrot.slane %v8160, 2
        %v8162 = vadd.f32 %v8160, %v8161
        %v8163 = vrot.slane %v8162, 1
        %v8164 = vadd.f32 %v8162, %v8163
        %v8165 = vsel %vm1234, %v8153, 0.0
        %v8166 = vsel %vm1234, %v8157, 0.0
        %v8167 = vadd.f32 %v8165, %v8166
        %v8168 = vrot.slane %v8167, 4
        %v8169 = vadd.f32 %v8167, %v8168
        %v8170 = vrot.slane %v8169, 2
        %v8171 = vadd.f32 %v8169, %v8170
        %v8172 = vrot.slane %v8171, 1
        %v8173 = vadd.f32 %v8171, %v8172
        %v8174 = vrcp.pop %v8164
        %v8175 = vrcp.pop %v8173
        %v8176 = vmul.f32 %v8151, %v8174
        %v8177 = vmul.f32 %v8153, %v8175
        %v8178 = vmul.f32 %v8155, %v8174
        %v8179 = vmul.f32 %v8157, %v8175
        %8180 = vxpose.xlu0.b32.start [1/16] %v8176, 128
        %8181 = vxpose.xlu0.b32.cont [2/16] %v8178, 128
        %8182 = vxpose.xlu0.b32.cont [3/16] 0.0, 128
        %8183 = vxpose.xlu0.b32.cont [4/16] 0.0, 128
        %8184 = vxpose.xlu0.b32.cont [5/16] 0.0, 128
        %8185 = vxpose.xlu0.b32.cont [6/16] 0.0, 128
        %8186 = vxpose.xlu0.b32.cont [7/16] 0.0, 128
        %8187 = vxpose.xlu0.b32.cont [8/16] 0.0, 128
        %8188 = vxpose.xlu0.b32.cont [9/16] 0.0, 128
        %8189 = vxpose.xlu0.b32.cont [10/16] 0.0, 128
        %8190 = vxpose.xlu0.b32.cont [11/16] 0.0, 128
        %8191 = vxpose.xlu0.b32.cont [12/16] 0.0, 128
        %8192 = vxpose.xlu0.b32.cont [13/16] 0.0, 128
        %8193 = vxpose.xlu0.b32.cont [14/16] 0.0, 128
        %8194 = vxpose.xlu0.b32.cont [15/16] 0.0, 128
        %8195 = vxpose.xlu0.b32.end [16/16] 0.0, 128
        %v8196 = vpop.trf.xlu0
        %v8197 = vpop.trf.xlu0
        %v8198 = vpop.trf.xlu0
        %v8199 = vpop.trf.xlu0
        %v8200 = vpop.trf.xlu0
        %v8201 = vpop.trf.xlu0
        %v8202 = vpop.trf.xlu0
        %v8203 = vpop.trf.xlu0
        %v8204 = vpop.trf.xlu0
        %v8205 = vpop.trf.xlu0
        %v8206 = vpop.trf.xlu0
        %v8207 = vpop.trf.xlu0
        %v8208 = vpop.trf.xlu0
        %v8209 = vpop.trf.xlu0
        %v8210 = vpop.trf.xlu0
        %v8211 = vpop.trf.xlu0
        %8212 = vxpose.xlu0.b32.start [1/16] %v8177, 128
        %8213 = vxpose.xlu0.b32.cont [2/16] %v8179, 128
        %8214 = vxpose.xlu0.b32.cont [3/16] 0.0, 128
        %8215 = vxpose.xlu0.b32.cont [4/16] 0.0, 128
        %8216 = vxpose.xlu0.b32.cont [5/16] 0.0, 128
        %8217 = vxpose.xlu0.b32.cont [6/16] 0.0, 128
        %8218 = vxpose.xlu0.b32.cont [7/16] 0.0, 128
        %8219 = vxpose.xlu0.b32.cont [8/16] 0.0, 128
        %8220 = vxpose.xlu0.b32.cont [9/16] 0.0, 128
        %8221 = vxpose.xlu0.b32.cont [10/16] 0.0, 128
        %8222 = vxpose.xlu0.b32.cont [11/16] 0.0, 128
        %8223 = vxpose.xlu0.b32.cont [12/16] 0.0, 128
        %8224 = vxpose.xlu0.b32.cont [13/16] 0.0, 128
        %8225 = vxpose.xlu0.b32.cont [14/16] 0.0, 128
        %8226 = vxpose.xlu0.b32.cont [15/16] 0.0, 128
        %8227 = vxpose.xlu0.b32.end [16/16] 0.0, 128
        %v8228 = vpop.trf.xlu0
        %v8229 = vpop.trf.xlu0
        %v8230 = vpop.trf.xlu0
        %v8231 = vpop.trf.xlu0
        %v8232 = vpop.trf.xlu0
        %v8233 = vpop.trf.xlu0
        %v8234 = vpop.trf.xlu0
        %v8235 = vpop.trf.xlu0
        %v8236 = vpop.trf.xlu0
        %v8237 = vpop.trf.xlu0
        %v8238 = vpop.trf.xlu0
        %v8239 = vpop.trf.xlu0
        %v8240 = vpop.trf.xlu0
        %v8241 = vpop.trf.xlu0
        %v8242 = vpop.trf.xlu0
        %v8243 = vpop.trf.xlu0
        %8244 = vrot.lane.b32.xlu0 %v6971, 74
        %v8245 = vpop.permute.xlu0 %8244
        %8246 = vrot.lane.b32.xlu0 %v6974, 74
        %v8247 = vpop.permute.xlu0 %8246
        %v8251 = vsel %vm1234, %v8196, 0
        %v8254 = vsel %vm1234, %v8197, 0
        %v8257 = vsel %vm1234, %v8198, 0
        %v8260 = vsel %vm1234, %v8199, 0
        %v8263 = vsel %vm1234, %v8200, 0
        %v8266 = vsel %vm1234, %v8201, 0
        %v8269 = vsel %vm1234, %v8202, 0
        %v8272 = vsel %vm1234, %v8203, 0
        %v8275 = vsel %vm1234, %v8204, 0
        %v8278 = vsel %vm1234, %v8205, 0
        %v8281 = vsel %vm1234, %v8206, 0
        %v8284 = vsel %vm1234, %v8207, 0
        %v8287 = vsel %vm1234, %v8208, 0
        %v8290 = vsel %vm1234, %v8209, 0
        %v8293 = vsel %vm1234, %v8210, 0
        %v8296 = vsel %vm1234, %v8211, 0
        %v8299 = vsel %vm1234, %v8228, 0
        %v8302 = vsel %vm1234, %v8229, 0
        %8304 = vmatpush.msra.mxu0 0.0
        %8305 = vmatpush.msra.mxu0 0.0
        %8306 = vmatpush.msra.mxu0 0.0
        %8307 = vmatpush.msra.mxu0 0.0
        %8308 = vmatpush.msra.mxu0 0.0
        %8309 = vmatpush.msra.mxu0 0.0
        %8310 = vmatpush.msra.mxu0 0.0
        %8311 = vmatpush.msra.mxu0 0.0
        %8312 = vmatpush.msra.mxu0 0.0
        %8313 = vmatpush.msra.mxu0 0.0
        %8314 = vmatpush.msra.mxu0 0.0
        %8315 = vmatpush.msra.mxu0 0.0
        %8316 = vmatpush.msra.mxu0 0.0
        %8317 = vmatpush.msra.mxu0 0.0
        %8318 = vmatpush.msra.mxu0 %v8247
        %8319 = vmatpush.msra.mxu0 %v8245
        %8320 = vmatmul.f32.gmra.mxu0 %v8251
        %v8321 = vpop.f32.mrf.mxu0
        %v8322 = vadd.f32 0.0, %v8321
        %8323 = vmatmul.f32.gmra.mxu0 %v8254
        %v8324 = vpop.f32.mrf.mxu0
        %v8325 = vadd.f32 0.0, %v8324
        %8326 = vmatmul.f32.gmra.mxu0 %v8257
        %v8327 = vpop.f32.mrf.mxu0
        %v8328 = vadd.f32 0.0, %v8327
        %8329 = vmatmul.f32.gmra.mxu0 %v8260
        %v8330 = vpop.f32.mrf.mxu0
        %v8331 = vadd.f32 0.0, %v8330
        %8332 = vmatmul.f32.gmra.mxu0 %v8263
        %v8333 = vpop.f32.mrf.mxu0
        %v8334 = vadd.f32 0.0, %v8333
        %8335 = vmatmul.f32.gmra.mxu0 %v8266
        %v8336 = vpop.f32.mrf.mxu0
        %v8337 = vadd.f32 0.0, %v8336
        %8338 = vmatmul.f32.gmra.mxu0 %v8269
        %v8339 = vpop.f32.mrf.mxu0
        %v8340 = vadd.f32 0.0, %v8339
        %8341 = vmatmul.f32.gmra.mxu0 %v8272
        %v8342 = vpop.f32.mrf.mxu0
        %v8343 = vadd.f32 0.0, %v8342
        %8344 = vmatmul.f32.gmra.mxu0 %v8275
        %v8345 = vpop.f32.mrf.mxu0
        %v8346 = vadd.f32 0.0, %v8345
        %8347 = vmatmul.f32.gmra.mxu0 %v8278
        %v8348 = vpop.f32.mrf.mxu0
        %v8349 = vadd.f32 0.0, %v8348
        %8350 = vmatmul.f32.gmra.mxu0 %v8281
        %v8351 = vpop.f32.mrf.mxu0
        %v8352 = vadd.f32 0.0, %v8351
        %8353 = vmatmul.f32.gmra.mxu0 %v8284
        %v8354 = vpop.f32.mrf.mxu0
        %v8355 = vadd.f32 0.0, %v8354
        %8356 = vmatmul.f32.gmra.mxu0 %v8287
        %v8357 = vpop.f32.mrf.mxu0
        %v8358 = vadd.f32 0.0, %v8357
        %8359 = vmatmul.f32.gmra.mxu0 %v8290
        %v8360 = vpop.f32.mrf.mxu0
        %v8361 = vadd.f32 0.0, %v8360
        %8362 = vmatmul.f32.gmra.mxu0 %v8293
        %v8363 = vpop.f32.mrf.mxu0
        %v8364 = vadd.f32 0.0, %v8363
        %8365 = vmatmul.f32.gmra.mxu0 %v8296
        %v8366 = vpop.f32.mrf.mxu0
        %v8367 = vadd.f32 0.0, %v8366
        %8368 = vmatmul.f32.gmra.mxu0 %v8299
        %v8369 = vpop.f32.mrf.mxu0
        %v8370 = vadd.f32 0.0, %v8369
        %8371 = vmatmul.f32.gmra.mxu0 %v8302
        %v8372 = vpop.f32.mrf.mxu0
        %v8373 = vadd.f32 0.0, %v8372
        %8374 = vdwg.mxu0
        %v8375 = vmul.f32 %v8322, %v374
        %v8376 = vmul.f32 %v8325, %v374
        %v8377 = vmul.f32 %v8328, %v379
        %v8378 = vmul.f32 %v8331, %v379
        %v8379 = vmul.f32 %v8334, %v384
        %v8380 = vmul.f32 %v8337, %v384
        %v8381 = vmul.f32 %v8340, %v389
        %v8382 = vmul.f32 %v8343, %v389
        %v8383 = vmul.f32 %v8346, %v394
        %v8384 = vmul.f32 %v8349, %v394
        %v8385 = vmul.f32 %v8352, %v399
        %v8386 = vmul.f32 %v8355, %v399
        %v8387 = vmul.f32 %v8358, %v404
        %v8388 = vmul.f32 %v8361, %v404
        %v8389 = vmul.f32 %v8364, %v409
        %v8390 = vmul.f32 %v8367, %v409
        %v8391 = vmul.f32 %v8370, %v414
        %v8392 = vmul.f32 %v8373, %v414
        %v8393 = vadd.f32 %v8375, %v8377
        %v8394 = vadd.f32 %v8376, %v8378
        %v8395 = vadd.f32 %v8393, %v8379
        %v8396 = vadd.f32 %v8394, %v8380
        %v8397 = vadd.f32 %v8395, %v8381
        %v8398 = vadd.f32 %v8396, %v8382
        %v8399 = vadd.f32 %v8397, %v8383
        %v8400 = vadd.f32 %v8398, %v8384
        %v8401 = vadd.f32 %v8399, %v8385
        %v8402 = vadd.f32 %v8400, %v8386
        %v8403 = vadd.f32 %v8401, %v8387
        %v8404 = vadd.f32 %v8402, %v8388
        %v8405 = vadd.f32 %v8403, %v8389
        %v8406 = vadd.f32 %v8404, %v8390
        %v8407 = vadd.f32 %v8405, %v8391
        %v8408 = vadd.f32 %v8406, %v8392
        %v8409 = vmul.f32 %v7174, %v374
        %v8410 = vmul.f32 %v7175, %v374
        %v8411 = vmul.f32 %v7174, %v379
        %v8412 = vmul.f32 %v7175, %v379
        %v8413 = vmul.f32 %v7174, %v384
        %v8414 = vmul.f32 %v7175, %v384
        %v8415 = vmul.f32 %v7174, %v389
        %v8416 = vmul.f32 %v7175, %v389
        %v8417 = vmul.f32 %v7174, %v394
        %v8418 = vmul.f32 %v7175, %v394
        %v8419 = vmul.f32 %v7174, %v399
        %v8420 = vmul.f32 %v7175, %v399
        %v8421 = vmul.f32 %v7174, %v404
        %v8422 = vmul.f32 %v7175, %v404
        %v8423 = vmul.f32 %v7174, %v409
        %v8424 = vmul.f32 %v7175, %v409
        %v8425 = vmul.f32 %v7174, %v414
        %v8426 = vmul.f32 %v7175, %v414
        %8429 = vrot.lane.b32.xlu0 %v6977, 101
        %v8430 = vpop.permute.xlu0 %8429
        %8431 = vrot.lane.b32.xlu0 %v6980, 101
        %v8432 = vpop.permute.xlu0 %8431
        %v8433 = vsel %vm417, %v8430, 0
        %v8435 = vsel %vm417, %v8432, 0
        %v8438 = vsel %vm417, %v8409, 0
        %v8441 = vsel %vm417, %v8410, 0
        %v8444 = vsel %vm417, %v8411, 0
        %v8447 = vsel %vm417, %v8412, 0
        %v8450 = vsel %vm417, %v8413, 0
        %v8453 = vsel %vm417, %v8414, 0
        %v8456 = vsel %vm417, %v8415, 0
        %v8459 = vsel %vm417, %v8416, 0
        %v8462 = vsel %vm417, %v8417, 0
        %v8465 = vsel %vm417, %v8418, 0
        %v8468 = vsel %vm417, %v8419, 0
        %v8471 = vsel %vm417, %v8420, 0
        %v8474 = vsel %vm417, %v8421, 0
        %v8477 = vsel %vm417, %v8422, 0
        %v8480 = vsel %vm417, %v8423, 0
        %v8483 = vsel %vm417, %v8424, 0
        %v8486 = vsel %vm417, %v8425, 0
        %v8489 = vsel %vm417, %v8426, 0
        %8491 = vmatpush.xpose.msra.mxu0 %v8483
        %8492 = vmatpush.xpose.msra.mxu0 %v8480
        %8493 = vmatpush.xpose.msra.mxu0 %v8477
        %8494 = vmatpush.xpose.msra.mxu0 %v8474
        %8495 = vmatpush.xpose.msra.mxu0 %v8471
        %8496 = vmatpush.xpose.msra.mxu0 %v8468
        %8497 = vmatpush.xpose.msra.mxu0 %v8465
        %8498 = vmatpush.xpose.msra.mxu0 %v8462
        %8499 = vmatpush.xpose.msra.mxu0 %v8459
        %8500 = vmatpush.xpose.msra.mxu0 %v8456
        %8501 = vmatpush.xpose.msra.mxu0 %v8453
        %8502 = vmatpush.xpose.msra.mxu0 %v8450
        %8503 = vmatpush.xpose.msra.mxu0 %v8447
        %8504 = vmatpush.xpose.msra.mxu0 %v8444
        %8505 = vmatpush.xpose.msra.mxu0 %v8441
        %8506 = vmatpush.xpose.msra.mxu0 %v8438
        %8507 = vmatmul.f32.gmra.mxu0 %v8433
        %v8508 = vpop.f32.mrf.mxu0
        %v8509 = vadd.f32 0.0, %v8508
        %8510 = vmatmul.f32.gmra.mxu0 %v8435
        %v8511 = vpop.f32.mrf.mxu0
        %v8512 = vadd.f32 0.0, %v8511
        %8513 = vdwg.mxu0
        %8514 = vmatpush.xpose.msra.mxu0 0.0
        %8515 = vmatpush.xpose.msra.mxu0 0.0
        %8516 = vmatpush.xpose.msra.mxu0 0.0
        %8517 = vmatpush.xpose.msra.mxu0 0.0
        %8518 = vmatpush.xpose.msra.mxu0 0.0
        %8519 = vmatpush.xpose.msra.mxu0 0.0
        %8520 = vmatpush.xpose.msra.mxu0 0.0
        %8521 = vmatpush.xpose.msra.mxu0 0.0
        %8522 = vmatpush.xpose.msra.mxu0 0.0
        %8523 = vmatpush.xpose.msra.mxu0 0.0
        %8524 = vmatpush.xpose.msra.mxu0 0.0
        %8525 = vmatpush.xpose.msra.mxu0 0.0
        %8526 = vmatpush.xpose.msra.mxu0 0.0
        %8527 = vmatpush.xpose.msra.mxu0 0.0
        %8528 = vmatpush.xpose.msra.mxu0 %v8489
        %8529 = vmatpush.xpose.msra.mxu0 %v8486
        %8530 = vmatmul.f32.gmra.mxu0 %v8433
        %v8531 = vpop.f32.mrf.mxu0
        %v8532 = vadd.f32 0.0, %v8531
        %8533 = vmatmul.f32.gmra.mxu0 %v8435
        %v8534 = vpop.f32.mrf.mxu0
        %v8535 = vadd.f32 0.0, %v8534
        %8536 = vdwg.mxu0
        %v8537 = vmul.f32 %v8509, 0.57735026
        %v8538 = vmul.f32 %v8532, 0.57735026
        %v8539 = vmul.f32 %v8512, 0.57735026
        %v8540 = vmul.f32 %v8535, 0.57735026
        %v8541 = vmax.f32 %v8537, %v8539
        %v8542 = vrot.slane %v8541, 4
        %v8543 = vmax.f32 %v8541, %v8542
        %v8544 = vrot.slane %v8543, 2
        %v8545 = vmax.f32 %v8543, %v8544
        %v8546 = vrot.slane %v8545, 1
        %v8547 = vmax.f32 %v8545, %v8546
        %v8548 = vsel %vm1234, %v8538, -inf
        %v8549 = vsel %vm1234, %v8540, -inf
        %v8550 = vmax.f32 %v8548, %v8549
        %v8551 = vrot.slane %v8550, 4
        %v8552 = vmax.f32 %v8550, %v8551
        %v8553 = vrot.slane %v8552, 2
        %v8554 = vmax.f32 %v8552, %v8553
        %v8555 = vrot.slane %v8554, 1
        %v8556 = vmax.f32 %v8554, %v8555
        %v8557 = vsub.f32 %v8537, %v8547
        %v8558 = vsub.f32 %v8538, %v8556
        %v8559 = vsub.f32 %v8539, %v8547
        %v8560 = vsub.f32 %v8540, %v8556
        %v8561 = vmul.f32 %v8557, 1.442695
        %v8562 = vpow.pop %v8561
        %v8563 = vmul.f32 %v8558, 1.442695
        %v8564 = vpow.pop %v8563
        %v8565 = vmul.f32 %v8559, 1.442695
        %v8566 = vpow.pop %v8565
        %v8567 = vmul.f32 %v8560, 1.442695
        %v8568 = vpow.pop %v8567
        %v8569 = vadd.f32 %v8562, %v8566
        %v8570 = vrot.slane %v8569, 4
        %v8571 = vadd.f32 %v8569, %v8570
        %v8572 = vrot.slane %v8571, 2
        %v8573 = vadd.f32 %v8571, %v8572
        %v8574 = vrot.slane %v8573, 1
        %v8575 = vadd.f32 %v8573, %v8574
        %v8576 = vsel %vm1234, %v8564, 0.0
        %v8577 = vsel %vm1234, %v8568, 0.0
        %v8578 = vadd.f32 %v8576, %v8577
        %v8579 = vrot.slane %v8578, 4
        %v8580 = vadd.f32 %v8578, %v8579
        %v8581 = vrot.slane %v8580, 2
        %v8582 = vadd.f32 %v8580, %v8581
        %v8583 = vrot.slane %v8582, 1
        %v8584 = vadd.f32 %v8582, %v8583
        %v8585 = vrcp.pop %v8575
        %v8586 = vrcp.pop %v8584
        %v8587 = vmul.f32 %v8562, %v8585
        %v8588 = vmul.f32 %v8564, %v8586
        %v8589 = vmul.f32 %v8566, %v8585
        %v8590 = vmul.f32 %v8568, %v8586
        %8591 = vxpose.xlu0.b32.start [1/16] %v8587, 128
        %8592 = vxpose.xlu0.b32.cont [2/16] %v8589, 128
        %8593 = vxpose.xlu0.b32.cont [3/16] 0.0, 128
        %8594 = vxpose.xlu0.b32.cont [4/16] 0.0, 128
        %8595 = vxpose.xlu0.b32.cont [5/16] 0.0, 128
        %8596 = vxpose.xlu0.b32.cont [6/16] 0.0, 128
        %8597 = vxpose.xlu0.b32.cont [7/16] 0.0, 128
        %8598 = vxpose.xlu0.b32.cont [8/16] 0.0, 128
        %8599 = vxpose.xlu0.b32.cont [9/16] 0.0, 128
        %8600 = vxpose.xlu0.b32.cont [10/16] 0.0, 128
        %8601 = vxpose.xlu0.b32.cont [11/16] 0.0, 128
        %8602 = vxpose.xlu0.b32.cont [12/16] 0.0, 128
        %8603 = vxpose.xlu0.b32.cont [13/16] 0.0, 128
        %8604 = vxpose.xlu0.b32.cont [14/16] 0.0, 128
        %8605 = vxpose.xlu0.b32.cont [15/16] 0.0, 128
        %8606 = vxpose.xlu0.b32.end [16/16] 0.0, 128
        %v8607 = vpop.trf.xlu0
        %v8608 = vpop.trf.xlu0
        %v8609 = vpop.trf.xlu0
        %v8610 = vpop.trf.xlu0
        %v8611 = vpop.trf.xlu0
        %v8612 = vpop.trf.xlu0
        %v8613 = vpop.trf.xlu0
        %v8614 = vpop.trf.xlu0
        %v8615 = vpop.trf.xlu0
        %v8616 = vpop.trf.xlu0
        %v8617 = vpop.trf.xlu0
        %v8618 = vpop.trf.xlu0
        %v8619 = vpop.trf.xlu0
        %v8620 = vpop.trf.xlu0
        %v8621 = vpop.trf.xlu0
        %v8622 = vpop.trf.xlu0
        %8623 = vxpose.xlu0.b32.start [1/16] %v8588, 128
        %8624 = vxpose.xlu0.b32.cont [2/16] %v8590, 128
        %8625 = vxpose.xlu0.b32.cont [3/16] 0.0, 128
        %8626 = vxpose.xlu0.b32.cont [4/16] 0.0, 128
        %8627 = vxpose.xlu0.b32.cont [5/16] 0.0, 128
        %8628 = vxpose.xlu0.b32.cont [6/16] 0.0, 128
        %8629 = vxpose.xlu0.b32.cont [7/16] 0.0, 128
        %8630 = vxpose.xlu0.b32.cont [8/16] 0.0, 128
        %8631 = vxpose.xlu0.b32.cont [9/16] 0.0, 128
        %8632 = vxpose.xlu0.b32.cont [10/16] 0.0, 128
        %8633 = vxpose.xlu0.b32.cont [11/16] 0.0, 128
        %8634 = vxpose.xlu0.b32.cont [12/16] 0.0, 128
        %8635 = vxpose.xlu0.b32.cont [13/16] 0.0, 128
        %8636 = vxpose.xlu0.b32.cont [14/16] 0.0, 128
        %8637 = vxpose.xlu0.b32.cont [15/16] 0.0, 128
        %8638 = vxpose.xlu0.b32.end [16/16] 0.0, 128
        %v8639 = vpop.trf.xlu0
        %v8640 = vpop.trf.xlu0
        %v8641 = vpop.trf.xlu0
        %v8642 = vpop.trf.xlu0
        %v8643 = vpop.trf.xlu0
        %v8644 = vpop.trf.xlu0
        %v8645 = vpop.trf.xlu0
        %v8646 = vpop.trf.xlu0
        %v8647 = vpop.trf.xlu0
        %v8648 = vpop.trf.xlu0
        %v8649 = vpop.trf.xlu0
        %v8650 = vpop.trf.xlu0
        %v8651 = vpop.trf.xlu0
        %v8652 = vpop.trf.xlu0
        %v8653 = vpop.trf.xlu0
        %v8654 = vpop.trf.xlu0
        %8655 = vrot.lane.b32.xlu0 %v6977, 74
        %v8656 = vpop.permute.xlu0 %8655
        %8657 = vrot.lane.b32.xlu0 %v6980, 74
        %v8658 = vpop.permute.xlu0 %8657
        %v8662 = vsel %vm1234, %v8607, 0
        %v8665 = vsel %vm1234, %v8608, 0
        %v8668 = vsel %vm1234, %v8609, 0
        %v8671 = vsel %vm1234, %v8610, 0
        %v8674 = vsel %vm1234, %v8611, 0
        %v8677 = vsel %vm1234, %v8612, 0
        %v8680 = vsel %vm1234, %v8613, 0
        %v8683 = vsel %vm1234, %v8614, 0
        %v8686 = vsel %vm1234, %v8615, 0
        %v8689 = vsel %vm1234, %v8616, 0
        %v8692 = vsel %vm1234, %v8617, 0
        %v8695 = vsel %vm1234, %v8618, 0
        %v8698 = vsel %vm1234, %v8619, 0
        %v8701 = vsel %vm1234, %v8620, 0
        %v8704 = vsel %vm1234, %v8621, 0
        %v8707 = vsel %vm1234, %v8622, 0
        %v8710 = vsel %vm1234, %v8639, 0
        %v8713 = vsel %vm1234, %v8640, 0
        %8715 = vmatpush.msra.mxu0 0.0
        %8716 = vmatpush.msra.mxu0 0.0
        %8717 = vmatpush.msra.mxu0 0.0
        %8718 = vmatpush.msra.mxu0 0.0
        %8719 = vmatpush.msra.mxu0 0.0
        %8720 = vmatpush.msra.mxu0 0.0
        %8721 = vmatpush.msra.mxu0 0.0
        %8722 = vmatpush.msra.mxu0 0.0
        %8723 = vmatpush.msra.mxu0 0.0
        %8724 = vmatpush.msra.mxu0 0.0
        %8725 = vmatpush.msra.mxu0 0.0
        %8726 = vmatpush.msra.mxu0 0.0
        %8727 = vmatpush.msra.mxu0 0.0
        %8728 = vmatpush.msra.mxu0 0.0
        %8729 = vmatpush.msra.mxu0 %v8658
        %8730 = vmatpush.msra.mxu0 %v8656
        %8731 = vmatmul.f32.gmra.mxu0 %v8662
        %v8732 = vpop.f32.mrf.mxu0
        %v8733 = vadd.f32 0.0, %v8732
        %8734 = vmatmul.f32.gmra.mxu0 %v8665
        %v8735 = vpop.f32.mrf.mxu0
        %v8736 = vadd.f32 0.0, %v8735
        %8737 = vmatmul.f32.gmra.mxu0 %v8668
        %v8738 = vpop.f32.mrf.mxu0
        %v8739 = vadd.f32 0.0, %v8738
        %8740 = vmatmul.f32.gmra.mxu0 %v8671
        %v8741 = vpop.f32.mrf.mxu0
        %v8742 = vadd.f32 0.0, %v8741
        %8743 = vmatmul.f32.gmra.mxu0 %v8674
        %v8744 = vpop.f32.mrf.mxu0
        %v8745 = vadd.f32 0.0, %v8744
        %8746 = vmatmul.f32.gmra.mxu0 %v8677
        %v8747 = vpop.f32.mrf.mxu0
        %v8748 = vadd.f32 0.0, %v8747
        %8749 = vmatmul.f32.gmra.mxu0 %v8680
        %v8750 = vpop.f32.mrf.mxu0
        %v8751 = vadd.f32 0.0, %v8750
        %8752 = vmatmul.f32.gmra.mxu0 %v8683
        %v8753 = vpop.f32.mrf.mxu0
        %v8754 = vadd.f32 0.0, %v8753
        %8755 = vmatmul.f32.gmra.mxu0 %v8686
        %v8756 = vpop.f32.mrf.mxu0
        %v8757 = vadd.f32 0.0, %v8756
        %8758 = vmatmul.f32.gmra.mxu0 %v8689
        %v8759 = vpop.f32.mrf.mxu0
        %v8760 = vadd.f32 0.0, %v8759
        %8761 = vmatmul.f32.gmra.mxu0 %v8692
        %v8762 = vpop.f32.mrf.mxu0
        %v8763 = vadd.f32 0.0, %v8762
        %8764 = vmatmul.f32.gmra.mxu0 %v8695
        %v8765 = vpop.f32.mrf.mxu0
        %v8766 = vadd.f32 0.0, %v8765
        %8767 = vmatmul.f32.gmra.mxu0 %v8698
        %v8768 = vpop.f32.mrf.mxu0
        %v8769 = vadd.f32 0.0, %v8768
        %8770 = vmatmul.f32.gmra.mxu0 %v8701
        %v8771 = vpop.f32.mrf.mxu0
        %v8772 = vadd.f32 0.0, %v8771
        %8773 = vmatmul.f32.gmra.mxu0 %v8704
        %v8774 = vpop.f32.mrf.mxu0
        %v8775 = vadd.f32 0.0, %v8774
        %8776 = vmatmul.f32.gmra.mxu0 %v8707
        %v8777 = vpop.f32.mrf.mxu0
        %v8778 = vadd.f32 0.0, %v8777
        %8779 = vmatmul.f32.gmra.mxu0 %v8710
        %v8780 = vpop.f32.mrf.mxu0
        %v8781 = vadd.f32 0.0, %v8780
        %8782 = vmatmul.f32.gmra.mxu0 %v8713
        %v8783 = vpop.f32.mrf.mxu0
        %v8784 = vadd.f32 0.0, %v8783
        %8785 = vdwg.mxu0
        %v8786 = vmul.f32 %v8733, %v374
        %v8787 = vmul.f32 %v8736, %v374
        %v8788 = vmul.f32 %v8739, %v379
        %v8789 = vmul.f32 %v8742, %v379
        %v8790 = vmul.f32 %v8745, %v384
        %v8791 = vmul.f32 %v8748, %v384
        %v8792 = vmul.f32 %v8751, %v389
        %v8793 = vmul.f32 %v8754, %v389
        %v8794 = vmul.f32 %v8757, %v394
        %v8795 = vmul.f32 %v8760, %v394
        %v8796 = vmul.f32 %v8763, %v399
        %v8797 = vmul.f32 %v8766, %v399
        %v8798 = vmul.f32 %v8769, %v404
        %v8799 = vmul.f32 %v8772, %v404
        %v8800 = vmul.f32 %v8775, %v409
        %v8801 = vmul.f32 %v8778, %v409
        %v8802 = vmul.f32 %v8781, %v414
        %v8803 = vmul.f32 %v8784, %v414
        %v8804 = vadd.f32 %v8786, %v8788
        %v8805 = vadd.f32 %v8787, %v8789
        %v8806 = vadd.f32 %v8804, %v8790
        %v8807 = vadd.f32 %v8805, %v8791
        %v8808 = vadd.f32 %v8806, %v8792
        %v8809 = vadd.f32 %v8807, %v8793
        %v8810 = vadd.f32 %v8808, %v8794
        %v8811 = vadd.f32 %v8809, %v8795
        %v8812 = vadd.f32 %v8810, %v8796
        %v8813 = vadd.f32 %v8811, %v8797
        %v8814 = vadd.f32 %v8812, %v8798
        %v8815 = vadd.f32 %v8813, %v8799
        %v8816 = vadd.f32 %v8814, %v8800
        %v8817 = vadd.f32 %v8815, %v8801
        %v8818 = vadd.f32 %v8816, %v8802
        %v8819 = vadd.f32 %v8817, %v8803
        %v8820 = vld [vmem:[%s1 + $0x1d] sm:$0x1]
        %v8821 = vsub.f32 %v7168, %v7585
        %v8822 = vsub.f32 %v7169, %v7586
        %v8823 = vsub.f32 %v7170, %v7996
        %v8824 = vsub.f32 %v7171, %v7997
        %v8825 = vsub.f32 %v7172, %v8407
        %v8826 = vsub.f32 %v7173, %v8408
        %v8827 = vsub.f32 %v7174, %v8818
        %v8828 = vsub.f32 %v7175, %v8819
        %s8829 = scalar_lea.vmem %s2, 256
        %v8830 = vld [vmem:[%s8829] sm:$0xff]
        %v8831 = vld [vmem:[%s8829 + $0x8] sm:$0xff]
        %v8832 = vld [vmem:[%s8829 + $0x10] sm:$0xff]
        %v8833 = vld [vmem:[%s8829 + $0x18] sm:$0x7]
        %v8834 = vperm.slane %v8820, 0
        %v8836 = vsel %vm417, %v8821, 0
        %v8839 = vsel %vm417, %v8822, 0
        %v8842 = vsel %vm417, %v8823, 0
        %v8845 = vsel %vm417, %v8824, 0
        %v8848 = vsel %vm417, %v8825, 0
        %v8851 = vsel %vm417, %v8826, 0
        %v8854 = vsel %vm417, %v8827, 0
        %v8857 = vsel %vm417, %v8828, 0
        %v8860 = vsel %vm855, %v8833, 0
        %8862 = vmatpush.msra.mxu0 0.0
        %8863 = vmatpush.msra.mxu0 0.0
        %8864 = vmatpush.msra.mxu0 0.0
        %8865 = vmatpush.msra.mxu0 0.0
        %8866 = vmatpush.msra.mxu0 0.0
        %8867 = vmatpush.msra.mxu0 0.0
        %8868 = vmatpush.msra.mxu0 0.0
        %8869 = vmatpush.msra.mxu0 0.0
        %8870 = vmatpush.msra.mxu0 0.0
        %8871 = vmatpush.msra.mxu0 0.0
        %8872 = vmatpush.msra.mxu0 0.0
        %8873 = vmatpush.msra.mxu0 0.0
        %8874 = vmatpush.msra.mxu0 %v8860
        %8875 = vmatpush.msra.mxu0 %v8832
        %8876 = vmatpush.msra.mxu0 %v8831
        %8877 = vmatpush.msra.mxu0 %v8830
        %8878 = vmatmul.f32.gmra.mxu0 %v8836
        %v8879 = vpop.f32.mrf.mxu0
        %v8880 = vadd.f32 %v8834, %v8879
        %8881 = vmatmul.f32.gmra.mxu0 %v8839
        %v8882 = vpop.f32.mrf.mxu0
        %v8883 = vadd.f32 %v8834, %v8882
        %8884 = vmatmul.f32.gmra.mxu0 %v8842
        %v8885 = vpop.f32.mrf.mxu0
        %v8886 = vadd.f32 %v8834, %v8885
        %8887 = vmatmul.f32.gmra.mxu0 %v8845
        %v8888 = vpop.f32.mrf.mxu0
        %v8889 = vadd.f32 %v8834, %v8888
        %8890 = vmatmul.f32.gmra.mxu0 %v8848
        %v8891 = vpop.f32.mrf.mxu0
        %v8892 = vadd.f32 %v8834, %v8891
        %8893 = vmatmul.f32.gmra.mxu0 %v8851
        %v8894 = vpop.f32.mrf.mxu0
        %v8895 = vadd.f32 %v8834, %v8894
        %8896 = vmatmul.f32.gmra.mxu0 %v8854
        %v8897 = vpop.f32.mrf.mxu0
        %v8898 = vadd.f32 %v8834, %v8897
        %8899 = vmatmul.f32.gmra.mxu0 %v8857
        %v8900 = vpop.f32.mrf.mxu0
        %v8901 = vadd.f32 %v8834, %v8900
        %8902 = vdwg.mxu0
        %v8903 = vadd.f32 %v6703, %v8880
        %v8904 = vadd.f32 %v6704, %v8883
        %v8905 = vadd.f32 %v6705, %v8886
        %v8906 = vadd.f32 %v6706, %v8889
        %v8907 = vadd.f32 %v6707, %v8892
        %v8908 = vadd.f32 %v6708, %v8895
        %v8909 = vadd.f32 %v6709, %v8898
        %v8910 = vadd.f32 %v6710, %v8901
        %v8911 = vld [vmem:[%s1 + $0x1e] sm:$0x1]
        %v8912 = vld [vmem:[%s1 + $0x1f] sm:$0x1]
        %v8913 = vsel %vm417, %v8903, 0.0
        %8914 = vadd.xlane.f32.xlu0 %v8913
        %v8915 = vpop.xlane.xlu0 %8914
        %v8916 = vsel %vm417, %v8904, 0.0
        %8917 = vadd.xlane.f32.xlu0 %v8916
        %v8918 = vpop.xlane.xlu0 %8917
        %v8919 = vsel %vm417, %v8905, 0.0
        %8920 = vadd.xlane.f32.xlu0 %v8919
        %v8921 = vpop.xlane.xlu0 %8920
        %v8922 = vsel %vm417, %v8906, 0.0
        %8923 = vadd.xlane.f32.xlu0 %v8922
        %v8924 = vpop.xlane.xlu0 %8923
        %v8925 = vsel %vm417, %v8907, 0.0
        %8926 = vadd.xlane.f32.xlu0 %v8925
        %v8927 = vpop.xlane.xlu0 %8926
        %v8928 = vsel %vm417, %v8908, 0.0
        %8929 = vadd.xlane.f32.xlu0 %v8928
        %v8930 = vpop.xlane.xlu0 %8929
        %v8931 = vsel %vm417, %v8909, 0.0
        %8932 = vadd.xlane.f32.xlu0 %v8931
        %v8933 = vpop.xlane.xlu0 %8932
        %v8934 = vsel %vm417, %v8910, 0.0
        %8935 = vadd.xlane.f32.xlu0 %v8934
        %v8936 = vpop.xlane.xlu0 %8935
        %v8937 = vmul.f32 %v8915, %v448
        %v8938 = vmul.f32 %v8918, %v448
        %v8939 = vmul.f32 %v8921, %v448
        %v8940 = vmul.f32 %v8924, %v448
        %v8941 = vmul.f32 %v8927, %v448
        %v8942 = vmul.f32 %v8930, %v448
        %v8943 = vmul.f32 %v8933, %v448
        %v8944 = vmul.f32 %v8936, %v448
        %v8945 = vsub.f32 %v8903, %v8937
        %v8946 = vsub.f32 %v8904, %v8938
        %v8947 = vsub.f32 %v8905, %v8939
        %v8948 = vsub.f32 %v8906, %v8940
        %v8949 = vsub.f32 %v8907, %v8941
        %v8950 = vsub.f32 %v8908, %v8942
        %v8951 = vsub.f32 %v8909, %v8943
        %v8952 = vsub.f32 %v8910, %v8944
        %v8953 = vmul.f32 %v8945, %v8945
        %v8954 = vmul.f32 %v8946, %v8946
        %v8955 = vmul.f32 %v8947, %v8947
        %v8956 = vmul.f32 %v8948, %v8948
        %v8957 = vmul.f32 %v8949, %v8949
        %v8958 = vmul.f32 %v8950, %v8950
        %v8959 = vmul.f32 %v8951, %v8951
        %v8960 = vmul.f32 %v8952, %v8952
        %v8961 = vsel %vm417, %v8953, 0.0
        %8962 = vadd.xlane.f32.xlu0 %v8961
        %v8963 = vpop.xlane.xlu0 %8962
        %v8964 = vsel %vm417, %v8954, 0.0
        %8965 = vadd.xlane.f32.xlu0 %v8964
        %v8966 = vpop.xlane.xlu0 %8965
        %v8967 = vsel %vm417, %v8955, 0.0
        %8968 = vadd.xlane.f32.xlu0 %v8967
        %v8969 = vpop.xlane.xlu0 %8968
        %v8970 = vsel %vm417, %v8956, 0.0
        %8971 = vadd.xlane.f32.xlu0 %v8970
        %v8972 = vpop.xlane.xlu0 %8971
        %v8973 = vsel %vm417, %v8957, 0.0
        %8974 = vadd.xlane.f32.xlu0 %v8973
        %v8975 = vpop.xlane.xlu0 %8974
        %v8976 = vsel %vm417, %v8958, 0.0
        %8977 = vadd.xlane.f32.xlu0 %v8976
        %v8978 = vpop.xlane.xlu0 %8977
        %v8979 = vsel %vm417, %v8959, 0.0
        %8980 = vadd.xlane.f32.xlu0 %v8979
        %v8981 = vpop.xlane.xlu0 %8980
        %v8982 = vsel %vm417, %v8960, 0.0
        %8983 = vadd.xlane.f32.xlu0 %v8982
        %v8984 = vpop.xlane.xlu0 %8983
        %v8985 = vmul.f32 %v8963, %v448
        %v8986 = vmul.f32 %v8966, %v448
        %v8987 = vmul.f32 %v8969, %v448
        %v8988 = vmul.f32 %v8972, %v448
        %v8989 = vmul.f32 %v8975, %v448
        %v8990 = vmul.f32 %v8978, %v448
        %v8991 = vmul.f32 %v8981, %v448
        %v8992 = vmul.f32 %v8984, %v448
        %v8993 = vadd.f32 %v8985, 1e-06
        %v8994 = vadd.f32 %v8986, 1e-06
        %v8995 = vadd.f32 %v8987, 1e-06
        %v8996 = vadd.f32 %v8988, 1e-06
        %v8997 = vadd.f32 %v8989, 1e-06
        %v8998 = vadd.f32 %v8990, 1e-06
        %v8999 = vadd.f32 %v8991, 1e-06
        %v9000 = vadd.f32 %v8992, 1e-06
        %v9001 = vrsqrt.pop %v8993
        %v9002 = vmul.f32 %v9001, %v8993
        %v9003 = vmul.f32 %v9002, %v9001
        %v9004 = vmul.f32 0.5, %v9003
        %v9005 = vsub.f32 1.5, %v9004
        %v9006 = vmul.f32 %v9001, %v9005
        %vm9007 = vweird.f32 %v8993
        %vm9008 = vweird.f32 %v9001
        %vm9009 = vmor %vm9007, %vm9008
        %v9010 = vsel %vm9009, %v9001, %v9006
        %v9011 = vrsqrt.pop %v8994
        %v9012 = vmul.f32 %v9011, %v8994
        %v9013 = vmul.f32 %v9012, %v9011
        %v9014 = vmul.f32 0.5, %v9013
        %v9015 = vsub.f32 1.5, %v9014
        %v9016 = vmul.f32 %v9011, %v9015
        %vm9017 = vweird.f32 %v8994
        %vm9018 = vweird.f32 %v9011
        %vm9019 = vmor %vm9017, %vm9018
        %v9020 = vsel %vm9019, %v9011, %v9016
        %v9021 = vrsqrt.pop %v8995
        %v9022 = vmul.f32 %v9021, %v8995
        %v9023 = vmul.f32 %v9022, %v9021
        %v9024 = vmul.f32 0.5, %v9023
        %v9025 = vsub.f32 1.5, %v9024
        %v9026 = vmul.f32 %v9021, %v9025
        %vm9027 = vweird.f32 %v8995
        %vm9028 = vweird.f32 %v9021
        %vm9029 = vmor %vm9027, %vm9028
        %v9030 = vsel %vm9029, %v9021, %v9026
        %v9031 = vrsqrt.pop %v8996
        %v9032 = vmul.f32 %v9031, %v8996
        %v9033 = vmul.f32 %v9032, %v9031
        %v9034 = vmul.f32 0.5, %v9033
        %v9035 = vsub.f32 1.5, %v9034
        %v9036 = vmul.f32 %v9031, %v9035
        %vm9037 = vweird.f32 %v8996
        %vm9038 = vweird.f32 %v9031
        %vm9039 = vmor %vm9037, %vm9038
        %v9040 = vsel %vm9039, %v9031, %v9036
        %v9041 = vrsqrt.pop %v8997
        %v9042 = vmul.f32 %v9041, %v8997
        %v9043 = vmul.f32 %v9042, %v9041
        %v9044 = vmul.f32 0.5, %v9043
        %v9045 = vsub.f32 1.5, %v9044
        %v9046 = vmul.f32 %v9041, %v9045
        %vm9047 = vweird.f32 %v8997
        %vm9048 = vweird.f32 %v9041
        %vm9049 = vmor %vm9047, %vm9048
        %v9050 = vsel %vm9049, %v9041, %v9046
        %v9051 = vrsqrt.pop %v8998
        %v9052 = vmul.f32 %v9051, %v8998
        %v9053 = vmul.f32 %v9052, %v9051
        %v9054 = vmul.f32 0.5, %v9053
        %v9055 = vsub.f32 1.5, %v9054
        %v9056 = vmul.f32 %v9051, %v9055
        %vm9057 = vweird.f32 %v8998
        %vm9058 = vweird.f32 %v9051
        %vm9059 = vmor %vm9057, %vm9058
        %v9060 = vsel %vm9059, %v9051, %v9056
        %v9061 = vrsqrt.pop %v8999
        %v9062 = vmul.f32 %v9061, %v8999
        %v9063 = vmul.f32 %v9062, %v9061
        %v9064 = vmul.f32 0.5, %v9063
        %v9065 = vsub.f32 1.5, %v9064
        %v9066 = vmul.f32 %v9061, %v9065
        %vm9067 = vweird.f32 %v8999
        %vm9068 = vweird.f32 %v9061
        %vm9069 = vmor %vm9067, %vm9068
        %v9070 = vsel %vm9069, %v9061, %v9066
        %v9071 = vrsqrt.pop %v9000
        %v9072 = vmul.f32 %v9071, %v9000
        %v9073 = vmul.f32 %v9072, %v9071
        %v9074 = vmul.f32 0.5, %v9073
        %v9075 = vsub.f32 1.5, %v9074
        %v9076 = vmul.f32 %v9071, %v9075
        %vm9077 = vweird.f32 %v9000
        %vm9078 = vweird.f32 %v9071
        %vm9079 = vmor %vm9077, %vm9078
        %v9080 = vsel %vm9079, %v9071, %v9076
        %v9081 = vmul.f32 %v8945, %v9010
        %v9082 = vmul.f32 %v8946, %v9020
        %v9083 = vmul.f32 %v8947, %v9030
        %v9084 = vmul.f32 %v8948, %v9040
        %v9085 = vmul.f32 %v8949, %v9050
        %v9086 = vmul.f32 %v8950, %v9060
        %v9087 = vmul.f32 %v8951, %v9070
        %v9088 = vmul.f32 %v8952, %v9080
        %v9089 = vperm.slane %v8911, 0
        %v9090 = vmul.f32 %v9081, %v9089
        %v9091 = vmul.f32 %v9082, %v9089
        %v9092 = vmul.f32 %v9083, %v9089
        %v9093 = vmul.f32 %v9084, %v9089
        %v9094 = vmul.f32 %v9085, %v9089
        %v9095 = vmul.f32 %v9086, %v9089
        %v9096 = vmul.f32 %v9087, %v9089
        %v9097 = vmul.f32 %v9088, %v9089
        %v9098 = vperm.slane %v8912, 0
        %v9099 = vadd.f32 %v9090, %v9098
        %v9100 = vadd.f32 %v9091, %v9098
        %v9101 = vadd.f32 %v9092, %v9098
        %v9102 = vadd.f32 %v9093, %v9098
        %v9103 = vadd.f32 %v9094, %v9098
        %v9104 = vadd.f32 %v9095, %v9098
        %v9105 = vadd.f32 %v9096, %v9098
        %v9106 = vadd.f32 %v9097, %v9098
        %v9107 = vld [vmem:[%s1 + $0x20] sm:$0x1]
        %s9108 = scalar_lea.vmem %s4, 64
        %v9109 = vld [vmem:[%s9108] sm:$0xff]
        %v9110 = vld [vmem:[%s9108 + $0x8] sm:$0xff]
        %v9111 = vld [vmem:[%s9108 + $0x10] sm:$0xff]
        %v9112 = vld [vmem:[%s9108 + $0x18] sm:$0x7]
        %v9113 = vperm.slane %v9107, 0
        %v9115 = vsel %vm417, %v9099, 0
        %v9118 = vsel %vm417, %v9100, 0
        %v9121 = vsel %vm417, %v9101, 0
        %v9124 = vsel %vm417, %v9102, 0
        %v9127 = vsel %vm417, %v9103, 0
        %v9130 = vsel %vm417, %v9104, 0
        %v9133 = vsel %vm417, %v9105, 0
        %v9136 = vsel %vm417, %v9106, 0
        %v9139 = vsel %vm855, %v9112, 0
        %9141 = vmatpush.msra.mxu0 0.0
        %9142 = vmatpush.msra.mxu0 0.0
        %9143 = vmatpush.msra.mxu0 0.0
        %9144 = vmatpush.msra.mxu0 0.0
        %9145 = vmatpush.msra.mxu0 0.0
        %9146 = vmatpush.msra.mxu0 0.0
        %9147 = vmatpush.msra.mxu0 0.0
        %9148 = vmatpush.msra.mxu0 0.0
        %9149 = vmatpush.msra.mxu0 0.0
        %9150 = vmatpush.msra.mxu0 0.0
        %9151 = vmatpush.msra.mxu0 0.0
        %9152 = vmatpush.msra.mxu0 0.0
        %9153 = vmatpush.msra.mxu0 %v9139
        %9154 = vmatpush.msra.mxu0 %v9111
        %9155 = vmatpush.msra.mxu0 %v9110
        %9156 = vmatpush.msra.mxu0 %v9109
        %9157 = vmatmul.f32.gmra.mxu0 %v9115
        %v9158 = vpop.f32.mrf.mxu0
        %v9159 = vadd.f32 %v9113, %v9158
        %9160 = vmatmul.f32.gmra.mxu0 %v9118
        %v9161 = vpop.f32.mrf.mxu0
        %v9162 = vadd.f32 %v9113, %v9161
        %9163 = vmatmul.f32.gmra.mxu0 %v9121
        %v9164 = vpop.f32.mrf.mxu0
        %v9165 = vadd.f32 %v9113, %v9164
        %9166 = vmatmul.f32.gmra.mxu0 %v9124
        %v9167 = vpop.f32.mrf.mxu0
        %v9168 = vadd.f32 %v9113, %v9167
        %9169 = vmatmul.f32.gmra.mxu0 %v9127
        %v9170 = vpop.f32.mrf.mxu0
        %v9171 = vadd.f32 %v9113, %v9170
        %9172 = vmatmul.f32.gmra.mxu0 %v9130
        %v9173 = vpop.f32.mrf.mxu0
        %v9174 = vadd.f32 %v9113, %v9173
        %9175 = vmatmul.f32.gmra.mxu0 %v9133
        %v9176 = vpop.f32.mrf.mxu0
        %v9177 = vadd.f32 %v9113, %v9176
        %9178 = vmatmul.f32.gmra.mxu0 %v9136
        %v9179 = vpop.f32.mrf.mxu0
        %v9180 = vadd.f32 %v9113, %v9179
        %9181 = vdwg.mxu0
        %v9182 = vmul.f32 %v9159, 0.5
        %v9183 = vmul.f32 %v9162, 0.5
        %v9184 = vmul.f32 %v9165, 0.5
        %v9185 = vmul.f32 %v9168, 0.5
        %v9186 = vmul.f32 %v9171, 0.5
        %v9187 = vmul.f32 %v9174, 0.5
        %v9188 = vmul.f32 %v9177, 0.5
        %v9189 = vmul.f32 %v9180, 0.5
        %v9190 = vmul.f32 %v9159, 0.044715
        %v9191 = vmul.f32 %v9162, 0.044715
        %v9192 = vmul.f32 %v9165, 0.044715
        %v9193 = vmul.f32 %v9168, 0.044715
        %v9194 = vmul.f32 %v9171, 0.044715
        %v9195 = vmul.f32 %v9174, 0.044715
        %v9196 = vmul.f32 %v9177, 0.044715
        %v9197 = vmul.f32 %v9180, 0.044715
        %v9198 = vmul.f32 %v9190, %v9159
        %v9199 = vmul.f32 %v9191, %v9162
        %v9200 = vmul.f32 %v9192, %v9165
        %v9201 = vmul.f32 %v9193, %v9168
        %v9202 = vmul.f32 %v9194, %v9171
        %v9203 = vmul.f32 %v9195, %v9174
        %v9204 = vmul.f32 %v9196, %v9177
        %v9205 = vmul.f32 %v9197, %v9180
        %v9206 = vmul.f32 %v9198, %v9159
        %v9207 = vmul.f32 %v9199, %v9162
        %v9208 = vmul.f32 %v9200, %v9165
        %v9209 = vmul.f32 %v9201, %v9168
        %v9210 = vmul.f32 %v9202, %v9171
        %v9211 = vmul.f32 %v9203, %v9174
        %v9212 = vmul.f32 %v9204, %v9177
        %v9213 = vmul.f32 %v9205, %v9180
        %v9214 = vadd.f32 %v9159, %v9206
        %v9215 = vadd.f32 %v9162, %v9207
        %v9216 = vadd.f32 %v9165, %v9208
        %v9217 = vadd.f32 %v9168, %v9209
        %v9218 = vadd.f32 %v9171, %v9210
        %v9219 = vadd.f32 %v9174, %v9211
        %v9220 = vadd.f32 %v9177, %v9212
        %v9221 = vadd.f32 %v9180, %v9213
        %v9222 = vmul.f32 %v9214, 0.7978846
        %v9223 = vmul.f32 %v9215, 0.7978846
        %v9224 = vmul.f32 %v9216, 0.7978846
        %v9225 = vmul.f32 %v9217, 0.7978846
        %v9226 = vmul.f32 %v9218, 0.7978846
        %v9227 = vmul.f32 %v9219, 0.7978846
        %v9228 = vmul.f32 %v9220, 0.7978846
        %v9229 = vmul.f32 %v9221, 0.7978846
        %v9230 = vtanh.pop %v9222
        %v9231 = vtanh.pop %v9223
        %v9232 = vtanh.pop %v9224
        %v9233 = vtanh.pop %v9225
        %v9234 = vtanh.pop %v9226
        %v9235 = vtanh.pop %v9227
        %v9236 = vtanh.pop %v9228
        %v9237 = vtanh.pop %v9229
        %v9238 = vadd.f32 %v9230, 1.0
        %v9239 = vadd.f32 %v9231, 1.0
        %v9240 = vadd.f32 %v9232, 1.0
        %v9241 = vadd.f32 %v9233, 1.0
        %v9242 = vadd.f32 %v9234, 1.0
        %v9243 = vadd.f32 %v9235, 1.0
        %v9244 = vadd.f32 %v9236, 1.0
        %v9245 = vadd.f32 %v9237, 1.0
        %v9246 = vmul.f32 %v9182, %v9238
        %v9247 = vmul.f32 %v9183, %v9239
        %v9248 = vmul.f32 %v9184, %v9240
        %v9249 = vmul.f32 %v9185, %v9241
        %v9250 = vmul.f32 %v9186, %v9242
        %v9251 = vmul.f32 %v9187, %v9243
        %v9252 = vmul.f32 %v9188, %v9244
        %v9253 = vmul.f32 %v9189, %v9245
        %v9254 = vld [vmem:[%s1 + $0x21] sm:$0x1]
        %s9255 = scalar_lea.vmem %s5, 112
        %v9256 = vld [vmem:[%s9255] sm:$0xff]
        %v9257 = vld [vmem:[%s9255 + $0x8] sm:$0xff]
        %v9258 = vld [vmem:[%s9255 + $0x10] sm:$0xff]
        %v9259 = vld [vmem:[%s9255 + $0x18] sm:$0xff]
        %v9260 = vld [vmem:[%s9255 + $0x20] sm:$0xff]
        %v9261 = vld [vmem:[%s9255 + $0x28] sm:$0xff]
        %v9262 = vld [vmem:[%s9255 + $0x30] sm:$0x3f]
        %v9263 = vperm.slane %v9254, 0
        %v9265 = vsel %vm3182, %v9246, 0
        %v9268 = vsel %vm3182, %v9247, 0
        %v9271 = vsel %vm3182, %v9248, 0
        %v9274 = vsel %vm3182, %v9249, 0
        %v9277 = vsel %vm3182, %v9250, 0
        %v9280 = vsel %vm3182, %v9251, 0
        %v9283 = vsel %vm3182, %v9252, 0
        %v9286 = vsel %vm3182, %v9253, 0
        %v9289 = vsel %vm3207, %v9262, 0
        %9291 = vmatpush.msra.mxu0 0.0
        %9292 = vmatpush.msra.mxu0 0.0
        %9293 = vmatpush.msra.mxu0 0.0
        %9294 = vmatpush.msra.mxu0 0.0
        %9295 = vmatpush.msra.mxu0 0.0
        %9296 = vmatpush.msra.mxu0 0.0
        %9297 = vmatpush.msra.mxu0 0.0
        %9298 = vmatpush.msra.mxu0 0.0
        %9299 = vmatpush.msra.mxu0 0.0
        %9300 = vmatpush.msra.mxu0 %v9289
        %9301 = vmatpush.msra.mxu0 %v9261
        %9302 = vmatpush.msra.mxu0 %v9260
        %9303 = vmatpush.msra.mxu0 %v9259
        %9304 = vmatpush.msra.mxu0 %v9258
        %9305 = vmatpush.msra.mxu0 %v9257
        %9306 = vmatpush.msra.mxu0 %v9256
        %9307 = vmatmul.f32.gmra.mxu0 %v9265
        %v9308 = vpop.f32.mrf.mxu0
        %v9309 = vadd.f32 %v9263, %v9308
        %9310 = vmatmul.f32.gmra.mxu0 %v9268
        %v9311 = vpop.f32.mrf.mxu0
        %v9312 = vadd.f32 %v9263, %v9311
        %9313 = vmatmul.f32.gmra.mxu0 %v9271
        %v9314 = vpop.f32.mrf.mxu0
        %v9315 = vadd.f32 %v9263, %v9314
        %9316 = vmatmul.f32.gmra.mxu0 %v9274
        %v9317 = vpop.f32.mrf.mxu0
        %v9318 = vadd.f32 %v9263, %v9317
        %9319 = vmatmul.f32.gmra.mxu0 %v9277
        %v9320 = vpop.f32.mrf.mxu0
        %v9321 = vadd.f32 %v9263, %v9320
        %9322 = vmatmul.f32.gmra.mxu0 %v9280
        %v9323 = vpop.f32.mrf.mxu0
        %v9324 = vadd.f32 %v9263, %v9323
        %9325 = vmatmul.f32.gmra.mxu0 %v9283
        %v9326 = vpop.f32.mrf.mxu0
        %v9327 = vadd.f32 %v9263, %v9326
        %9328 = vmatmul.f32.gmra.mxu0 %v9286
        %v9329 = vpop.f32.mrf.mxu0
        %v9330 = vadd.f32 %v9263, %v9329
        %9331 = vdwg.mxu0
        %v9332 = vadd.f32 %v8903, %v9309
        %v9333 = vadd.f32 %v8904, %v9312
        %v9334 = vadd.f32 %v8905, %v9315
        %v9335 = vadd.f32 %v8906, %v9318
        %v9336 = vadd.f32 %v8907, %v9321
        %v9337 = vadd.f32 %v8908, %v9324
        %v9338 = vadd.f32 %v8909, %v9327
        %v9339 = vadd.f32 %v8910, %v9330
        %v9340 = vld [vmem:[%s1 + $0x22] sm:$0x1]
        %v9341 = vld [vmem:[%s1 + $0x23] sm:$0x1]
        %v9342 = vsel %vm417, %v9332, 0.0
        %9343 = vadd.xlane.f32.xlu0 %v9342
        %v9344 = vpop.xlane.xlu0 %9343
        %v9345 = vsel %vm417, %v9333, 0.0
        %9346 = vadd.xlane.f32.xlu0 %v9345
        %v9347 = vpop.xlane.xlu0 %9346
        %v9348 = vsel %vm417, %v9334, 0.0
        %9349 = vadd.xlane.f32.xlu0 %v9348
        %v9350 = vpop.xlane.xlu0 %9349
        %v9351 = vsel %vm417, %v9335, 0.0
        %9352 = vadd.xlane.f32.xlu0 %v9351
        %v9353 = vpop.xlane.xlu0 %9352
        %v9354 = vsel %vm417, %v9336, 0.0
        %9355 = vadd.xlane.f32.xlu0 %v9354
        %v9356 = vpop.xlane.xlu0 %9355
        %v9357 = vsel %vm417, %v9337, 0.0
        %9358 = vadd.xlane.f32.xlu0 %v9357
        %v9359 = vpop.xlane.xlu0 %9358
        %v9360 = vsel %vm417, %v9338, 0.0
        %9361 = vadd.xlane.f32.xlu0 %v9360
        %v9362 = vpop.xlane.xlu0 %9361
        %v9363 = vsel %vm417, %v9339, 0.0
        %9364 = vadd.xlane.f32.xlu0 %v9363
        %v9365 = vpop.xlane.xlu0 %9364
        %v9366 = vmul.f32 %v9344, %v448
        %v9367 = vmul.f32 %v9347, %v448
        %v9368 = vmul.f32 %v9350, %v448
        %v9369 = vmul.f32 %v9353, %v448
        %v9370 = vmul.f32 %v9356, %v448
        %v9371 = vmul.f32 %v9359, %v448
        %v9372 = vmul.f32 %v9362, %v448
        %v9373 = vmul.f32 %v9365, %v448
        %v9374 = vsub.f32 %v9332, %v9366
        %v9375 = vsub.f32 %v9333, %v9367
        %v9376 = vsub.f32 %v9334, %v9368
        %v9377 = vsub.f32 %v9335, %v9369
        %v9378 = vsub.f32 %v9336, %v9370
        %v9379 = vsub.f32 %v9337, %v9371
        %v9380 = vsub.f32 %v9338, %v9372
        %v9381 = vsub.f32 %v9339, %v9373
        %v9382 = vmul.f32 %v9374, %v9374
        %v9383 = vmul.f32 %v9375, %v9375
        %v9384 = vmul.f32 %v9376, %v9376
        %v9385 = vmul.f32 %v9377, %v9377
        %v9386 = vmul.f32 %v9378, %v9378
        %v9387 = vmul.f32 %v9379, %v9379
        %v9388 = vmul.f32 %v9380, %v9380
        %v9389 = vmul.f32 %v9381, %v9381
        %v9390 = vsel %vm417, %v9382, 0.0
        %9391 = vadd.xlane.f32.xlu0 %v9390
        %v9392 = vpop.xlane.xlu0 %9391
        %v9393 = vsel %vm417, %v9383, 0.0
        %9394 = vadd.xlane.f32.xlu0 %v9393
        %v9395 = vpop.xlane.xlu0 %9394
        %v9396 = vsel %vm417, %v9384, 0.0
        %9397 = vadd.xlane.f32.xlu0 %v9396
        %v9398 = vpop.xlane.xlu0 %9397
        %v9399 = vsel %vm417, %v9385, 0.0
        %9400 = vadd.xlane.f32.xlu0 %v9399
        %v9401 = vpop.xlane.xlu0 %9400
        %v9402 = vsel %vm417, %v9386, 0.0
        %9403 = vadd.xlane.f32.xlu0 %v9402
        %v9404 = vpop.xlane.xlu0 %9403
        %v9405 = vsel %vm417, %v9387, 0.0
        %9406 = vadd.xlane.f32.xlu0 %v9405
        %v9407 = vpop.xlane.xlu0 %9406
        %v9408 = vsel %vm417, %v9388, 0.0
        %9409 = vadd.xlane.f32.xlu0 %v9408
        %v9410 = vpop.xlane.xlu0 %9409
        %v9411 = vsel %vm417, %v9389, 0.0
        %9412 = vadd.xlane.f32.xlu0 %v9411
        %v9413 = vpop.xlane.xlu0 %9412
        %v9414 = vmul.f32 %v9392, %v448
        %v9415 = vmul.f32 %v9395, %v448
        %v9416 = vmul.f32 %v9398, %v448
        %v9417 = vmul.f32 %v9401, %v448
        %v9418 = vmul.f32 %v9404, %v448
        %v9419 = vmul.f32 %v9407, %v448
        %v9420 = vmul.f32 %v9410, %v448
        %v9421 = vmul.f32 %v9413, %v448
        %v9422 = vadd.f32 %v9414, 1e-06
        %v9423 = vadd.f32 %v9415, 1e-06
        %v9424 = vadd.f32 %v9416, 1e-06
        %v9425 = vadd.f32 %v9417, 1e-06
        %v9426 = vadd.f32 %v9418, 1e-06
        %v9427 = vadd.f32 %v9419, 1e-06
        %v9428 = vadd.f32 %v9420, 1e-06
        %v9429 = vadd.f32 %v9421, 1e-06
        %v9430 = vrsqrt.pop %v9422
        %v9431 = vmul.f32 %v9430, %v9422
        %v9432 = vmul.f32 %v9431, %v9430
        %v9433 = vmul.f32 0.5, %v9432
        %v9434 = vsub.f32 1.5, %v9433
        %v9435 = vmul.f32 %v9430, %v9434
        %vm9436 = vweird.f32 %v9422
        %vm9437 = vweird.f32 %v9430
        %vm9438 = vmor %vm9436, %vm9437
        %v9439 = vsel %vm9438, %v9430, %v9435
        %v9440 = vrsqrt.pop %v9423
        %v9441 = vmul.f32 %v9440, %v9423
        %v9442 = vmul.f32 %v9441, %v9440
        %v9443 = vmul.f32 0.5, %v9442
        %v9444 = vsub.f32 1.5, %v9443
        %v9445 = vmul.f32 %v9440, %v9444
        %vm9446 = vweird.f32 %v9423
        %vm9447 = vweird.f32 %v9440
        %vm9448 = vmor %vm9446, %vm9447
        %v9449 = vsel %vm9448, %v9440, %v9445
        %v9450 = vrsqrt.pop %v9424
        %v9451 = vmul.f32 %v9450, %v9424
        %v9452 = vmul.f32 %v9451, %v9450
        %v9453 = vmul.f32 0.5, %v9452
        %v9454 = vsub.f32 1.5, %v9453
        %v9455 = vmul.f32 %v9450, %v9454
        %vm9456 = vweird.f32 %v9424
        %vm9457 = vweird.f32 %v9450
        %vm9458 = vmor %vm9456, %vm9457
        %v9459 = vsel %vm9458, %v9450, %v9455
        %v9460 = vrsqrt.pop %v9425
        %v9461 = vmul.f32 %v9460, %v9425
        %v9462 = vmul.f32 %v9461, %v9460
        %v9463 = vmul.f32 0.5, %v9462
        %v9464 = vsub.f32 1.5, %v9463
        %v9465 = vmul.f32 %v9460, %v9464
        %vm9466 = vweird.f32 %v9425
        %vm9467 = vweird.f32 %v9460
        %vm9468 = vmor %vm9466, %vm9467
        %v9469 = vsel %vm9468, %v9460, %v9465
        %v9470 = vrsqrt.pop %v9426
        %v9471 = vmul.f32 %v9470, %v9426
        %v9472 = vmul.f32 %v9471, %v9470
        %v9473 = vmul.f32 0.5, %v9472
        %v9474 = vsub.f32 1.5, %v9473
        %v9475 = vmul.f32 %v9470, %v9474
        %vm9476 = vweird.f32 %v9426
        %vm9477 = vweird.f32 %v9470
        %vm9478 = vmor %vm9476, %vm9477
        %v9479 = vsel %vm9478, %v9470, %v9475
        %v9480 = vrsqrt.pop %v9427
        %v9481 = vmul.f32 %v9480, %v9427
        %v9482 = vmul.f32 %v9481, %v9480
        %v9483 = vmul.f32 0.5, %v9482
        %v9484 = vsub.f32 1.5, %v9483
        %v9485 = vmul.f32 %v9480, %v9484
        %vm9486 = vweird.f32 %v9427
        %vm9487 = vweird.f32 %v9480
        %vm9488 = vmor %vm9486, %vm9487
        %v9489 = vsel %vm9488, %v9480, %v9485
        %v9490 = vrsqrt.pop %v9428
        %v9491 = vmul.f32 %v9490, %v9428
        %v9492 = vmul.f32 %v9491, %v9490
        %v9493 = vmul.f32 0.5, %v9492
        %v9494 = vsub.f32 1.5, %v9493
        %v9495 = vmul.f32 %v9490, %v9494
        %vm9496 = vweird.f32 %v9428
        %vm9497 = vweird.f32 %v9490
        %vm9498 = vmor %vm9496, %vm9497
        %v9499 = vsel %vm9498, %v9490, %v9495
        %v9500 = vrsqrt.pop %v9429
        %v9501 = vmul.f32 %v9500, %v9429
        %v9502 = vmul.f32 %v9501, %v9500
        %v9503 = vmul.f32 0.5, %v9502
        %v9504 = vsub.f32 1.5, %v9503
        %v9505 = vmul.f32 %v9500, %v9504
        %vm9506 = vweird.f32 %v9429
        %vm9507 = vweird.f32 %v9500
        %vm9508 = vmor %vm9506, %vm9507
        %v9509 = vsel %vm9508, %v9500, %v9505
        %v9510 = vmul.f32 %v9374, %v9439
        %v9511 = vmul.f32 %v9375, %v9449
        %v9512 = vmul.f32 %v9376, %v9459
        %v9513 = vmul.f32 %v9377, %v9469
        %v9514 = vmul.f32 %v9378, %v9479
        %v9515 = vmul.f32 %v9379, %v9489
        %v9516 = vmul.f32 %v9380, %v9499
        %v9517 = vmul.f32 %v9381, %v9509
        %v9518 = vperm.slane %v9340, 0
        %v9519 = vmul.f32 %v9510, %v9518
        %v9520 = vmul.f32 %v9511, %v9518
        %v9521 = vmul.f32 %v9512, %v9518
        %v9522 = vmul.f32 %v9513, %v9518
        %v9523 = vmul.f32 %v9514, %v9518
        %v9524 = vmul.f32 %v9515, %v9518
        %v9525 = vmul.f32 %v9516, %v9518
        %v9526 = vmul.f32 %v9517, %v9518
        %v9527 = vperm.slane %v9341, 0
        %v9528 = vadd.f32 %v9519, %v9527
        %v9529 = vadd.f32 %v9520, %v9527
        %v9530 = vadd.f32 %v9521, %v9527
        %v9531 = vadd.f32 %v9522, %v9527
        %v9532 = vadd.f32 %v9523, %v9527
        %v9533 = vadd.f32 %v9524, %v9527
        %v9534 = vadd.f32 %v9525, %v9527
        %v9535 = vadd.f32 %v9526, %v9527
        %v9536 = vadd.f32 %v6496, %v9528
        %v9537 = vadd.f32 %v6497, %v9529
        %v9538 = vadd.f32 %v6498, %v9530
        %v9539 = vadd.f32 %v6499, %v9531
        %v9540 = vadd.f32 %v6500, %v9532
        %v9541 = vadd.f32 %v6501, %v9533
        %v9542 = vadd.f32 %v6502, %v9534
        %v9543 = vadd.f32 %v6503, %v9535
        %v9544 = vld [vmem:[%s7] sm:$0xff]
        %v9545 = vld [vmem:[%s7 + $0x8] sm:$0xff]
        %v9546 = vld [vmem:[%s7 + $0x10] sm:$0xff]
        %v9547 = vld [vmem:[%s7 + $0x18] sm:$0xff]
        %v9548 = vld [vmem:[%s7 + $0x20] sm:$0xff]
        %v9549 = vld [vmem:[%s7 + $0x28] sm:$0xff]
        %v9550 = vld [vmem:[%s8] sm:$0x1]
        %9551 = vxpose.xlu0.b32.start [1/16] %v3456, 128
        %9552 = vxpose.xlu0.b32.cont [2/16] %v3457, 128
        %9553 = vxpose.xlu0.b32.cont [3/16] %v6496, 128
        %9554 = vxpose.xlu0.b32.cont [4/16] %v6497, 128
        %9555 = vxpose.xlu0.b32.cont [5/16] %v9536, 128
        %9556 = vxpose.xlu0.b32.cont [6/16] %v9537, 128
        %9557 = vxpose.xlu0.b32.cont [7/16] 0.0, 128
        %9558 = vxpose.xlu0.b32.cont [8/16] 0.0, 128
        %9559 = vxpose.xlu0.b32.cont [9/16] 0.0, 128
        %9560 = vxpose.xlu0.b32.cont [10/16] 0.0, 128
        %9561 = vxpose.xlu0.b32.cont [11/16] 0.0, 128
        %9562 = vxpose.xlu0.b32.cont [12/16] 0.0, 128
        %9563 = vxpose.xlu0.b32.cont [13/16] 0.0, 128
        %9564 = vxpose.xlu0.b32.cont [14/16] 0.0, 128
        %9565 = vxpose.xlu0.b32.cont [15/16] 0.0, 128
        %9566 = vxpose.xlu0.b32.end [16/16] 0.0, 128
        %v9567 = vpop.trf.xlu0
        %v9568 = vpop.trf.xlu0
        %v9569 = vpop.trf.xlu0
        %v9570 = vpop.trf.xlu0
        %v9571 = vpop.trf.xlu0
        %v9572 = vpop.trf.xlu0
        %v9573 = vpop.trf.xlu0
        %v9574 = vpop.trf.xlu0
        %v9575 = vpop.trf.xlu0
        %v9576 = vpop.trf.xlu0
        %v9577 = vpop.trf.xlu0
        %v9578 = vpop.trf.xlu0
        %v9579 = vpop.trf.xlu0
        %v9580 = vpop.trf.xlu0
        %v9581 = vpop.trf.xlu0
        %v9582 = vpop.trf.xlu0
        %v9584 = vperm.slane %v9550, 0
        %vm9586 = vcmask 392192
        %v9588 = vsel %vm9586, %v9567, 0
        %v9591 = vsel %vm9586, %v9568, 0
        %v9594 = vsel %vm9586, %v9569, 0
        %v9597 = vsel %vm9586, %v9570, 0
        %9599 = vmatpush.msra.mxu0 0.0
        %9600 = vmatpush.msra.mxu0 0.0
        %9601 = vmatpush.msra.mxu0 0.0
        %9602 = vmatpush.msra.mxu0 0.0
        %9603 = vmatpush.msra.mxu0 0.0
        %9604 = vmatpush.msra.mxu0 0.0
        %9605 = vmatpush.msra.mxu0 0.0
        %9606 = vmatpush.msra.mxu0 0.0
        %9607 = vmatpush.msra.mxu0 0.0
        %9608 = vmatpush.msra.mxu0 0.0
        %9609 = vmatpush.msra.mxu0 %v9549
        %9610 = vmatpush.msra.mxu0 %v9548
        %9611 = vmatpush.msra.mxu0 %v9547
        %9612 = vmatpush.msra.mxu0 %v9546
        %9613 = vmatpush.msra.mxu0 %v9545
        %9614 = vmatpush.msra.mxu0 %v9544
        %9615 = vmatmul.f32.gmra.mxu0 %v9588
        %v9616 = vpop.f32.mrf.mxu0
        %v9617 = vadd.f32 %v9584, %v9616
        %9618 = vmatmul.f32.gmra.mxu0 %v9591
        %v9619 = vpop.f32.mrf.mxu0
        %v9620 = vadd.f32 %v9584, %v9619
        %9621 = vmatmul.f32.gmra.mxu0 %v9594
        %v9622 = vpop.f32.mrf.mxu0
        %v9623 = vadd.f32 %v9584, %v9622
        %9624 = vmatmul.f32.gmra.mxu0 %v9597
        %v9625 = vpop.f32.mrf.mxu0
        %v9626 = vadd.f32 %v9584, %v9625
        %9627 = vdwg.mxu0
        %v9628 = vmax.f32 %v9617, 0.0
        %v9629 = vmax.f32 %v9620, 0.0
        %v9630 = vmax.f32 %v9623, 0.0
        %v9631 = vmax.f32 %v9626, 0.0
        %9632 = vst [vmem:[%s358] sm:$0xff] %v9628
        %9633 = vst [vmem:[%s358 + $0x8] sm:$0xff] %v9629
        %9634 = vst [vmem:[%s358 + $0x10] sm:$0xff] %v9630
        %9635 = vst [vmem:[%s358 + $0x18] sm:$0x7] %v9631
        %9636 = vxpose.xlu0.b32.start [1/16] %v3458, 128
        %9637 = vxpose.xlu0.b32.cont [2/16] %v3459, 128
        %9638 = vxpose.xlu0.b32.cont [3/16] %v6498, 128
        %9639 = vxpose.xlu0.b32.cont [4/16] %v6499, 128
        %9640 = vxpose.xlu0.b32.cont [5/16] %v9538, 128
        %9641 = vxpose.xlu0.b32.cont [6/16] %v9539, 128
        %9642 = vxpose.xlu0.b32.cont [7/16] 0.0, 128
        %9643 = vxpose.xlu0.b32.cont [8/16] 0.0, 128
        %9644 = vxpose.xlu0.b32.cont [9/16] 0.0, 128
        %9645 = vxpose.xlu0.b32.cont [10/16] 0.0, 128
        %9646 = vxpose.xlu0.b32.cont [11/16] 0.0, 128
        %9647 = vxpose.xlu0.b32.cont [12/16] 0.0, 128
        %9648 = vxpose.xlu0.b32.cont [13/16] 0.0, 128
        %9649 = vxpose.xlu0.b32.cont [14/16] 0.0, 128
        %9650 = vxpose.xlu0.b32.cont [15/16] 0.0, 128
        %9651 = vxpose.xlu0.b32.end [16/16] 0.0, 128
        %v9652 = vpop.trf.xlu0
        %v9653 = vpop.trf.xlu0
        %v9654 = vpop.trf.xlu0
        %v9655 = vpop.trf.xlu0
        %v9656 = vpop.trf.xlu0
        %v9657 = vpop.trf.xlu0
        %v9658 = vpop.trf.xlu0
        %v9659 = vpop.trf.xlu0
        %v9660 = vpop.trf.xlu0
        %v9661 = vpop.trf.xlu0
        %v9662 = vpop.trf.xlu0
        %v9663 = vpop.trf.xlu0
        %v9664 = vpop.trf.xlu0
        %v9665 = vpop.trf.xlu0
        %v9666 = vpop.trf.xlu0
        %v9667 = vpop.trf.xlu0
        %v9669 = vsel %vm9586, %v9652, 0
        %v9672 = vsel %vm9586, %v9653, 0
        %v9675 = vsel %vm9586, %v9654, 0
        %v9678 = vsel %vm9586, %v9655, 0
        %9680 = vmatpush.msra.mxu0 0.0
        %9681 = vmatpush.msra.mxu0 0.0
        %9682 = vmatpush.msra.mxu0 0.0
        %9683 = vmatpush.msra.mxu0 0.0
        %9684 = vmatpush.msra.mxu0 0.0
        %9685 = vmatpush.msra.mxu0 0.0
        %9686 = vmatpush.msra.mxu0 0.0
        %9687 = vmatpush.msra.mxu0 0.0
        %9688 = vmatpush.msra.mxu0 0.0
        %9689 = vmatpush.msra.mxu0 0.0
        %9690 = vmatpush.msra.mxu0 %v9549
        %9691 = vmatpush.msra.mxu0 %v9548
        %9692 = vmatpush.msra.mxu0 %v9547
        %9693 = vmatpush.msra.mxu0 %v9546
        %9694 = vmatpush.msra.mxu0 %v9545
        %9695 = vmatpush.msra.mxu0 %v9544
        %9696 = vmatmul.f32.gmra.mxu0 %v9669
        %v9697 = vpop.f32.mrf.mxu0
        %v9698 = vadd.f32 %v9584, %v9697
        %9699 = vmatmul.f32.gmra.mxu0 %v9672
        %v9700 = vpop.f32.mrf.mxu0
        %v9701 = vadd.f32 %v9584, %v9700
        %9702 = vmatmul.f32.gmra.mxu0 %v9675
        %v9703 = vpop.f32.mrf.mxu0
        %v9704 = vadd.f32 %v9584, %v9703
        %9705 = vmatmul.f32.gmra.mxu0 %v9678
        %v9706 = vpop.f32.mrf.mxu0
        %v9707 = vadd.f32 %v9584, %v9706
        %9708 = vdwg.mxu0
        %v9709 = vmax.f32 %v9698, 0.0
        %v9710 = vmax.f32 %v9701, 0.0
        %v9711 = vmax.f32 %v9704, 0.0
        %v9712 = vmax.f32 %v9707, 0.0
        %s9713 = scalar_lea.vmem %s358, 32
        %9714 = vst [vmem:[%s9713] sm:$0xff] %v9709
        %9715 = vst [vmem:[%s9713 + $0x8] sm:$0xff] %v9710
        %9716 = vst [vmem:[%s9713 + $0x10] sm:$0xff] %v9711
        %9717 = vst [vmem:[%s9713 + $0x18] sm:$0x7] %v9712
        %9718 = vxpose.xlu0.b32.start [1/16] %v3460, 128
        %9719 = vxpose.xlu0.b32.cont [2/16] %v3461, 128
        %9720 = vxpose.xlu0.b32.cont [3/16] %v6500, 128
        %9721 = vxpose.xlu0.b32.cont [4/16] %v6501, 128
        %9722 = vxpose.xlu0.b32.cont [5/16] %v9540, 128
        %9723 = vxpose.xlu0.b32.cont [6/16] %v9541, 128
        %9724 = vxpose.xlu0.b32.cont [7/16] 0.0, 128
        %9725 = vxpose.xlu0.b32.cont [8/16] 0.0, 128
        %9726 = vxpose.xlu0.b32.cont [9/16] 0.0, 128
        %9727 = vxpose.xlu0.b32.cont [10/16] 0.0, 128
        %9728 = vxpose.xlu0.b32.cont [11/16] 0.0, 128
        %9729 = vxpose.xlu0.b32.cont [12/16] 0.0, 128
        %9730 = vxpose.xlu0.b32.cont [13/16] 0.0, 128
        %9731 = vxpose.xlu0.b32.cont [14/16] 0.0, 128
        %9732 = vxpose.xlu0.b32.cont [15/16] 0.0, 128
        %9733 = vxpose.xlu0.b32.end [16/16] 0.0, 128
        %v9734 = vpop.trf.xlu0
        %v9735 = vpop.trf.xlu0
        %v9736 = vpop.trf.xlu0
        %v9737 = vpop.trf.xlu0
        %v9738 = vpop.trf.xlu0
        %v9739 = vpop.trf.xlu0
        %v9740 = vpop.trf.xlu0
        %v9741 = vpop.trf.xlu0
        %v9742 = vpop.trf.xlu0
        %v9743 = vpop.trf.xlu0
        %v9744 = vpop.trf.xlu0
        %v9745 = vpop.trf.xlu0
        %v9746 = vpop.trf.xlu0
        %v9747 = vpop.trf.xlu0
        %v9748 = vpop.trf.xlu0
        %v9749 = vpop.trf.xlu0
        %v9751 = vsel %vm9586, %v9734, 0
        %v9754 = vsel %vm9586, %v9735, 0
        %v9757 = vsel %vm9586, %v9736, 0
        %v9760 = vsel %vm9586, %v9737, 0
        %9762 = vmatpush.msra.mxu0 0.0
        %9763 = vmatpush.msra.mxu0 0.0
        %9764 = vmatpush.msra.mxu0 0.0
        %9765 = vmatpush.msra.mxu0 0.0
        %9766 = vmatpush.msra.mxu0 0.0
        %9767 = vmatpush.msra.mxu0 0.0
        %9768 = vmatpush.msra.mxu0 0.0
        %9769 = vmatpush.msra.mxu0 0.0
        %9770 = vmatpush.msra.mxu0 0.0
        %9771 = vmatpush.msra.mxu0 0.0
        %9772 = vmatpush.msra.mxu0 %v9549
        %9773 = vmatpush.msra.mxu0 %v9548
        %9774 = vmatpush.msra.mxu0 %v9547
        %9775 = vmatpush.msra.mxu0 %v9546
        %9776 = vmatpush.msra.mxu0 %v9545
        %9777 = vmatpush.msra.mxu0 %v9544
        %9778 = vmatmul.f32.gmra.mxu0 %v9751
        %v9779 = vpop.f32.mrf.mxu0
        %v9780 = vadd.f32 %v9584, %v9779
        %9781 = vmatmul.f32.gmra.mxu0 %v9754
        %v9782 = vpop.f32.mrf.mxu0
        %v9783 = vadd.f32 %v9584, %v9782
        %9784 = vmatmul.f32.gmra.mxu0 %v9757
        %v9785 = vpop.f32.mrf.mxu0
        %v9786 = vadd.f32 %v9584, %v9785
        %9787 = vmatmul.f32.gmra.mxu0 %v9760
        %v9788 = vpop.f32.mrf.mxu0
        %v9789 = vadd.f32 %v9584, %v9788
        %9790 = vdwg.mxu0
        %v9791 = vmax.f32 %v9780, 0.0
        %v9792 = vmax.f32 %v9783, 0.0
        %v9793 = vmax.f32 %v9786, 0.0
        %v9794 = vmax.f32 %v9789, 0.0
        %s9795 = scalar_lea.vmem %s358, 64
        %9796 = vst [vmem:[%s9795] sm:$0xff] %v9791
        %9797 = vst [vmem:[%s9795 + $0x8] sm:$0xff] %v9792
        %9798 = vst [vmem:[%s9795 + $0x10] sm:$0xff] %v9793
        %9799 = vst [vmem:[%s9795 + $0x18] sm:$0x7] %v9794
        %9800 = vxpose.xlu0.b32.start [1/16] %v3462, 128
        %9801 = vxpose.xlu0.b32.cont [2/16] %v3463, 128
        %9802 = vxpose.xlu0.b32.cont [3/16] %v6502, 128
        %9803 = vxpose.xlu0.b32.cont [4/16] %v6503, 128
        %9804 = vxpose.xlu0.b32.cont [5/16] %v9542, 128
        %9805 = vxpose.xlu0.b32.cont [6/16] %v9543, 128
        %9806 = vxpose.xlu0.b32.cont [7/16] 0.0, 128
        %9807 = vxpose.xlu0.b32.cont [8/16] 0.0, 128
        %9808 = vxpose.xlu0.b32.cont [9/16] 0.0, 128
        %9809 = vxpose.xlu0.b32.cont [10/16] 0.0, 128
        %9810 = vxpose.xlu0.b32.cont [11/16] 0.0, 128
        %9811 = vxpose.xlu0.b32.cont [12/16] 0.0, 128
        %9812 = vxpose.xlu0.b32.cont [13/16] 0.0, 128
        %9813 = vxpose.xlu0.b32.cont [14/16] 0.0, 128
        %9814 = vxpose.xlu0.b32.cont [15/16] 0.0, 128
        %9815 = vxpose.xlu0.b32.end [16/16] 0.0, 128
        %v9816 = vpop.trf.xlu0
        %v9817 = vpop.trf.xlu0
        %v9818 = vpop.trf.xlu0
        %v9819 = vpop.trf.xlu0
        %v9820 = vpop.trf.xlu0
        %v9821 = vpop.trf.xlu0
        %v9822 = vpop.trf.xlu0
        %v9823 = vpop.trf.xlu0
        %v9824 = vpop.trf.xlu0
        %v9825 = vpop.trf.xlu0
        %v9826 = vpop.trf.xlu0
        %v9827 = vpop.trf.xlu0
        %v9828 = vpop.trf.xlu0
        %v9829 = vpop.trf.xlu0
        %v9830 = vpop.trf.xlu0
        %v9831 = vpop.trf.xlu0
        %v9833 = vsel %vm9586, %v9816, 0
        %v9836 = vsel %vm9586, %v9817, 0
        %v9839 = vsel %vm9586, %v9818, 0
        %v9842 = vsel %vm9586, %v9819, 0
        %9844 = vmatpush.msra.mxu0 0.0
        %9845 = vmatpush.msra.mxu0 0.0
        %9846 = vmatpush.msra.mxu0 0.0
        %9847 = vmatpush.msra.mxu0 0.0
        %9848 = vmatpush.msra.mxu0 0.0
        %9849 = vmatpush.msra.mxu0 0.0
        %9850 = vmatpush.msra.mxu0 0.0
        %9851 = vmatpush.msra.mxu0 0.0
        %9852 = vmatpush.msra.mxu0 0.0
        %9853 = vmatpush.msra.mxu0 0.0
        %9854 = vmatpush.msra.mxu0 %v9549
        %9855 = vmatpush.msra.mxu0 %v9548
        %9856 = vmatpush.msra.mxu0 %v9547
        %9857 = vmatpush.msra.mxu0 %v9546
        %9858 = vmatpush.msra.mxu0 %v9545
        %9859 = vmatpush.msra.mxu0 %v9544
        %9860 = vmatmul.f32.gmra.mxu0 %v9833
        %v9861 = vpop.f32.mrf.mxu0
        %v9862 = vadd.f32 %v9584, %v9861
        %9863 = vmatmul.f32.gmra.mxu0 %v9836
        %v9864 = vpop.f32.mrf.mxu0
        %v9865 = vadd.f32 %v9584, %v9864
        %9866 = vmatmul.f32.gmra.mxu0 %v9839
        %v9867 = vpop.f32.mrf.mxu0
        %v9868 = vadd.f32 %v9584, %v9867
        %9869 = vmatmul.f32.gmra.mxu0 %v9842
        %v9870 = vpop.f32.mrf.mxu0
        %v9871 = vadd.f32 %v9584, %v9870
        %9872 = vdwg.mxu0
        %v9873 = vmax.f32 %v9862, 0.0
        %v9874 = vmax.f32 %v9865, 0.0
        %v9875 = vmax.f32 %v9868, 0.0
        %v9876 = vmax.f32 %v9871, 0.0
        %s9877 = scalar_lea.vmem %s358, 96
        %9878 = vst [vmem:[%s9877] sm:$0xff] %v9873
        %9879 = vst [vmem:[%s9877 + $0x8] sm:$0xff] %v9874
        %9880 = vst [vmem:[%s9877 + $0x10] sm:$0xff] %v9875
        %9881 = vst [vmem:[%s9877 + $0x18] sm:$0x7] %v9876
        %s9882 = smul.u32 4, %s23
        %p9883 = scmp.lt.s32.totalorder %s9882, 7
        %s9884 = scalar_select %p9883, %s9882, 7
        %s9885 = smul.addr %s9884, 4
        %s9886 = smul.addr %s9885, 8
        %s9887 = scalar_lea.vmem %s9, %s9886
        // Predicated region
        $region61: #{_lambda_.1} parent=55 // pred_check
          %p9888 = pneg %p235
        $region62: #{_lambda_.1} parent=55 // pred_check_branch
          %9890 = sbr.rel (%p9888) target = $region64
        $region63: #{_lambda_.1} parent=55 // pred_region
          %s9891 = smul.u32 4, %s23
        $region64: #{_lambda_.1} parent=55 // pred_fallthru
          _
      $region56: #{_lambda_.1} parent=5 // pred_fallthru
        _
      %p9892 = scmp.le.s32.totalorder 2, %s18
      // Predicated region
      $region65: #{_lambda_.1} parent=5 // pred_check
        %p9893 = pneg %p9892
      $region66: #{_lambda_.1} parent=5 // pred_check_branch
        %9895 = sbr.rel (%p9893) target = $region68
      $region67: #{_lambda_.1} parent=5 // pred_region
        %s9896 = ssub.s32 %s18, 2
        // Predicated region
        $region69: #{_lambda_.1} parent=67 // pred_check
          %p9897 = pneg %p241
        $region70: #{_lambda_.1} parent=67 // pred_check_branch
          %9899 = sbr.rel (%p9897) target = $region72
        $region71: #{_lambda_.1} parent=67 // pred_region
          %s9900 = smul.u32 4, %s24
          %p9901 = scmp.lt.s32.totalorder %s9900, 7
          %s9902 = scalar_select %p9901, %s9900, 7
          %s9903 = smul.addr %s9902, 4
          %s9904 = smul.addr %s9903, 8
          %s9905 = scalar_lea.vmem %s9, %s9904
        $region72: #{_lambda_.1} parent=67 // pred_fallthru
          _
      $region68: #{_lambda_.1} parent=5 // pred_fallthru
        _
    $region6: #{_lambda_.1} parent=1 // loop_footer
      %s22 = sadd.s32 1, %s18
    $region7: #{_lambda_.1} parent=1 // loop_footer_branch
      %17 = sbr.rel target = $region3
    $region8: #{_lambda_.1} parent=1 // loop_exit
      _
    %9906 = vsyncpa [#allocation3], 1
    %s9907 = scalar_lea.sflag [#allocation3], 1
    %9908 = vsyncpa %s9907, 1

</llo_original>
